<compile_context>
chip_gen: v7x
topology: tpu7x:2x2x1
jax: 0.10.0
libtpu: 0.0.40
codegen_flags: <defaults>
</compile_context>

<pallas_src>
import functools

import jax
import jax.numpy as jnp
from jax import lax
from jax.experimental import pallas as pl
from jax.experimental.pallas import tpu as pltpu

# ---- padded sizes (lane-friendly) ----
K1P = 32      # conv1 im2col K   (25  -> 32)
C1P = 32      # conv1 channels   (20  -> 32)
C2P = 64      # conv2 channels   (50  -> 64)
FC1P = 512    # fc1 outputs      (500 -> 512)
NCLS = 128    # classes          (10  -> 128), lane-dense final store
P1R = 152     # pool1 scratch rows: 144 valid + 8 zero pad (max tap read = row 147)
Z2R = 96      # conv2 rows computed: oh in 0..7 over 12 cols (covers every pooled read)


# ------------------------------ fused kernel -------------------------------

def make_net_kernel(bt):
    """Kernel processing `bt` images per grid step."""

    def net_kernel(pat_ref, w1_ref, b1_ref, w2_ref, b2_ref,
                   wf1_ref, bf1_ref, wf2_ref, bf2_ref,
                   out_ref, p1_scr, z_scr, p2_scr):
        f32 = jnp.float32

        # ---- conv1: single im2col matmul over the whole batch tile.
        pat = pat_ref[...].reshape(bt * 576, K1P)
        y = jnp.dot(pat, w1_ref[...], preferred_element_type=f32)    # (bt*576, C1P)

        # ---- maxpool1 fused: per image, rows are pool-corner-major (4 x 144).
        # max(relu(x+b)) == relu(max(x)+b), so bias/relu run on the pooled map.
        y = y.reshape(bt, 4, 144, C1P)
        m = jnp.maximum(jnp.maximum(y[:, 0], y[:, 1]),
                        jnp.maximum(y[:, 2], y[:, 3]))                # (bt,144,C1P)
        p1 = jnp.maximum(m.reshape(bt * 144, C1P) + b1_ref[...], 0.0)
        p1_scr[:, 0:144, :] = p1.reshape(bt, 144, C1P)
        p1_scr[:, 144:P1R, :] = jnp.zeros((bt, P1R - 144, C1P), f32)  # finite pad

        # ---- conv2: in-kernel im2col as 25 shifted-row tap matmuls, batched.
        # Output row r = oh*12 + ow (oh<8); valid rows (ow<8) never read pad.
        acc = None
        for kh in range(5):
            for kw in range(5):
                t = kh * 5 + kw
                off = kh * 12 + kw
                slab = p1_scr[:, off:off + Z2R, :].reshape(bt * Z2R, C1P)
                d = jnp.dot(slab, w2_ref[t], preferred_element_type=f32)
                acc = d if acc is None else acc + d                   # (bt*Z2R, C2P)
        z_scr[...] = acc.reshape(bt, Z2R, C2P)

        # ---- maxpool2 + bias/relu + PyTorch NCHW flatten, written straight
        # into the fc1 LHS: lane block [s*C2P,(s+1)*C2P) holds pooled pixel s.
        for a in range(4):
            for b in range(4):
                r = 24 * a + 2 * b
                mm = jnp.maximum(
                    jnp.maximum(z_scr[:, r:r + 1, :], z_scr[:, r + 1:r + 2, :]),
                    jnp.maximum(z_scr[:, r + 12:r + 13, :], z_scr[:, r + 13:r + 14, :]))
                s = a * 4 + b
                p2_scr[:, s * C2P:(s + 1) * C2P] = jnp.maximum(
                    mm.reshape(bt, C2P) + b2_ref[...], 0.0)

        # ---- fc1 + relu, fc2, masked log_softmax (lanes >= 10 are padding).
        h = jnp.dot(p2_scr[...], wf1_ref[...], preferred_element_type=f32)
        h = jnp.maximum(h + bf1_ref[...], 0.0)                        # (bt, FC1P)
        logits = jnp.dot(h, wf2_ref[...], preferred_element_type=f32) + bf2_ref[...]
        lane = lax.broadcasted_iota(jnp.int32, (bt, NCLS), 1)
        valid = lane < 10
        masked = jnp.where(valid, logits, jnp.float32(-1e30))
        mx = jnp.max(masked, axis=-1, keepdims=True)
        zc = logits - mx
        ez = jnp.where(valid, jnp.exp(zc), 0.0)
        lse = jnp.log(jnp.sum(ez, axis=-1, keepdims=True))
        out_ref[...] = jnp.where(valid, zc - lse, 0.0)                # (bt, NCLS)

    return net_kernel


# --------------------------- host-side preparation --------------------------

def conv1_pool_reordered_patches(x):
    """im2col for conv1 with per-image rows ordered q*144 + p (q = 2x2 pool
    corner, p = pooled pixel), so the in-kernel pool is a max of 4 row blocks."""
    n = x.shape[0]
    xs = x[:, 0]                                                     # (N, 28, 28)
    cols = [xs[:, kh:kh + 24, kw:kw + 24] for kh in range(5) for kw in range(5)]
    pat = jnp.stack(cols, axis=-1)                                   # (N, 24, 24, 25)
    # oh = 2*poh + dh, ow = 2*pow + dw  ->  row = (2*dh + dw)*144 + poh*12 + pow
    pat = pat.reshape(n, 12, 2, 12, 2, 25).transpose(0, 2, 4, 1, 3, 5)
    pat = pat.reshape(n, 576, 25)
    return jnp.pad(pat, ((0, 0), (0, 0), (0, K1P - 25)))             # (N, 576, K1P)


def preprocess_params(p):
    """Zero-pad / permute the PyTorch-layout weights into kernel layouts."""
    f32 = jnp.float32
    # conv1: [t = kh*5+kw, co]
    w1 = p["conv1_w"].reshape(20, 25).T.astype(f32)
    w1p = jnp.zeros((K1P, C1P), f32).at[:25, :20].set(w1)
    b1p = jnp.zeros((1, C1P), f32).at[0, :20].set(p["conv1_b"])
    # conv2: per-tap (ci, co) slabs, [t, ci, co]
    w2 = jnp.transpose(p["conv2_w"], (2, 3, 1, 0)).reshape(25, 20, 50)
    w2p = jnp.zeros((25, C1P, C2P), f32).at[:, :20, :50].set(w2)
    b2p = jnp.zeros((1, C2P), f32).at[0, :50].set(p["conv2_b"])
    # fc1: remap row index so row (s*C2P + c) <-> PyTorch flatten index c*16 + s
    wf1 = jnp.transpose(p["fc1_w"].reshape(50, 16, 500), (1, 0, 2))  # [s, c, j]
    wf1p = (jnp.zeros((16, C2P, FC1P), f32).at[:, :50, :500].set(wf1)
            .reshape(16 * C2P, FC1P))
    bf1p = jnp.zeros((1, FC1P), f32).at[0, :500].set(p["fc1_b"])
    # fc2
    wf2p = jnp.zeros((FC1P, NCLS), f32).at[:500, :10].set(p["fc2_w"])
    bf2p = jnp.zeros((1, NCLS), f32).at[0, :10].set(p["fc2_b"])
    return dict(w1=w1p, b1=b1p, w2=w2p, b2=b2p,
                wf1=wf1p, bf1=bf1p, wf2=wf2p, bf2=bf2p)


@functools.partial(jax.jit, static_argnames=("block_batch",))
def net_forward(x, params, block_batch=8):
    n = x.shape[0]
    bt = min(block_batch, n)                       # images per grid step
    npad = ((n + bt - 1) // bt) * bt
    if npad != n:
        x = jnp.pad(x, ((0, npad - n), (0, 0), (0, 0), (0, 0)))
    pk = preprocess_params(params)
    patches = conv1_pool_reordered_patches(x)      # (npad, 576, K1P)

    out = pl.pallas_call(
        make_net_kernel(bt),
        out_shape=jax.ShapeDtypeStruct((npad, NCLS), jnp.float32),
        grid_spec=pltpu.PrefetchScalarGridSpec(
            num_scalar_prefetch=0,
            grid=(npad // bt,),
            in_specs=[
                pl.BlockSpec((bt, 576, K1P), lambda i: (i, 0, 0)),       # patches
                pl.BlockSpec((K1P, C1P), lambda i: (0, 0)),              # w1
                pl.BlockSpec((1, C1P), lambda i: (0, 0)),                # b1
                pl.BlockSpec((25, C1P, C2P), lambda i: (0, 0, 0)),       # w2 taps
                pl.BlockSpec((1, C2P), lambda i: (0, 0)),                # b2
                pl.BlockSpec((16 * C2P, FC1P), lambda i: (0, 0)),        # fc1 w
                pl.BlockSpec((1, FC1P), lambda i: (0, 0)),               # fc1 b
                pl.BlockSpec((FC1P, NCLS), lambda i: (0, 0)),            # fc2 w
                pl.BlockSpec((1, NCLS), lambda i: (0, 0)),               # fc2 b
            ],
            out_specs=pl.BlockSpec((bt, NCLS), lambda i: (i, 0)),
            scratch_shapes=[
                pltpu.VMEM((bt, P1R, C1P), jnp.float32),    # pool1 output + pad rows
                pltpu.VMEM((bt, Z2R, C2P), jnp.float32),    # conv2 (pre-relu) output
                pltpu.VMEM((bt, 16 * C2P), jnp.float32),    # flattened fc1 LHS
            ],
        ),
        compiler_params=pltpu.CompilerParams(dimension_semantics=("parallel",)),
    )(patches, pk["w1"], pk["b1"], pk["w2"], pk["b2"],
      pk["wf1"], pk["bf1"], pk["wf2"], pk["bf2"])
    return out[:n, :10]


# ----------------------------- params & reference ---------------------------

def init_params(key):
    ks = jax.random.split(key, 8)

    def u(k, shape, fan_in):
        bound = 1.0 / jnp.sqrt(jnp.float32(fan_in))
        return jax.random.uniform(k, shape, jnp.float32, -bound, bound)

    return {
        "conv1_w": u(ks[0], (20, 1, 5, 5), 1 * 25),
        "conv1_b": u(ks[1], (20,), 1 * 25),
        "conv2_w": u(ks[2], (50, 20, 5, 5), 20 * 25),
        "conv2_b": u(ks[3], (50,), 20 * 25),
        "fc1_w":   u(ks[4], (800, 500), 800),
        "fc1_b":   u(ks[5], (500,), 800),
        "fc2_w":   u(ks[6], (500, 10), 500),
        "fc2_b":   u(ks[7], (10,), 500),
    }


def net_forward_ref(x, params):
    """Pure-JAX reference (lax.conv / reduce_window), default matmul precision."""
    def conv(y, w, b):
        dn = lax.conv_dimension_numbers(y.shape, w.shape, ("NCHW", "OIHW", "NCHW"))
        y = lax.conv_general_dilated(y, w, (1, 1), "VALID", dimension_numbers=dn)
        return jax.nn.relu(y + b[None, :, None, None])

    def pool(y):
        return lax.reduce_window(y, -jnp.inf, lax.max, (1, 1, 2, 2), (1, 1, 2, 2), "VALID")

    y = pool(conv(x, params["conv1_w"], params["conv1_b"]))
    y = pool(conv(y, params["conv2_w"], params["conv2_b"]))
    y = y.reshape(y.shape[0], -1)
    y = jax.nn.relu(y @ params["fc1_w"] + params["fc1_b"])
    y = y @ params["fc2_w"] + params["fc2_b"]
    return jax.nn.log_softmax(y, axis=1)


if __name__ == "__main__":
    key = jax.random.PRNGKey(0)
    pkey, xkey = jax.random.split(key)
    params = init_params(pkey)
    x = jax.random.normal(xkey, (2, 1, 28, 28), jnp.float32)   # NCHW, MNIST-sized

    out = jax.block_until_ready(net_forward(x, params))
    ref = jax.block_until_ready(net_forward_ref(x, params))

    assert out.shape == (2, 10), out.shape
    assert bool(jnp.all(jnp.isfinite(out)))
    assert bool(jnp.allclose(jnp.sum(jnp.exp(out), axis=1), 1.0, atol=1e-3))
    err = float(jnp.max(jnp.abs(out - ref)))
    assert bool(jnp.allclose(out, ref, rtol=2e-2, atol=2e-2)), err
    print("KERNEL_OK")
</pallas_src>

<mosaic_0001>
module attributes {stable_mosaic.version = 11 : i64} {
  func.func @net_kernel(%arg0: i32, %arg1: memref<2x576x32xf32, #tpu.memory_space<vmem>>, %arg2: memref<32x32xf32, #tpu.memory_space<vmem>>, %arg3: memref<1x32xf32, #tpu.memory_space<vmem>>, %arg4: memref<25x32x64xf32, #tpu.memory_space<vmem>>, %arg5: memref<1x64xf32, #tpu.memory_space<vmem>>, %arg6: memref<1024x512xf32, #tpu.memory_space<vmem>>, %arg7: memref<1x512xf32, #tpu.memory_space<vmem>>, %arg8: memref<512x128xf32, #tpu.memory_space<vmem>>, %arg9: memref<1x128xf32, #tpu.memory_space<vmem>>, %arg10: memref<2x128xf32, #tpu.memory_space<vmem>>, %arg11: memref<2x152x32xf32, #tpu.memory_space<vmem>>, %arg12: memref<2x96x64xf32, #tpu.memory_space<vmem>>, %arg13: memref<2x1024xf32, #tpu.memory_space<vmem>>) attributes {dimension_semantics = [#tpu.dimension_semantics<parallel>], iteration_bounds = array<i64: 1>, scalar_prefetch = 0 : i64, scratch_operands = 3 : i64, tpu.core_type = #tpu.core_type<tc>, window_params = [{transform_indices = @transform_0, window_bounds = array<i64: 2, 576, 32>}, {pipeline_mode = #tpu.pipeline_mode<synchronous>, transform_indices = @transform_1, window_bounds = array<i64: 32, 32>}, {pipeline_mode = #tpu.pipeline_mode<synchronous>, transform_indices = @transform_2, window_bounds = array<i64: 1, 32>}, {pipeline_mode = #tpu.pipeline_mode<synchronous>, transform_indices = @transform_3, window_bounds = array<i64: 25, 32, 64>}, {pipeline_mode = #tpu.pipeline_mode<synchronous>, transform_indices = @transform_4, window_bounds = array<i64: 1, 64>}, {pipeline_mode = #tpu.pipeline_mode<synchronous>, transform_indices = @transform_5, window_bounds = array<i64: 1024, 512>}, {pipeline_mode = #tpu.pipeline_mode<synchronous>, transform_indices = @transform_6, window_bounds = array<i64: 1, 512>}, {pipeline_mode = #tpu.pipeline_mode<synchronous>, transform_indices = @transform_7, window_bounds = array<i64: 512, 128>}, {pipeline_mode = #tpu.pipeline_mode<synchronous>, transform_indices = @transform_8, window_bounds = array<i64: 1, 128>}, {transform_indices = @transform_9, window_bounds = array<i64: 2, 128>}]} {
    %c0 = arith.constant 0 : index
    %c0_0 = arith.constant 0 : index
    %c0_1 = arith.constant 0 : index
    %0 = vector.load %arg1[%c0, %c0_0, %c0_1] : memref<2x576x32xf32, #tpu.memory_space<vmem>>, vector<2x576x32xf32>
    %1 = vector.shape_cast %0 : vector<2x576x32xf32> to vector<1152x32xf32>
    %c0_2 = arith.constant 0 : index
    %c0_3 = arith.constant 0 : index
    %2 = vector.load %arg2[%c0_2, %c0_3] : memref<32x32xf32, #tpu.memory_space<vmem>>, vector<32x32xf32>
    %cst = arith.constant dense<0.000000e+00> : vector<1152x32xf32>
    %3 = tpu.matmul %1, %2, %cst {dimension_numbers = #tpu.dot_dimension_numbers<[1], [0], [0], [1], [0, 0, 1, 1], [], []>} : vector<1152x32xf32>, vector<32x32xf32>, vector<1152x32xf32> -> vector<1152x32xf32>
    %4 = vector.shape_cast %3 : vector<1152x32xf32> to vector<2x4x144x32xf32>
    %5 = vector.extract_strided_slice %4 {offsets = [0, 0, 0, 0], sizes = [2, 1, 144, 32], strides = [1, 1, 1, 1]} : vector<2x4x144x32xf32> to vector<2x1x144x32xf32>
    %6 = vector.shape_cast %5 : vector<2x1x144x32xf32> to vector<2x144x32xf32>
    %7 = vector.extract_strided_slice %4 {offsets = [0, 1, 0, 0], sizes = [2, 1, 144, 32], strides = [1, 1, 1, 1]} : vector<2x4x144x32xf32> to vector<2x1x144x32xf32>
    %8 = vector.shape_cast %7 : vector<2x1x144x32xf32> to vector<2x144x32xf32>
    %9 = arith.maximumf %6, %8 : vector<2x144x32xf32>
    %10 = vector.extract_strided_slice %4 {offsets = [0, 2, 0, 0], sizes = [2, 1, 144, 32], strides = [1, 1, 1, 1]} : vector<2x4x144x32xf32> to vector<2x1x144x32xf32>
    %11 = vector.shape_cast %10 : vector<2x1x144x32xf32> to vector<2x144x32xf32>
    %12 = vector.extract_strided_slice %4 {offsets = [0, 3, 0, 0], sizes = [2, 1, 144, 32], strides = [1, 1, 1, 1]} : vector<2x4x144x32xf32> to vector<2x1x144x32xf32>
    %13 = vector.shape_cast %12 : vector<2x1x144x32xf32> to vector<2x144x32xf32>
    %14 = arith.maximumf %11, %13 : vector<2x144x32xf32>
    %15 = arith.maximumf %9, %14 : vector<2x144x32xf32>
    %16 = vector.shape_cast %15 : vector<2x144x32xf32> to vector<288x32xf32>
    %c0_4 = arith.constant 0 : index
    %c0_5 = arith.constant 0 : index
    %17 = vector.load %arg3[%c0_4, %c0_5] : memref<1x32xf32, #tpu.memory_space<vmem>>, vector<1x32xf32>
    %18 = vector.broadcast %17 : vector<1x32xf32> to vector<288x32xf32>
    %19 = arith.addf %16, %18 : vector<288x32xf32>
    %cst_6 = arith.constant 0.000000e+00 : f32
    %20 = vector.broadcast %cst_6 : f32 to vector<288x32xf32>
    %21 = arith.maximumf %19, %20 : vector<288x32xf32>
    %22 = vector.shape_cast %21 : vector<288x32xf32> to vector<2x144x32xf32>
    %c0_7 = arith.constant 0 : index
    %c0_8 = arith.constant 0 : index
    %c0_9 = arith.constant 0 : index
    %23 = vector.load %arg11[%c0_7, %c0_8, %c0_9] : memref<2x152x32xf32, #tpu.memory_space<vmem>>, vector<2x144x32xf32>
    tpu.vector_store %arg11[%c0_7, %c0_8, %c0_9], %22 {strides = array<i32>} : memref<2x152x32xf32, #tpu.memory_space<vmem>>, vector<2x144x32xf32>,
    %cst_10 = arith.constant 0.000000e+00 : f32
    %24 = vector.broadcast %cst_10 : f32 to vector<2x8x32xf32>
    %c0_11 = arith.constant 0 : index
    %c144 = arith.constant 144 : index
    %c0_12 = arith.constant 0 : index
    %25 = vector.load %arg11[%c0_11, %c144, %c0_12] : memref<2x152x32xf32, #tpu.memory_space<vmem>>, vector<2x8x32xf32>
    tpu.vector_store %arg11[%c0_11, %c144, %c0_12], %24 {strides = array<i32>} : memref<2x152x32xf32, #tpu.memory_space<vmem>>, vector<2x8x32xf32>,
    %c0_13 = arith.constant 0 : index
    %c0_14 = arith.constant 0 : index
    %c0_15 = arith.constant 0 : index
    %26 = vector.load %arg11[%c0_13, %c0_14, %c0_15] : memref<2x152x32xf32, #tpu.memory_space<vmem>>, vector<2x96x32xf32>
    %27 = vector.shape_cast %26 : vector<2x96x32xf32> to vector<192x32xf32>
    %c0_16 = arith.constant 0 : index
    %c0_17 = arith.constant 0 : index
    %c0_18 = arith.constant 0 : index
    %28 = vector.load %arg4[%c0_16, %c0_17, %c0_18] : memref<25x32x64xf32, #tpu.memory_space<vmem>>, vector<1x32x64xf32>
    %29 = vector.shape_cast %28 : vector<1x32x64xf32> to vector<32x64xf32>
    %cst_19 = arith.constant dense<0.000000e+00> : vector<192x64xf32>
    %30 = tpu.matmul %27, %29, %cst_19 {dimension_numbers = #tpu.dot_dimension_numbers<[1], [0], [0], [1], [0, 0, 1, 1], [], []>} : vector<192x32xf32>, vector<32x64xf32>, vector<192x64xf32> -> vector<192x64xf32>
    %c0_20 = arith.constant 0 : index
    %c1 = arith.constant 1 : index
    %c0_21 = arith.constant 0 : index
    %31 = vector.load %arg11[%c0_20, %c1, %c0_21] : memref<2x152x32xf32, #tpu.memory_space<vmem>>, vector<2x96x32xf32>
    %32 = vector.shape_cast %31 : vector<2x96x32xf32> to vector<192x32xf32>
    %c1_22 = arith.constant 1 : index
    %c0_23 = arith.constant 0 : index
    %c0_24 = arith.constant 0 : index
    %33 = vector.load %arg4[%c1_22, %c0_23, %c0_24] : memref<25x32x64xf32, #tpu.memory_space<vmem>>, vector<1x32x64xf32>
    %34 = vector.shape_cast %33 : vector<1x32x64xf32> to vector<32x64xf32>
    %cst_25 = arith.constant dense<0.000000e+00> : vector<192x64xf32>
    %35 = tpu.matmul %32, %34, %cst_25 {dimension_numbers = #tpu.dot_dimension_numbers<[1], [0], [0], [1], [0, 0, 1, 1], [], []>} : vector<192x32xf32>, vector<32x64xf32>, vector<192x64xf32> -> vector<192x64xf32>
    %36 = arith.addf %30, %35 : vector<192x64xf32>
    %c0_26 = arith.constant 0 : index
    %c2 = arith.constant 2 : index
    %c0_27 = arith.constant 0 : index
    %37 = vector.load %arg11[%c0_26, %c2, %c0_27] : memref<2x152x32xf32, #tpu.memory_space<vmem>>, vector<2x96x32xf32>
    %38 = vector.shape_cast %37 : vector<2x96x32xf32> to vector<192x32xf32>
    %c2_28 = arith.constant 2 : index
    %c0_29 = arith.constant 0 : index
    %c0_30 = arith.constant 0 : index
    %39 = vector.load %arg4[%c2_28, %c0_29, %c0_30] : memref<25x32x64xf32, #tpu.memory_space<vmem>>, vector<1x32x64xf32>
    %40 = vector.shape_cast %39 : vector<1x32x64xf32> to vector<32x64xf32>
    %cst_31 = arith.constant dense<0.000000e+00> : vector<192x64xf32>
    %41 = tpu.matmul %38, %40, %cst_31 {dimension_numbers = #tpu.dot_dimension_numbers<[1], [0], [0], [1], [0, 0, 1, 1], [], []>} : vector<192x32xf32>, vector<32x64xf32>, vector<192x64xf32> -> vector<192x64xf32>
    %42 = arith.addf %36, %41 : vector<192x64xf32>
    %c0_32 = arith.constant 0 : index
    %c3 = arith.constant 3 : index
    %c0_33 = arith.constant 0 : index
    %43 = vector.load %arg11[%c0_32, %c3, %c0_33] : memref<2x152x32xf32, #tpu.memory_space<vmem>>, vector<2x96x32xf32>
    %44 = vector.shape_cast %43 : vector<2x96x32xf32> to vector<192x32xf32>
    %c3_34 = arith.constant 3 : index
    %c0_35 = arith.constant 0 : index
    %c0_36 = arith.constant 0 : index
    %45 = vector.load %arg4[%c3_34, %c0_35, %c0_36] : memref<25x32x64xf32, #tpu.memory_space<vmem>>, vector<1x32x64xf32>
    %46 = vector.shape_cast %45 : vector<1x32x64xf32> to vector<32x64xf32>
    %cst_37 = arith.constant dense<0.000000e+00> : vector<192x64xf32>
    %47 = tpu.matmul %44, %46, %cst_37 {dimension_numbers = #tpu.dot_dimension_numbers<[1], [0], [0], [1], [0, 0, 1, 1], [], []>} : vector<192x32xf32>, vector<32x64xf32>, vector<192x64xf32> -> vector<192x64xf32>
    %48 = arith.addf %42, %47 : vector<192x64xf32>
    %c0_38 = arith.constant 0 : index
    %c4 = arith.constant 4 : index
    %c0_39 = arith.constant 0 : index
    %49 = vector.load %arg11[%c0_38, %c4, %c0_39] : memref<2x152x32xf32, #tpu.memory_space<vmem>>, vector<2x96x32xf32>
    %50 = vector.shape_cast %49 : vector<2x96x32xf32> to vector<192x32xf32>
    %c4_40 = arith.constant 4 : index
    %c0_41 = arith.constant 0 : index
    %c0_42 = arith.constant 0 : index
    %51 = vector.load %arg4[%c4_40, %c0_41, %c0_42] : memref<25x32x64xf32, #tpu.memory_space<vmem>>, vector<1x32x64xf32>
    %52 = vector.shape_cast %51 : vector<1x32x64xf32> to vector<32x64xf32>
    %cst_43 = arith.constant dense<0.000000e+00> : vector<192x64xf32>
    %53 = tpu.matmul %50, %52, %cst_43 {dimension_numbers = #tpu.dot_dimension_numbers<[1], [0], [0], [1], [0, 0, 1, 1], [], []>} : vector<192x32xf32>, vector<32x64xf32>, vector<192x64xf32> -> vector<192x64xf32>
    %54 = arith.addf %48, %53 : vector<192x64xf32>
    %c0_44 = arith.constant 0 : index
    %c12 = arith.constant 12 : index
    %c0_45 = arith.constant 0 : index
    %55 = vector.load %arg11[%c0_44, %c12, %c0_45] : memref<2x152x32xf32, #tpu.memory_space<vmem>>, vector<2x96x32xf32>
    %56 = vector.shape_cast %55 : vector<2x96x32xf32> to vector<192x32xf32>
    %c5 = arith.constant 5 : index
    %c0_46 = arith.constant 0 : index
    %c0_47 = arith.constant 0 : index
    %57 = vector.load %arg4[%c5, %c0_46, %c0_47] : memref<25x32x64xf32, #tpu.memory_space<vmem>>, vector<1x32x64xf32>
    %58 = vector.shape_cast %57 : vector<1x32x64xf32> to vector<32x64xf32>
    %cst_48 = arith.constant dense<0.000000e+00> : vector<192x64xf32>
    %59 = tpu.matmul %56, %58, %cst_48 {dimension_numbers = #tpu.dot_dimension_numbers<[1], [0], [0], [1], [0, 0, 1, 1], [], []>} : vector<192x32xf32>, vector<32x64xf32>, vector<192x64xf32> -> vector<192x64xf32>
    %60 = arith.addf %54, %59 : vector<192x64xf32>
    %c0_49 = arith.constant 0 : index
    %c13 = arith.constant 13 : index
    %c0_50 = arith.constant 0 : index
    %61 = vector.load %arg11[%c0_49, %c13, %c0_50] : memref<2x152x32xf32, #tpu.memory_space<vmem>>, vector<2x96x32xf32>
    %62 = vector.shape_cast %61 : vector<2x96x32xf32> to vector<192x32xf32>
    %c6 = arith.constant 6 : index
    %c0_51 = arith.constant 0 : index
    %c0_52 = arith.constant 0 : index
    %63 = vector.load %arg4[%c6, %c0_51, %c0_52] : memref<25x32x64xf32, #tpu.memory_space<vmem>>, vector<1x32x64xf32>
    %64 = vector.shape_cast %63 : vector<1x32x64xf32> to vector<32x64xf32>
    %cst_53 = arith.constant dense<0.000000e+00> : vector<192x64xf32>
    %65 = tpu.matmul %62, %64, %cst_53 {dimension_numbers = #tpu.dot_dimension_numbers<[1], [0], [0], [1], [0, 0, 1, 1], [], []>} : vector<192x32xf32>, vector<32x64xf32>, vector<192x64xf32> -> vector<192x64xf32>
    %66 = arith.addf %60, %65 : vector<192x64xf32>
    %c0_54 = arith.constant 0 : index
    %c14 = arith.constant 14 : index
    %c0_55 = arith.constant 0 : index
    %67 = vector.load %arg11[%c0_54, %c14, %c0_55] : memref<2x152x32xf32, #tpu.memory_space<vmem>>, vector<2x96x32xf32>
    %68 = vector.shape_cast %67 : vector<2x96x32xf32> to vector<192x32xf32>
    %c7 = arith.constant 7 : index
    %c0_56 = arith.constant 0 : index
    %c0_57 = arith.constant 0 : index
    %69 = vector.load %arg4[%c7, %c0_56, %c0_57] : memref<25x32x64xf32, #tpu.memory_space<vmem>>, vector<1x32x64xf32>
    %70 = vector.shape_cast %69 : vector<1x32x64xf32> to vector<32x64xf32>
    %cst_58 = arith.constant dense<0.000000e+00> : vector<192x64xf32>
    %71 = tpu.matmul %68, %70, %cst_58 {dimension_numbers = #tpu.dot_dimension_numbers<[1], [0], [0], [1], [0, 0, 1, 1], [], []>} : vector<192x32xf32>, vector<32x64xf32>, vector<192x64xf32> -> vector<192x64xf32>
    %72 = arith.addf %66, %71 : vector<192x64xf32>
    %c0_59 = arith.constant 0 : index
    %c15 = arith.constant 15 : index
    %c0_60 = arith.constant 0 : index
    %73 = vector.load %arg11[%c0_59, %c15, %c0_60] : memref<2x152x32xf32, #tpu.memory_space<vmem>>, vector<2x96x32xf32>
    %74 = vector.shape_cast %73 : vector<2x96x32xf32> to vector<192x32xf32>
    %c8 = arith.constant 8 : index
    %c0_61 = arith.constant 0 : index
    %c0_62 = arith.constant 0 : index
    %75 = vector.load %arg4[%c8, %c0_61, %c0_62] : memref<25x32x64xf32, #tpu.memory_space<vmem>>, vector<1x32x64xf32>
    %76 = vector.shape_cast %75 : vector<1x32x64xf32> to vector<32x64xf32>
    %cst_63 = arith.constant dense<0.000000e+00> : vector<192x64xf32>
    %77 = tpu.matmul %74, %76, %cst_63 {dimension_numbers = #tpu.dot_dimension_numbers<[1], [0], [0], [1], [0, 0, 1, 1], [], []>} : vector<192x32xf32>, vector<32x64xf32>, vector<192x64xf32> -> vector<192x64xf32>
    %78 = arith.addf %72, %77 : vector<192x64xf32>
    %c0_64 = arith.constant 0 : index
    %c16 = arith.constant 16 : index
    %c0_65 = arith.constant 0 : index
    %79 = vector.load %arg11[%c0_64, %c16, %c0_65] : memref<2x152x32xf32, #tpu.memory_space<vmem>>, vector<2x96x32xf32>
    %80 = vector.shape_cast %79 : vector<2x96x32xf32> to vector<192x32xf32>
    %c9 = arith.constant 9 : index
    %c0_66 = arith.constant 0 : index
    %c0_67 = arith.constant 0 : index
    %81 = vector.load %arg4[%c9, %c0_66, %c0_67] : memref<25x32x64xf32, #tpu.memory_space<vmem>>, vector<1x32x64xf32>
    %82 = vector.shape_cast %81 : vector<1x32x64xf32> to vector<32x64xf32>
    %cst_68 = arith.constant dense<0.000000e+00> : vector<192x64xf32>
    %83 = tpu.matmul %80, %82, %cst_68 {dimension_numbers = #tpu.dot_dimension_numbers<[1], [0], [0], [1], [0, 0, 1, 1], [], []>} : vector<192x32xf32>, vector<32x64xf32>, vector<192x64xf32> -> vector<192x64xf32>
    %84 = arith.addf %78, %83 : vector<192x64xf32>
    %c0_69 = arith.constant 0 : index
    %c24 = arith.constant 24 : index
    %c0_70 = arith.constant 0 : index
    %85 = vector.load %arg11[%c0_69, %c24, %c0_70] : memref<2x152x32xf32, #tpu.memory_space<vmem>>, vector<2x96x32xf32>
    %86 = vector.shape_cast %85 : vector<2x96x32xf32> to vector<192x32xf32>
    %c10 = arith.constant 10 : index
    %c0_71 = arith.constant 0 : index
    %c0_72 = arith.constant 0 : index
    %87 = vector.load %arg4[%c10, %c0_71, %c0_72] : memref<25x32x64xf32, #tpu.memory_space<vmem>>, vector<1x32x64xf32>
    %88 = vector.shape_cast %87 : vector<1x32x64xf32> to vector<32x64xf32>
    %cst_73 = arith.constant dense<0.000000e+00> : vector<192x64xf32>
    %89 = tpu.matmul %86, %88, %cst_73 {dimension_numbers = #tpu.dot_dimension_numbers<[1], [0], [0], [1], [0, 0, 1, 1], [], []>} : vector<192x32xf32>, vector<32x64xf32>, vector<192x64xf32> -> vector<192x64xf32>
    %90 = arith.addf %84, %89 : vector<192x64xf32>
    %c0_74 = arith.constant 0 : index
    %c25 = arith.constant 25 : index
    %c0_75 = arith.constant 0 : index
    %91 = vector.load %arg11[%c0_74, %c25, %c0_75] : memref<2x152x32xf32, #tpu.memory_space<vmem>>, vector<2x96x32xf32>
    %92 = vector.shape_cast %91 : vector<2x96x32xf32> to vector<192x32xf32>
    %c11 = arith.constant 11 : index
    %c0_76 = arith.constant 0 : index
    %c0_77 = arith.constant 0 : index
    %93 = vector.load %arg4[%c11, %c0_76, %c0_77] : memref<25x32x64xf32, #tpu.memory_space<vmem>>, vector<1x32x64xf32>
    %94 = vector.shape_cast %93 : vector<1x32x64xf32> to vector<32x64xf32>
    %cst_78 = arith.constant dense<0.000000e+00> : vector<192x64xf32>
    %95 = tpu.matmul %92, %94, %cst_78 {dimension_numbers = #tpu.dot_dimension_numbers<[1], [0], [0], [1], [0, 0, 1, 1], [], []>} : vector<192x32xf32>, vector<32x64xf32>, vector<192x64xf32> -> vector<192x64xf32>
    %96 = arith.addf %90, %95 : vector<192x64xf32>
    %c0_79 = arith.constant 0 : index
    %c26 = arith.constant 26 : index
    %c0_80 = arith.constant 0 : index
    %97 = vector.load %arg11[%c0_79, %c26, %c0_80] : memref<2x152x32xf32, #tpu.memory_space<vmem>>, vector<2x96x32xf32>
    %98 = vector.shape_cast %97 : vector<2x96x32xf32> to vector<192x32xf32>
    %c12_81 = arith.constant 12 : index
    %c0_82 = arith.constant 0 : index
    %c0_83 = arith.constant 0 : index
    %99 = vector.load %arg4[%c12_81, %c0_82, %c0_83] : memref<25x32x64xf32, #tpu.memory_space<vmem>>, vector<1x32x64xf32>
    %100 = vector.shape_cast %99 : vector<1x32x64xf32> to vector<32x64xf32>
    %cst_84 = arith.constant dense<0.000000e+00> : vector<192x64xf32>
    %101 = tpu.matmul %98, %100, %cst_84 {dimension_numbers = #tpu.dot_dimension_numbers<[1], [0], [0], [1], [0, 0, 1, 1], [], []>} : vector<192x32xf32>, vector<32x64xf32>, vector<192x64xf32> -> vector<192x64xf32>
    %102 = arith.addf %96, %101 : vector<192x64xf32>
    %c0_85 = arith.constant 0 : index
    %c27 = arith.constant 27 : index
    %c0_86 = arith.constant 0 : index
    %103 = vector.load %arg11[%c0_85, %c27, %c0_86] : memref<2x152x32xf32, #tpu.memory_space<vmem>>, vector<2x96x32xf32>
    %104 = vector.shape_cast %103 : vector<2x96x32xf32> to vector<192x32xf32>
    %c13_87 = arith.constant 13 : index
    %c0_88 = arith.constant 0 : index
    %c0_89 = arith.constant 0 : index
    %105 = vector.load %arg4[%c13_87, %c0_88, %c0_89] : memref<25x32x64xf32, #tpu.memory_space<vmem>>, vector<1x32x64xf32>
    %106 = vector.shape_cast %105 : vector<1x32x64xf32> to vector<32x64xf32>
    %cst_90 = arith.constant dense<0.000000e+00> : vector<192x64xf32>
    %107 = tpu.matmul %104, %106, %cst_90 {dimension_numbers = #tpu.dot_dimension_numbers<[1], [0], [0], [1], [0, 0, 1, 1], [], []>} : vector<192x32xf32>, vector<32x64xf32>, vector<192x64xf32> -> vector<192x64xf32>
    %108 = arith.addf %102, %107 : vector<192x64xf32>
    %c0_91 = arith.constant 0 : index
    %c28 = arith.constant 28 : index
    %c0_92 = arith.constant 0 : index
    %109 = vector.load %arg11[%c0_91, %c28, %c0_92] : memref<2x152x32xf32, #tpu.memory_space<vmem>>, vector<2x96x32xf32>
    %110 = vector.shape_cast %109 : vector<2x96x32xf32> to vector<192x32xf32>
    %c14_93 = arith.constant 14 : index
    %c0_94 = arith.constant 0 : index
    %c0_95 = arith.constant 0 : index
    %111 = vector.load %arg4[%c14_93, %c0_94, %c0_95] : memref<25x32x64xf32, #tpu.memory_space<vmem>>, vector<1x32x64xf32>
    %112 = vector.shape_cast %111 : vector<1x32x64xf32> to vector<32x64xf32>
    %cst_96 = arith.constant dense<0.000000e+00> : vector<192x64xf32>
    %113 = tpu.matmul %110, %112, %cst_96 {dimension_numbers = #tpu.dot_dimension_numbers<[1], [0], [0], [1], [0, 0, 1, 1], [], []>} : vector<192x32xf32>, vector<32x64xf32>, vector<192x64xf32> -> vector<192x64xf32>
    %114 = arith.addf %108, %113 : vector<192x64xf32>
    %c0_97 = arith.constant 0 : index
    %c36 = arith.constant 36 : index
    %c0_98 = arith.constant 0 : index
    %115 = vector.load %arg11[%c0_97, %c36, %c0_98] : memref<2x152x32xf32, #tpu.memory_space<vmem>>, vector<2x96x32xf32>
    %116 = vector.shape_cast %115 : vector<2x96x32xf32> to vector<192x32xf32>
    %c15_99 = arith.constant 15 : index
    %c0_100 = arith.constant 0 : index
    %c0_101 = arith.constant 0 : index
    %117 = vector.load %arg4[%c15_99, %c0_100, %c0_101] : memref<25x32x64xf32, #tpu.memory_space<vmem>>, vector<1x32x64xf32>
    %118 = vector.shape_cast %117 : vector<1x32x64xf32> to vector<32x64xf32>
    %cst_102 = arith.constant dense<0.000000e+00> : vector<192x64xf32>
    %119 = tpu.matmul %116, %118, %cst_102 {dimension_numbers = #tpu.dot_dimension_numbers<[1], [0], [0], [1], [0, 0, 1, 1], [], []>} : vector<192x32xf32>, vector<32x64xf32>, vector<192x64xf32> -> vector<192x64xf32>
    %120 = arith.addf %114, %119 : vector<192x64xf32>
    %c0_103 = arith.constant 0 : index
    %c37 = arith.constant 37 : index
    %c0_104 = arith.constant 0 : index
    %121 = vector.load %arg11[%c0_103, %c37, %c0_104] : memref<2x152x32xf32, #tpu.memory_space<vmem>>, vector<2x96x32xf32>
    %122 = vector.shape_cast %121 : vector<2x96x32xf32> to vector<192x32xf32>
    %c16_105 = arith.constant 16 : index
    %c0_106 = arith.constant 0 : index
    %c0_107 = arith.constant 0 : index
    %123 = vector.load %arg4[%c16_105, %c0_106, %c0_107] : memref<25x32x64xf32, #tpu.memory_space<vmem>>, vector<1x32x64xf32>
    %124 = vector.shape_cast %123 : vector<1x32x64xf32> to vector<32x64xf32>
    %cst_108 = arith.constant dense<0.000000e+00> : vector<192x64xf32>
    %125 = tpu.matmul %122, %124, %cst_108 {dimension_numbers = #tpu.dot_dimension_numbers<[1], [0], [0], [1], [0, 0, 1, 1], [], []>} : vector<192x32xf32>, vector<32x64xf32>, vector<192x64xf32> -> vector<192x64xf32>
    %126 = arith.addf %120, %125 : vector<192x64xf32>
    %c0_109 = arith.constant 0 : index
    %c38 = arith.constant 38 : index
    %c0_110 = arith.constant 0 : index
    %127 = vector.load %arg11[%c0_109, %c38, %c0_110] : memref<2x152x32xf32, #tpu.memory_space<vmem>>, vector<2x96x32xf32>
    %128 = vector.shape_cast %127 : vector<2x96x32xf32> to vector<192x32xf32>
    %c17 = arith.constant 17 : index
    %c0_111 = arith.constant 0 : index
    %c0_112 = arith.constant 0 : index
    %129 = vector.load %arg4[%c17, %c0_111, %c0_112] : memref<25x32x64xf32, #tpu.memory_space<vmem>>, vector<1x32x64xf32>
    %130 = vector.shape_cast %129 : vector<1x32x64xf32> to vector<32x64xf32>
    %cst_113 = arith.constant dense<0.000000e+00> : vector<192x64xf32>
    %131 = tpu.matmul %128, %130, %cst_113 {dimension_numbers = #tpu.dot_dimension_numbers<[1], [0], [0], [1], [0, 0, 1, 1], [], []>} : vector<192x32xf32>, vector<32x64xf32>, vector<192x64xf32> -> vector<192x64xf32>
    %132 = arith.addf %126, %131 : vector<192x64xf32>
    %c0_114 = arith.constant 0 : index
    %c39 = arith.constant 39 : index
    %c0_115 = arith.constant 0 : index
    %133 = vector.load %arg11[%c0_114, %c39, %c0_115] : memref<2x152x32xf32, #tpu.memory_space<vmem>>, vector<2x96x32xf32>
    %134 = vector.shape_cast %133 : vector<2x96x32xf32> to vector<192x32xf32>
    %c18 = arith.constant 18 : index
    %c0_116 = arith.constant 0 : index
    %c0_117 = arith.constant 0 : index
    %135 = vector.load %arg4[%c18, %c0_116, %c0_117] : memref<25x32x64xf32, #tpu.memory_space<vmem>>, vector<1x32x64xf32>
    %136 = vector.shape_cast %135 : vector<1x32x64xf32> to vector<32x64xf32>
    %cst_118 = arith.constant dense<0.000000e+00> : vector<192x64xf32>
    %137 = tpu.matmul %134, %136, %cst_118 {dimension_numbers = #tpu.dot_dimension_numbers<[1], [0], [0], [1], [0, 0, 1, 1], [], []>} : vector<192x32xf32>, vector<32x64xf32>, vector<192x64xf32> -> vector<192x64xf32>
    %138 = arith.addf %132, %137 : vector<192x64xf32>
    %c0_119 = arith.constant 0 : index
    %c40 = arith.constant 40 : index
    %c0_120 = arith.constant 0 : index
    %139 = vector.load %arg11[%c0_119, %c40, %c0_120] : memref<2x152x32xf32, #tpu.memory_space<vmem>>, vector<2x96x32xf32>
    %140 = vector.shape_cast %139 : vector<2x96x32xf32> to vector<192x32xf32>
    %c19 = arith.constant 19 : index
    %c0_121 = arith.constant 0 : index
    %c0_122 = arith.constant 0 : index
    %141 = vector.load %arg4[%c19, %c0_121, %c0_122] : memref<25x32x64xf32, #tpu.memory_space<vmem>>, vector<1x32x64xf32>
    %142 = vector.shape_cast %141 : vector<1x32x64xf32> to vector<32x64xf32>
    %cst_123 = arith.constant dense<0.000000e+00> : vector<192x64xf32>
    %143 = tpu.matmul %140, %142, %cst_123 {dimension_numbers = #tpu.dot_dimension_numbers<[1], [0], [0], [1], [0, 0, 1, 1], [], []>} : vector<192x32xf32>, vector<32x64xf32>, vector<192x64xf32> -> vector<192x64xf32>
    %144 = arith.addf %138, %143 : vector<192x64xf32>
    %c0_124 = arith.constant 0 : index
    %c48 = arith.constant 48 : index
    %c0_125 = arith.constant 0 : index
    %145 = vector.load %arg11[%c0_124, %c48, %c0_125] : memref<2x152x32xf32, #tpu.memory_space<vmem>>, vector<2x96x32xf32>
    %146 = vector.shape_cast %145 : vector<2x96x32xf32> to vector<192x32xf32>
    %c20 = arith.constant 20 : index
    %c0_126 = arith.constant 0 : index
    %c0_127 = arith.constant 0 : index
    %147 = vector.load %arg4[%c20, %c0_126, %c0_127] : memref<25x32x64xf32, #tpu.memory_space<vmem>>, vector<1x32x64xf32>
    %148 = vector.shape_cast %147 : vector<1x32x64xf32> to vector<32x64xf32>
    %cst_128 = arith.constant dense<0.000000e+00> : vector<192x64xf32>
    %149 = tpu.matmul %146, %148, %cst_128 {dimension_numbers = #tpu.dot_dimension_numbers<[1], [0], [0], [1], [0, 0, 1, 1], [], []>} : vector<192x32xf32>, vector<32x64xf32>, vector<192x64xf32> -> vector<192x64xf32>
    %150 = arith.addf %144, %149 : vector<192x64xf32>
    %c0_129 = arith.constant 0 : index
    %c49 = arith.constant 49 : index
    %c0_130 = arith.constant 0 : index
    %151 = vector.load %arg11[%c0_129, %c49, %c0_130] : memref<2x152x32xf32, #tpu.memory_space<vmem>>, vector<2x96x32xf32>
    %152 = vector.shape_cast %151 : vector<2x96x32xf32> to vector<192x32xf32>
    %c21 = arith.constant 21 : index
    %c0_131 = arith.constant 0 : index
    %c0_132 = arith.constant 0 : index
    %153 = vector.load %arg4[%c21, %c0_131, %c0_132] : memref<25x32x64xf32, #tpu.memory_space<vmem>>, vector<1x32x64xf32>
    %154 = vector.shape_cast %153 : vector<1x32x64xf32> to vector<32x64xf32>
    %cst_133 = arith.constant dense<0.000000e+00> : vector<192x64xf32>
    %155 = tpu.matmul %152, %154, %cst_133 {dimension_numbers = #tpu.dot_dimension_numbers<[1], [0], [0], [1], [0, 0, 1, 1], [], []>} : vector<192x32xf32>, vector<32x64xf32>, vector<192x64xf32> -> vector<192x64xf32>
    %156 = arith.addf %150, %155 : vector<192x64xf32>
    %c0_134 = arith.constant 0 : index
    %c50 = arith.constant 50 : index
    %c0_135 = arith.constant 0 : index
    %157 = vector.load %arg11[%c0_134, %c50, %c0_135] : memref<2x152x32xf32, #tpu.memory_space<vmem>>, vector<2x96x32xf32>
    %158 = vector.shape_cast %157 : vector<2x96x32xf32> to vector<192x32xf32>
    %c22 = arith.constant 22 : index
    %c0_136 = arith.constant 0 : index
    %c0_137 = arith.constant 0 : index
    %159 = vector.load %arg4[%c22, %c0_136, %c0_137] : memref<25x32x64xf32, #tpu.memory_space<vmem>>, vector<1x32x64xf32>
    %160 = vector.shape_cast %159 : vector<1x32x64xf32> to vector<32x64xf32>
    %cst_138 = arith.constant dense<0.000000e+00> : vector<192x64xf32>
    %161 = tpu.matmul %158, %160, %cst_138 {dimension_numbers = #tpu.dot_dimension_numbers<[1], [0], [0], [1], [0, 0, 1, 1], [], []>} : vector<192x32xf32>, vector<32x64xf32>, vector<192x64xf32> -> vector<192x64xf32>
    %162 = arith.addf %156, %161 : vector<192x64xf32>
    %c0_139 = arith.constant 0 : index
    %c51 = arith.constant 51 : index
    %c0_140 = arith.constant 0 : index
    %163 = vector.load %arg11[%c0_139, %c51, %c0_140] : memref<2x152x32xf32, #tpu.memory_space<vmem>>, vector<2x96x32xf32>
    %164 = vector.shape_cast %163 : vector<2x96x32xf32> to vector<192x32xf32>
    %c23 = arith.constant 23 : index
    %c0_141 = arith.constant 0 : index
    %c0_142 = arith.constant 0 : index
    %165 = vector.load %arg4[%c23, %c0_141, %c0_142] : memref<25x32x64xf32, #tpu.memory_space<vmem>>, vector<1x32x64xf32>
    %166 = vector.shape_cast %165 : vector<1x32x64xf32> to vector<32x64xf32>
    %cst_143 = arith.constant dense<0.000000e+00> : vector<192x64xf32>
    %167 = tpu.matmul %164, %166, %cst_143 {dimension_numbers = #tpu.dot_dimension_numbers<[1], [0], [0], [1], [0, 0, 1, 1], [], []>} : vector<192x32xf32>, vector<32x64xf32>, vector<192x64xf32> -> vector<192x64xf32>
    %168 = arith.addf %162, %167 : vector<192x64xf32>
    %c0_144 = arith.constant 0 : index
    %c52 = arith.constant 52 : index
    %c0_145 = arith.constant 0 : index
    %169 = vector.load %arg11[%c0_144, %c52, %c0_145] : memref<2x152x32xf32, #tpu.memory_space<vmem>>, vector<2x96x32xf32>
    %170 = vector.shape_cast %169 : vector<2x96x32xf32> to vector<192x32xf32>
    %c24_146 = arith.constant 24 : index
    %c0_147 = arith.constant 0 : index
    %c0_148 = arith.constant 0 : index
    %171 = vector.load %arg4[%c24_146, %c0_147, %c0_148] : memref<25x32x64xf32, #tpu.memory_space<vmem>>, vector<1x32x64xf32>
    %172 = vector.shape_cast %171 : vector<1x32x64xf32> to vector<32x64xf32>
    %cst_149 = arith.constant dense<0.000000e+00> : vector<192x64xf32>
    %173 = tpu.matmul %170, %172, %cst_149 {dimension_numbers = #tpu.dot_dimension_numbers<[1], [0], [0], [1], [0, 0, 1, 1], [], []>} : vector<192x32xf32>, vector<32x64xf32>, vector<192x64xf32> -> vector<192x64xf32>
    %174 = arith.addf %168, %173 : vector<192x64xf32>
    %175 = vector.shape_cast %174 : vector<192x64xf32> to vector<2x96x64xf32>
    %c0_150 = arith.constant 0 : index
    %c0_151 = arith.constant 0 : index
    %c0_152 = arith.constant 0 : index
    %176 = vector.load %arg12[%c0_150, %c0_151, %c0_152] : memref<2x96x64xf32, #tpu.memory_space<vmem>>, vector<2x96x64xf32>
    tpu.vector_store %arg12[%c0_150, %c0_151, %c0_152], %175 {strides = array<i32>} : memref<2x96x64xf32, #tpu.memory_space<vmem>>, vector<2x96x64xf32>,
    %c0_153 = arith.constant 0 : index
    %c0_154 = arith.constant 0 : index
    %c0_155 = arith.constant 0 : index
    %177 = vector.load %arg12[%c0_153, %c0_154, %c0_155] : memref<2x96x64xf32, #tpu.memory_space<vmem>>, vector<2x1x64xf32>
    %c0_156 = arith.constant 0 : index
    %c1_157 = arith.constant 1 : index
    %c0_158 = arith.constant 0 : index
    %178 = vector.load %arg12[%c0_156, %c1_157, %c0_158] : memref<2x96x64xf32, #tpu.memory_space<vmem>>, vector<2x1x64xf32>
    %179 = arith.maximumf %177, %178 : vector<2x1x64xf32>
    %c0_159 = arith.constant 0 : index
    %c12_160 = arith.constant 12 : index
    %c0_161 = arith.constant 0 : index
    %180 = vector.load %arg12[%c0_159, %c12_160, %c0_161] : memref<2x96x64xf32, #tpu.memory_space<vmem>>, vector<2x1x64xf32>
    %c0_162 = arith.constant 0 : index
    %c13_163 = arith.constant 13 : index
    %c0_164 = arith.constant 0 : index
    %181 = vector.load %arg12[%c0_162, %c13_163, %c0_164] : memref<2x96x64xf32, #tpu.memory_space<vmem>>, vector<2x1x64xf32>
    %182 = arith.maximumf %180, %181 : vector<2x1x64xf32>
    %183 = arith.maximumf %179, %182 : vector<2x1x64xf32>
    %184 = vector.shape_cast %183 : vector<2x1x64xf32> to vector<2x64xf32>
    %c0_165 = arith.constant 0 : index
    %c0_166 = arith.constant 0 : index
    %185 = vector.load %arg5[%c0_165, %c0_166] : memref<1x64xf32, #tpu.memory_space<vmem>>, vector<1x64xf32>
    %186 = vector.broadcast %185 : vector<1x64xf32> to vector<2x64xf32>
    %187 = arith.addf %184, %186 : vector<2x64xf32>
    %cst_167 = arith.constant 0.000000e+00 : f32
    %188 = vector.broadcast %cst_167 : f32 to vector<2x64xf32>
    %189 = arith.maximumf %187, %188 : vector<2x64xf32>
    %c0_168 = arith.constant 0 : index
    %c0_169 = arith.constant 0 : index
    %190 = vector.load %arg13[%c0_168, %c0_169] : memref<2x1024xf32, #tpu.memory_space<vmem>>, vector<2x64xf32>
    tpu.vector_store %arg13[%c0_168, %c0_169], %189 {strides = array<i32>} : memref<2x1024xf32, #tpu.memory_space<vmem>>, vector<2x64xf32>,
    %c0_170 = arith.constant 0 : index
    %c2_171 = arith.constant 2 : index
    %c0_172 = arith.constant 0 : index
    %191 = vector.load %arg12[%c0_170, %c2_171, %c0_172] : memref<2x96x64xf32, #tpu.memory_space<vmem>>, vector<2x1x64xf32>
    %c0_173 = arith.constant 0 : index
    %c3_174 = arith.constant 3 : index
    %c0_175 = arith.constant 0 : index
    %192 = vector.load %arg12[%c0_173, %c3_174, %c0_175] : memref<2x96x64xf32, #tpu.memory_space<vmem>>, vector<2x1x64xf32>
    %193 = arith.maximumf %191, %192 : vector<2x1x64xf32>
    %c0_176 = arith.constant 0 : index
    %c14_177 = arith.constant 14 : index
    %c0_178 = arith.constant 0 : index
    %194 = vector.load %arg12[%c0_176, %c14_177, %c0_178] : memref<2x96x64xf32, #tpu.memory_space<vmem>>, vector<2x1x64xf32>
    %c0_179 = arith.constant 0 : index
    %c15_180 = arith.constant 15 : index
    %c0_181 = arith.constant 0 : index
    %195 = vector.load %arg12[%c0_179, %c15_180, %c0_181] : memref<2x96x64xf32, #tpu.memory_space<vmem>>, vector<2x1x64xf32>
    %196 = arith.maximumf %194, %195 : vector<2x1x64xf32>
    %197 = arith.maximumf %193, %196 : vector<2x1x64xf32>
    %198 = vector.shape_cast %197 : vector<2x1x64xf32> to vector<2x64xf32>
    %c0_182 = arith.constant 0 : index
    %c0_183 = arith.constant 0 : index
    %199 = vector.load %arg5[%c0_182, %c0_183] : memref<1x64xf32, #tpu.memory_space<vmem>>, vector<1x64xf32>
    %200 = vector.broadcast %199 : vector<1x64xf32> to vector<2x64xf32>
    %201 = arith.addf %198, %200 : vector<2x64xf32>
    %cst_184 = arith.constant 0.000000e+00 : f32
    %202 = vector.broadcast %cst_184 : f32 to vector<2x64xf32>
    %203 = arith.maximumf %201, %202 : vector<2x64xf32>
    %c0_185 = arith.constant 0 : index
    %c64 = arith.constant 64 : index
    %204 = vector.load %arg13[%c0_185, %c64] : memref<2x1024xf32, #tpu.memory_space<vmem>>, vector<2x64xf32>
    tpu.vector_store %arg13[%c0_185, %c64], %203 {strides = array<i32>} : memref<2x1024xf32, #tpu.memory_space<vmem>>, vector<2x64xf32>,
    %c0_186 = arith.constant 0 : index
    %c4_187 = arith.constant 4 : index
    %c0_188 = arith.constant 0 : index
    %205 = vector.load %arg12[%c0_186, %c4_187, %c0_188] : memref<2x96x64xf32, #tpu.memory_space<vmem>>, vector<2x1x64xf32>
    %c0_189 = arith.constant 0 : index
    %c5_190 = arith.constant 5 : index
    %c0_191 = arith.constant 0 : index
    %206 = vector.load %arg12[%c0_189, %c5_190, %c0_191] : memref<2x96x64xf32, #tpu.memory_space<vmem>>, vector<2x1x64xf32>
    %207 = arith.maximumf %205, %206 : vector<2x1x64xf32>
    %c0_192 = arith.constant 0 : index
    %c16_193 = arith.constant 16 : index
    %c0_194 = arith.constant 0 : index
    %208 = vector.load %arg12[%c0_192, %c16_193, %c0_194] : memref<2x96x64xf32, #tpu.memory_space<vmem>>, vector<2x1x64xf32>
    %c0_195 = arith.constant 0 : index
    %c17_196 = arith.constant 17 : index
    %c0_197 = arith.constant 0 : index
    %209 = vector.load %arg12[%c0_195, %c17_196, %c0_197] : memref<2x96x64xf32, #tpu.memory_space<vmem>>, vector<2x1x64xf32>
    %210 = arith.maximumf %208, %209 : vector<2x1x64xf32>
    %211 = arith.maximumf %207, %210 : vector<2x1x64xf32>
    %212 = vector.shape_cast %211 : vector<2x1x64xf32> to vector<2x64xf32>
    %c0_198 = arith.constant 0 : index
    %c0_199 = arith.constant 0 : index
    %213 = vector.load %arg5[%c0_198, %c0_199] : memref<1x64xf32, #tpu.memory_space<vmem>>, vector<1x64xf32>
    %214 = vector.broadcast %213 : vector<1x64xf32> to vector<2x64xf32>
    %215 = arith.addf %212, %214 : vector<2x64xf32>
    %cst_200 = arith.constant 0.000000e+00 : f32
    %216 = vector.broadcast %cst_200 : f32 to vector<2x64xf32>
    %217 = arith.maximumf %215, %216 : vector<2x64xf32>
    %c0_201 = arith.constant 0 : index
    %c128 = arith.constant 128 : index
    %218 = vector.load %arg13[%c0_201, %c128] : memref<2x1024xf32, #tpu.memory_space<vmem>>, vector<2x64xf32>
    tpu.vector_store %arg13[%c0_201, %c128], %217 {strides = array<i32>} : memref<2x1024xf32, #tpu.memory_space<vmem>>, vector<2x64xf32>,
    %c0_202 = arith.constant 0 : index
    %c6_203 = arith.constant 6 : index
    %c0_204 = arith.constant 0 : index
    %219 = vector.load %arg12[%c0_202, %c6_203, %c0_204] : memref<2x96x64xf32, #tpu.memory_space<vmem>>, vector<2x1x64xf32>
    %c0_205 = arith.constant 0 : index
    %c7_206 = arith.constant 7 : index
    %c0_207 = arith.constant 0 : index
    %220 = vector.load %arg12[%c0_205, %c7_206, %c0_207] : memref<2x96x64xf32, #tpu.memory_space<vmem>>, vector<2x1x64xf32>
    %221 = arith.maximumf %219, %220 : vector<2x1x64xf32>
    %c0_208 = arith.constant 0 : index
    %c18_209 = arith.constant 18 : index
    %c0_210 = arith.constant 0 : index
    %222 = vector.load %arg12[%c0_208, %c18_209, %c0_210] : memref<2x96x64xf32, #tpu.memory_space<vmem>>, vector<2x1x64xf32>
    %c0_211 = arith.constant 0 : index
    %c19_212 = arith.constant 19 : index
    %c0_213 = arith.constant 0 : index
    %223 = vector.load %arg12[%c0_211, %c19_212, %c0_213] : memref<2x96x64xf32, #tpu.memory_space<vmem>>, vector<2x1x64xf32>
    %224 = arith.maximumf %222, %223 : vector<2x1x64xf32>
    %225 = arith.maximumf %221, %224 : vector<2x1x64xf32>
    %226 = vector.shape_cast %225 : vector<2x1x64xf32> to vector<2x64xf32>
    %c0_214 = arith.constant 0 : index
    %c0_215 = arith.constant 0 : index
    %227 = vector.load %arg5[%c0_214, %c0_215] : memref<1x64xf32, #tpu.memory_space<vmem>>, vector<1x64xf32>
    %228 = vector.broadcast %227 : vector<1x64xf32> to vector<2x64xf32>
    %229 = arith.addf %226, %228 : vector<2x64xf32>
    %cst_216 = arith.constant 0.000000e+00 : f32
    %230 = vector.broadcast %cst_216 : f32 to vector<2x64xf32>
    %231 = arith.maximumf %229, %230 : vector<2x64xf32>
    %c0_217 = arith.constant 0 : index
    %c192 = arith.constant 192 : index
    %232 = vector.load %arg13[%c0_217, %c192] : memref<2x1024xf32, #tpu.memory_space<vmem>>, vector<2x64xf32>
    tpu.vector_store %arg13[%c0_217, %c192], %231 {strides = array<i32>} : memref<2x1024xf32, #tpu.memory_space<vmem>>, vector<2x64xf32>,
    %c0_218 = arith.constant 0 : index
    %c24_219 = arith.constant 24 : index
    %c0_220 = arith.constant 0 : index
    %233 = vector.load %arg12[%c0_218, %c24_219, %c0_220] : memref<2x96x64xf32, #tpu.memory_space<vmem>>, vector<2x1x64xf32>
    %c0_221 = arith.constant 0 : index
    %c25_222 = arith.constant 25 : index
    %c0_223 = arith.constant 0 : index
    %234 = vector.load %arg12[%c0_221, %c25_222, %c0_223] : memref<2x96x64xf32, #tpu.memory_space<vmem>>, vector<2x1x64xf32>
    %235 = arith.maximumf %233, %234 : vector<2x1x64xf32>
    %c0_224 = arith.constant 0 : index
    %c36_225 = arith.constant 36 : index
    %c0_226 = arith.constant 0 : index
    %236 = vector.load %arg12[%c0_224, %c36_225, %c0_226] : memref<2x96x64xf32, #tpu.memory_space<vmem>>, vector<2x1x64xf32>
    %c0_227 = arith.constant 0 : index
    %c37_228 = arith.constant 37 : index
    %c0_229 = arith.constant 0 : index
    %237 = vector.load %arg12[%c0_227, %c37_228, %c0_229] : memref<2x96x64xf32, #tpu.memory_space<vmem>>, vector<2x1x64xf32>
    %238 = arith.maximumf %236, %237 : vector<2x1x64xf32>
    %239 = arith.maximumf %235, %238 : vector<2x1x64xf32>
    %240 = vector.shape_cast %239 : vector<2x1x64xf32> to vector<2x64xf32>
    %c0_230 = arith.constant 0 : index
    %c0_231 = arith.constant 0 : index
    %241 = vector.load %arg5[%c0_230, %c0_231] : memref<1x64xf32, #tpu.memory_space<vmem>>, vector<1x64xf32>
    %242 = vector.broadcast %241 : vector<1x64xf32> to vector<2x64xf32>
    %243 = arith.addf %240, %242 : vector<2x64xf32>
    %cst_232 = arith.constant 0.000000e+00 : f32
    %244 = vector.broadcast %cst_232 : f32 to vector<2x64xf32>
    %245 = arith.maximumf %243, %244 : vector<2x64xf32>
    %c0_233 = arith.constant 0 : index
    %c256 = arith.constant 256 : index
    %246 = vector.load %arg13[%c0_233, %c256] : memref<2x1024xf32, #tpu.memory_space<vmem>>, vector<2x64xf32>
    tpu.vector_store %arg13[%c0_233, %c256], %245 {strides = array<i32>} : memref<2x1024xf32, #tpu.memory_space<vmem>>, vector<2x64xf32>,
    %c0_234 = arith.constant 0 : index
    %c26_235 = arith.constant 26 : index
    %c0_236 = arith.constant 0 : index
    %247 = vector.load %arg12[%c0_234, %c26_235, %c0_236] : memref<2x96x64xf32, #tpu.memory_space<vmem>>, vector<2x1x64xf32>
    %c0_237 = arith.constant 0 : index
    %c27_238 = arith.constant 27 : index
    %c0_239 = arith.constant 0 : index
    %248 = vector.load %arg12[%c0_237, %c27_238, %c0_239] : memref<2x96x64xf32, #tpu.memory_space<vmem>>, vector<2x1x64xf32>
    %249 = arith.maximumf %247, %248 : vector<2x1x64xf32>
    %c0_240 = arith.constant 0 : index
    %c38_241 = arith.constant 38 : index
    %c0_242 = arith.constant 0 : index
    %250 = vector.load %arg12[%c0_240, %c38_241, %c0_242] : memref<2x96x64xf32, #tpu.memory_space<vmem>>, vector<2x1x64xf32>
    %c0_243 = arith.constant 0 : index
    %c39_244 = arith.constant 39 : index
    %c0_245 = arith.constant 0 : index
    %251 = vector.load %arg12[%c0_243, %c39_244, %c0_245] : memref<2x96x64xf32, #tpu.memory_space<vmem>>, vector<2x1x64xf32>
    %252 = arith.maximumf %250, %251 : vector<2x1x64xf32>
    %253 = arith.maximumf %249, %252 : vector<2x1x64xf32>
    %254 = vector.shape_cast %253 : vector<2x1x64xf32> to vector<2x64xf32>
    %c0_246 = arith.constant 0 : index
    %c0_247 = arith.constant 0 : index
    %255 = vector.load %arg5[%c0_246, %c0_247] : memref<1x64xf32, #tpu.memory_space<vmem>>, vector<1x64xf32>
    %256 = vector.broadcast %255 : vector<1x64xf32> to vector<2x64xf32>
    %257 = arith.addf %254, %256 : vector<2x64xf32>
    %cst_248 = arith.constant 0.000000e+00 : f32
    %258 = vector.broadcast %cst_248 : f32 to vector<2x64xf32>
    %259 = arith.maximumf %257, %258 : vector<2x64xf32>
    %c0_249 = arith.constant 0 : index
    %c320 = arith.constant 320 : index
    %260 = vector.load %arg13[%c0_249, %c320] : memref<2x1024xf32, #tpu.memory_space<vmem>>, vector<2x64xf32>
    tpu.vector_store %arg13[%c0_249, %c320], %259 {strides = array<i32>} : memref<2x1024xf32, #tpu.memory_space<vmem>>, vector<2x64xf32>,
    %c0_250 = arith.constant 0 : index
    %c28_251 = arith.constant 28 : index
    %c0_252 = arith.constant 0 : index
    %261 = vector.load %arg12[%c0_250, %c28_251, %c0_252] : memref<2x96x64xf32, #tpu.memory_space<vmem>>, vector<2x1x64xf32>
    %c0_253 = arith.constant 0 : index
    %c29 = arith.constant 29 : index
    %c0_254 = arith.constant 0 : index
    %262 = vector.load %arg12[%c0_253, %c29, %c0_254] : memref<2x96x64xf32, #tpu.memory_space<vmem>>, vector<2x1x64xf32>
    %263 = arith.maximumf %261, %262 : vector<2x1x64xf32>
    %c0_255 = arith.constant 0 : index
    %c40_256 = arith.constant 40 : index
    %c0_257 = arith.constant 0 : index
    %264 = vector.load %arg12[%c0_255, %c40_256, %c0_257] : memref<2x96x64xf32, #tpu.memory_space<vmem>>, vector<2x1x64xf32>
    %c0_258 = arith.constant 0 : index
    %c41 = arith.constant 41 : index
    %c0_259 = arith.constant 0 : index
    %265 = vector.load %arg12[%c0_258, %c41, %c0_259] : memref<2x96x64xf32, #tpu.memory_space<vmem>>, vector<2x1x64xf32>
    %266 = arith.maximumf %264, %265 : vector<2x1x64xf32>
    %267 = arith.maximumf %263, %266 : vector<2x1x64xf32>
    %268 = vector.shape_cast %267 : vector<2x1x64xf32> to vector<2x64xf32>
    %c0_260 = arith.constant 0 : index
    %c0_261 = arith.constant 0 : index
    %269 = vector.load %arg5[%c0_260, %c0_261] : memref<1x64xf32, #tpu.memory_space<vmem>>, vector<1x64xf32>
    %270 = vector.broadcast %269 : vector<1x64xf32> to vector<2x64xf32>
    %271 = arith.addf %268, %270 : vector<2x64xf32>
    %cst_262 = arith.constant 0.000000e+00 : f32
    %272 = vector.broadcast %cst_262 : f32 to vector<2x64xf32>
    %273 = arith.maximumf %271, %272 : vector<2x64xf32>
    %c0_263 = arith.constant 0 : index
    %c384 = arith.constant 384 : index
    %274 = vector.load %arg13[%c0_263, %c384] : memref<2x1024xf32, #tpu.memory_space<vmem>>, vector<2x64xf32>
    tpu.vector_store %arg13[%c0_263, %c384], %273 {strides = array<i32>} : memref<2x1024xf32, #tpu.memory_space<vmem>>, vector<2x64xf32>,
    %c0_264 = arith.constant 0 : index
    %c30 = arith.constant 30 : index
    %c0_265 = arith.constant 0 : index
    %275 = vector.load %arg12[%c0_264, %c30, %c0_265] : memref<2x96x64xf32, #tpu.memory_space<vmem>>, vector<2x1x64xf32>
    %c0_266 = arith.constant 0 : index
    %c31 = arith.constant 31 : index
    %c0_267 = arith.constant 0 : index
    %276 = vector.load %arg12[%c0_266, %c31, %c0_267] : memref<2x96x64xf32, #tpu.memory_space<vmem>>, vector<2x1x64xf32>
    %277 = arith.maximumf %275, %276 : vector<2x1x64xf32>
    %c0_268 = arith.constant 0 : index
    %c42 = arith.constant 42 : index
    %c0_269 = arith.constant 0 : index
    %278 = vector.load %arg12[%c0_268, %c42, %c0_269] : memref<2x96x64xf32, #tpu.memory_space<vmem>>, vector<2x1x64xf32>
    %c0_270 = arith.constant 0 : index
    %c43 = arith.constant 43 : index
    %c0_271 = arith.constant 0 : index
    %279 = vector.load %arg12[%c0_270, %c43, %c0_271] : memref<2x96x64xf32, #tpu.memory_space<vmem>>, vector<2x1x64xf32>
    %280 = arith.maximumf %278, %279 : vector<2x1x64xf32>
    %281 = arith.maximumf %277, %280 : vector<2x1x64xf32>
    %282 = vector.shape_cast %281 : vector<2x1x64xf32> to vector<2x64xf32>
    %c0_272 = arith.constant 0 : index
    %c0_273 = arith.constant 0 : index
    %283 = vector.load %arg5[%c0_272, %c0_273] : memref<1x64xf32, #tpu.memory_space<vmem>>, vector<1x64xf32>
    %284 = vector.broadcast %283 : vector<1x64xf32> to vector<2x64xf32>
    %285 = arith.addf %282, %284 : vector<2x64xf32>
    %cst_274 = arith.constant 0.000000e+00 : f32
    %286 = vector.broadcast %cst_274 : f32 to vector<2x64xf32>
    %287 = arith.maximumf %285, %286 : vector<2x64xf32>
    %c0_275 = arith.constant 0 : index
    %c448 = arith.constant 448 : index
    %288 = vector.load %arg13[%c0_275, %c448] : memref<2x1024xf32, #tpu.memory_space<vmem>>, vector<2x64xf32>
    tpu.vector_store %arg13[%c0_275, %c448], %287 {strides = array<i32>} : memref<2x1024xf32, #tpu.memory_space<vmem>>, vector<2x64xf32>,
    %c0_276 = arith.constant 0 : index
    %c48_277 = arith.constant 48 : index
    %c0_278 = arith.constant 0 : index
    %289 = vector.load %arg12[%c0_276, %c48_277, %c0_278] : memref<2x96x64xf32, #tpu.memory_space<vmem>>, vector<2x1x64xf32>
    %c0_279 = arith.constant 0 : index
    %c49_280 = arith.constant 49 : index
    %c0_281 = arith.constant 0 : index
    %290 = vector.load %arg12[%c0_279, %c49_280, %c0_281] : memref<2x96x64xf32, #tpu.memory_space<vmem>>, vector<2x1x64xf32>
    %291 = arith.maximumf %289, %290 : vector<2x1x64xf32>
    %c0_282 = arith.constant 0 : index
    %c60 = arith.constant 60 : index
    %c0_283 = arith.constant 0 : index
    %292 = vector.load %arg12[%c0_282, %c60, %c0_283] : memref<2x96x64xf32, #tpu.memory_space<vmem>>, vector<2x1x64xf32>
    %c0_284 = arith.constant 0 : index
    %c61 = arith.constant 61 : index
    %c0_285 = arith.constant 0 : index
    %293 = vector.load %arg12[%c0_284, %c61, %c0_285] : memref<2x96x64xf32, #tpu.memory_space<vmem>>, vector<2x1x64xf32>
    %294 = arith.maximumf %292, %293 : vector<2x1x64xf32>
    %295 = arith.maximumf %291, %294 : vector<2x1x64xf32>
    %296 = vector.shape_cast %295 : vector<2x1x64xf32> to vector<2x64xf32>
    %c0_286 = arith.constant 0 : index
    %c0_287 = arith.constant 0 : index
    %297 = vector.load %arg5[%c0_286, %c0_287] : memref<1x64xf32, #tpu.memory_space<vmem>>, vector<1x64xf32>
    %298 = vector.broadcast %297 : vector<1x64xf32> to vector<2x64xf32>
    %299 = arith.addf %296, %298 : vector<2x64xf32>
    %cst_288 = arith.constant 0.000000e+00 : f32
    %300 = vector.broadcast %cst_288 : f32 to vector<2x64xf32>
    %301 = arith.maximumf %299, %300 : vector<2x64xf32>
    %c0_289 = arith.constant 0 : index
    %c512 = arith.constant 512 : index
    %302 = vector.load %arg13[%c0_289, %c512] : memref<2x1024xf32, #tpu.memory_space<vmem>>, vector<2x64xf32>
    tpu.vector_store %arg13[%c0_289, %c512], %301 {strides = array<i32>} : memref<2x1024xf32, #tpu.memory_space<vmem>>, vector<2x64xf32>,
    %c0_290 = arith.constant 0 : index
    %c50_291 = arith.constant 50 : index
    %c0_292 = arith.constant 0 : index
    %303 = vector.load %arg12[%c0_290, %c50_291, %c0_292] : memref<2x96x64xf32, #tpu.memory_space<vmem>>, vector<2x1x64xf32>
    %c0_293 = arith.constant 0 : index
    %c51_294 = arith.constant 51 : index
    %c0_295 = arith.constant 0 : index
    %304 = vector.load %arg12[%c0_293, %c51_294, %c0_295] : memref<2x96x64xf32, #tpu.memory_space<vmem>>, vector<2x1x64xf32>
    %305 = arith.maximumf %303, %304 : vector<2x1x64xf32>
    %c0_296 = arith.constant 0 : index
    %c62 = arith.constant 62 : index
    %c0_297 = arith.constant 0 : index
    %306 = vector.load %arg12[%c0_296, %c62, %c0_297] : memref<2x96x64xf32, #tpu.memory_space<vmem>>, vector<2x1x64xf32>
    %c0_298 = arith.constant 0 : index
    %c63 = arith.constant 63 : index
    %c0_299 = arith.constant 0 : index
    %307 = vector.load %arg12[%c0_298, %c63, %c0_299] : memref<2x96x64xf32, #tpu.memory_space<vmem>>, vector<2x1x64xf32>
    %308 = arith.maximumf %306, %307 : vector<2x1x64xf32>
    %309 = arith.maximumf %305, %308 : vector<2x1x64xf32>
    %310 = vector.shape_cast %309 : vector<2x1x64xf32> to vector<2x64xf32>
    %c0_300 = arith.constant 0 : index
    %c0_301 = arith.constant 0 : index
    %311 = vector.load %arg5[%c0_300, %c0_301] : memref<1x64xf32, #tpu.memory_space<vmem>>, vector<1x64xf32>
    %312 = vector.broadcast %311 : vector<1x64xf32> to vector<2x64xf32>
    %313 = arith.addf %310, %312 : vector<2x64xf32>
    %cst_302 = arith.constant 0.000000e+00 : f32
    %314 = vector.broadcast %cst_302 : f32 to vector<2x64xf32>
    %315 = arith.maximumf %313, %314 : vector<2x64xf32>
    %c0_303 = arith.constant 0 : index
    %c576 = arith.constant 576 : index
    %316 = vector.load %arg13[%c0_303, %c576] : memref<2x1024xf32, #tpu.memory_space<vmem>>, vector<2x64xf32>
    tpu.vector_store %arg13[%c0_303, %c576], %315 {strides = array<i32>} : memref<2x1024xf32, #tpu.memory_space<vmem>>, vector<2x64xf32>,
    %c0_304 = arith.constant 0 : index
    %c52_305 = arith.constant 52 : index
    %c0_306 = arith.constant 0 : index
    %317 = vector.load %arg12[%c0_304, %c52_305, %c0_306] : memref<2x96x64xf32, #tpu.memory_space<vmem>>, vector<2x1x64xf32>
    %c0_307 = arith.constant 0 : index
    %c53 = arith.constant 53 : index
    %c0_308 = arith.constant 0 : index
    %318 = vector.load %arg12[%c0_307, %c53, %c0_308] : memref<2x96x64xf32, #tpu.memory_space<vmem>>, vector<2x1x64xf32>
    %319 = arith.maximumf %317, %318 : vector<2x1x64xf32>
    %c0_309 = arith.constant 0 : index
    %c64_310 = arith.constant 64 : index
    %c0_311 = arith.constant 0 : index
    %320 = vector.load %arg12[%c0_309, %c64_310, %c0_311] : memref<2x96x64xf32, #tpu.memory_space<vmem>>, vector<2x1x64xf32>
    %c0_312 = arith.constant 0 : index
    %c65 = arith.constant 65 : index
    %c0_313 = arith.constant 0 : index
    %321 = vector.load %arg12[%c0_312, %c65, %c0_313] : memref<2x96x64xf32, #tpu.memory_space<vmem>>, vector<2x1x64xf32>
    %322 = arith.maximumf %320, %321 : vector<2x1x64xf32>
    %323 = arith.maximumf %319, %322 : vector<2x1x64xf32>
    %324 = vector.shape_cast %323 : vector<2x1x64xf32> to vector<2x64xf32>
    %c0_314 = arith.constant 0 : index
    %c0_315 = arith.constant 0 : index
    %325 = vector.load %arg5[%c0_314, %c0_315] : memref<1x64xf32, #tpu.memory_space<vmem>>, vector<1x64xf32>
    %326 = vector.broadcast %325 : vector<1x64xf32> to vector<2x64xf32>
    %327 = arith.addf %324, %326 : vector<2x64xf32>
    %cst_316 = arith.constant 0.000000e+00 : f32
    %328 = vector.broadcast %cst_316 : f32 to vector<2x64xf32>
    %329 = arith.maximumf %327, %328 : vector<2x64xf32>
    %c0_317 = arith.constant 0 : index
    %c640 = arith.constant 640 : index
    %330 = vector.load %arg13[%c0_317, %c640] : memref<2x1024xf32, #tpu.memory_space<vmem>>, vector<2x64xf32>
    tpu.vector_store %arg13[%c0_317, %c640], %329 {strides = array<i32>} : memref<2x1024xf32, #tpu.memory_space<vmem>>, vector<2x64xf32>,
    %c0_318 = arith.constant 0 : index
    %c54 = arith.constant 54 : index
    %c0_319 = arith.constant 0 : index
    %331 = vector.load %arg12[%c0_318, %c54, %c0_319] : memref<2x96x64xf32, #tpu.memory_space<vmem>>, vector<2x1x64xf32>
    %c0_320 = arith.constant 0 : index
    %c55 = arith.constant 55 : index
    %c0_321 = arith.constant 0 : index
    %332 = vector.load %arg12[%c0_320, %c55, %c0_321] : memref<2x96x64xf32, #tpu.memory_space<vmem>>, vector<2x1x64xf32>
    %333 = arith.maximumf %331, %332 : vector<2x1x64xf32>
    %c0_322 = arith.constant 0 : index
    %c66 = arith.constant 66 : index
    %c0_323 = arith.constant 0 : index
    %334 = vector.load %arg12[%c0_322, %c66, %c0_323] : memref<2x96x64xf32, #tpu.memory_space<vmem>>, vector<2x1x64xf32>
    %c0_324 = arith.constant 0 : index
    %c67 = arith.constant 67 : index
    %c0_325 = arith.constant 0 : index
    %335 = vector.load %arg12[%c0_324, %c67, %c0_325] : memref<2x96x64xf32, #tpu.memory_space<vmem>>, vector<2x1x64xf32>
    %336 = arith.maximumf %334, %335 : vector<2x1x64xf32>
    %337 = arith.maximumf %333, %336 : vector<2x1x64xf32>
    %338 = vector.shape_cast %337 : vector<2x1x64xf32> to vector<2x64xf32>
    %c0_326 = arith.constant 0 : index
    %c0_327 = arith.constant 0 : index
    %339 = vector.load %arg5[%c0_326, %c0_327] : memref<1x64xf32, #tpu.memory_space<vmem>>, vector<1x64xf32>
    %340 = vector.broadcast %339 : vector<1x64xf32> to vector<2x64xf32>
    %341 = arith.addf %338, %340 : vector<2x64xf32>
    %cst_328 = arith.constant 0.000000e+00 : f32
    %342 = vector.broadcast %cst_328 : f32 to vector<2x64xf32>
    %343 = arith.maximumf %341, %342 : vector<2x64xf32>
    %c0_329 = arith.constant 0 : index
    %c704 = arith.constant 704 : index
    %344 = vector.load %arg13[%c0_329, %c704] : memref<2x1024xf32, #tpu.memory_space<vmem>>, vector<2x64xf32>
    tpu.vector_store %arg13[%c0_329, %c704], %343 {strides = array<i32>} : memref<2x1024xf32, #tpu.memory_space<vmem>>, vector<2x64xf32>,
    %c0_330 = arith.constant 0 : index
    %c72 = arith.constant 72 : index
    %c0_331 = arith.constant 0 : index
    %345 = vector.load %arg12[%c0_330, %c72, %c0_331] : memref<2x96x64xf32, #tpu.memory_space<vmem>>, vector<2x1x64xf32>
    %c0_332 = arith.constant 0 : index
    %c73 = arith.constant 73 : index
    %c0_333 = arith.constant 0 : index
    %346 = vector.load %arg12[%c0_332, %c73, %c0_333] : memref<2x96x64xf32, #tpu.memory_space<vmem>>, vector<2x1x64xf32>
    %347 = arith.maximumf %345, %346 : vector<2x1x64xf32>
    %c0_334 = arith.constant 0 : index
    %c84 = arith.constant 84 : index
    %c0_335 = arith.constant 0 : index
    %348 = vector.load %arg12[%c0_334, %c84, %c0_335] : memref<2x96x64xf32, #tpu.memory_space<vmem>>, vector<2x1x64xf32>
    %c0_336 = arith.constant 0 : index
    %c85 = arith.constant 85 : index
    %c0_337 = arith.constant 0 : index
    %349 = vector.load %arg12[%c0_336, %c85, %c0_337] : memref<2x96x64xf32, #tpu.memory_space<vmem>>, vector<2x1x64xf32>
    %350 = arith.maximumf %348, %349 : vector<2x1x64xf32>
    %351 = arith.maximumf %347, %350 : vector<2x1x64xf32>
    %352 = vector.shape_cast %351 : vector<2x1x64xf32> to vector<2x64xf32>
    %c0_338 = arith.constant 0 : index
    %c0_339 = arith.constant 0 : index
    %353 = vector.load %arg5[%c0_338, %c0_339] : memref<1x64xf32, #tpu.memory_space<vmem>>, vector<1x64xf32>
    %354 = vector.broadcast %353 : vector<1x64xf32> to vector<2x64xf32>
    %355 = arith.addf %352, %354 : vector<2x64xf32>
    %cst_340 = arith.constant 0.000000e+00 : f32
    %356 = vector.broadcast %cst_340 : f32 to vector<2x64xf32>
    %357 = arith.maximumf %355, %356 : vector<2x64xf32>
    %c0_341 = arith.constant 0 : index
    %c768 = arith.constant 768 : index
    %358 = vector.load %arg13[%c0_341, %c768] : memref<2x1024xf32, #tpu.memory_space<vmem>>, vector<2x64xf32>
    tpu.vector_store %arg13[%c0_341, %c768], %357 {strides = array<i32>} : memref<2x1024xf32, #tpu.memory_space<vmem>>, vector<2x64xf32>,
    %c0_342 = arith.constant 0 : index
    %c74 = arith.constant 74 : index
    %c0_343 = arith.constant 0 : index
    %359 = vector.load %arg12[%c0_342, %c74, %c0_343] : memref<2x96x64xf32, #tpu.memory_space<vmem>>, vector<2x1x64xf32>
    %c0_344 = arith.constant 0 : index
    %c75 = arith.constant 75 : index
    %c0_345 = arith.constant 0 : index
    %360 = vector.load %arg12[%c0_344, %c75, %c0_345] : memref<2x96x64xf32, #tpu.memory_space<vmem>>, vector<2x1x64xf32>
    %361 = arith.maximumf %359, %360 : vector<2x1x64xf32>
    %c0_346 = arith.constant 0 : index
    %c86 = arith.constant 86 : index
    %c0_347 = arith.constant 0 : index
    %362 = vector.load %arg12[%c0_346, %c86, %c0_347] : memref<2x96x64xf32, #tpu.memory_space<vmem>>, vector<2x1x64xf32>
    %c0_348 = arith.constant 0 : index
    %c87 = arith.constant 87 : index
    %c0_349 = arith.constant 0 : index
    %363 = vector.load %arg12[%c0_348, %c87, %c0_349] : memref<2x96x64xf32, #tpu.memory_space<vmem>>, vector<2x1x64xf32>
    %364 = arith.maximumf %362, %363 : vector<2x1x64xf32>
    %365 = arith.maximumf %361, %364 : vector<2x1x64xf32>
    %366 = vector.shape_cast %365 : vector<2x1x64xf32> to vector<2x64xf32>
    %c0_350 = arith.constant 0 : index
    %c0_351 = arith.constant 0 : index
    %367 = vector.load %arg5[%c0_350, %c0_351] : memref<1x64xf32, #tpu.memory_space<vmem>>, vector<1x64xf32>
    %368 = vector.broadcast %367 : vector<1x64xf32> to vector<2x64xf32>
    %369 = arith.addf %366, %368 : vector<2x64xf32>
    %cst_352 = arith.constant 0.000000e+00 : f32
    %370 = vector.broadcast %cst_352 : f32 to vector<2x64xf32>
    %371 = arith.maximumf %369, %370 : vector<2x64xf32>
    %c0_353 = arith.constant 0 : index
    %c832 = arith.constant 832 : index
    %372 = vector.load %arg13[%c0_353, %c832] : memref<2x1024xf32, #tpu.memory_space<vmem>>, vector<2x64xf32>
    tpu.vector_store %arg13[%c0_353, %c832], %371 {strides = array<i32>} : memref<2x1024xf32, #tpu.memory_space<vmem>>, vector<2x64xf32>,
    %c0_354 = arith.constant 0 : index
    %c76 = arith.constant 76 : index
    %c0_355 = arith.constant 0 : index
    %373 = vector.load %arg12[%c0_354, %c76, %c0_355] : memref<2x96x64xf32, #tpu.memory_space<vmem>>, vector<2x1x64xf32>
    %c0_356 = arith.constant 0 : index
    %c77 = arith.constant 77 : index
    %c0_357 = arith.constant 0 : index
    %374 = vector.load %arg12[%c0_356, %c77, %c0_357] : memref<2x96x64xf32, #tpu.memory_space<vmem>>, vector<2x1x64xf32>
    %375 = arith.maximumf %373, %374 : vector<2x1x64xf32>
    %c0_358 = arith.constant 0 : index
    %c88 = arith.constant 88 : index
    %c0_359 = arith.constant 0 : index
    %376 = vector.load %arg12[%c0_358, %c88, %c0_359] : memref<2x96x64xf32, #tpu.memory_space<vmem>>, vector<2x1x64xf32>
    %c0_360 = arith.constant 0 : index
    %c89 = arith.constant 89 : index
    %c0_361 = arith.constant 0 : index
    %377 = vector.load %arg12[%c0_360, %c89, %c0_361] : memref<2x96x64xf32, #tpu.memory_space<vmem>>, vector<2x1x64xf32>
    %378 = arith.maximumf %376, %377 : vector<2x1x64xf32>
    %379 = arith.maximumf %375, %378 : vector<2x1x64xf32>
    %380 = vector.shape_cast %379 : vector<2x1x64xf32> to vector<2x64xf32>
    %c0_362 = arith.constant 0 : index
    %c0_363 = arith.constant 0 : index
    %381 = vector.load %arg5[%c0_362, %c0_363] : memref<1x64xf32, #tpu.memory_space<vmem>>, vector<1x64xf32>
    %382 = vector.broadcast %381 : vector<1x64xf32> to vector<2x64xf32>
    %383 = arith.addf %380, %382 : vector<2x64xf32>
    %cst_364 = arith.constant 0.000000e+00 : f32
    %384 = vector.broadcast %cst_364 : f32 to vector<2x64xf32>
    %385 = arith.maximumf %383, %384 : vector<2x64xf32>
    %c0_365 = arith.constant 0 : index
    %c896 = arith.constant 896 : index
    %386 = vector.load %arg13[%c0_365, %c896] : memref<2x1024xf32, #tpu.memory_space<vmem>>, vector<2x64xf32>
    tpu.vector_store %arg13[%c0_365, %c896], %385 {strides = array<i32>} : memref<2x1024xf32, #tpu.memory_space<vmem>>, vector<2x64xf32>,
    %c0_366 = arith.constant 0 : index
    %c78 = arith.constant 78 : index
    %c0_367 = arith.constant 0 : index
    %387 = vector.load %arg12[%c0_366, %c78, %c0_367] : memref<2x96x64xf32, #tpu.memory_space<vmem>>, vector<2x1x64xf32>
    %c0_368 = arith.constant 0 : index
    %c79 = arith.constant 79 : index
    %c0_369 = arith.constant 0 : index
    %388 = vector.load %arg12[%c0_368, %c79, %c0_369] : memref<2x96x64xf32, #tpu.memory_space<vmem>>, vector<2x1x64xf32>
    %389 = arith.maximumf %387, %388 : vector<2x1x64xf32>
    %c0_370 = arith.constant 0 : index
    %c90 = arith.constant 90 : index
    %c0_371 = arith.constant 0 : index
    %390 = vector.load %arg12[%c0_370, %c90, %c0_371] : memref<2x96x64xf32, #tpu.memory_space<vmem>>, vector<2x1x64xf32>
    %c0_372 = arith.constant 0 : index
    %c91 = arith.constant 91 : index
    %c0_373 = arith.constant 0 : index
    %391 = vector.load %arg12[%c0_372, %c91, %c0_373] : memref<2x96x64xf32, #tpu.memory_space<vmem>>, vector<2x1x64xf32>
    %392 = arith.maximumf %390, %391 : vector<2x1x64xf32>
    %393 = arith.maximumf %389, %392 : vector<2x1x64xf32>
    %394 = vector.shape_cast %393 : vector<2x1x64xf32> to vector<2x64xf32>
    %c0_374 = arith.constant 0 : index
    %c0_375 = arith.constant 0 : index
    %395 = vector.load %arg5[%c0_374, %c0_375] : memref<1x64xf32, #tpu.memory_space<vmem>>, vector<1x64xf32>
    %396 = vector.broadcast %395 : vector<1x64xf32> to vector<2x64xf32>
    %397 = arith.addf %394, %396 : vector<2x64xf32>
    %cst_376 = arith.constant 0.000000e+00 : f32
    %398 = vector.broadcast %cst_376 : f32 to vector<2x64xf32>
    %399 = arith.maximumf %397, %398 : vector<2x64xf32>
    %c0_377 = arith.constant 0 : index
    %c960 = arith.constant 960 : index
    %400 = vector.load %arg13[%c0_377, %c960] : memref<2x1024xf32, #tpu.memory_space<vmem>>, vector<2x64xf32>
    tpu.vector_store %arg13[%c0_377, %c960], %399 {strides = array<i32>} : memref<2x1024xf32, #tpu.memory_space<vmem>>, vector<2x64xf32>,
    %c0_378 = arith.constant 0 : index
    %c0_379 = arith.constant 0 : index
    %401 = vector.load %arg13[%c0_378, %c0_379] : memref<2x1024xf32, #tpu.memory_space<vmem>>, vector<2x1024xf32>
    %c0_380 = arith.constant 0 : index
    %c0_381 = arith.constant 0 : index
    %402 = vector.load %arg6[%c0_380, %c0_381] : memref<1024x512xf32, #tpu.memory_space<vmem>>, vector<1024x512xf32>
    %cst_382 = arith.constant dense<0.000000e+00> : vector<2x512xf32>
    %403 = tpu.matmul %401, %402, %cst_382 {dimension_numbers = #tpu.dot_dimension_numbers<[1], [0], [0], [1], [0, 0, 1, 1], [], []>} : vector<2x1024xf32>, vector<1024x512xf32>, vector<2x512xf32> -> vector<2x512xf32>
    %c0_383 = arith.constant 0 : index
    %c0_384 = arith.constant 0 : index
    %404 = vector.load %arg7[%c0_383, %c0_384] : memref<1x512xf32, #tpu.memory_space<vmem>>, vector<1x512xf32>
    %405 = vector.broadcast %404 : vector<1x512xf32> to vector<2x512xf32>
    %406 = arith.addf %403, %405 : vector<2x512xf32>
    %cst_385 = arith.constant 0.000000e+00 : f32
    %407 = vector.broadcast %cst_385 : f32 to vector<2x512xf32>
    %408 = arith.maximumf %406, %407 : vector<2x512xf32>
    %c0_386 = arith.constant 0 : index
    %c0_387 = arith.constant 0 : index
    %409 = vector.load %arg8[%c0_386, %c0_387] : memref<512x128xf32, #tpu.memory_space<vmem>>, vector<512x128xf32>
    %cst_388 = arith.constant dense<0.000000e+00> : vector<2x128xf32>
    %410 = tpu.matmul %408, %409, %cst_388 {dimension_numbers = #tpu.dot_dimension_numbers<[1], [0], [0], [1], [0, 0, 1, 1], [], []>} : vector<2x512xf32>, vector<512x128xf32>, vector<2x128xf32> -> vector<2x128xf32>
    %c0_389 = arith.constant 0 : index
    %c0_390 = arith.constant 0 : index
    %411 = vector.load %arg9[%c0_389, %c0_390] : memref<1x128xf32, #tpu.memory_space<vmem>>, vector<1x128xf32>
    %412 = vector.broadcast %411 : vector<1x128xf32> to vector<2x128xf32>
    %413 = arith.addf %410, %412 : vector<2x128xf32>
    %414 = tpu.iota {dimensions = array<i32: 1>} : vector<2x128xi32>
    %c10_i32 = arith.constant 10 : i32
    %415 = vector.broadcast %c10_i32 : i32 to vector<2x128xi32>
    %416 = arith.cmpi slt, %414, %415 : vector<2x128xi32>
    %cst_391 = arith.constant -1.000000e+30 : f32
    %417 = vector.broadcast %cst_391 : f32 to vector<2x128xf32>
    %418 = arith.select %416, %413, %417 : vector<2x128xi1>, vector<2x128xf32>
    %cst_392 = arith.constant dense<0xFF800000> : vector<2xf32>
    %419 = vector.multi_reduction <maximumf>, %418, %cst_392 [1] : vector<2x128xf32> to vector<2xf32>
    %420 = vector.shape_cast %419 : vector<2xf32> to vector<2x1xf32>
    %421 = vector.broadcast %420 : vector<2x1xf32> to vector<2x128xf32>
    %422 = arith.subf %413, %421 : vector<2x128xf32>
    %423 = math.exp %422 : vector<2x128xf32>
    %cst_393 = arith.constant 0.000000e+00 : f32
    %424 = vector.broadcast %cst_393 : f32 to vector<2x128xf32>
    %425 = arith.select %416, %423, %424 : vector<2x128xi1>, vector<2x128xf32>
    %cst_394 = arith.constant dense<0.000000e+00> : vector<2xf32>
    %426 = vector.multi_reduction <add>, %425, %cst_394 [1] : vector<2x128xf32> to vector<2xf32>
    %427 = vector.shape_cast %426 : vector<2xf32> to vector<2x1xf32>
    %428 = math.log %427 : vector<2x1xf32>
    %429 = vector.broadcast %428 : vector<2x1xf32> to vector<2x128xf32>
    %430 = arith.subf %422, %429 : vector<2x128xf32>
    %cst_395 = arith.constant 0.000000e+00 : f32
    %431 = vector.broadcast %cst_395 : f32 to vector<2x128xf32>
    %432 = arith.select %416, %430, %431 : vector<2x128xi1>, vector<2x128xf32>
    %c0_396 = arith.constant 0 : index
    %c0_397 = arith.constant 0 : index
    %433 = vector.load %arg10[%c0_396, %c0_397] : memref<2x128xf32, #tpu.memory_space<vmem>>, vector<2x128xf32>
    tpu.vector_store %arg10[%c0_396, %c0_397], %432 {strides = array<i32>} : memref<2x128xf32, #tpu.memory_space<vmem>>, vector<2x128xf32>,
    return
  }
  func.func @transform_0(%arg0: i32) -> (i32, i32, i32) {
    %c0_i32 = arith.constant 0 : i32
    %c0_i32_0 = arith.constant 0 : i32
    %c0_i32_1 = arith.constant 0 : i32
    return %arg0, %c0_i32, %c0_i32_0 : i32, i32, i32
  }
  func.func @transform_1(%arg0: i32) -> (i32, i32) {
    %c0_i32 = arith.constant 0 : i32
    %c0_i32_0 = arith.constant 0 : i32
    %c0_i32_1 = arith.constant 0 : i32
    return %c0_i32, %c0_i32_0 : i32, i32
  }
  func.func @transform_2(%arg0: i32) -> (i32, i32) {
    %c0_i32 = arith.constant 0 : i32
    %c0_i32_0 = arith.constant 0 : i32
    %c0_i32_1 = arith.constant 0 : i32
    return %c0_i32, %c0_i32_0 : i32, i32
  }
  func.func @transform_3(%arg0: i32) -> (i32, i32, i32) {
    %c0_i32 = arith.constant 0 : i32
    %c0_i32_0 = arith.constant 0 : i32
    %c0_i32_1 = arith.constant 0 : i32
    %c0_i32_2 = arith.constant 0 : i32
    return %c0_i32, %c0_i32_0, %c0_i32_1 : i32, i32, i32
  }
  func.func @transform_4(%arg0: i32) -> (i32, i32) {
    %c0_i32 = arith.constant 0 : i32
    %c0_i32_0 = arith.constant 0 : i32
    %c0_i32_1 = arith.constant 0 : i32
    return %c0_i32, %c0_i32_0 : i32, i32
  }
  func.func @transform_5(%arg0: i32) -> (i32, i32) {
    %c0_i32 = arith.constant 0 : i32
    %c0_i32_0 = arith.constant 0 : i32
    %c0_i32_1 = arith.constant 0 : i32
    return %c0_i32, %c0_i32_0 : i32, i32
  }
  func.func @transform_6(%arg0: i32) -> (i32, i32) {
    %c0_i32 = arith.constant 0 : i32
    %c0_i32_0 = arith.constant 0 : i32
    %c0_i32_1 = arith.constant 0 : i32
    return %c0_i32, %c0_i32_0 : i32, i32
  }
  func.func @transform_7(%arg0: i32) -> (i32, i32) {
    %c0_i32 = arith.constant 0 : i32
    %c0_i32_0 = arith.constant 0 : i32
    %c0_i32_1 = arith.constant 0 : i32
    return %c0_i32, %c0_i32_0 : i32, i32
  }
  func.func @transform_8(%arg0: i32) -> (i32, i32) {
    %c0_i32 = arith.constant 0 : i32
    %c0_i32_0 = arith.constant 0 : i32
    %c0_i32_1 = arith.constant 0 : i32
    return %c0_i32, %c0_i32_0 : i32, i32
  }
  func.func @transform_9(%arg0: i32) -> (i32, i32) {
    %c0_i32 = arith.constant 0 : i32
    %c0_i32_0 = arith.constant 0 : i32
    return %arg0, %c0_i32 : i32, i32
  }
}

</mosaic_0001>

<llo_original>
// kernel: net_forward.1
$region0: #{net_forward.1}
  #allocation0 [shape = 'u32[]', space=smem, size = 0x4, offset = 0x4, fixed_abs, tag = 'smem constant byte address 0x4 - core index']
  #allocation1 [shape = 'u32[144,128]{1,0:T(1,128)}', space=vmem, size = 0x12000, scoped, tag = 'internal scratch']
  #allocation2 [shape = 'f32[2,152,32]{2,1,0:T(8,128)}', space=vmem, size = 0x26000, scoped, tag = 'scratch operand']
  #allocation3 [shape = 'f32[2,96,64]{2,1,0:T(8,128)}', space=vmem, size = 0x18000, scoped, tag = 'scratch operand']
  #allocation4 [shape = 'f32[2,1024]{1,0:T(2,128)}', space=vmem, size = 0x2000, scoped, tag = 'scratch operand']
  %s0 = inlined_call_operand.vmem [shape: f32[2,576,32], index: 0, kind: input, shape index: {}]
  %s1 = inlined_call_operand.vmem [shape: f32[32,32], index: 1, kind: input, shape index: {}]
  %s2 = inlined_call_operand.vmem [shape: f32[1,32], index: 2, kind: input, shape index: {}]
  %s3 = inlined_call_operand.vmem [shape: f32[25,32,64], index: 3, kind: input, shape index: {}]
  %s4 = inlined_call_operand.vmem [shape: f32[1,64], index: 4, kind: input, shape index: {}]
  %s5 = inlined_call_operand.vmem [shape: f32[1024,512], index: 5, kind: input, shape index: {}]
  %s6 = inlined_call_operand.vmem [shape: f32[1,512], index: 6, kind: input, shape index: {}]
  %s7 = inlined_call_operand.vmem [shape: f32[512,128], index: 7, kind: input, shape index: {}]
  %s8 = inlined_call_operand.vmem [shape: f32[1,128], index: 8, kind: input, shape index: {}]
  %s9 = inlined_call_operand.hbm [shape: f32[2,128], index: 9, kind: output, shape index: {}]
  %s10 = sld [smem:[#allocation0]]
  $region46: #{net_forward.1} parent=0
    _
  %s12 = ssub.s32 1, %s10
  %s13 = scalar_select 0, %s12, %s10
  $region1: #{net_forward.1} parent=0
    #allocation5 [shape = 'u8[1024]{0}', space=vmem, size = 0x400, scoped, tag = 'output window, operand 0, single buffered']
    #allocation6 [shape = 's32[1]{0}', space=sflag, size = 0x4, scoped, tag = 'scoped memory for net_forward.1']
    %14 = vsyncpa [#allocation6], 0
    // Predicated region
    $region2: #{net_forward.1} parent=1 // pred_check
      _
    $region3: #{net_forward.1} parent=1 // pred_check_branch
      %16 = sbr.rel (0) target = $region5
    $region4: #{net_forward.1} parent=1 // pred_region
      _
    $region5: #{net_forward.1} parent=1 // pred_fallthru
      _
    // Predicated region
    $region6: #{net_forward.1} parent=1 // pred_check
      _
    $region7: #{net_forward.1} parent=1 // pred_check_branch
      %18 = sbr.rel (0) target = $region9
    $region8: #{net_forward.1} parent=1 // pred_region
      _
    $region9: #{net_forward.1} parent=1 // pred_fallthru
      _
    // Predicated region
    $region10: #{net_forward.1} parent=1 // pred_check
      _
    $region11: #{net_forward.1} parent=1 // pred_check_branch
      %20 = sbr.rel (0) target = $region13
    $region12: #{net_forward.1} parent=1 // pred_region
      _
    $region13: #{net_forward.1} parent=1 // pred_fallthru
      _
    // Predicated region
    $region14: #{net_forward.1} parent=1 // pred_check
      _
    $region15: #{net_forward.1} parent=1 // pred_check_branch
      %22 = sbr.rel (0) target = $region17
    $region16: #{net_forward.1} parent=1 // pred_region
      _
    $region17: #{net_forward.1} parent=1 // pred_fallthru
      _
    // Predicated region
    $region18: #{net_forward.1} parent=1 // pred_check
      _
    $region19: #{net_forward.1} parent=1 // pred_check_branch
      %24 = sbr.rel (0) target = $region21
    $region20: #{net_forward.1} parent=1 // pred_region
      _
    $region21: #{net_forward.1} parent=1 // pred_fallthru
      _
    // Predicated region
    $region22: #{net_forward.1} parent=1 // pred_check
      _
    $region23: #{net_forward.1} parent=1 // pred_check_branch
      %26 = sbr.rel (0) target = $region25
    $region24: #{net_forward.1} parent=1 // pred_region
      _
    $region25: #{net_forward.1} parent=1 // pred_fallthru
      _
    // Predicated region
    $region26: #{net_forward.1} parent=1 // pred_check
      _
    $region27: #{net_forward.1} parent=1 // pred_check_branch
      %28 = sbr.rel (0) target = $region29
    $region28: #{net_forward.1} parent=1 // pred_region
      _
    $region29: #{net_forward.1} parent=1 // pred_fallthru
      _
    // Predicated region
    $region30: #{net_forward.1} parent=1 // pred_check
      _
    $region31: #{net_forward.1} parent=1 // pred_check_branch
      %30 = sbr.rel (0) target = $region33
    $region32: #{net_forward.1} parent=1 // pred_region
      _
    $region33: #{net_forward.1} parent=1 // pred_fallthru
      _
    // Predicated region
    $region34: #{net_forward.1} parent=1 // pred_check
      _
    $region35: #{net_forward.1} parent=1 // pred_check_branch
      %32 = sbr.rel (0) target = $region37
    $region36: #{net_forward.1} parent=1 // pred_region
      _
    $region37: #{net_forward.1} parent=1 // pred_fallthru
      _
    %v33 = vld [vmem:[%s0] sm:$0xff]
    %v34 = vld [vmem:[%s0 + $0x8] sm:$0xff]
    %v35 = vld [vmem:[%s0 + $0x10] sm:$0xff]
    %v36 = vld [vmem:[%s0 + $0x18] sm:$0xff]
    %v37 = vld [vmem:[%s0 + $0x20] sm:$0xff]
    %v38 = vld [vmem:[%s0 + $0x28] sm:$0xff]
    %v39 = vld [vmem:[%s0 + $0x30] sm:$0xff]
    %v40 = vld [vmem:[%s0 + $0x38] sm:$0xff]
    %v41 = vld [vmem:[%s0 + $0x40] sm:$0xff]
    %v42 = vld [vmem:[%s0 + $0x48] sm:$0xff]
    %v43 = vld [vmem:[%s0 + $0x50] sm:$0xff]
    %v44 = vld [vmem:[%s0 + $0x58] sm:$0xff]
    %v45 = vld [vmem:[%s0 + $0x60] sm:$0xff]
    %v46 = vld [vmem:[%s0 + $0x68] sm:$0xff]
    %v47 = vld [vmem:[%s0 + $0x70] sm:$0xff]
    %v48 = vld [vmem:[%s0 + $0x78] sm:$0xff]
    %v49 = vld [vmem:[%s0 + $0x80] sm:$0xff]
    %v50 = vld [vmem:[%s0 + $0x88] sm:$0xff]
    %v51 = vld [vmem:[%s0 + $0x90] sm:$0xff]
    %v52 = vld [vmem:[%s0 + $0x98] sm:$0xff]
    %v53 = vld [vmem:[%s0 + $0xa0] sm:$0xff]
    %v54 = vld [vmem:[%s0 + $0xa8] sm:$0xff]
    %v55 = vld [vmem:[%s0 + $0xb0] sm:$0xff]
    %v56 = vld [vmem:[%s0 + $0xb8] sm:$0xff]
    %v57 = vld [vmem:[%s0 + $0xc0] sm:$0xff]
    %v58 = vld [vmem:[%s0 + $0xc8] sm:$0xff]
    %v59 = vld [vmem:[%s0 + $0xd0] sm:$0xff]
    %v60 = vld [vmem:[%s0 + $0xd8] sm:$0xff]
    %v61 = vld [vmem:[%s0 + $0xe0] sm:$0xff]
    %v62 = vld [vmem:[%s0 + $0xe8] sm:$0xff]
    %v63 = vld [vmem:[%s0 + $0xf0] sm:$0xff]
    %v64 = vld [vmem:[%s0 + $0xf8] sm:$0xff]
    %v65 = vld [vmem:[%s0 + $0x100] sm:$0xff]
    %v66 = vld [vmem:[%s0 + $0x108] sm:$0xff]
    %v67 = vld [vmem:[%s0 + $0x110] sm:$0xff]
    %v68 = vld [vmem:[%s0 + $0x118] sm:$0xff]
    %v69 = vld [vmem:[%s0 + $0x120] sm:$0xff]
    %v70 = vld [vmem:[%s0 + $0x128] sm:$0xff]
    %v71 = vld [vmem:[%s0 + $0x130] sm:$0xff]
    %v72 = vld [vmem:[%s0 + $0x138] sm:$0xff]
    %v73 = vld [vmem:[%s0 + $0x140] sm:$0xff]
    %v74 = vld [vmem:[%s0 + $0x148] sm:$0xff]
    %v75 = vld [vmem:[%s0 + $0x150] sm:$0xff]
    %v76 = vld [vmem:[%s0 + $0x158] sm:$0xff]
    %v77 = vld [vmem:[%s0 + $0x160] sm:$0xff]
    %v78 = vld [vmem:[%s0 + $0x168] sm:$0xff]
    %v79 = vld [vmem:[%s0 + $0x170] sm:$0xff]
    %v80 = vld [vmem:[%s0 + $0x178] sm:$0xff]
    %v81 = vld [vmem:[%s0 + $0x180] sm:$0xff]
    %v82 = vld [vmem:[%s0 + $0x188] sm:$0xff]
    %v83 = vld [vmem:[%s0 + $0x190] sm:$0xff]
    %v84 = vld [vmem:[%s0 + $0x198] sm:$0xff]
    %v85 = vld [vmem:[%s0 + $0x1a0] sm:$0xff]
    %v86 = vld [vmem:[%s0 + $0x1a8] sm:$0xff]
    %v87 = vld [vmem:[%s0 + $0x1b0] sm:$0xff]
    %v88 = vld [vmem:[%s0 + $0x1b8] sm:$0xff]
    %v89 = vld [vmem:[%s0 + $0x1c0] sm:$0xff]
    %v90 = vld [vmem:[%s0 + $0x1c8] sm:$0xff]
    %v91 = vld [vmem:[%s0 + $0x1d0] sm:$0xff]
    %v92 = vld [vmem:[%s0 + $0x1d8] sm:$0xff]
    %v93 = vld [vmem:[%s0 + $0x1e0] sm:$0xff]
    %v94 = vld [vmem:[%s0 + $0x1e8] sm:$0xff]
    %v95 = vld [vmem:[%s0 + $0x1f0] sm:$0xff]
    %v96 = vld [vmem:[%s0 + $0x1f8] sm:$0xff]
    %v97 = vld [vmem:[%s0 + $0x200] sm:$0xff]
    %v98 = vld [vmem:[%s0 + $0x208] sm:$0xff]
    %v99 = vld [vmem:[%s0 + $0x210] sm:$0xff]
    %v100 = vld [vmem:[%s0 + $0x218] sm:$0xff]
    %v101 = vld [vmem:[%s0 + $0x220] sm:$0xff]
    %v102 = vld [vmem:[%s0 + $0x228] sm:$0xff]
    %v103 = vld [vmem:[%s0 + $0x230] sm:$0xff]
    %v104 = vld [vmem:[%s0 + $0x238] sm:$0xff]
    %v105 = vld [vmem:[%s0 + $0x240] sm:$0xff]
    %v106 = vld [vmem:[%s0 + $0x248] sm:$0xff]
    %v107 = vld [vmem:[%s0 + $0x250] sm:$0xff]
    %v108 = vld [vmem:[%s0 + $0x258] sm:$0xff]
    %v109 = vld [vmem:[%s0 + $0x260] sm:$0xff]
    %v110 = vld [vmem:[%s0 + $0x268] sm:$0xff]
    %v111 = vld [vmem:[%s0 + $0x270] sm:$0xff]
    %v112 = vld [vmem:[%s0 + $0x278] sm:$0xff]
    %v113 = vld [vmem:[%s0 + $0x280] sm:$0xff]
    %v114 = vld [vmem:[%s0 + $0x288] sm:$0xff]
    %v115 = vld [vmem:[%s0 + $0x290] sm:$0xff]
    %v116 = vld [vmem:[%s0 + $0x298] sm:$0xff]
    %v117 = vld [vmem:[%s0 + $0x2a0] sm:$0xff]
    %v118 = vld [vmem:[%s0 + $0x2a8] sm:$0xff]
    %v119 = vld [vmem:[%s0 + $0x2b0] sm:$0xff]
    %v120 = vld [vmem:[%s0 + $0x2b8] sm:$0xff]
    %v121 = vld [vmem:[%s0 + $0x2c0] sm:$0xff]
    %v122 = vld [vmem:[%s0 + $0x2c8] sm:$0xff]
    %v123 = vld [vmem:[%s0 + $0x2d0] sm:$0xff]
    %v124 = vld [vmem:[%s0 + $0x2d8] sm:$0xff]
    %v125 = vld [vmem:[%s0 + $0x2e0] sm:$0xff]
    %v126 = vld [vmem:[%s0 + $0x2e8] sm:$0xff]
    %v127 = vld [vmem:[%s0 + $0x2f0] sm:$0xff]
    %v128 = vld [vmem:[%s0 + $0x2f8] sm:$0xff]
    %v129 = vld [vmem:[%s0 + $0x300] sm:$0xff]
    %v130 = vld [vmem:[%s0 + $0x308] sm:$0xff]
    %v131 = vld [vmem:[%s0 + $0x310] sm:$0xff]
    %v132 = vld [vmem:[%s0 + $0x318] sm:$0xff]
    %v133 = vld [vmem:[%s0 + $0x320] sm:$0xff]
    %v134 = vld [vmem:[%s0 + $0x328] sm:$0xff]
    %v135 = vld [vmem:[%s0 + $0x330] sm:$0xff]
    %v136 = vld [vmem:[%s0 + $0x338] sm:$0xff]
    %v137 = vld [vmem:[%s0 + $0x340] sm:$0xff]
    %v138 = vld [vmem:[%s0 + $0x348] sm:$0xff]
    %v139 = vld [vmem:[%s0 + $0x350] sm:$0xff]
    %v140 = vld [vmem:[%s0 + $0x358] sm:$0xff]
    %v141 = vld [vmem:[%s0 + $0x360] sm:$0xff]
    %v142 = vld [vmem:[%s0 + $0x368] sm:$0xff]
    %v143 = vld [vmem:[%s0 + $0x370] sm:$0xff]
    %v144 = vld [vmem:[%s0 + $0x378] sm:$0xff]
    %v145 = vld [vmem:[%s0 + $0x380] sm:$0xff]
    %v146 = vld [vmem:[%s0 + $0x388] sm:$0xff]
    %v147 = vld [vmem:[%s0 + $0x390] sm:$0xff]
    %v148 = vld [vmem:[%s0 + $0x398] sm:$0xff]
    %v149 = vld [vmem:[%s0 + $0x3a0] sm:$0xff]
    %v150 = vld [vmem:[%s0 + $0x3a8] sm:$0xff]
    %v151 = vld [vmem:[%s0 + $0x3b0] sm:$0xff]
    %v152 = vld [vmem:[%s0 + $0x3b8] sm:$0xff]
    %v153 = vld [vmem:[%s0 + $0x3c0] sm:$0xff]
    %v154 = vld [vmem:[%s0 + $0x3c8] sm:$0xff]
    %v155 = vld [vmem:[%s0 + $0x3d0] sm:$0xff]
    %v156 = vld [vmem:[%s0 + $0x3d8] sm:$0xff]
    %v157 = vld [vmem:[%s0 + $0x3e0] sm:$0xff]
    %v158 = vld [vmem:[%s0 + $0x3e8] sm:$0xff]
    %v159 = vld [vmem:[%s0 + $0x3f0] sm:$0xff]
    %v160 = vld [vmem:[%s0 + $0x3f8] sm:$0xff]
    %v161 = vld [vmem:[%s0 + $0x400] sm:$0xff]
    %v162 = vld [vmem:[%s0 + $0x408] sm:$0xff]
    %v163 = vld [vmem:[%s0 + $0x410] sm:$0xff]
    %v164 = vld [vmem:[%s0 + $0x418] sm:$0xff]
    %v165 = vld [vmem:[%s0 + $0x420] sm:$0xff]
    %v166 = vld [vmem:[%s0 + $0x428] sm:$0xff]
    %v167 = vld [vmem:[%s0 + $0x430] sm:$0xff]
    %v168 = vld [vmem:[%s0 + $0x438] sm:$0xff]
    %v169 = vld [vmem:[%s0 + $0x440] sm:$0xff]
    %v170 = vld [vmem:[%s0 + $0x448] sm:$0xff]
    %v171 = vld [vmem:[%s0 + $0x450] sm:$0xff]
    %v172 = vld [vmem:[%s0 + $0x458] sm:$0xff]
    %v173 = vld [vmem:[%s0 + $0x460] sm:$0xff]
    %v174 = vld [vmem:[%s0 + $0x468] sm:$0xff]
    %v175 = vld [vmem:[%s0 + $0x470] sm:$0xff]
    %v176 = vld [vmem:[%s0 + $0x478] sm:$0xff]
    %v177 = vld [vmem:[%s1] sm:$0xff]
    %v178 = vld [vmem:[%s1 + $0x8] sm:$0xff]
    %v179 = vld [vmem:[%s1 + $0x10] sm:$0xff]
    %v180 = vld [vmem:[%s1 + $0x18] sm:$0xff]
    %vm181 = vcmask 261120
    %v183 = vsel %vm181, %v33, 0
    %v186 = vsel %vm181, %v34, 0
    %v189 = vsel %vm181, %v35, 0
    %v192 = vsel %vm181, %v36, 0
    %v195 = vsel %vm181, %v37, 0
    %v198 = vsel %vm181, %v38, 0
    %v201 = vsel %vm181, %v39, 0
    %v204 = vsel %vm181, %v40, 0
    %v207 = vsel %vm181, %v41, 0
    %v210 = vsel %vm181, %v42, 0
    %v213 = vsel %vm181, %v43, 0
    %v216 = vsel %vm181, %v44, 0
    %v219 = vsel %vm181, %v45, 0
    %v222 = vsel %vm181, %v46, 0
    %v225 = vsel %vm181, %v47, 0
    %v228 = vsel %vm181, %v48, 0
    %v231 = vsel %vm181, %v49, 0
    %v234 = vsel %vm181, %v50, 0
    %v237 = vsel %vm181, %v51, 0
    %v240 = vsel %vm181, %v52, 0
    %v243 = vsel %vm181, %v53, 0
    %v246 = vsel %vm181, %v54, 0
    %v249 = vsel %vm181, %v55, 0
    %v252 = vsel %vm181, %v56, 0
    %v255 = vsel %vm181, %v57, 0
    %v258 = vsel %vm181, %v58, 0
    %v261 = vsel %vm181, %v59, 0
    %v264 = vsel %vm181, %v60, 0
    %v267 = vsel %vm181, %v61, 0
    %v270 = vsel %vm181, %v62, 0
    %v273 = vsel %vm181, %v63, 0
    %v276 = vsel %vm181, %v64, 0
    %v279 = vsel %vm181, %v65, 0
    %v282 = vsel %vm181, %v66, 0
    %v285 = vsel %vm181, %v67, 0
    %v288 = vsel %vm181, %v68, 0
    %v291 = vsel %vm181, %v69, 0
    %v294 = vsel %vm181, %v70, 0
    %v297 = vsel %vm181, %v71, 0
    %v300 = vsel %vm181, %v72, 0
    %v303 = vsel %vm181, %v73, 0
    %v306 = vsel %vm181, %v74, 0
    %v309 = vsel %vm181, %v75, 0
    %v312 = vsel %vm181, %v76, 0
    %v315 = vsel %vm181, %v77, 0
    %v318 = vsel %vm181, %v78, 0
    %v321 = vsel %vm181, %v79, 0
    %v324 = vsel %vm181, %v80, 0
    %v327 = vsel %vm181, %v81, 0
    %v330 = vsel %vm181, %v82, 0
    %v333 = vsel %vm181, %v83, 0
    %v336 = vsel %vm181, %v84, 0
    %v339 = vsel %vm181, %v85, 0
    %v342 = vsel %vm181, %v86, 0
    %v345 = vsel %vm181, %v87, 0
    %v348 = vsel %vm181, %v88, 0
    %v351 = vsel %vm181, %v89, 0
    %v354 = vsel %vm181, %v90, 0
    %v357 = vsel %vm181, %v91, 0
    %v360 = vsel %vm181, %v92, 0
    %v363 = vsel %vm181, %v93, 0
    %v366 = vsel %vm181, %v94, 0
    %v369 = vsel %vm181, %v95, 0
    %v372 = vsel %vm181, %v96, 0
    %v375 = vsel %vm181, %v97, 0
    %v378 = vsel %vm181, %v98, 0
    %v381 = vsel %vm181, %v99, 0
    %v384 = vsel %vm181, %v100, 0
    %v387 = vsel %vm181, %v101, 0
    %v390 = vsel %vm181, %v102, 0
    %v393 = vsel %vm181, %v103, 0
    %v396 = vsel %vm181, %v104, 0
    %v399 = vsel %vm181, %v105, 0
    %v402 = vsel %vm181, %v106, 0
    %v405 = vsel %vm181, %v107, 0
    %v408 = vsel %vm181, %v108, 0
    %v411 = vsel %vm181, %v109, 0
    %v414 = vsel %vm181, %v110, 0
    %v417 = vsel %vm181, %v111, 0
    %v420 = vsel %vm181, %v112, 0
    %v423 = vsel %vm181, %v113, 0
    %v426 = vsel %vm181, %v114, 0
    %v429 = vsel %vm181, %v115, 0
    %v432 = vsel %vm181, %v116, 0
    %v435 = vsel %vm181, %v117, 0
    %v438 = vsel %vm181, %v118, 0
    %v441 = vsel %vm181, %v119, 0
    %v444 = vsel %vm181, %v120, 0
    %v447 = vsel %vm181, %v121, 0
    %v450 = vsel %vm181, %v122, 0
    %v453 = vsel %vm181, %v123, 0
    %v456 = vsel %vm181, %v124, 0
    %v459 = vsel %vm181, %v125, 0
    %v462 = vsel %vm181, %v126, 0
    %v465 = vsel %vm181, %v127, 0
    %v468 = vsel %vm181, %v128, 0
    %v471 = vsel %vm181, %v129, 0
    %v474 = vsel %vm181, %v130, 0
    %v477 = vsel %vm181, %v131, 0
    %v480 = vsel %vm181, %v132, 0
    %v483 = vsel %vm181, %v133, 0
    %v486 = vsel %vm181, %v134, 0
    %v489 = vsel %vm181, %v135, 0
    %v492 = vsel %vm181, %v136, 0
    %v495 = vsel %vm181, %v137, 0
    %v498 = vsel %vm181, %v138, 0
    %v501 = vsel %vm181, %v139, 0
    %v504 = vsel %vm181, %v140, 0
    %v507 = vsel %vm181, %v141, 0
    %v510 = vsel %vm181, %v142, 0
    %v513 = vsel %vm181, %v143, 0
    %v516 = vsel %vm181, %v144, 0
    %v519 = vsel %vm181, %v145, 0
    %v522 = vsel %vm181, %v146, 0
    %v525 = vsel %vm181, %v147, 0
    %v528 = vsel %vm181, %v148, 0
    %v531 = vsel %vm181, %v149, 0
    %v534 = vsel %vm181, %v150, 0
    %v537 = vsel %vm181, %v151, 0
    %v540 = vsel %vm181, %v152, 0
    %v543 = vsel %vm181, %v153, 0
    %v546 = vsel %vm181, %v154, 0
    %v549 = vsel %vm181, %v155, 0
    %v552 = vsel %vm181, %v156, 0
    %v555 = vsel %vm181, %v157, 0
    %v558 = vsel %vm181, %v158, 0
    %v561 = vsel %vm181, %v159, 0
    %v564 = vsel %vm181, %v160, 0
    %v567 = vsel %vm181, %v161, 0
    %v570 = vsel %vm181, %v162, 0
    %v573 = vsel %vm181, %v163, 0
    %v576 = vsel %vm181, %v164, 0
    %v579 = vsel %vm181, %v165, 0
    %v582 = vsel %vm181, %v166, 0
    %v585 = vsel %vm181, %v167, 0
    %v588 = vsel %vm181, %v168, 0
    %v591 = vsel %vm181, %v169, 0
    %v594 = vsel %vm181, %v170, 0
    %v597 = vsel %vm181, %v171, 0
    %v600 = vsel %vm181, %v172, 0
    %v603 = vsel %vm181, %v173, 0
    %v606 = vsel %vm181, %v174, 0
    %v609 = vsel %vm181, %v175, 0
    %v612 = vsel %vm181, %v176, 0
    %614 = vmatprep.subr.mxu0 0.0
    %615 = vmatpush1.msra.mxu0 %v177
    %616 = vmatprep.subr.mxu0 0.0
    %617 = vmatpush1.msra.mxu0 %v178
    %618 = vmatprep.subr.mxu0 0.0
    %619 = vmatpush1.msra.mxu0 %v179
    %620 = vmatprep.subr.mxu0 0.0
    %621 = vmatpush1.msra.mxu0 %v180
    %622 = vmatprep.subr.mxu0 0.0
    %623 = vmatpush1.msra.mxu0 0.0
    %624 = vmatprep.subr.mxu0 0.0
    %625 = vmatpush1.msra.mxu0 0.0
    %626 = vmatprep.subr.mxu0 0.0
    %627 = vmatpush1.msra.mxu0 0.0
    %628 = vmatprep.subr.mxu0 0.0
    %629 = vmatpush1.msra.mxu0 0.0
    %630 = vmatprep.subr.mxu0 0.0
    %631 = vmatpush1.msra.mxu0 0.0
    %632 = vmatprep.subr.mxu0 0.0
    %633 = vmatpush1.msra.mxu0 0.0
    %634 = vmatprep.subr.mxu0 0.0
    %635 = vmatpush1.msra.mxu0 0.0
    %636 = vmatprep.subr.mxu0 0.0
    %637 = vmatpush1.msra.mxu0 0.0
    %638 = vmatprep.subr.mxu0 0.0
    %639 = vmatpush1.msra.mxu0 0.0
    %640 = vmatprep.subr.mxu0 0.0
    %641 = vmatpush1.msra.mxu0 0.0
    %642 = vmatprep.subr.mxu0 0.0
    %643 = vmatpush1.msra.mxu0 0.0
    %644 = vmatprep.subr.mxu0 0.0
    %645 = vmatpush1.msra.mxu0 0.0
    %646 = vmatprep.subr.mxu0 0.0
    %647 = vmatpush1.msra.mxu0 0.0
    %648 = vmatprep.subr.mxu0 0.0
    %649 = vmatpush1.msra.mxu0 0.0
    %650 = vmatprep.subr.mxu0 0.0
    %651 = vmatpush1.msra.mxu0 0.0
    %652 = vmatprep.subr.mxu0 0.0
    %653 = vmatpush1.msra.mxu0 0.0
    %654 = vmatprep.subr.mxu0 0.0
    %655 = vmatpush1.msra.mxu0 0.0
    %656 = vmatprep.subr.mxu0 0.0
    %657 = vmatpush1.msra.mxu0 0.0
    %658 = vmatprep.subr.mxu0 0.0
    %659 = vmatpush1.msra.mxu0 0.0
    %660 = vmatprep.subr.mxu0 0.0
    %661 = vmatpush1.msra.mxu0 0.0
    %662 = vmatprep.subr.mxu0 0.0
    %663 = vmatpush1.msra.mxu0 0.0
    %664 = vmatprep.subr.mxu0 0.0
    %665 = vmatpush1.msra.mxu0 0.0
    %666 = vmatprep.subr.mxu0 0.0
    %667 = vmatpush1.msra.mxu0 0.0
    %668 = vmatprep.subr.mxu0 0.0
    %669 = vmatpush1.msra.mxu0 0.0
    %670 = vmatprep.subr.mxu0 0.0
    %671 = vmatpush1.msra.mxu0 0.0
    %672 = vmatprep.subr.mxu0 0.0
    %673 = vmatpush1.msra.mxu0 0.0
    %674 = vmatprep.subr.mxu0 0.0
    %675 = vmatpush1.msra.mxu0 0.0
    %676 = vmatprep.subr.mxu0 0.0
    %677 = vmatpush1.msra.mxu0 0.0
    %678 = vmatprep.mubr.f32.mxu0 0.0
    %679 = vmatmul.mubr.f32.gmra.mrb[0].mxu0 %v183
    %v680 = vpop.f32.mrb[0].mxu0
    %v681 = vadd.f32 0.0, %v680
    %v682 = vpop.f32.mrb[0].mxu0
    %683 = vmatprep.mubr.f32.mxu0 0.0
    %684 = vmatmul.mubr.f32.gmra.mrb[0].mxu0 %v186
    %v685 = vpop.f32.mrb[0].mxu0
    %v686 = vadd.f32 0.0, %v685
    %v687 = vpop.f32.mrb[0].mxu0
    %688 = vmatprep.mubr.f32.mxu0 0.0
    %689 = vmatmul.mubr.f32.gmra.mrb[0].mxu0 %v189
    %v690 = vpop.f32.mrb[0].mxu0
    %v691 = vadd.f32 0.0, %v690
    %v692 = vpop.f32.mrb[0].mxu0
    %693 = vmatprep.mubr.f32.mxu0 0.0
    %694 = vmatmul.mubr.f32.gmra.mrb[0].mxu0 %v192
    %v695 = vpop.f32.mrb[0].mxu0
    %v696 = vadd.f32 0.0, %v695
    %v697 = vpop.f32.mrb[0].mxu0
    %698 = vmatprep.mubr.f32.mxu0 0.0
    %699 = vmatmul.mubr.f32.gmra.mrb[0].mxu0 %v195
    %v700 = vpop.f32.mrb[0].mxu0
    %v701 = vadd.f32 0.0, %v700
    %v702 = vpop.f32.mrb[0].mxu0
    %703 = vmatprep.mubr.f32.mxu0 0.0
    %704 = vmatmul.mubr.f32.gmra.mrb[0].mxu0 %v198
    %v705 = vpop.f32.mrb[0].mxu0
    %v706 = vadd.f32 0.0, %v705
    %v707 = vpop.f32.mrb[0].mxu0
    %708 = vmatprep.mubr.f32.mxu0 0.0
    %709 = vmatmul.mubr.f32.gmra.mrb[0].mxu0 %v201
    %v710 = vpop.f32.mrb[0].mxu0
    %v711 = vadd.f32 0.0, %v710
    %v712 = vpop.f32.mrb[0].mxu0
    %713 = vmatprep.mubr.f32.mxu0 0.0
    %714 = vmatmul.mubr.f32.gmra.mrb[0].mxu0 %v204
    %v715 = vpop.f32.mrb[0].mxu0
    %v716 = vadd.f32 0.0, %v715
    %v717 = vpop.f32.mrb[0].mxu0
    %718 = vmatprep.mubr.f32.mxu0 0.0
    %719 = vmatmul.mubr.f32.gmra.mrb[0].mxu0 %v207
    %v720 = vpop.f32.mrb[0].mxu0
    %v721 = vadd.f32 0.0, %v720
    %v722 = vpop.f32.mrb[0].mxu0
    %723 = vmatprep.mubr.f32.mxu0 0.0
    %724 = vmatmul.mubr.f32.gmra.mrb[0].mxu0 %v210
    %v725 = vpop.f32.mrb[0].mxu0
    %v726 = vadd.f32 0.0, %v725
    %v727 = vpop.f32.mrb[0].mxu0
    %728 = vmatprep.mubr.f32.mxu0 0.0
    %729 = vmatmul.mubr.f32.gmra.mrb[0].mxu0 %v213
    %v730 = vpop.f32.mrb[0].mxu0
    %v731 = vadd.f32 0.0, %v730
    %v732 = vpop.f32.mrb[0].mxu0
    %733 = vmatprep.mubr.f32.mxu0 0.0
    %734 = vmatmul.mubr.f32.gmra.mrb[0].mxu0 %v216
    %v735 = vpop.f32.mrb[0].mxu0
    %v736 = vadd.f32 0.0, %v735
    %v737 = vpop.f32.mrb[0].mxu0
    %738 = vmatprep.mubr.f32.mxu0 0.0
    %739 = vmatmul.mubr.f32.gmra.mrb[0].mxu0 %v219
    %v740 = vpop.f32.mrb[0].mxu0
    %v741 = vadd.f32 0.0, %v740
    %v742 = vpop.f32.mrb[0].mxu0
    %743 = vmatprep.mubr.f32.mxu0 0.0
    %744 = vmatmul.mubr.f32.gmra.mrb[0].mxu0 %v222
    %v745 = vpop.f32.mrb[0].mxu0
    %v746 = vadd.f32 0.0, %v745
    %v747 = vpop.f32.mrb[0].mxu0
    %748 = vmatprep.mubr.f32.mxu0 0.0
    %749 = vmatmul.mubr.f32.gmra.mrb[0].mxu0 %v225
    %v750 = vpop.f32.mrb[0].mxu0
    %v751 = vadd.f32 0.0, %v750
    %v752 = vpop.f32.mrb[0].mxu0
    %753 = vmatprep.mubr.f32.mxu0 0.0
    %754 = vmatmul.mubr.f32.gmra.mrb[0].mxu0 %v228
    %v755 = vpop.f32.mrb[0].mxu0
    %v756 = vadd.f32 0.0, %v755
    %v757 = vpop.f32.mrb[0].mxu0
    %758 = vmatprep.mubr.f32.mxu0 0.0
    %759 = vmatmul.mubr.f32.gmra.mrb[0].mxu0 %v231
    %v760 = vpop.f32.mrb[0].mxu0
    %v761 = vadd.f32 0.0, %v760
    %v762 = vpop.f32.mrb[0].mxu0
    %763 = vmatprep.mubr.f32.mxu0 0.0
    %764 = vmatmul.mubr.f32.gmra.mrb[0].mxu0 %v234
    %v765 = vpop.f32.mrb[0].mxu0
    %v766 = vadd.f32 0.0, %v765
    %v767 = vpop.f32.mrb[0].mxu0
    %768 = vmatprep.mubr.f32.mxu0 0.0
    %769 = vmatmul.mubr.f32.gmra.mrb[0].mxu0 %v237
    %v770 = vpop.f32.mrb[0].mxu0
    %v771 = vadd.f32 0.0, %v770
    %v772 = vpop.f32.mrb[0].mxu0
    %773 = vmatprep.mubr.f32.mxu0 0.0
    %774 = vmatmul.mubr.f32.gmra.mrb[0].mxu0 %v240
    %v775 = vpop.f32.mrb[0].mxu0
    %v776 = vadd.f32 0.0, %v775
    %v777 = vpop.f32.mrb[0].mxu0
    %778 = vmatprep.mubr.f32.mxu0 0.0
    %779 = vmatmul.mubr.f32.gmra.mrb[0].mxu0 %v243
    %v780 = vpop.f32.mrb[0].mxu0
    %v781 = vadd.f32 0.0, %v780
    %v782 = vpop.f32.mrb[0].mxu0
    %783 = vmatprep.mubr.f32.mxu0 0.0
    %784 = vmatmul.mubr.f32.gmra.mrb[0].mxu0 %v246
    %v785 = vpop.f32.mrb[0].mxu0
    %v786 = vadd.f32 0.0, %v785
    %v787 = vpop.f32.mrb[0].mxu0
    %788 = vmatprep.mubr.f32.mxu0 0.0
    %789 = vmatmul.mubr.f32.gmra.mrb[0].mxu0 %v249
    %v790 = vpop.f32.mrb[0].mxu0
    %v791 = vadd.f32 0.0, %v790
    %v792 = vpop.f32.mrb[0].mxu0
    %793 = vmatprep.mubr.f32.mxu0 0.0
    %794 = vmatmul.mubr.f32.gmra.mrb[0].mxu0 %v252
    %v795 = vpop.f32.mrb[0].mxu0
    %v796 = vadd.f32 0.0, %v795
    %v797 = vpop.f32.mrb[0].mxu0
    %798 = vmatprep.mubr.f32.mxu0 0.0
    %799 = vmatmul.mubr.f32.gmra.mrb[0].mxu0 %v255
    %v800 = vpop.f32.mrb[0].mxu0
    %v801 = vadd.f32 0.0, %v800
    %v802 = vpop.f32.mrb[0].mxu0
    %803 = vmatprep.mubr.f32.mxu0 0.0
    %804 = vmatmul.mubr.f32.gmra.mrb[0].mxu0 %v258
    %v805 = vpop.f32.mrb[0].mxu0
    %v806 = vadd.f32 0.0, %v805
    %v807 = vpop.f32.mrb[0].mxu0
    %808 = vmatprep.mubr.f32.mxu0 0.0
    %809 = vmatmul.mubr.f32.gmra.mrb[0].mxu0 %v261
    %v810 = vpop.f32.mrb[0].mxu0
    %v811 = vadd.f32 0.0, %v810
    %v812 = vpop.f32.mrb[0].mxu0
    %813 = vmatprep.mubr.f32.mxu0 0.0
    %814 = vmatmul.mubr.f32.gmra.mrb[0].mxu0 %v264
    %v815 = vpop.f32.mrb[0].mxu0
    %v816 = vadd.f32 0.0, %v815
    %v817 = vpop.f32.mrb[0].mxu0
    %818 = vmatprep.mubr.f32.mxu0 0.0
    %819 = vmatmul.mubr.f32.gmra.mrb[0].mxu0 %v267
    %v820 = vpop.f32.mrb[0].mxu0
    %v821 = vadd.f32 0.0, %v820
    %v822 = vpop.f32.mrb[0].mxu0
    %823 = vmatprep.mubr.f32.mxu0 0.0
    %824 = vmatmul.mubr.f32.gmra.mrb[0].mxu0 %v270
    %v825 = vpop.f32.mrb[0].mxu0
    %v826 = vadd.f32 0.0, %v825
    %v827 = vpop.f32.mrb[0].mxu0
    %828 = vmatprep.mubr.f32.mxu0 0.0
    %829 = vmatmul.mubr.f32.gmra.mrb[0].mxu0 %v273
    %v830 = vpop.f32.mrb[0].mxu0
    %v831 = vadd.f32 0.0, %v830
    %v832 = vpop.f32.mrb[0].mxu0
    %833 = vmatprep.mubr.f32.mxu0 0.0
    %834 = vmatmul.mubr.f32.gmra.mrb[0].mxu0 %v276
    %v835 = vpop.f32.mrb[0].mxu0
    %v836 = vadd.f32 0.0, %v835
    %v837 = vpop.f32.mrb[0].mxu0
    %838 = vmatprep.mubr.f32.mxu0 0.0
    %839 = vmatmul.mubr.f32.gmra.mrb[0].mxu0 %v279
    %v840 = vpop.f32.mrb[0].mxu0
    %v841 = vadd.f32 0.0, %v840
    %v842 = vpop.f32.mrb[0].mxu0
    %843 = vmatprep.mubr.f32.mxu0 0.0
    %844 = vmatmul.mubr.f32.gmra.mrb[0].mxu0 %v282
    %v845 = vpop.f32.mrb[0].mxu0
    %v846 = vadd.f32 0.0, %v845
    %v847 = vpop.f32.mrb[0].mxu0
    %848 = vmatprep.mubr.f32.mxu0 0.0
    %849 = vmatmul.mubr.f32.gmra.mrb[0].mxu0 %v285
    %v850 = vpop.f32.mrb[0].mxu0
    %v851 = vadd.f32 0.0, %v850
    %v852 = vpop.f32.mrb[0].mxu0
    %853 = vmatprep.mubr.f32.mxu0 0.0
    %854 = vmatmul.mubr.f32.gmra.mrb[0].mxu0 %v288
    %v855 = vpop.f32.mrb[0].mxu0
    %v856 = vadd.f32 0.0, %v855
    %v857 = vpop.f32.mrb[0].mxu0
    %858 = vmatprep.mubr.f32.mxu0 0.0
    %859 = vmatmul.mubr.f32.gmra.mrb[0].mxu0 %v291
    %v860 = vpop.f32.mrb[0].mxu0
    %v861 = vadd.f32 0.0, %v860
    %v862 = vpop.f32.mrb[0].mxu0
    %863 = vmatprep.mubr.f32.mxu0 0.0
    %864 = vmatmul.mubr.f32.gmra.mrb[0].mxu0 %v294
    %v865 = vpop.f32.mrb[0].mxu0
    %v866 = vadd.f32 0.0, %v865
    %v867 = vpop.f32.mrb[0].mxu0
    %868 = vmatprep.mubr.f32.mxu0 0.0
    %869 = vmatmul.mubr.f32.gmra.mrb[0].mxu0 %v297
    %v870 = vpop.f32.mrb[0].mxu0
    %v871 = vadd.f32 0.0, %v870
    %v872 = vpop.f32.mrb[0].mxu0
    %873 = vmatprep.mubr.f32.mxu0 0.0
    %874 = vmatmul.mubr.f32.gmra.mrb[0].mxu0 %v300
    %v875 = vpop.f32.mrb[0].mxu0
    %v876 = vadd.f32 0.0, %v875
    %v877 = vpop.f32.mrb[0].mxu0
    %878 = vmatprep.mubr.f32.mxu0 0.0
    %879 = vmatmul.mubr.f32.gmra.mrb[0].mxu0 %v303
    %v880 = vpop.f32.mrb[0].mxu0
    %v881 = vadd.f32 0.0, %v880
    %v882 = vpop.f32.mrb[0].mxu0
    %883 = vmatprep.mubr.f32.mxu0 0.0
    %884 = vmatmul.mubr.f32.gmra.mrb[0].mxu0 %v306
    %v885 = vpop.f32.mrb[0].mxu0
    %v886 = vadd.f32 0.0, %v885
    %v887 = vpop.f32.mrb[0].mxu0
    %888 = vmatprep.mubr.f32.mxu0 0.0
    %889 = vmatmul.mubr.f32.gmra.mrb[0].mxu0 %v309
    %v890 = vpop.f32.mrb[0].mxu0
    %v891 = vadd.f32 0.0, %v890
    %v892 = vpop.f32.mrb[0].mxu0
    %893 = vmatprep.mubr.f32.mxu0 0.0
    %894 = vmatmul.mubr.f32.gmra.mrb[0].mxu0 %v312
    %v895 = vpop.f32.mrb[0].mxu0
    %v896 = vadd.f32 0.0, %v895
    %v897 = vpop.f32.mrb[0].mxu0
    %898 = vmatprep.mubr.f32.mxu0 0.0
    %899 = vmatmul.mubr.f32.gmra.mrb[0].mxu0 %v315
    %v900 = vpop.f32.mrb[0].mxu0
    %v901 = vadd.f32 0.0, %v900
    %v902 = vpop.f32.mrb[0].mxu0
    %903 = vmatprep.mubr.f32.mxu0 0.0
    %904 = vmatmul.mubr.f32.gmra.mrb[0].mxu0 %v318
    %v905 = vpop.f32.mrb[0].mxu0
    %v906 = vadd.f32 0.0, %v905
    %v907 = vpop.f32.mrb[0].mxu0
    %908 = vmatprep.mubr.f32.mxu0 0.0
    %909 = vmatmul.mubr.f32.gmra.mrb[0].mxu0 %v321
    %v910 = vpop.f32.mrb[0].mxu0
    %v911 = vadd.f32 0.0, %v910
    %v912 = vpop.f32.mrb[0].mxu0
    %913 = vmatprep.mubr.f32.mxu0 0.0
    %914 = vmatmul.mubr.f32.gmra.mrb[0].mxu0 %v324
    %v915 = vpop.f32.mrb[0].mxu0
    %v916 = vadd.f32 0.0, %v915
    %v917 = vpop.f32.mrb[0].mxu0
    %918 = vmatprep.mubr.f32.mxu0 0.0
    %919 = vmatmul.mubr.f32.gmra.mrb[0].mxu0 %v327
    %v920 = vpop.f32.mrb[0].mxu0
    %v921 = vadd.f32 0.0, %v920
    %v922 = vpop.f32.mrb[0].mxu0
    %923 = vmatprep.mubr.f32.mxu0 0.0
    %924 = vmatmul.mubr.f32.gmra.mrb[0].mxu0 %v330
    %v925 = vpop.f32.mrb[0].mxu0
    %v926 = vadd.f32 0.0, %v925
    %v927 = vpop.f32.mrb[0].mxu0
    %928 = vmatprep.mubr.f32.mxu0 0.0
    %929 = vmatmul.mubr.f32.gmra.mrb[0].mxu0 %v333
    %v930 = vpop.f32.mrb[0].mxu0
    %v931 = vadd.f32 0.0, %v930
    %v932 = vpop.f32.mrb[0].mxu0
    %933 = vmatprep.mubr.f32.mxu0 0.0
    %934 = vmatmul.mubr.f32.gmra.mrb[0].mxu0 %v336
    %v935 = vpop.f32.mrb[0].mxu0
    %v936 = vadd.f32 0.0, %v935
    %v937 = vpop.f32.mrb[0].mxu0
    %938 = vmatprep.mubr.f32.mxu0 0.0
    %939 = vmatmul.mubr.f32.gmra.mrb[0].mxu0 %v339
    %v940 = vpop.f32.mrb[0].mxu0
    %v941 = vadd.f32 0.0, %v940
    %v942 = vpop.f32.mrb[0].mxu0
    %943 = vmatprep.mubr.f32.mxu0 0.0
    %944 = vmatmul.mubr.f32.gmra.mrb[0].mxu0 %v342
    %v945 = vpop.f32.mrb[0].mxu0
    %v946 = vadd.f32 0.0, %v945
    %v947 = vpop.f32.mrb[0].mxu0
    %948 = vmatprep.mubr.f32.mxu0 0.0
    %949 = vmatmul.mubr.f32.gmra.mrb[0].mxu0 %v345
    %v950 = vpop.f32.mrb[0].mxu0
    %v951 = vadd.f32 0.0, %v950
    %v952 = vpop.f32.mrb[0].mxu0
    %953 = vmatprep.mubr.f32.mxu0 0.0
    %954 = vmatmul.mubr.f32.gmra.mrb[0].mxu0 %v348
    %v955 = vpop.f32.mrb[0].mxu0
    %v956 = vadd.f32 0.0, %v955
    %v957 = vpop.f32.mrb[0].mxu0
    %958 = vmatprep.mubr.f32.mxu0 0.0
    %959 = vmatmul.mubr.f32.gmra.mrb[0].mxu0 %v351
    %v960 = vpop.f32.mrb[0].mxu0
    %v961 = vadd.f32 0.0, %v960
    %v962 = vpop.f32.mrb[0].mxu0
    %963 = vmatprep.mubr.f32.mxu0 0.0
    %964 = vmatmul.mubr.f32.gmra.mrb[0].mxu0 %v354
    %v965 = vpop.f32.mrb[0].mxu0
    %v966 = vadd.f32 0.0, %v965
    %v967 = vpop.f32.mrb[0].mxu0
    %968 = vmatprep.mubr.f32.mxu0 0.0
    %969 = vmatmul.mubr.f32.gmra.mrb[0].mxu0 %v357
    %v970 = vpop.f32.mrb[0].mxu0
    %v971 = vadd.f32 0.0, %v970
    %v972 = vpop.f32.mrb[0].mxu0
    %973 = vmatprep.mubr.f32.mxu0 0.0
    %974 = vmatmul.mubr.f32.gmra.mrb[0].mxu0 %v360
    %v975 = vpop.f32.mrb[0].mxu0
    %v976 = vadd.f32 0.0, %v975
    %v977 = vpop.f32.mrb[0].mxu0
    %978 = vmatprep.mubr.f32.mxu0 0.0
    %979 = vmatmul.mubr.f32.gmra.mrb[0].mxu0 %v363
    %v980 = vpop.f32.mrb[0].mxu0
    %v981 = vadd.f32 0.0, %v980
    %v982 = vpop.f32.mrb[0].mxu0
    %983 = vmatprep.mubr.f32.mxu0 0.0
    %984 = vmatmul.mubr.f32.gmra.mrb[0].mxu0 %v366
    %v985 = vpop.f32.mrb[0].mxu0
    %v986 = vadd.f32 0.0, %v985
    %v987 = vpop.f32.mrb[0].mxu0
    %988 = vmatprep.mubr.f32.mxu0 0.0
    %989 = vmatmul.mubr.f32.gmra.mrb[0].mxu0 %v369
    %v990 = vpop.f32.mrb[0].mxu0
    %v991 = vadd.f32 0.0, %v990
    %v992 = vpop.f32.mrb[0].mxu0
    %993 = vmatprep.mubr.f32.mxu0 0.0
    %994 = vmatmul.mubr.f32.gmra.mrb[0].mxu0 %v372
    %v995 = vpop.f32.mrb[0].mxu0
    %v996 = vadd.f32 0.0, %v995
    %v997 = vpop.f32.mrb[0].mxu0
    %998 = vmatprep.mubr.f32.mxu0 0.0
    %999 = vmatmul.mubr.f32.gmra.mrb[0].mxu0 %v375
    %v1000 = vpop.f32.mrb[0].mxu0
    %v1001 = vadd.f32 0.0, %v1000
    %v1002 = vpop.f32.mrb[0].mxu0
    %1003 = vmatprep.mubr.f32.mxu0 0.0
    %1004 = vmatmul.mubr.f32.gmra.mrb[0].mxu0 %v378
    %v1005 = vpop.f32.mrb[0].mxu0
    %v1006 = vadd.f32 0.0, %v1005
    %v1007 = vpop.f32.mrb[0].mxu0
    %1008 = vmatprep.mubr.f32.mxu0 0.0
    %1009 = vmatmul.mubr.f32.gmra.mrb[0].mxu0 %v381
    %v1010 = vpop.f32.mrb[0].mxu0
    %v1011 = vadd.f32 0.0, %v1010
    %v1012 = vpop.f32.mrb[0].mxu0
    %1013 = vmatprep.mubr.f32.mxu0 0.0
    %1014 = vmatmul.mubr.f32.gmra.mrb[0].mxu0 %v384
    %v1015 = vpop.f32.mrb[0].mxu0
    %v1016 = vadd.f32 0.0, %v1015
    %v1017 = vpop.f32.mrb[0].mxu0
    %1018 = vmatprep.mubr.f32.mxu0 0.0
    %1019 = vmatmul.mubr.f32.gmra.mrb[0].mxu0 %v387
    %v1020 = vpop.f32.mrb[0].mxu0
    %v1021 = vadd.f32 0.0, %v1020
    %v1022 = vpop.f32.mrb[0].mxu0
    %1023 = vmatprep.mubr.f32.mxu0 0.0
    %1024 = vmatmul.mubr.f32.gmra.mrb[0].mxu0 %v390
    %v1025 = vpop.f32.mrb[0].mxu0
    %v1026 = vadd.f32 0.0, %v1025
    %v1027 = vpop.f32.mrb[0].mxu0
    %1028 = vmatprep.mubr.f32.mxu0 0.0
    %1029 = vmatmul.mubr.f32.gmra.mrb[0].mxu0 %v393
    %v1030 = vpop.f32.mrb[0].mxu0
    %v1031 = vadd.f32 0.0, %v1030
    %v1032 = vpop.f32.mrb[0].mxu0
    %1033 = vmatprep.mubr.f32.mxu0 0.0
    %1034 = vmatmul.mubr.f32.gmra.mrb[0].mxu0 %v396
    %v1035 = vpop.f32.mrb[0].mxu0
    %v1036 = vadd.f32 0.0, %v1035
    %v1037 = vpop.f32.mrb[0].mxu0
    %1038 = vmatprep.mubr.f32.mxu0 0.0
    %1039 = vmatmul.mubr.f32.gmra.mrb[0].mxu0 %v399
    %v1040 = vpop.f32.mrb[0].mxu0
    %v1041 = vadd.f32 0.0, %v1040
    %v1042 = vpop.f32.mrb[0].mxu0
    %1043 = vmatprep.mubr.f32.mxu0 0.0
    %1044 = vmatmul.mubr.f32.gmra.mrb[0].mxu0 %v402
    %v1045 = vpop.f32.mrb[0].mxu0
    %v1046 = vadd.f32 0.0, %v1045
    %v1047 = vpop.f32.mrb[0].mxu0
    %1048 = vmatprep.mubr.f32.mxu0 0.0
    %1049 = vmatmul.mubr.f32.gmra.mrb[0].mxu0 %v405
    %v1050 = vpop.f32.mrb[0].mxu0
    %v1051 = vadd.f32 0.0, %v1050
    %v1052 = vpop.f32.mrb[0].mxu0
    %1053 = vmatprep.mubr.f32.mxu0 0.0
    %1054 = vmatmul.mubr.f32.gmra.mrb[0].mxu0 %v408
    %v1055 = vpop.f32.mrb[0].mxu0
    %v1056 = vadd.f32 0.0, %v1055
    %v1057 = vpop.f32.mrb[0].mxu0
    %1058 = vmatprep.mubr.f32.mxu0 0.0
    %1059 = vmatmul.mubr.f32.gmra.mrb[0].mxu0 %v411
    %v1060 = vpop.f32.mrb[0].mxu0
    %v1061 = vadd.f32 0.0, %v1060
    %v1062 = vpop.f32.mrb[0].mxu0
    %1063 = vmatprep.mubr.f32.mxu0 0.0
    %1064 = vmatmul.mubr.f32.gmra.mrb[0].mxu0 %v414
    %v1065 = vpop.f32.mrb[0].mxu0
    %v1066 = vadd.f32 0.0, %v1065
    %v1067 = vpop.f32.mrb[0].mxu0
    %1068 = vmatprep.mubr.f32.mxu0 0.0
    %1069 = vmatmul.mubr.f32.gmra.mrb[0].mxu0 %v417
    %v1070 = vpop.f32.mrb[0].mxu0
    %v1071 = vadd.f32 0.0, %v1070
    %v1072 = vpop.f32.mrb[0].mxu0
    %1073 = vmatprep.mubr.f32.mxu0 0.0
    %1074 = vmatmul.mubr.f32.gmra.mrb[0].mxu0 %v420
    %v1075 = vpop.f32.mrb[0].mxu0
    %v1076 = vadd.f32 0.0, %v1075
    %v1077 = vpop.f32.mrb[0].mxu0
    %1078 = vmatprep.mubr.f32.mxu0 0.0
    %1079 = vmatmul.mubr.f32.gmra.mrb[0].mxu0 %v423
    %v1080 = vpop.f32.mrb[0].mxu0
    %v1081 = vadd.f32 0.0, %v1080
    %v1082 = vpop.f32.mrb[0].mxu0
    %1083 = vmatprep.mubr.f32.mxu0 0.0
    %1084 = vmatmul.mubr.f32.gmra.mrb[0].mxu0 %v426
    %v1085 = vpop.f32.mrb[0].mxu0
    %v1086 = vadd.f32 0.0, %v1085
    %v1087 = vpop.f32.mrb[0].mxu0
    %1088 = vmatprep.mubr.f32.mxu0 0.0
    %1089 = vmatmul.mubr.f32.gmra.mrb[0].mxu0 %v429
    %v1090 = vpop.f32.mrb[0].mxu0
    %v1091 = vadd.f32 0.0, %v1090
    %v1092 = vpop.f32.mrb[0].mxu0
    %1093 = vmatprep.mubr.f32.mxu0 0.0
    %1094 = vmatmul.mubr.f32.gmra.mrb[0].mxu0 %v432
    %v1095 = vpop.f32.mrb[0].mxu0
    %v1096 = vadd.f32 0.0, %v1095
    %v1097 = vpop.f32.mrb[0].mxu0
    %1098 = vmatprep.mubr.f32.mxu0 0.0
    %1099 = vmatmul.mubr.f32.gmra.mrb[0].mxu0 %v435
    %v1100 = vpop.f32.mrb[0].mxu0
    %v1101 = vadd.f32 0.0, %v1100
    %v1102 = vpop.f32.mrb[0].mxu0
    %1103 = vmatprep.mubr.f32.mxu0 0.0
    %1104 = vmatmul.mubr.f32.gmra.mrb[0].mxu0 %v438
    %v1105 = vpop.f32.mrb[0].mxu0
    %v1106 = vadd.f32 0.0, %v1105
    %v1107 = vpop.f32.mrb[0].mxu0
    %1108 = vmatprep.mubr.f32.mxu0 0.0
    %1109 = vmatmul.mubr.f32.gmra.mrb[0].mxu0 %v441
    %v1110 = vpop.f32.mrb[0].mxu0
    %v1111 = vadd.f32 0.0, %v1110
    %v1112 = vpop.f32.mrb[0].mxu0
    %1113 = vmatprep.mubr.f32.mxu0 0.0
    %1114 = vmatmul.mubr.f32.gmra.mrb[0].mxu0 %v444
    %v1115 = vpop.f32.mrb[0].mxu0
    %v1116 = vadd.f32 0.0, %v1115
    %v1117 = vpop.f32.mrb[0].mxu0
    %1118 = vmatprep.mubr.f32.mxu0 0.0
    %1119 = vmatmul.mubr.f32.gmra.mrb[0].mxu0 %v447
    %v1120 = vpop.f32.mrb[0].mxu0
    %v1121 = vadd.f32 0.0, %v1120
    %v1122 = vpop.f32.mrb[0].mxu0
    %1123 = vmatprep.mubr.f32.mxu0 0.0
    %1124 = vmatmul.mubr.f32.gmra.mrb[0].mxu0 %v450
    %v1125 = vpop.f32.mrb[0].mxu0
    %v1126 = vadd.f32 0.0, %v1125
    %v1127 = vpop.f32.mrb[0].mxu0
    %1128 = vmatprep.mubr.f32.mxu0 0.0
    %1129 = vmatmul.mubr.f32.gmra.mrb[0].mxu0 %v453
    %v1130 = vpop.f32.mrb[0].mxu0
    %v1131 = vadd.f32 0.0, %v1130
    %v1132 = vpop.f32.mrb[0].mxu0
    %1133 = vmatprep.mubr.f32.mxu0 0.0
    %1134 = vmatmul.mubr.f32.gmra.mrb[0].mxu0 %v456
    %v1135 = vpop.f32.mrb[0].mxu0
    %v1136 = vadd.f32 0.0, %v1135
    %v1137 = vpop.f32.mrb[0].mxu0
    %1138 = vmatprep.mubr.f32.mxu0 0.0
    %1139 = vmatmul.mubr.f32.gmra.mrb[0].mxu0 %v459
    %v1140 = vpop.f32.mrb[0].mxu0
    %v1141 = vadd.f32 0.0, %v1140
    %v1142 = vpop.f32.mrb[0].mxu0
    %1143 = vmatprep.mubr.f32.mxu0 0.0
    %1144 = vmatmul.mubr.f32.gmra.mrb[0].mxu0 %v462
    %v1145 = vpop.f32.mrb[0].mxu0
    %v1146 = vadd.f32 0.0, %v1145
    %v1147 = vpop.f32.mrb[0].mxu0
    %1148 = vmatprep.mubr.f32.mxu0 0.0
    %1149 = vmatmul.mubr.f32.gmra.mrb[0].mxu0 %v465
    %v1150 = vpop.f32.mrb[0].mxu0
    %v1151 = vadd.f32 0.0, %v1150
    %v1152 = vpop.f32.mrb[0].mxu0
    %1153 = vmatprep.mubr.f32.mxu0 0.0
    %1154 = vmatmul.mubr.f32.gmra.mrb[0].mxu0 %v468
    %v1155 = vpop.f32.mrb[0].mxu0
    %v1156 = vadd.f32 0.0, %v1155
    %v1157 = vpop.f32.mrb[0].mxu0
    %1158 = vmatprep.mubr.f32.mxu0 0.0
    %1159 = vmatmul.mubr.f32.gmra.mrb[0].mxu0 %v471
    %v1160 = vpop.f32.mrb[0].mxu0
    %v1161 = vadd.f32 0.0, %v1160
    %v1162 = vpop.f32.mrb[0].mxu0
    %1163 = vmatprep.mubr.f32.mxu0 0.0
    %1164 = vmatmul.mubr.f32.gmra.mrb[0].mxu0 %v474
    %v1165 = vpop.f32.mrb[0].mxu0
    %v1166 = vadd.f32 0.0, %v1165
    %v1167 = vpop.f32.mrb[0].mxu0
    %1168 = vmatprep.mubr.f32.mxu0 0.0
    %1169 = vmatmul.mubr.f32.gmra.mrb[0].mxu0 %v477
    %v1170 = vpop.f32.mrb[0].mxu0
    %v1171 = vadd.f32 0.0, %v1170
    %v1172 = vpop.f32.mrb[0].mxu0
    %1173 = vmatprep.mubr.f32.mxu0 0.0
    %1174 = vmatmul.mubr.f32.gmra.mrb[0].mxu0 %v480
    %v1175 = vpop.f32.mrb[0].mxu0
    %v1176 = vadd.f32 0.0, %v1175
    %v1177 = vpop.f32.mrb[0].mxu0
    %1178 = vmatprep.mubr.f32.mxu0 0.0
    %1179 = vmatmul.mubr.f32.gmra.mrb[0].mxu0 %v483
    %v1180 = vpop.f32.mrb[0].mxu0
    %v1181 = vadd.f32 0.0, %v1180
    %v1182 = vpop.f32.mrb[0].mxu0
    %1183 = vmatprep.mubr.f32.mxu0 0.0
    %1184 = vmatmul.mubr.f32.gmra.mrb[0].mxu0 %v486
    %v1185 = vpop.f32.mrb[0].mxu0
    %v1186 = vadd.f32 0.0, %v1185
    %v1187 = vpop.f32.mrb[0].mxu0
    %1188 = vmatprep.mubr.f32.mxu0 0.0
    %1189 = vmatmul.mubr.f32.gmra.mrb[0].mxu0 %v489
    %v1190 = vpop.f32.mrb[0].mxu0
    %v1191 = vadd.f32 0.0, %v1190
    %v1192 = vpop.f32.mrb[0].mxu0
    %1193 = vmatprep.mubr.f32.mxu0 0.0
    %1194 = vmatmul.mubr.f32.gmra.mrb[0].mxu0 %v492
    %v1195 = vpop.f32.mrb[0].mxu0
    %v1196 = vadd.f32 0.0, %v1195
    %v1197 = vpop.f32.mrb[0].mxu0
    %1198 = vmatprep.mubr.f32.mxu0 0.0
    %1199 = vmatmul.mubr.f32.gmra.mrb[0].mxu0 %v495
    %v1200 = vpop.f32.mrb[0].mxu0
    %v1201 = vadd.f32 0.0, %v1200
    %v1202 = vpop.f32.mrb[0].mxu0
    %1203 = vmatprep.mubr.f32.mxu0 0.0
    %1204 = vmatmul.mubr.f32.gmra.mrb[0].mxu0 %v498
    %v1205 = vpop.f32.mrb[0].mxu0
    %v1206 = vadd.f32 0.0, %v1205
    %v1207 = vpop.f32.mrb[0].mxu0
    %1208 = vmatprep.mubr.f32.mxu0 0.0
    %1209 = vmatmul.mubr.f32.gmra.mrb[0].mxu0 %v501
    %v1210 = vpop.f32.mrb[0].mxu0
    %v1211 = vadd.f32 0.0, %v1210
    %v1212 = vpop.f32.mrb[0].mxu0
    %1213 = vmatprep.mubr.f32.mxu0 0.0
    %1214 = vmatmul.mubr.f32.gmra.mrb[0].mxu0 %v504
    %v1215 = vpop.f32.mrb[0].mxu0
    %v1216 = vadd.f32 0.0, %v1215
    %v1217 = vpop.f32.mrb[0].mxu0
    %1218 = vmatprep.mubr.f32.mxu0 0.0
    %1219 = vmatmul.mubr.f32.gmra.mrb[0].mxu0 %v507
    %v1220 = vpop.f32.mrb[0].mxu0
    %v1221 = vadd.f32 0.0, %v1220
    %v1222 = vpop.f32.mrb[0].mxu0
    %1223 = vmatprep.mubr.f32.mxu0 0.0
    %1224 = vmatmul.mubr.f32.gmra.mrb[0].mxu0 %v510
    %v1225 = vpop.f32.mrb[0].mxu0
    %v1226 = vadd.f32 0.0, %v1225
    %v1227 = vpop.f32.mrb[0].mxu0
    %1228 = vmatprep.mubr.f32.mxu0 0.0
    %1229 = vmatmul.mubr.f32.gmra.mrb[0].mxu0 %v513
    %v1230 = vpop.f32.mrb[0].mxu0
    %v1231 = vadd.f32 0.0, %v1230
    %v1232 = vpop.f32.mrb[0].mxu0
    %1233 = vmatprep.mubr.f32.mxu0 0.0
    %1234 = vmatmul.mubr.f32.gmra.mrb[0].mxu0 %v516
    %v1235 = vpop.f32.mrb[0].mxu0
    %v1236 = vadd.f32 0.0, %v1235
    %v1237 = vpop.f32.mrb[0].mxu0
    %1238 = vmatprep.mubr.f32.mxu0 0.0
    %1239 = vmatmul.mubr.f32.gmra.mrb[0].mxu0 %v519
    %v1240 = vpop.f32.mrb[0].mxu0
    %v1241 = vadd.f32 0.0, %v1240
    %v1242 = vpop.f32.mrb[0].mxu0
    %1243 = vmatprep.mubr.f32.mxu0 0.0
    %1244 = vmatmul.mubr.f32.gmra.mrb[0].mxu0 %v522
    %v1245 = vpop.f32.mrb[0].mxu0
    %v1246 = vadd.f32 0.0, %v1245
    %v1247 = vpop.f32.mrb[0].mxu0
    %1248 = vmatprep.mubr.f32.mxu0 0.0
    %1249 = vmatmul.mubr.f32.gmra.mrb[0].mxu0 %v525
    %v1250 = vpop.f32.mrb[0].mxu0
    %v1251 = vadd.f32 0.0, %v1250
    %v1252 = vpop.f32.mrb[0].mxu0
    %1253 = vmatprep.mubr.f32.mxu0 0.0
    %1254 = vmatmul.mubr.f32.gmra.mrb[0].mxu0 %v528
    %v1255 = vpop.f32.mrb[0].mxu0
    %v1256 = vadd.f32 0.0, %v1255
    %v1257 = vpop.f32.mrb[0].mxu0
    %1258 = vmatprep.mubr.f32.mxu0 0.0
    %1259 = vmatmul.mubr.f32.gmra.mrb[0].mxu0 %v531
    %v1260 = vpop.f32.mrb[0].mxu0
    %v1261 = vadd.f32 0.0, %v1260
    %v1262 = vpop.f32.mrb[0].mxu0
    %1263 = vmatprep.mubr.f32.mxu0 0.0
    %1264 = vmatmul.mubr.f32.gmra.mrb[0].mxu0 %v534
    %v1265 = vpop.f32.mrb[0].mxu0
    %v1266 = vadd.f32 0.0, %v1265
    %v1267 = vpop.f32.mrb[0].mxu0
    %1268 = vmatprep.mubr.f32.mxu0 0.0
    %1269 = vmatmul.mubr.f32.gmra.mrb[0].mxu0 %v537
    %v1270 = vpop.f32.mrb[0].mxu0
    %v1271 = vadd.f32 0.0, %v1270
    %v1272 = vpop.f32.mrb[0].mxu0
    %1273 = vmatprep.mubr.f32.mxu0 0.0
    %1274 = vmatmul.mubr.f32.gmra.mrb[0].mxu0 %v540
    %v1275 = vpop.f32.mrb[0].mxu0
    %v1276 = vadd.f32 0.0, %v1275
    %v1277 = vpop.f32.mrb[0].mxu0
    %1278 = vmatprep.mubr.f32.mxu0 0.0
    %1279 = vmatmul.mubr.f32.gmra.mrb[0].mxu0 %v543
    %v1280 = vpop.f32.mrb[0].mxu0
    %v1281 = vadd.f32 0.0, %v1280
    %v1282 = vpop.f32.mrb[0].mxu0
    %1283 = vmatprep.mubr.f32.mxu0 0.0
    %1284 = vmatmul.mubr.f32.gmra.mrb[0].mxu0 %v546
    %v1285 = vpop.f32.mrb[0].mxu0
    %v1286 = vadd.f32 0.0, %v1285
    %v1287 = vpop.f32.mrb[0].mxu0
    %1288 = vmatprep.mubr.f32.mxu0 0.0
    %1289 = vmatmul.mubr.f32.gmra.mrb[0].mxu0 %v549
    %v1290 = vpop.f32.mrb[0].mxu0
    %v1291 = vadd.f32 0.0, %v1290
    %v1292 = vpop.f32.mrb[0].mxu0
    %1293 = vmatprep.mubr.f32.mxu0 0.0
    %1294 = vmatmul.mubr.f32.gmra.mrb[0].mxu0 %v552
    %v1295 = vpop.f32.mrb[0].mxu0
    %v1296 = vadd.f32 0.0, %v1295
    %v1297 = vpop.f32.mrb[0].mxu0
    %1298 = vmatprep.mubr.f32.mxu0 0.0
    %1299 = vmatmul.mubr.f32.gmra.mrb[0].mxu0 %v555
    %v1300 = vpop.f32.mrb[0].mxu0
    %v1301 = vadd.f32 0.0, %v1300
    %v1302 = vpop.f32.mrb[0].mxu0
    %1303 = vmatprep.mubr.f32.mxu0 0.0
    %1304 = vmatmul.mubr.f32.gmra.mrb[0].mxu0 %v558
    %v1305 = vpop.f32.mrb[0].mxu0
    %v1306 = vadd.f32 0.0, %v1305
    %v1307 = vpop.f32.mrb[0].mxu0
    %1308 = vmatprep.mubr.f32.mxu0 0.0
    %1309 = vmatmul.mubr.f32.gmra.mrb[0].mxu0 %v561
    %v1310 = vpop.f32.mrb[0].mxu0
    %v1311 = vadd.f32 0.0, %v1310
    %v1312 = vpop.f32.mrb[0].mxu0
    %1313 = vmatprep.mubr.f32.mxu0 0.0
    %1314 = vmatmul.mubr.f32.gmra.mrb[0].mxu0 %v564
    %v1315 = vpop.f32.mrb[0].mxu0
    %v1316 = vadd.f32 0.0, %v1315
    %v1317 = vpop.f32.mrb[0].mxu0
    %1318 = vmatprep.mubr.f32.mxu0 0.0
    %1319 = vmatmul.mubr.f32.gmra.mrb[0].mxu0 %v567
    %v1320 = vpop.f32.mrb[0].mxu0
    %v1321 = vadd.f32 0.0, %v1320
    %v1322 = vpop.f32.mrb[0].mxu0
    %1323 = vmatprep.mubr.f32.mxu0 0.0
    %1324 = vmatmul.mubr.f32.gmra.mrb[0].mxu0 %v570
    %v1325 = vpop.f32.mrb[0].mxu0
    %v1326 = vadd.f32 0.0, %v1325
    %v1327 = vpop.f32.mrb[0].mxu0
    %1328 = vmatprep.mubr.f32.mxu0 0.0
    %1329 = vmatmul.mubr.f32.gmra.mrb[0].mxu0 %v573
    %v1330 = vpop.f32.mrb[0].mxu0
    %v1331 = vadd.f32 0.0, %v1330
    %v1332 = vpop.f32.mrb[0].mxu0
    %1333 = vmatprep.mubr.f32.mxu0 0.0
    %1334 = vmatmul.mubr.f32.gmra.mrb[0].mxu0 %v576
    %v1335 = vpop.f32.mrb[0].mxu0
    %v1336 = vadd.f32 0.0, %v1335
    %v1337 = vpop.f32.mrb[0].mxu0
    %1338 = vmatprep.mubr.f32.mxu0 0.0
    %1339 = vmatmul.mubr.f32.gmra.mrb[0].mxu0 %v579
    %v1340 = vpop.f32.mrb[0].mxu0
    %v1341 = vadd.f32 0.0, %v1340
    %v1342 = vpop.f32.mrb[0].mxu0
    %1343 = vmatprep.mubr.f32.mxu0 0.0
    %1344 = vmatmul.mubr.f32.gmra.mrb[0].mxu0 %v582
    %v1345 = vpop.f32.mrb[0].mxu0
    %v1346 = vadd.f32 0.0, %v1345
    %v1347 = vpop.f32.mrb[0].mxu0
    %1348 = vmatprep.mubr.f32.mxu0 0.0
    %1349 = vmatmul.mubr.f32.gmra.mrb[0].mxu0 %v585
    %v1350 = vpop.f32.mrb[0].mxu0
    %v1351 = vadd.f32 0.0, %v1350
    %v1352 = vpop.f32.mrb[0].mxu0
    %1353 = vmatprep.mubr.f32.mxu0 0.0
    %1354 = vmatmul.mubr.f32.gmra.mrb[0].mxu0 %v588
    %v1355 = vpop.f32.mrb[0].mxu0
    %v1356 = vadd.f32 0.0, %v1355
    %v1357 = vpop.f32.mrb[0].mxu0
    %1358 = vmatprep.mubr.f32.mxu0 0.0
    %1359 = vmatmul.mubr.f32.gmra.mrb[0].mxu0 %v591
    %v1360 = vpop.f32.mrb[0].mxu0
    %v1361 = vadd.f32 0.0, %v1360
    %v1362 = vpop.f32.mrb[0].mxu0
    %1363 = vmatprep.mubr.f32.mxu0 0.0
    %1364 = vmatmul.mubr.f32.gmra.mrb[0].mxu0 %v594
    %v1365 = vpop.f32.mrb[0].mxu0
    %v1366 = vadd.f32 0.0, %v1365
    %v1367 = vpop.f32.mrb[0].mxu0
    %1368 = vmatprep.mubr.f32.mxu0 0.0
    %1369 = vmatmul.mubr.f32.gmra.mrb[0].mxu0 %v597
    %v1370 = vpop.f32.mrb[0].mxu0
    %v1371 = vadd.f32 0.0, %v1370
    %v1372 = vpop.f32.mrb[0].mxu0
    %1373 = vmatprep.mubr.f32.mxu0 0.0
    %1374 = vmatmul.mubr.f32.gmra.mrb[0].mxu0 %v600
    %v1375 = vpop.f32.mrb[0].mxu0
    %v1376 = vadd.f32 0.0, %v1375
    %v1377 = vpop.f32.mrb[0].mxu0
    %1378 = vmatprep.mubr.f32.mxu0 0.0
    %1379 = vmatmul.mubr.f32.gmra.mrb[0].mxu0 %v603
    %v1380 = vpop.f32.mrb[0].mxu0
    %v1381 = vadd.f32 0.0, %v1380
    %v1382 = vpop.f32.mrb[0].mxu0
    %1383 = vmatprep.mubr.f32.mxu0 0.0
    %1384 = vmatmul.mubr.f32.gmra.mrb[0].mxu0 %v606
    %v1385 = vpop.f32.mrb[0].mxu0
    %v1386 = vadd.f32 0.0, %v1385
    %v1387 = vpop.f32.mrb[0].mxu0
    %1388 = vmatprep.mubr.f32.mxu0 0.0
    %1389 = vmatmul.mubr.f32.gmra.mrb[0].mxu0 %v609
    %v1390 = vpop.f32.mrb[0].mxu0
    %v1391 = vadd.f32 0.0, %v1390
    %v1392 = vpop.f32.mrb[0].mxu0
    %1393 = vmatprep.mubr.f32.mxu0 0.0
    %1394 = vmatmul.mubr.f32.gmra.mrb[0].mxu0 %v612
    %v1395 = vpop.f32.mrb[0].mxu0
    %v1396 = vadd.f32 0.0, %v1395
    %v1397 = vpop.f32.mrb[0].mxu0
    %1398 = vdwg.mxu0
    %v1399 = vmax.f32 %v681, %v771
    %v1400 = vmax.f32 %v686, %v776
    %v1401 = vmax.f32 %v691, %v781
    %v1402 = vmax.f32 %v696, %v786
    %v1403 = vmax.f32 %v701, %v791
    %v1404 = vmax.f32 %v706, %v796
    %v1405 = vmax.f32 %v711, %v801
    %v1406 = vmax.f32 %v716, %v806
    %v1407 = vmax.f32 %v721, %v811
    %v1408 = vmax.f32 %v726, %v816
    %v1409 = vmax.f32 %v731, %v821
    %v1410 = vmax.f32 %v736, %v826
    %v1411 = vmax.f32 %v741, %v831
    %v1412 = vmax.f32 %v746, %v836
    %v1413 = vmax.f32 %v751, %v841
    %v1414 = vmax.f32 %v756, %v846
    %v1415 = vmax.f32 %v761, %v851
    %v1416 = vmax.f32 %v766, %v856
    %v1417 = vmax.f32 %v1041, %v1131
    %v1418 = vmax.f32 %v1046, %v1136
    %v1419 = vmax.f32 %v1051, %v1141
    %v1420 = vmax.f32 %v1056, %v1146
    %v1421 = vmax.f32 %v1061, %v1151
    %v1422 = vmax.f32 %v1066, %v1156
    %v1423 = vmax.f32 %v1071, %v1161
    %v1424 = vmax.f32 %v1076, %v1166
    %v1425 = vmax.f32 %v1081, %v1171
    %v1426 = vmax.f32 %v1086, %v1176
    %v1427 = vmax.f32 %v1091, %v1181
    %v1428 = vmax.f32 %v1096, %v1186
    %v1429 = vmax.f32 %v1101, %v1191
    %v1430 = vmax.f32 %v1106, %v1196
    %v1431 = vmax.f32 %v1111, %v1201
    %v1432 = vmax.f32 %v1116, %v1206
    %v1433 = vmax.f32 %v1121, %v1211
    %v1434 = vmax.f32 %v1126, %v1216
    %v1435 = vmax.f32 %v861, %v951
    %v1436 = vmax.f32 %v866, %v956
    %v1437 = vmax.f32 %v871, %v961
    %v1438 = vmax.f32 %v876, %v966
    %v1439 = vmax.f32 %v881, %v971
    %v1440 = vmax.f32 %v886, %v976
    %v1441 = vmax.f32 %v891, %v981
    %v1442 = vmax.f32 %v896, %v986
    %v1443 = vmax.f32 %v901, %v991
    %v1444 = vmax.f32 %v906, %v996
    %v1445 = vmax.f32 %v911, %v1001
    %v1446 = vmax.f32 %v916, %v1006
    %v1447 = vmax.f32 %v921, %v1011
    %v1448 = vmax.f32 %v926, %v1016
    %v1449 = vmax.f32 %v931, %v1021
    %v1450 = vmax.f32 %v936, %v1026
    %v1451 = vmax.f32 %v941, %v1031
    %v1452 = vmax.f32 %v946, %v1036
    %v1453 = vmax.f32 %v1221, %v1311
    %v1454 = vmax.f32 %v1226, %v1316
    %v1455 = vmax.f32 %v1231, %v1321
    %v1456 = vmax.f32 %v1236, %v1326
    %v1457 = vmax.f32 %v1241, %v1331
    %v1458 = vmax.f32 %v1246, %v1336
    %v1459 = vmax.f32 %v1251, %v1341
    %v1460 = vmax.f32 %v1256, %v1346
    %v1461 = vmax.f32 %v1261, %v1351
    %v1462 = vmax.f32 %v1266, %v1356
    %v1463 = vmax.f32 %v1271, %v1361
    %v1464 = vmax.f32 %v1276, %v1366
    %v1465 = vmax.f32 %v1281, %v1371
    %v1466 = vmax.f32 %v1286, %v1376
    %v1467 = vmax.f32 %v1291, %v1381
    %v1468 = vmax.f32 %v1296, %v1386
    %v1469 = vmax.f32 %v1301, %v1391
    %v1470 = vmax.f32 %v1306, %v1396
    %v1471 = vmax.f32 %v1399, %v1435
    %v1472 = vmax.f32 %v1400, %v1436
    %v1473 = vmax.f32 %v1401, %v1437
    %v1474 = vmax.f32 %v1402, %v1438
    %v1475 = vmax.f32 %v1403, %v1439
    %v1476 = vmax.f32 %v1404, %v1440
    %v1477 = vmax.f32 %v1405, %v1441
    %v1478 = vmax.f32 %v1406, %v1442
    %v1479 = vmax.f32 %v1407, %v1443
    %v1480 = vmax.f32 %v1408, %v1444
    %v1481 = vmax.f32 %v1409, %v1445
    %v1482 = vmax.f32 %v1410, %v1446
    %v1483 = vmax.f32 %v1411, %v1447
    %v1484 = vmax.f32 %v1412, %v1448
    %v1485 = vmax.f32 %v1413, %v1449
    %v1486 = vmax.f32 %v1414, %v1450
    %v1487 = vmax.f32 %v1415, %v1451
    %v1488 = vmax.f32 %v1416, %v1452
    %v1489 = vmax.f32 %v1417, %v1453
    %v1490 = vmax.f32 %v1418, %v1454
    %v1491 = vmax.f32 %v1419, %v1455
    %v1492 = vmax.f32 %v1420, %v1456
    %v1493 = vmax.f32 %v1421, %v1457
    %v1494 = vmax.f32 %v1422, %v1458
    %v1495 = vmax.f32 %v1423, %v1459
    %v1496 = vmax.f32 %v1424, %v1460
    %v1497 = vmax.f32 %v1425, %v1461
    %v1498 = vmax.f32 %v1426, %v1462
    %v1499 = vmax.f32 %v1427, %v1463
    %v1500 = vmax.f32 %v1428, %v1464
    %v1501 = vmax.f32 %v1429, %v1465
    %v1502 = vmax.f32 %v1430, %v1466
    %v1503 = vmax.f32 %v1431, %v1467
    %v1504 = vmax.f32 %v1432, %v1468
    %v1505 = vmax.f32 %v1433, %v1469
    %v1506 = vmax.f32 %v1434, %v1470
    %v1507 = vld [vmem:[%s2] sm:$0x1]
    %v1509 = vlaneseq
    %v1510 = vshrl.u32 %v1509, 7
    %v1511 = vsub.s32 0, %v1510
    %v1512 = vrot.slane %v1507, %v1511
    %v1514 = vadd.f32 %v1471, %v1512
    %v1515 = vadd.f32 %v1472, %v1512
    %v1516 = vadd.f32 %v1473, %v1512
    %v1517 = vadd.f32 %v1474, %v1512
    %v1518 = vadd.f32 %v1475, %v1512
    %v1519 = vadd.f32 %v1476, %v1512
    %v1520 = vadd.f32 %v1477, %v1512
    %v1521 = vadd.f32 %v1478, %v1512
    %v1522 = vadd.f32 %v1479, %v1512
    %v1523 = vadd.f32 %v1480, %v1512
    %v1524 = vadd.f32 %v1481, %v1512
    %v1525 = vadd.f32 %v1482, %v1512
    %v1526 = vadd.f32 %v1483, %v1512
    %v1527 = vadd.f32 %v1484, %v1512
    %v1528 = vadd.f32 %v1485, %v1512
    %v1529 = vadd.f32 %v1486, %v1512
    %v1530 = vadd.f32 %v1487, %v1512
    %v1531 = vadd.f32 %v1488, %v1512
    %v1532 = vadd.f32 %v1489, %v1512
    %v1533 = vadd.f32 %v1490, %v1512
    %v1534 = vadd.f32 %v1491, %v1512
    %v1535 = vadd.f32 %v1492, %v1512
    %v1536 = vadd.f32 %v1493, %v1512
    %v1537 = vadd.f32 %v1494, %v1512
    %v1538 = vadd.f32 %v1495, %v1512
    %v1539 = vadd.f32 %v1496, %v1512
    %v1540 = vadd.f32 %v1497, %v1512
    %v1541 = vadd.f32 %v1498, %v1512
    %v1542 = vadd.f32 %v1499, %v1512
    %v1543 = vadd.f32 %v1500, %v1512
    %v1544 = vadd.f32 %v1501, %v1512
    %v1545 = vadd.f32 %v1502, %v1512
    %v1546 = vadd.f32 %v1503, %v1512
    %v1547 = vadd.f32 %v1504, %v1512
    %v1548 = vadd.f32 %v1505, %v1512
    %v1549 = vadd.f32 %v1506, %v1512
    %v1550 = vmax.f32 %v1514, 0.0
    %v1551 = vmax.f32 %v1515, 0.0
    %v1552 = vmax.f32 %v1516, 0.0
    %v1553 = vmax.f32 %v1517, 0.0
    %v1554 = vmax.f32 %v1518, 0.0
    %v1555 = vmax.f32 %v1519, 0.0
    %v1556 = vmax.f32 %v1520, 0.0
    %v1557 = vmax.f32 %v1521, 0.0
    %v1558 = vmax.f32 %v1522, 0.0
    %v1559 = vmax.f32 %v1523, 0.0
    %v1560 = vmax.f32 %v1524, 0.0
    %v1561 = vmax.f32 %v1525, 0.0
    %v1562 = vmax.f32 %v1526, 0.0
    %v1563 = vmax.f32 %v1527, 0.0
    %v1564 = vmax.f32 %v1528, 0.0
    %v1565 = vmax.f32 %v1529, 0.0
    %v1566 = vmax.f32 %v1530, 0.0
    %v1567 = vmax.f32 %v1531, 0.0
    %v1568 = vmax.f32 %v1532, 0.0
    %v1569 = vmax.f32 %v1533, 0.0
    %v1570 = vmax.f32 %v1534, 0.0
    %v1571 = vmax.f32 %v1535, 0.0
    %v1572 = vmax.f32 %v1536, 0.0
    %v1573 = vmax.f32 %v1537, 0.0
    %v1574 = vmax.f32 %v1538, 0.0
    %v1575 = vmax.f32 %v1539, 0.0
    %v1576 = vmax.f32 %v1540, 0.0
    %v1577 = vmax.f32 %v1541, 0.0
    %v1578 = vmax.f32 %v1542, 0.0
    %v1579 = vmax.f32 %v1543, 0.0
    %v1580 = vmax.f32 %v1544, 0.0
    %v1581 = vmax.f32 %v1545, 0.0
    %v1582 = vmax.f32 %v1546, 0.0
    %v1583 = vmax.f32 %v1547, 0.0
    %v1584 = vmax.f32 %v1548, 0.0
    %v1585 = vmax.f32 %v1549, 0.0
    %1586 = vst.msk [vmem:[#allocation2] sm:$0xff] %vm181, %v1550
    %1587 = vst.msk [vmem:[#allocation2 + $0x8] sm:$0xff] %vm181, %v1551
    %1588 = vst.msk [vmem:[#allocation2 + $0x10] sm:$0xff] %vm181, %v1552
    %1589 = vst.msk [vmem:[#allocation2 + $0x18] sm:$0xff] %vm181, %v1553
    %1590 = vst.msk [vmem:[#allocation2 + $0x20] sm:$0xff] %vm181, %v1554
    %1591 = vst.msk [vmem:[#allocation2 + $0x28] sm:$0xff] %vm181, %v1555
    %1592 = vst.msk [vmem:[#allocation2 + $0x30] sm:$0xff] %vm181, %v1556
    %1593 = vst.msk [vmem:[#allocation2 + $0x38] sm:$0xff] %vm181, %v1557
    %1594 = vst.msk [vmem:[#allocation2 + $0x40] sm:$0xff] %vm181, %v1558
    %1595 = vst.msk [vmem:[#allocation2 + $0x48] sm:$0xff] %vm181, %v1559
    %1596 = vst.msk [vmem:[#allocation2 + $0x50] sm:$0xff] %vm181, %v1560
    %1597 = vst.msk [vmem:[#allocation2 + $0x58] sm:$0xff] %vm181, %v1561
    %1598 = vst.msk [vmem:[#allocation2 + $0x60] sm:$0xff] %vm181, %v1562
    %1599 = vst.msk [vmem:[#allocation2 + $0x68] sm:$0xff] %vm181, %v1563
    %1600 = vst.msk [vmem:[#allocation2 + $0x70] sm:$0xff] %vm181, %v1564
    %1601 = vst.msk [vmem:[#allocation2 + $0x78] sm:$0xff] %vm181, %v1565
    %1602 = vst.msk [vmem:[#allocation2 + $0x80] sm:$0xff] %vm181, %v1566
    %1603 = vst.msk [vmem:[#allocation2 + $0x88] sm:$0xff] %vm181, %v1567
    %1604 = vst.msk [vmem:[#allocation2 + $0x98] sm:$0xff] %vm181, %v1568
    %1605 = vst.msk [vmem:[#allocation2 + $0xa0] sm:$0xff] %vm181, %v1569
    %1606 = vst.msk [vmem:[#allocation2 + $0xa8] sm:$0xff] %vm181, %v1570
    %1607 = vst.msk [vmem:[#allocation2 + $0xb0] sm:$0xff] %vm181, %v1571
    %1608 = vst.msk [vmem:[#allocation2 + $0xb8] sm:$0xff] %vm181, %v1572
    %1609 = vst.msk [vmem:[#allocation2 + $0xc0] sm:$0xff] %vm181, %v1573
    %1610 = vst.msk [vmem:[#allocation2 + $0xc8] sm:$0xff] %vm181, %v1574
    %1611 = vst.msk [vmem:[#allocation2 + $0xd0] sm:$0xff] %vm181, %v1575
    %1612 = vst.msk [vmem:[#allocation2 + $0xd8] sm:$0xff] %vm181, %v1576
    %1613 = vst.msk [vmem:[#allocation2 + $0xe0] sm:$0xff] %vm181, %v1577
    %1614 = vst.msk [vmem:[#allocation2 + $0xe8] sm:$0xff] %vm181, %v1578
    %1615 = vst.msk [vmem:[#allocation2 + $0xf0] sm:$0xff] %vm181, %v1579
    %1616 = vst.msk [vmem:[#allocation2 + $0xf8] sm:$0xff] %vm181, %v1580
    %1617 = vst.msk [vmem:[#allocation2 + $0x100] sm:$0xff] %vm181, %v1581
    %1618 = vst.msk [vmem:[#allocation2 + $0x108] sm:$0xff] %vm181, %v1582
    %1619 = vst.msk [vmem:[#allocation2 + $0x110] sm:$0xff] %vm181, %v1583
    %1620 = vst.msk [vmem:[#allocation2 + $0x118] sm:$0xff] %vm181, %v1584
    %1621 = vst.msk [vmem:[#allocation2 + $0x120] sm:$0xff] %vm181, %v1585
    %1622 = vst.msk [vmem:[#allocation2 + $0x90] sm:$0xff] %vm181, 0.0
    %1623 = vst.msk [vmem:[#allocation2 + $0x128] sm:$0xff] %vm181, 0.0
    %v1624 = vld [vmem:[#allocation2] sm:$0xff]
    %v1625 = vld [vmem:[#allocation2 + $0x8] sm:$0xff]
    %v1626 = vld [vmem:[#allocation2 + $0x10] sm:$0xff]
    %v1627 = vld [vmem:[#allocation2 + $0x18] sm:$0xff]
    %v1628 = vld [vmem:[#allocation2 + $0x20] sm:$0xff]
    %v1629 = vld [vmem:[#allocation2 + $0x28] sm:$0xff]
    %v1630 = vld [vmem:[#allocation2 + $0x30] sm:$0xff]
    %v1631 = vld [vmem:[#allocation2 + $0x38] sm:$0xff]
    %v1632 = vld [vmem:[#allocation2 + $0x40] sm:$0xff]
    %v1633 = vld [vmem:[#allocation2 + $0x48] sm:$0xff]
    %v1634 = vld [vmem:[#allocation2 + $0x50] sm:$0xff]
    %v1635 = vld [vmem:[#allocation2 + $0x58] sm:$0xff]
    %v1636 = vld [vmem:[#allocation2 + $0x98] sm:$0xff]
    %v1637 = vld [vmem:[#allocation2 + $0xa0] sm:$0xff]
    %v1638 = vld [vmem:[#allocation2 + $0xa8] sm:$0xff]
    %v1639 = vld [vmem:[#allocation2 + $0xb0] sm:$0xff]
    %v1640 = vld [vmem:[#allocation2 + $0xb8] sm:$0xff]
    %v1641 = vld [vmem:[#allocation2 + $0xc0] sm:$0xff]
    %v1642 = vld [vmem:[#allocation2 + $0xc8] sm:$0xff]
    %v1643 = vld [vmem:[#allocation2 + $0xd0] sm:$0xff]
    %v1644 = vld [vmem:[#allocation2 + $0xd8] sm:$0xff]
    %v1645 = vld [vmem:[#allocation2 + $0xe0] sm:$0xff]
    %v1646 = vld [vmem:[#allocation2 + $0xe8] sm:$0xff]
    %v1647 = vld [vmem:[#allocation2 + $0xf0] sm:$0xff]
    %v1648 = vld [vmem:[%s3] sm:$0xff]
    %v1649 = vld [vmem:[%s3 + $0x8] sm:$0xff]
    %v1650 = vld [vmem:[%s3 + $0x10] sm:$0xff]
    %v1651 = vld [vmem:[%s3 + $0x18] sm:$0xff]
    %v1652 = vld [vmem:[#allocation2 + $0x1] sm:$0xff]
    %v1653 = vld [vmem:[#allocation2 + $0x9] sm:$0xff]
    %v1654 = vld [vmem:[#allocation2 + $0x11] sm:$0xff]
    %v1655 = vld [vmem:[#allocation2 + $0x19] sm:$0xff]
    %v1656 = vld [vmem:[#allocation2 + $0x21] sm:$0xff]
    %v1657 = vld [vmem:[#allocation2 + $0x29] sm:$0xff]
    %v1658 = vld [vmem:[#allocation2 + $0x31] sm:$0xff]
    %v1659 = vld [vmem:[#allocation2 + $0x39] sm:$0xff]
    %v1660 = vld [vmem:[#allocation2 + $0x41] sm:$0xff]
    %v1661 = vld [vmem:[#allocation2 + $0x49] sm:$0xff]
    %v1662 = vld [vmem:[#allocation2 + $0x51] sm:$0xff]
    %v1663 = vld [vmem:[#allocation2 + $0x59] sm:$0xff]
    %v1664 = vld [vmem:[#allocation2 + $0x99] sm:$0xff]
    %v1665 = vld [vmem:[#allocation2 + $0xa1] sm:$0xff]
    %v1666 = vld [vmem:[#allocation2 + $0xa9] sm:$0xff]
    %v1667 = vld [vmem:[#allocation2 + $0xb1] sm:$0xff]
    %v1668 = vld [vmem:[#allocation2 + $0xb9] sm:$0xff]
    %v1669 = vld [vmem:[#allocation2 + $0xc1] sm:$0xff]
    %v1670 = vld [vmem:[#allocation2 + $0xc9] sm:$0xff]
    %v1671 = vld [vmem:[#allocation2 + $0xd1] sm:$0xff]
    %v1672 = vld [vmem:[#allocation2 + $0xd9] sm:$0xff]
    %v1673 = vld [vmem:[#allocation2 + $0xe1] sm:$0xff]
    %v1674 = vld [vmem:[#allocation2 + $0xe9] sm:$0xff]
    %v1675 = vld [vmem:[#allocation2 + $0xf1] sm:$0xff]
    %s1676 = scalar_lea.vmem %s3, 32
    %v1677 = vld [vmem:[%s1676] sm:$0xff]
    %v1678 = vld [vmem:[%s1676 + $0x8] sm:$0xff]
    %v1679 = vld [vmem:[%s1676 + $0x10] sm:$0xff]
    %v1680 = vld [vmem:[%s1676 + $0x18] sm:$0xff]
    %v1682 = vsel %vm181, %v1652, 0
    %v1685 = vsel %vm181, %v1653, 0
    %v1688 = vsel %vm181, %v1654, 0
    %v1691 = vsel %vm181, %v1655, 0
    %v1694 = vsel %vm181, %v1656, 0
    %v1697 = vsel %vm181, %v1657, 0
    %v1700 = vsel %vm181, %v1658, 0
    %v1703 = vsel %vm181, %v1659, 0
    %v1706 = vsel %vm181, %v1660, 0
    %v1709 = vsel %vm181, %v1661, 0
    %v1712 = vsel %vm181, %v1662, 0
    %v1715 = vsel %vm181, %v1663, 0
    %v1718 = vsel %vm181, %v1664, 0
    %v1721 = vsel %vm181, %v1665, 0
    %v1724 = vsel %vm181, %v1666, 0
    %v1727 = vsel %vm181, %v1667, 0
    %v1730 = vsel %vm181, %v1668, 0
    %v1733 = vsel %vm181, %v1669, 0
    %v1736 = vsel %vm181, %v1670, 0
    %v1739 = vsel %vm181, %v1671, 0
    %v1742 = vsel %vm181, %v1672, 0
    %v1745 = vsel %vm181, %v1673, 0
    %v1748 = vsel %vm181, %v1674, 0
    %v1751 = vsel %vm181, %v1675, 0
    %1753 = vmatprep.subr.mxu0 0.0
    %1754 = vmatpush1.msra.mxu0 %v1677
    %1755 = vmatprep.subr.mxu0 0.0
    %1756 = vmatpush1.msra.mxu0 %v1678
    %1757 = vmatprep.subr.mxu0 0.0
    %1758 = vmatpush1.msra.mxu0 %v1679
    %1759 = vmatprep.subr.mxu0 0.0
    %1760 = vmatpush1.msra.mxu0 %v1680
    %1761 = vmatprep.subr.mxu0 0.0
    %1762 = vmatpush1.msra.mxu0 0.0
    %1763 = vmatprep.subr.mxu0 0.0
    %1764 = vmatpush1.msra.mxu0 0.0
    %1765 = vmatprep.subr.mxu0 0.0
    %1766 = vmatpush1.msra.mxu0 0.0
    %1767 = vmatprep.subr.mxu0 0.0
    %1768 = vmatpush1.msra.mxu0 0.0
    %1769 = vmatprep.subr.mxu0 0.0
    %1770 = vmatpush1.msra.mxu0 0.0
    %1771 = vmatprep.subr.mxu0 0.0
    %1772 = vmatpush1.msra.mxu0 0.0
    %1773 = vmatprep.subr.mxu0 0.0
    %1774 = vmatpush1.msra.mxu0 0.0
    %1775 = vmatprep.subr.mxu0 0.0
    %1776 = vmatpush1.msra.mxu0 0.0
    %1777 = vmatprep.subr.mxu0 0.0
    %1778 = vmatpush1.msra.mxu0 0.0
    %1779 = vmatprep.subr.mxu0 0.0
    %1780 = vmatpush1.msra.mxu0 0.0
    %1781 = vmatprep.subr.mxu0 0.0
    %1782 = vmatpush1.msra.mxu0 0.0
    %1783 = vmatprep.subr.mxu0 0.0
    %1784 = vmatpush1.msra.mxu0 0.0
    %1785 = vmatprep.subr.mxu0 0.0
    %1786 = vmatpush1.msra.mxu0 0.0
    %1787 = vmatprep.subr.mxu0 0.0
    %1788 = vmatpush1.msra.mxu0 0.0
    %1789 = vmatprep.subr.mxu0 0.0
    %1790 = vmatpush1.msra.mxu0 0.0
    %1791 = vmatprep.subr.mxu0 0.0
    %1792 = vmatpush1.msra.mxu0 0.0
    %1793 = vmatprep.subr.mxu0 0.0
    %1794 = vmatpush1.msra.mxu0 0.0
    %1795 = vmatprep.subr.mxu0 0.0
    %1796 = vmatpush1.msra.mxu0 0.0
    %1797 = vmatprep.subr.mxu0 0.0
    %1798 = vmatpush1.msra.mxu0 0.0
    %1799 = vmatprep.subr.mxu0 0.0
    %1800 = vmatpush1.msra.mxu0 0.0
    %1801 = vmatprep.subr.mxu0 0.0
    %1802 = vmatpush1.msra.mxu0 0.0
    %1803 = vmatprep.subr.mxu0 0.0
    %1804 = vmatpush1.msra.mxu0 0.0
    %1805 = vmatprep.subr.mxu0 0.0
    %1806 = vmatpush1.msra.mxu0 0.0
    %1807 = vmatprep.subr.mxu0 0.0
    %1808 = vmatpush1.msra.mxu0 0.0
    %1809 = vmatprep.subr.mxu0 0.0
    %1810 = vmatpush1.msra.mxu0 0.0
    %1811 = vmatprep.subr.mxu0 0.0
    %1812 = vmatpush1.msra.mxu0 0.0
    %1813 = vmatprep.subr.mxu0 0.0
    %1814 = vmatpush1.msra.mxu0 0.0
    %1815 = vmatprep.subr.mxu0 0.0
    %1816 = vmatpush1.msra.mxu0 0.0
    %1817 = vmatprep.mubr.f32.mxu0 0.0
    %1818 = vmatmul.mubr.f32.gmra.mrb[0].mxu0 %v1682
    %v1819 = vpop.f32.mrb[0].mxu0
    %v1820 = vadd.f32 0.0, %v1819
    %v1821 = vpop.f32.mrb[0].mxu0
    %1822 = vmatprep.mubr.f32.mxu0 0.0
    %1823 = vmatmul.mubr.f32.gmra.mrb[0].mxu0 %v1685
    %v1824 = vpop.f32.mrb[0].mxu0
    %v1825 = vadd.f32 0.0, %v1824
    %v1826 = vpop.f32.mrb[0].mxu0
    %1827 = vmatprep.mubr.f32.mxu0 0.0
    %1828 = vmatmul.mubr.f32.gmra.mrb[0].mxu0 %v1688
    %v1829 = vpop.f32.mrb[0].mxu0
    %v1830 = vadd.f32 0.0, %v1829
    %v1831 = vpop.f32.mrb[0].mxu0
    %1832 = vmatprep.mubr.f32.mxu0 0.0
    %1833 = vmatmul.mubr.f32.gmra.mrb[0].mxu0 %v1691
    %v1834 = vpop.f32.mrb[0].mxu0
    %v1835 = vadd.f32 0.0, %v1834
    %v1836 = vpop.f32.mrb[0].mxu0
    %1837 = vmatprep.mubr.f32.mxu0 0.0
    %1838 = vmatmul.mubr.f32.gmra.mrb[0].mxu0 %v1694
    %v1839 = vpop.f32.mrb[0].mxu0
    %v1840 = vadd.f32 0.0, %v1839
    %v1841 = vpop.f32.mrb[0].mxu0
    %1842 = vmatprep.mubr.f32.mxu0 0.0
    %1843 = vmatmul.mubr.f32.gmra.mrb[0].mxu0 %v1697
    %v1844 = vpop.f32.mrb[0].mxu0
    %v1845 = vadd.f32 0.0, %v1844
    %v1846 = vpop.f32.mrb[0].mxu0
    %1847 = vmatprep.mubr.f32.mxu0 0.0
    %1848 = vmatmul.mubr.f32.gmra.mrb[0].mxu0 %v1700
    %v1849 = vpop.f32.mrb[0].mxu0
    %v1850 = vadd.f32 0.0, %v1849
    %v1851 = vpop.f32.mrb[0].mxu0
    %1852 = vmatprep.mubr.f32.mxu0 0.0
    %1853 = vmatmul.mubr.f32.gmra.mrb[0].mxu0 %v1703
    %v1854 = vpop.f32.mrb[0].mxu0
    %v1855 = vadd.f32 0.0, %v1854
    %v1856 = vpop.f32.mrb[0].mxu0
    %1857 = vmatprep.mubr.f32.mxu0 0.0
    %1858 = vmatmul.mubr.f32.gmra.mrb[0].mxu0 %v1706
    %v1859 = vpop.f32.mrb[0].mxu0
    %v1860 = vadd.f32 0.0, %v1859
    %v1861 = vpop.f32.mrb[0].mxu0
    %1862 = vmatprep.mubr.f32.mxu0 0.0
    %1863 = vmatmul.mubr.f32.gmra.mrb[0].mxu0 %v1709
    %v1864 = vpop.f32.mrb[0].mxu0
    %v1865 = vadd.f32 0.0, %v1864
    %v1866 = vpop.f32.mrb[0].mxu0
    %1867 = vmatprep.mubr.f32.mxu0 0.0
    %1868 = vmatmul.mubr.f32.gmra.mrb[0].mxu0 %v1712
    %v1869 = vpop.f32.mrb[0].mxu0
    %v1870 = vadd.f32 0.0, %v1869
    %v1871 = vpop.f32.mrb[0].mxu0
    %1872 = vmatprep.mubr.f32.mxu0 0.0
    %1873 = vmatmul.mubr.f32.gmra.mrb[0].mxu0 %v1715
    %v1874 = vpop.f32.mrb[0].mxu0
    %v1875 = vadd.f32 0.0, %v1874
    %v1876 = vpop.f32.mrb[0].mxu0
    %1877 = vmatprep.mubr.f32.mxu0 0.0
    %1878 = vmatmul.mubr.f32.gmra.mrb[0].mxu0 %v1718
    %v1879 = vpop.f32.mrb[0].mxu0
    %v1880 = vadd.f32 0.0, %v1879
    %v1881 = vpop.f32.mrb[0].mxu0
    %1882 = vmatprep.mubr.f32.mxu0 0.0
    %1883 = vmatmul.mubr.f32.gmra.mrb[0].mxu0 %v1721
    %v1884 = vpop.f32.mrb[0].mxu0
    %v1885 = vadd.f32 0.0, %v1884
    %v1886 = vpop.f32.mrb[0].mxu0
    %1887 = vmatprep.mubr.f32.mxu0 0.0
    %1888 = vmatmul.mubr.f32.gmra.mrb[0].mxu0 %v1724
    %v1889 = vpop.f32.mrb[0].mxu0
    %v1890 = vadd.f32 0.0, %v1889
    %v1891 = vpop.f32.mrb[0].mxu0
    %1892 = vmatprep.mubr.f32.mxu0 0.0
    %1893 = vmatmul.mubr.f32.gmra.mrb[0].mxu0 %v1727
    %v1894 = vpop.f32.mrb[0].mxu0
    %v1895 = vadd.f32 0.0, %v1894
    %v1896 = vpop.f32.mrb[0].mxu0
    %1897 = vmatprep.mubr.f32.mxu0 0.0
    %1898 = vmatmul.mubr.f32.gmra.mrb[0].mxu0 %v1730
    %v1899 = vpop.f32.mrb[0].mxu0
    %v1900 = vadd.f32 0.0, %v1899
    %v1901 = vpop.f32.mrb[0].mxu0
    %1902 = vmatprep.mubr.f32.mxu0 0.0
    %1903 = vmatmul.mubr.f32.gmra.mrb[0].mxu0 %v1733
    %v1904 = vpop.f32.mrb[0].mxu0
    %v1905 = vadd.f32 0.0, %v1904
    %v1906 = vpop.f32.mrb[0].mxu0
    %1907 = vmatprep.mubr.f32.mxu0 0.0
    %1908 = vmatmul.mubr.f32.gmra.mrb[0].mxu0 %v1736
    %v1909 = vpop.f32.mrb[0].mxu0
    %v1910 = vadd.f32 0.0, %v1909
    %v1911 = vpop.f32.mrb[0].mxu0
    %1912 = vmatprep.mubr.f32.mxu0 0.0
    %1913 = vmatmul.mubr.f32.gmra.mrb[0].mxu0 %v1739
    %v1914 = vpop.f32.mrb[0].mxu0
    %v1915 = vadd.f32 0.0, %v1914
    %v1916 = vpop.f32.mrb[0].mxu0
    %1917 = vmatprep.mubr.f32.mxu0 0.0
    %1918 = vmatmul.mubr.f32.gmra.mrb[0].mxu0 %v1742
    %v1919 = vpop.f32.mrb[0].mxu0
    %v1920 = vadd.f32 0.0, %v1919
    %v1921 = vpop.f32.mrb[0].mxu0
    %1922 = vmatprep.mubr.f32.mxu0 0.0
    %1923 = vmatmul.mubr.f32.gmra.mrb[0].mxu0 %v1745
    %v1924 = vpop.f32.mrb[0].mxu0
    %v1925 = vadd.f32 0.0, %v1924
    %v1926 = vpop.f32.mrb[0].mxu0
    %1927 = vmatprep.mubr.f32.mxu0 0.0
    %1928 = vmatmul.mubr.f32.gmra.mrb[0].mxu0 %v1748
    %v1929 = vpop.f32.mrb[0].mxu0
    %v1930 = vadd.f32 0.0, %v1929
    %v1931 = vpop.f32.mrb[0].mxu0
    %1932 = vmatprep.mubr.f32.mxu0 0.0
    %1933 = vmatmul.mubr.f32.gmra.mrb[0].mxu0 %v1751
    %v1934 = vpop.f32.mrb[0].mxu0
    %v1935 = vadd.f32 0.0, %v1934
    %v1936 = vpop.f32.mrb[0].mxu0
    %1937 = vdwg.mxu0
    %v1939 = vsel %vm181, %v1624, 0
    %v1942 = vsel %vm181, %v1625, 0
    %v1945 = vsel %vm181, %v1626, 0
    %v1948 = vsel %vm181, %v1627, 0
    %v1951 = vsel %vm181, %v1628, 0
    %v1954 = vsel %vm181, %v1629, 0
    %v1957 = vsel %vm181, %v1630, 0
    %v1960 = vsel %vm181, %v1631, 0
    %v1963 = vsel %vm181, %v1632, 0
    %v1966 = vsel %vm181, %v1633, 0
    %v1969 = vsel %vm181, %v1634, 0
    %v1972 = vsel %vm181, %v1635, 0
    %v1975 = vsel %vm181, %v1636, 0
    %v1978 = vsel %vm181, %v1637, 0
    %v1981 = vsel %vm181, %v1638, 0
    %v1984 = vsel %vm181, %v1639, 0
    %v1987 = vsel %vm181, %v1640, 0
    %v1990 = vsel %vm181, %v1641, 0
    %v1993 = vsel %vm181, %v1642, 0
    %v1996 = vsel %vm181, %v1643, 0
    %v1999 = vsel %vm181, %v1644, 0
    %v2002 = vsel %vm181, %v1645, 0
    %v2005 = vsel %vm181, %v1646, 0
    %v2008 = vsel %vm181, %v1647, 0
    %2010 = vmatprep.subr.mxu0 0.0
    %2011 = vmatpush1.msra.mxu0 %v1648
    %2012 = vmatprep.subr.mxu0 0.0
    %2013 = vmatpush1.msra.mxu0 %v1649
    %2014 = vmatprep.subr.mxu0 0.0
    %2015 = vmatpush1.msra.mxu0 %v1650
    %2016 = vmatprep.subr.mxu0 0.0
    %2017 = vmatpush1.msra.mxu0 %v1651
    %2018 = vmatprep.subr.mxu0 0.0
    %2019 = vmatpush1.msra.mxu0 0.0
    %2020 = vmatprep.subr.mxu0 0.0
    %2021 = vmatpush1.msra.mxu0 0.0
    %2022 = vmatprep.subr.mxu0 0.0
    %2023 = vmatpush1.msra.mxu0 0.0
    %2024 = vmatprep.subr.mxu0 0.0
    %2025 = vmatpush1.msra.mxu0 0.0
    %2026 = vmatprep.subr.mxu0 0.0
    %2027 = vmatpush1.msra.mxu0 0.0
    %2028 = vmatprep.subr.mxu0 0.0
    %2029 = vmatpush1.msra.mxu0 0.0
    %2030 = vmatprep.subr.mxu0 0.0
    %2031 = vmatpush1.msra.mxu0 0.0
    %2032 = vmatprep.subr.mxu0 0.0
    %2033 = vmatpush1.msra.mxu0 0.0
    %2034 = vmatprep.subr.mxu0 0.0
    %2035 = vmatpush1.msra.mxu0 0.0
    %2036 = vmatprep.subr.mxu0 0.0
    %2037 = vmatpush1.msra.mxu0 0.0
    %2038 = vmatprep.subr.mxu0 0.0
    %2039 = vmatpush1.msra.mxu0 0.0
    %2040 = vmatprep.subr.mxu0 0.0
    %2041 = vmatpush1.msra.mxu0 0.0
    %2042 = vmatprep.subr.mxu0 0.0
    %2043 = vmatpush1.msra.mxu0 0.0
    %2044 = vmatprep.subr.mxu0 0.0
    %2045 = vmatpush1.msra.mxu0 0.0
    %2046 = vmatprep.subr.mxu0 0.0
    %2047 = vmatpush1.msra.mxu0 0.0
    %2048 = vmatprep.subr.mxu0 0.0
    %2049 = vmatpush1.msra.mxu0 0.0
    %2050 = vmatprep.subr.mxu0 0.0
    %2051 = vmatpush1.msra.mxu0 0.0
    %2052 = vmatprep.subr.mxu0 0.0
    %2053 = vmatpush1.msra.mxu0 0.0
    %2054 = vmatprep.subr.mxu0 0.0
    %2055 = vmatpush1.msra.mxu0 0.0
    %2056 = vmatprep.subr.mxu0 0.0
    %2057 = vmatpush1.msra.mxu0 0.0
    %2058 = vmatprep.subr.mxu0 0.0
    %2059 = vmatpush1.msra.mxu0 0.0
    %2060 = vmatprep.subr.mxu0 0.0
    %2061 = vmatpush1.msra.mxu0 0.0
    %2062 = vmatprep.subr.mxu0 0.0
    %2063 = vmatpush1.msra.mxu0 0.0
    %2064 = vmatprep.subr.mxu0 0.0
    %2065 = vmatpush1.msra.mxu0 0.0
    %2066 = vmatprep.subr.mxu0 0.0
    %2067 = vmatpush1.msra.mxu0 0.0
    %2068 = vmatprep.subr.mxu0 0.0
    %2069 = vmatpush1.msra.mxu0 0.0
    %2070 = vmatprep.subr.mxu0 0.0
    %2071 = vmatpush1.msra.mxu0 0.0
    %2072 = vmatprep.subr.mxu0 0.0
    %2073 = vmatpush1.msra.mxu0 0.0
    %2074 = vmatprep.mubr.f32.mxu0 0.0
    %2075 = vmatmul.mubr.f32.gmra.mrb[0].mxu0 %v1939
    %v2076 = vpop.f32.mrb[0].mxu0
    %v2077 = vadd.f32 %v1820, %v2076
    %v2078 = vpop.f32.mrb[0].mxu0
    %2079 = vmatprep.mubr.f32.mxu0 0.0
    %2080 = vmatmul.mubr.f32.gmra.mrb[0].mxu0 %v1942
    %v2081 = vpop.f32.mrb[0].mxu0
    %v2082 = vadd.f32 %v1825, %v2081
    %v2083 = vpop.f32.mrb[0].mxu0
    %2084 = vmatprep.mubr.f32.mxu0 0.0
    %2085 = vmatmul.mubr.f32.gmra.mrb[0].mxu0 %v1945
    %v2086 = vpop.f32.mrb[0].mxu0
    %v2087 = vadd.f32 %v1830, %v2086
    %v2088 = vpop.f32.mrb[0].mxu0
    %2089 = vmatprep.mubr.f32.mxu0 0.0
    %2090 = vmatmul.mubr.f32.gmra.mrb[0].mxu0 %v1948
    %v2091 = vpop.f32.mrb[0].mxu0
    %v2092 = vadd.f32 %v1835, %v2091
    %v2093 = vpop.f32.mrb[0].mxu0
    %2094 = vmatprep.mubr.f32.mxu0 0.0
    %2095 = vmatmul.mubr.f32.gmra.mrb[0].mxu0 %v1951
    %v2096 = vpop.f32.mrb[0].mxu0
    %v2097 = vadd.f32 %v1840, %v2096
    %v2098 = vpop.f32.mrb[0].mxu0
    %2099 = vmatprep.mubr.f32.mxu0 0.0
    %2100 = vmatmul.mubr.f32.gmra.mrb[0].mxu0 %v1954
    %v2101 = vpop.f32.mrb[0].mxu0
    %v2102 = vadd.f32 %v1845, %v2101
    %v2103 = vpop.f32.mrb[0].mxu0
    %2104 = vmatprep.mubr.f32.mxu0 0.0
    %2105 = vmatmul.mubr.f32.gmra.mrb[0].mxu0 %v1957
    %v2106 = vpop.f32.mrb[0].mxu0
    %v2107 = vadd.f32 %v1850, %v2106
    %v2108 = vpop.f32.mrb[0].mxu0
    %2109 = vmatprep.mubr.f32.mxu0 0.0
    %2110 = vmatmul.mubr.f32.gmra.mrb[0].mxu0 %v1960
    %v2111 = vpop.f32.mrb[0].mxu0
    %v2112 = vadd.f32 %v1855, %v2111
    %v2113 = vpop.f32.mrb[0].mxu0
    %2114 = vmatprep.mubr.f32.mxu0 0.0
    %2115 = vmatmul.mubr.f32.gmra.mrb[0].mxu0 %v1963
    %v2116 = vpop.f32.mrb[0].mxu0
    %v2117 = vadd.f32 %v1860, %v2116
    %v2118 = vpop.f32.mrb[0].mxu0
    %2119 = vmatprep.mubr.f32.mxu0 0.0
    %2120 = vmatmul.mubr.f32.gmra.mrb[0].mxu0 %v1966
    %v2121 = vpop.f32.mrb[0].mxu0
    %v2122 = vadd.f32 %v1865, %v2121
    %v2123 = vpop.f32.mrb[0].mxu0
    %2124 = vmatprep.mubr.f32.mxu0 0.0
    %2125 = vmatmul.mubr.f32.gmra.mrb[0].mxu0 %v1969
    %v2126 = vpop.f32.mrb[0].mxu0
    %v2127 = vadd.f32 %v1870, %v2126
    %v2128 = vpop.f32.mrb[0].mxu0
    %2129 = vmatprep.mubr.f32.mxu0 0.0
    %2130 = vmatmul.mubr.f32.gmra.mrb[0].mxu0 %v1972
    %v2131 = vpop.f32.mrb[0].mxu0
    %v2132 = vadd.f32 %v1875, %v2131
    %v2133 = vpop.f32.mrb[0].mxu0
    %2134 = vmatprep.mubr.f32.mxu0 0.0
    %2135 = vmatmul.mubr.f32.gmra.mrb[0].mxu0 %v1975
    %v2136 = vpop.f32.mrb[0].mxu0
    %v2137 = vadd.f32 %v1880, %v2136
    %v2138 = vpop.f32.mrb[0].mxu0
    %2139 = vmatprep.mubr.f32.mxu0 0.0
    %2140 = vmatmul.mubr.f32.gmra.mrb[0].mxu0 %v1978
    %v2141 = vpop.f32.mrb[0].mxu0
    %v2142 = vadd.f32 %v1885, %v2141
    %v2143 = vpop.f32.mrb[0].mxu0
    %2144 = vmatprep.mubr.f32.mxu0 0.0
    %2145 = vmatmul.mubr.f32.gmra.mrb[0].mxu0 %v1981
    %v2146 = vpop.f32.mrb[0].mxu0
    %v2147 = vadd.f32 %v1890, %v2146
    %v2148 = vpop.f32.mrb[0].mxu0
    %2149 = vmatprep.mubr.f32.mxu0 0.0
    %2150 = vmatmul.mubr.f32.gmra.mrb[0].mxu0 %v1984
    %v2151 = vpop.f32.mrb[0].mxu0
    %v2152 = vadd.f32 %v1895, %v2151
    %v2153 = vpop.f32.mrb[0].mxu0
    %2154 = vmatprep.mubr.f32.mxu0 0.0
    %2155 = vmatmul.mubr.f32.gmra.mrb[0].mxu0 %v1987
    %v2156 = vpop.f32.mrb[0].mxu0
    %v2157 = vadd.f32 %v1900, %v2156
    %v2158 = vpop.f32.mrb[0].mxu0
    %2159 = vmatprep.mubr.f32.mxu0 0.0
    %2160 = vmatmul.mubr.f32.gmra.mrb[0].mxu0 %v1990
    %v2161 = vpop.f32.mrb[0].mxu0
    %v2162 = vadd.f32 %v1905, %v2161
    %v2163 = vpop.f32.mrb[0].mxu0
    %2164 = vmatprep.mubr.f32.mxu0 0.0
    %2165 = vmatmul.mubr.f32.gmra.mrb[0].mxu0 %v1993
    %v2166 = vpop.f32.mrb[0].mxu0
    %v2167 = vadd.f32 %v1910, %v2166
    %v2168 = vpop.f32.mrb[0].mxu0
    %2169 = vmatprep.mubr.f32.mxu0 0.0
    %2170 = vmatmul.mubr.f32.gmra.mrb[0].mxu0 %v1996
    %v2171 = vpop.f32.mrb[0].mxu0
    %v2172 = vadd.f32 %v1915, %v2171
    %v2173 = vpop.f32.mrb[0].mxu0
    %2174 = vmatprep.mubr.f32.mxu0 0.0
    %2175 = vmatmul.mubr.f32.gmra.mrb[0].mxu0 %v1999
    %v2176 = vpop.f32.mrb[0].mxu0
    %v2177 = vadd.f32 %v1920, %v2176
    %v2178 = vpop.f32.mrb[0].mxu0
    %2179 = vmatprep.mubr.f32.mxu0 0.0
    %2180 = vmatmul.mubr.f32.gmra.mrb[0].mxu0 %v2002
    %v2181 = vpop.f32.mrb[0].mxu0
    %v2182 = vadd.f32 %v1925, %v2181
    %v2183 = vpop.f32.mrb[0].mxu0
    %2184 = vmatprep.mubr.f32.mxu0 0.0
    %2185 = vmatmul.mubr.f32.gmra.mrb[0].mxu0 %v2005
    %v2186 = vpop.f32.mrb[0].mxu0
    %v2187 = vadd.f32 %v1930, %v2186
    %v2188 = vpop.f32.mrb[0].mxu0
    %2189 = vmatprep.mubr.f32.mxu0 0.0
    %2190 = vmatmul.mubr.f32.gmra.mrb[0].mxu0 %v2008
    %v2191 = vpop.f32.mrb[0].mxu0
    %v2192 = vadd.f32 %v1935, %v2191
    %v2193 = vpop.f32.mrb[0].mxu0
    %2194 = vdwg.mxu0
    %v2195 = vld [vmem:[#allocation2 + $0x2] sm:$0xff]
    %v2196 = vld [vmem:[#allocation2 + $0xa] sm:$0xff]
    %v2197 = vld [vmem:[#allocation2 + $0x12] sm:$0xff]
    %v2198 = vld [vmem:[#allocation2 + $0x1a] sm:$0xff]
    %v2199 = vld [vmem:[#allocation2 + $0x22] sm:$0xff]
    %v2200 = vld [vmem:[#allocation2 + $0x2a] sm:$0xff]
    %v2201 = vld [vmem:[#allocation2 + $0x32] sm:$0xff]
    %v2202 = vld [vmem:[#allocation2 + $0x3a] sm:$0xff]
    %v2203 = vld [vmem:[#allocation2 + $0x42] sm:$0xff]
    %v2204 = vld [vmem:[#allocation2 + $0x4a] sm:$0xff]
    %v2205 = vld [vmem:[#allocation2 + $0x52] sm:$0xff]
    %v2206 = vld [vmem:[#allocation2 + $0x5a] sm:$0xff]
    %v2207 = vld [vmem:[#allocation2 + $0x9a] sm:$0xff]
    %v2208 = vld [vmem:[#allocation2 + $0xa2] sm:$0xff]
    %v2209 = vld [vmem:[#allocation2 + $0xaa] sm:$0xff]
    %v2210 = vld [vmem:[#allocation2 + $0xb2] sm:$0xff]
    %v2211 = vld [vmem:[#allocation2 + $0xba] sm:$0xff]
    %v2212 = vld [vmem:[#allocation2 + $0xc2] sm:$0xff]
    %v2213 = vld [vmem:[#allocation2 + $0xca] sm:$0xff]
    %v2214 = vld [vmem:[#allocation2 + $0xd2] sm:$0xff]
    %v2215 = vld [vmem:[#allocation2 + $0xda] sm:$0xff]
    %v2216 = vld [vmem:[#allocation2 + $0xe2] sm:$0xff]
    %v2217 = vld [vmem:[#allocation2 + $0xea] sm:$0xff]
    %v2218 = vld [vmem:[#allocation2 + $0xf2] sm:$0xff]
    %s2219 = scalar_lea.vmem %s3, 64
    %v2220 = vld [vmem:[%s2219] sm:$0xff]
    %v2221 = vld [vmem:[%s2219 + $0x8] sm:$0xff]
    %v2222 = vld [vmem:[%s2219 + $0x10] sm:$0xff]
    %v2223 = vld [vmem:[%s2219 + $0x18] sm:$0xff]
    %v2225 = vsel %vm181, %v2195, 0
    %v2228 = vsel %vm181, %v2196, 0
    %v2231 = vsel %vm181, %v2197, 0
    %v2234 = vsel %vm181, %v2198, 0
    %v2237 = vsel %vm181, %v2199, 0
    %v2240 = vsel %vm181, %v2200, 0
    %v2243 = vsel %vm181, %v2201, 0
    %v2246 = vsel %vm181, %v2202, 0
    %v2249 = vsel %vm181, %v2203, 0
    %v2252 = vsel %vm181, %v2204, 0
    %v2255 = vsel %vm181, %v2205, 0
    %v2258 = vsel %vm181, %v2206, 0
    %v2261 = vsel %vm181, %v2207, 0
    %v2264 = vsel %vm181, %v2208, 0
    %v2267 = vsel %vm181, %v2209, 0
    %v2270 = vsel %vm181, %v2210, 0
    %v2273 = vsel %vm181, %v2211, 0
    %v2276 = vsel %vm181, %v2212, 0
    %v2279 = vsel %vm181, %v2213, 0
    %v2282 = vsel %vm181, %v2214, 0
    %v2285 = vsel %vm181, %v2215, 0
    %v2288 = vsel %vm181, %v2216, 0
    %v2291 = vsel %vm181, %v2217, 0
    %v2294 = vsel %vm181, %v2218, 0
    %2296 = vmatprep.subr.mxu0 0.0
    %2297 = vmatpush1.msra.mxu0 %v2220
    %2298 = vmatprep.subr.mxu0 0.0
    %2299 = vmatpush1.msra.mxu0 %v2221
    %2300 = vmatprep.subr.mxu0 0.0
    %2301 = vmatpush1.msra.mxu0 %v2222
    %2302 = vmatprep.subr.mxu0 0.0
    %2303 = vmatpush1.msra.mxu0 %v2223
    %2304 = vmatprep.subr.mxu0 0.0
    %2305 = vmatpush1.msra.mxu0 0.0
    %2306 = vmatprep.subr.mxu0 0.0
    %2307 = vmatpush1.msra.mxu0 0.0
    %2308 = vmatprep.subr.mxu0 0.0
    %2309 = vmatpush1.msra.mxu0 0.0
    %2310 = vmatprep.subr.mxu0 0.0
    %2311 = vmatpush1.msra.mxu0 0.0
    %2312 = vmatprep.subr.mxu0 0.0
    %2313 = vmatpush1.msra.mxu0 0.0
    %2314 = vmatprep.subr.mxu0 0.0
    %2315 = vmatpush1.msra.mxu0 0.0
    %2316 = vmatprep.subr.mxu0 0.0
    %2317 = vmatpush1.msra.mxu0 0.0
    %2318 = vmatprep.subr.mxu0 0.0
    %2319 = vmatpush1.msra.mxu0 0.0
    %2320 = vmatprep.subr.mxu0 0.0
    %2321 = vmatpush1.msra.mxu0 0.0
    %2322 = vmatprep.subr.mxu0 0.0
    %2323 = vmatpush1.msra.mxu0 0.0
    %2324 = vmatprep.subr.mxu0 0.0
    %2325 = vmatpush1.msra.mxu0 0.0
    %2326 = vmatprep.subr.mxu0 0.0
    %2327 = vmatpush1.msra.mxu0 0.0
    %2328 = vmatprep.subr.mxu0 0.0
    %2329 = vmatpush1.msra.mxu0 0.0
    %2330 = vmatprep.subr.mxu0 0.0
    %2331 = vmatpush1.msra.mxu0 0.0
    %2332 = vmatprep.subr.mxu0 0.0
    %2333 = vmatpush1.msra.mxu0 0.0
    %2334 = vmatprep.subr.mxu0 0.0
    %2335 = vmatpush1.msra.mxu0 0.0
    %2336 = vmatprep.subr.mxu0 0.0
    %2337 = vmatpush1.msra.mxu0 0.0
    %2338 = vmatprep.subr.mxu0 0.0
    %2339 = vmatpush1.msra.mxu0 0.0
    %2340 = vmatprep.subr.mxu0 0.0
    %2341 = vmatpush1.msra.mxu0 0.0
    %2342 = vmatprep.subr.mxu0 0.0
    %2343 = vmatpush1.msra.mxu0 0.0
    %2344 = vmatprep.subr.mxu0 0.0
    %2345 = vmatpush1.msra.mxu0 0.0
    %2346 = vmatprep.subr.mxu0 0.0
    %2347 = vmatpush1.msra.mxu0 0.0
    %2348 = vmatprep.subr.mxu0 0.0
    %2349 = vmatpush1.msra.mxu0 0.0
    %2350 = vmatprep.subr.mxu0 0.0
    %2351 = vmatpush1.msra.mxu0 0.0
    %2352 = vmatprep.subr.mxu0 0.0
    %2353 = vmatpush1.msra.mxu0 0.0
    %2354 = vmatprep.subr.mxu0 0.0
    %2355 = vmatpush1.msra.mxu0 0.0
    %2356 = vmatprep.subr.mxu0 0.0
    %2357 = vmatpush1.msra.mxu0 0.0
    %2358 = vmatprep.subr.mxu0 0.0
    %2359 = vmatpush1.msra.mxu0 0.0
    %2360 = vmatprep.mubr.f32.mxu0 0.0
    %2361 = vmatmul.mubr.f32.gmra.mrb[0].mxu0 %v2225
    %v2362 = vpop.f32.mrb[0].mxu0
    %v2363 = vadd.f32 0.0, %v2362
    %v2364 = vpop.f32.mrb[0].mxu0
    %2365 = vmatprep.mubr.f32.mxu0 0.0
    %2366 = vmatmul.mubr.f32.gmra.mrb[0].mxu0 %v2228
    %v2367 = vpop.f32.mrb[0].mxu0
    %v2368 = vadd.f32 0.0, %v2367
    %v2369 = vpop.f32.mrb[0].mxu0
    %2370 = vmatprep.mubr.f32.mxu0 0.0
    %2371 = vmatmul.mubr.f32.gmra.mrb[0].mxu0 %v2231
    %v2372 = vpop.f32.mrb[0].mxu0
    %v2373 = vadd.f32 0.0, %v2372
    %v2374 = vpop.f32.mrb[0].mxu0
    %2375 = vmatprep.mubr.f32.mxu0 0.0
    %2376 = vmatmul.mubr.f32.gmra.mrb[0].mxu0 %v2234
    %v2377 = vpop.f32.mrb[0].mxu0
    %v2378 = vadd.f32 0.0, %v2377
    %v2379 = vpop.f32.mrb[0].mxu0
    %2380 = vmatprep.mubr.f32.mxu0 0.0
    %2381 = vmatmul.mubr.f32.gmra.mrb[0].mxu0 %v2237
    %v2382 = vpop.f32.mrb[0].mxu0
    %v2383 = vadd.f32 0.0, %v2382
    %v2384 = vpop.f32.mrb[0].mxu0
    %2385 = vmatprep.mubr.f32.mxu0 0.0
    %2386 = vmatmul.mubr.f32.gmra.mrb[0].mxu0 %v2240
    %v2387 = vpop.f32.mrb[0].mxu0
    %v2388 = vadd.f32 0.0, %v2387
    %v2389 = vpop.f32.mrb[0].mxu0
    %2390 = vmatprep.mubr.f32.mxu0 0.0
    %2391 = vmatmul.mubr.f32.gmra.mrb[0].mxu0 %v2243
    %v2392 = vpop.f32.mrb[0].mxu0
    %v2393 = vadd.f32 0.0, %v2392
    %v2394 = vpop.f32.mrb[0].mxu0
    %2395 = vmatprep.mubr.f32.mxu0 0.0
    %2396 = vmatmul.mubr.f32.gmra.mrb[0].mxu0 %v2246
    %v2397 = vpop.f32.mrb[0].mxu0
    %v2398 = vadd.f32 0.0, %v2397
    %v2399 = vpop.f32.mrb[0].mxu0
    %2400 = vmatprep.mubr.f32.mxu0 0.0
    %2401 = vmatmul.mubr.f32.gmra.mrb[0].mxu0 %v2249
    %v2402 = vpop.f32.mrb[0].mxu0
    %v2403 = vadd.f32 0.0, %v2402
    %v2404 = vpop.f32.mrb[0].mxu0
    %2405 = vmatprep.mubr.f32.mxu0 0.0
    %2406 = vmatmul.mubr.f32.gmra.mrb[0].mxu0 %v2252
    %v2407 = vpop.f32.mrb[0].mxu0
    %v2408 = vadd.f32 0.0, %v2407
    %v2409 = vpop.f32.mrb[0].mxu0
    %2410 = vmatprep.mubr.f32.mxu0 0.0
    %2411 = vmatmul.mubr.f32.gmra.mrb[0].mxu0 %v2255
    %v2412 = vpop.f32.mrb[0].mxu0
    %v2413 = vadd.f32 0.0, %v2412
    %v2414 = vpop.f32.mrb[0].mxu0
    %2415 = vmatprep.mubr.f32.mxu0 0.0
    %2416 = vmatmul.mubr.f32.gmra.mrb[0].mxu0 %v2258
    %v2417 = vpop.f32.mrb[0].mxu0
    %v2418 = vadd.f32 0.0, %v2417
    %v2419 = vpop.f32.mrb[0].mxu0
    %2420 = vmatprep.mubr.f32.mxu0 0.0
    %2421 = vmatmul.mubr.f32.gmra.mrb[0].mxu0 %v2261
    %v2422 = vpop.f32.mrb[0].mxu0
    %v2423 = vadd.f32 0.0, %v2422
    %v2424 = vpop.f32.mrb[0].mxu0
    %2425 = vmatprep.mubr.f32.mxu0 0.0
    %2426 = vmatmul.mubr.f32.gmra.mrb[0].mxu0 %v2264
    %v2427 = vpop.f32.mrb[0].mxu0
    %v2428 = vadd.f32 0.0, %v2427
    %v2429 = vpop.f32.mrb[0].mxu0
    %2430 = vmatprep.mubr.f32.mxu0 0.0
    %2431 = vmatmul.mubr.f32.gmra.mrb[0].mxu0 %v2267
    %v2432 = vpop.f32.mrb[0].mxu0
    %v2433 = vadd.f32 0.0, %v2432
    %v2434 = vpop.f32.mrb[0].mxu0
    %2435 = vmatprep.mubr.f32.mxu0 0.0
    %2436 = vmatmul.mubr.f32.gmra.mrb[0].mxu0 %v2270
    %v2437 = vpop.f32.mrb[0].mxu0
    %v2438 = vadd.f32 0.0, %v2437
    %v2439 = vpop.f32.mrb[0].mxu0
    %2440 = vmatprep.mubr.f32.mxu0 0.0
    %2441 = vmatmul.mubr.f32.gmra.mrb[0].mxu0 %v2273
    %v2442 = vpop.f32.mrb[0].mxu0
    %v2443 = vadd.f32 0.0, %v2442
    %v2444 = vpop.f32.mrb[0].mxu0
    %2445 = vmatprep.mubr.f32.mxu0 0.0
    %2446 = vmatmul.mubr.f32.gmra.mrb[0].mxu0 %v2276
    %v2447 = vpop.f32.mrb[0].mxu0
    %v2448 = vadd.f32 0.0, %v2447
    %v2449 = vpop.f32.mrb[0].mxu0
    %2450 = vmatprep.mubr.f32.mxu0 0.0
    %2451 = vmatmul.mubr.f32.gmra.mrb[0].mxu0 %v2279
    %v2452 = vpop.f32.mrb[0].mxu0
    %v2453 = vadd.f32 0.0, %v2452
    %v2454 = vpop.f32.mrb[0].mxu0
    %2455 = vmatprep.mubr.f32.mxu0 0.0
    %2456 = vmatmul.mubr.f32.gmra.mrb[0].mxu0 %v2282
    %v2457 = vpop.f32.mrb[0].mxu0
    %v2458 = vadd.f32 0.0, %v2457
    %v2459 = vpop.f32.mrb[0].mxu0
    %2460 = vmatprep.mubr.f32.mxu0 0.0
    %2461 = vmatmul.mubr.f32.gmra.mrb[0].mxu0 %v2285
    %v2462 = vpop.f32.mrb[0].mxu0
    %v2463 = vadd.f32 0.0, %v2462
    %v2464 = vpop.f32.mrb[0].mxu0
    %2465 = vmatprep.mubr.f32.mxu0 0.0
    %2466 = vmatmul.mubr.f32.gmra.mrb[0].mxu0 %v2288
    %v2467 = vpop.f32.mrb[0].mxu0
    %v2468 = vadd.f32 0.0, %v2467
    %v2469 = vpop.f32.mrb[0].mxu0
    %2470 = vmatprep.mubr.f32.mxu0 0.0
    %2471 = vmatmul.mubr.f32.gmra.mrb[0].mxu0 %v2291
    %v2472 = vpop.f32.mrb[0].mxu0
    %v2473 = vadd.f32 0.0, %v2472
    %v2474 = vpop.f32.mrb[0].mxu0
    %2475 = vmatprep.mubr.f32.mxu0 0.0
    %2476 = vmatmul.mubr.f32.gmra.mrb[0].mxu0 %v2294
    %v2477 = vpop.f32.mrb[0].mxu0
    %v2478 = vadd.f32 0.0, %v2477
    %v2479 = vpop.f32.mrb[0].mxu0
    %2480 = vdwg.mxu0
    %v2481 = vadd.f32 %v2077, %v2363
    %v2482 = vadd.f32 %v2082, %v2368
    %v2483 = vadd.f32 %v2087, %v2373
    %v2484 = vadd.f32 %v2092, %v2378
    %v2485 = vadd.f32 %v2097, %v2383
    %v2486 = vadd.f32 %v2102, %v2388
    %v2487 = vadd.f32 %v2107, %v2393
    %v2488 = vadd.f32 %v2112, %v2398
    %v2489 = vadd.f32 %v2117, %v2403
    %v2490 = vadd.f32 %v2122, %v2408
    %v2491 = vadd.f32 %v2127, %v2413
    %v2492 = vadd.f32 %v2132, %v2418
    %v2493 = vadd.f32 %v2137, %v2423
    %v2494 = vadd.f32 %v2142, %v2428
    %v2495 = vadd.f32 %v2147, %v2433
    %v2496 = vadd.f32 %v2152, %v2438
    %v2497 = vadd.f32 %v2157, %v2443
    %v2498 = vadd.f32 %v2162, %v2448
    %v2499 = vadd.f32 %v2167, %v2453
    %v2500 = vadd.f32 %v2172, %v2458
    %v2501 = vadd.f32 %v2177, %v2463
    %v2502 = vadd.f32 %v2182, %v2468
    %v2503 = vadd.f32 %v2187, %v2473
    %v2504 = vadd.f32 %v2192, %v2478
    %v2505 = vld [vmem:[#allocation2 + $0x3] sm:$0xff]
    %v2506 = vld [vmem:[#allocation2 + $0xb] sm:$0xff]
    %v2507 = vld [vmem:[#allocation2 + $0x13] sm:$0xff]
    %v2508 = vld [vmem:[#allocation2 + $0x1b] sm:$0xff]
    %v2509 = vld [vmem:[#allocation2 + $0x23] sm:$0xff]
    %v2510 = vld [vmem:[#allocation2 + $0x2b] sm:$0xff]
    %v2511 = vld [vmem:[#allocation2 + $0x33] sm:$0xff]
    %v2512 = vld [vmem:[#allocation2 + $0x3b] sm:$0xff]
    %v2513 = vld [vmem:[#allocation2 + $0x43] sm:$0xff]
    %v2514 = vld [vmem:[#allocation2 + $0x4b] sm:$0xff]
    %v2515 = vld [vmem:[#allocation2 + $0x53] sm:$0xff]
    %v2516 = vld [vmem:[#allocation2 + $0x5b] sm:$0xff]
    %v2517 = vld [vmem:[#allocation2 + $0x9b] sm:$0xff]
    %v2518 = vld [vmem:[#allocation2 + $0xa3] sm:$0xff]
    %v2519 = vld [vmem:[#allocation2 + $0xab] sm:$0xff]
    %v2520 = vld [vmem:[#allocation2 + $0xb3] sm:$0xff]
    %v2521 = vld [vmem:[#allocation2 + $0xbb] sm:$0xff]
    %v2522 = vld [vmem:[#allocation2 + $0xc3] sm:$0xff]
    %v2523 = vld [vmem:[#allocation2 + $0xcb] sm:$0xff]
    %v2524 = vld [vmem:[#allocation2 + $0xd3] sm:$0xff]
    %v2525 = vld [vmem:[#allocation2 + $0xdb] sm:$0xff]
    %v2526 = vld [vmem:[#allocation2 + $0xe3] sm:$0xff]
    %v2527 = vld [vmem:[#allocation2 + $0xeb] sm:$0xff]
    %v2528 = vld [vmem:[#allocation2 + $0xf3] sm:$0xff]
    %s2529 = scalar_lea.vmem %s3, 96
    %v2530 = vld [vmem:[%s2529] sm:$0xff]
    %v2531 = vld [vmem:[%s2529 + $0x8] sm:$0xff]
    %v2532 = vld [vmem:[%s2529 + $0x10] sm:$0xff]
    %v2533 = vld [vmem:[%s2529 + $0x18] sm:$0xff]
    %v2535 = vsel %vm181, %v2505, 0
    %v2538 = vsel %vm181, %v2506, 0
    %v2541 = vsel %vm181, %v2507, 0
    %v2544 = vsel %vm181, %v2508, 0
    %v2547 = vsel %vm181, %v2509, 0
    %v2550 = vsel %vm181, %v2510, 0
    %v2553 = vsel %vm181, %v2511, 0
    %v2556 = vsel %vm181, %v2512, 0
    %v2559 = vsel %vm181, %v2513, 0
    %v2562 = vsel %vm181, %v2514, 0
    %v2565 = vsel %vm181, %v2515, 0
    %v2568 = vsel %vm181, %v2516, 0
    %v2571 = vsel %vm181, %v2517, 0
    %v2574 = vsel %vm181, %v2518, 0
    %v2577 = vsel %vm181, %v2519, 0
    %v2580 = vsel %vm181, %v2520, 0
    %v2583 = vsel %vm181, %v2521, 0
    %v2586 = vsel %vm181, %v2522, 0
    %v2589 = vsel %vm181, %v2523, 0
    %v2592 = vsel %vm181, %v2524, 0
    %v2595 = vsel %vm181, %v2525, 0
    %v2598 = vsel %vm181, %v2526, 0
    %v2601 = vsel %vm181, %v2527, 0
    %v2604 = vsel %vm181, %v2528, 0
    %2606 = vmatprep.subr.mxu0 0.0
    %2607 = vmatpush1.msra.mxu0 %v2530
    %2608 = vmatprep.subr.mxu0 0.0
    %2609 = vmatpush1.msra.mxu0 %v2531
    %2610 = vmatprep.subr.mxu0 0.0
    %2611 = vmatpush1.msra.mxu0 %v2532
    %2612 = vmatprep.subr.mxu0 0.0
    %2613 = vmatpush1.msra.mxu0 %v2533
    %2614 = vmatprep.subr.mxu0 0.0
    %2615 = vmatpush1.msra.mxu0 0.0
    %2616 = vmatprep.subr.mxu0 0.0
    %2617 = vmatpush1.msra.mxu0 0.0
    %2618 = vmatprep.subr.mxu0 0.0
    %2619 = vmatpush1.msra.mxu0 0.0
    %2620 = vmatprep.subr.mxu0 0.0
    %2621 = vmatpush1.msra.mxu0 0.0
    %2622 = vmatprep.subr.mxu0 0.0
    %2623 = vmatpush1.msra.mxu0 0.0
    %2624 = vmatprep.subr.mxu0 0.0
    %2625 = vmatpush1.msra.mxu0 0.0
    %2626 = vmatprep.subr.mxu0 0.0
    %2627 = vmatpush1.msra.mxu0 0.0
    %2628 = vmatprep.subr.mxu0 0.0
    %2629 = vmatpush1.msra.mxu0 0.0
    %2630 = vmatprep.subr.mxu0 0.0
    %2631 = vmatpush1.msra.mxu0 0.0
    %2632 = vmatprep.subr.mxu0 0.0
    %2633 = vmatpush1.msra.mxu0 0.0
    %2634 = vmatprep.subr.mxu0 0.0
    %2635 = vmatpush1.msra.mxu0 0.0
    %2636 = vmatprep.subr.mxu0 0.0
    %2637 = vmatpush1.msra.mxu0 0.0
    %2638 = vmatprep.subr.mxu0 0.0
    %2639 = vmatpush1.msra.mxu0 0.0
    %2640 = vmatprep.subr.mxu0 0.0
    %2641 = vmatpush1.msra.mxu0 0.0
    %2642 = vmatprep.subr.mxu0 0.0
    %2643 = vmatpush1.msra.mxu0 0.0
    %2644 = vmatprep.subr.mxu0 0.0
    %2645 = vmatpush1.msra.mxu0 0.0
    %2646 = vmatprep.subr.mxu0 0.0
    %2647 = vmatpush1.msra.mxu0 0.0
    %2648 = vmatprep.subr.mxu0 0.0
    %2649 = vmatpush1.msra.mxu0 0.0
    %2650 = vmatprep.subr.mxu0 0.0
    %2651 = vmatpush1.msra.mxu0 0.0
    %2652 = vmatprep.subr.mxu0 0.0
    %2653 = vmatpush1.msra.mxu0 0.0
    %2654 = vmatprep.subr.mxu0 0.0
    %2655 = vmatpush1.msra.mxu0 0.0
    %2656 = vmatprep.subr.mxu0 0.0
    %2657 = vmatpush1.msra.mxu0 0.0
    %2658 = vmatprep.subr.mxu0 0.0
    %2659 = vmatpush1.msra.mxu0 0.0
    %2660 = vmatprep.subr.mxu0 0.0
    %2661 = vmatpush1.msra.mxu0 0.0
    %2662 = vmatprep.subr.mxu0 0.0
    %2663 = vmatpush1.msra.mxu0 0.0
    %2664 = vmatprep.subr.mxu0 0.0
    %2665 = vmatpush1.msra.mxu0 0.0
    %2666 = vmatprep.subr.mxu0 0.0
    %2667 = vmatpush1.msra.mxu0 0.0
    %2668 = vmatprep.subr.mxu0 0.0
    %2669 = vmatpush1.msra.mxu0 0.0
    %2670 = vmatprep.mubr.f32.mxu0 0.0
    %2671 = vmatmul.mubr.f32.gmra.mrb[0].mxu0 %v2535
    %v2672 = vpop.f32.mrb[0].mxu0
    %v2673 = vadd.f32 0.0, %v2672
    %v2674 = vpop.f32.mrb[0].mxu0
    %2675 = vmatprep.mubr.f32.mxu0 0.0
    %2676 = vmatmul.mubr.f32.gmra.mrb[0].mxu0 %v2538
    %v2677 = vpop.f32.mrb[0].mxu0
    %v2678 = vadd.f32 0.0, %v2677
    %v2679 = vpop.f32.mrb[0].mxu0
    %2680 = vmatprep.mubr.f32.mxu0 0.0
    %2681 = vmatmul.mubr.f32.gmra.mrb[0].mxu0 %v2541
    %v2682 = vpop.f32.mrb[0].mxu0
    %v2683 = vadd.f32 0.0, %v2682
    %v2684 = vpop.f32.mrb[0].mxu0
    %2685 = vmatprep.mubr.f32.mxu0 0.0
    %2686 = vmatmul.mubr.f32.gmra.mrb[0].mxu0 %v2544
    %v2687 = vpop.f32.mrb[0].mxu0
    %v2688 = vadd.f32 0.0, %v2687
    %v2689 = vpop.f32.mrb[0].mxu0
    %2690 = vmatprep.mubr.f32.mxu0 0.0
    %2691 = vmatmul.mubr.f32.gmra.mrb[0].mxu0 %v2547
    %v2692 = vpop.f32.mrb[0].mxu0
    %v2693 = vadd.f32 0.0, %v2692
    %v2694 = vpop.f32.mrb[0].mxu0
    %2695 = vmatprep.mubr.f32.mxu0 0.0
    %2696 = vmatmul.mubr.f32.gmra.mrb[0].mxu0 %v2550
    %v2697 = vpop.f32.mrb[0].mxu0
    %v2698 = vadd.f32 0.0, %v2697
    %v2699 = vpop.f32.mrb[0].mxu0
    %2700 = vmatprep.mubr.f32.mxu0 0.0
    %2701 = vmatmul.mubr.f32.gmra.mrb[0].mxu0 %v2553
    %v2702 = vpop.f32.mrb[0].mxu0
    %v2703 = vadd.f32 0.0, %v2702
    %v2704 = vpop.f32.mrb[0].mxu0
    %2705 = vmatprep.mubr.f32.mxu0 0.0
    %2706 = vmatmul.mubr.f32.gmra.mrb[0].mxu0 %v2556
    %v2707 = vpop.f32.mrb[0].mxu0
    %v2708 = vadd.f32 0.0, %v2707
    %v2709 = vpop.f32.mrb[0].mxu0
    %2710 = vmatprep.mubr.f32.mxu0 0.0
    %2711 = vmatmul.mubr.f32.gmra.mrb[0].mxu0 %v2559
    %v2712 = vpop.f32.mrb[0].mxu0
    %v2713 = vadd.f32 0.0, %v2712
    %v2714 = vpop.f32.mrb[0].mxu0
    %2715 = vmatprep.mubr.f32.mxu0 0.0
    %2716 = vmatmul.mubr.f32.gmra.mrb[0].mxu0 %v2562
    %v2717 = vpop.f32.mrb[0].mxu0
    %v2718 = vadd.f32 0.0, %v2717
    %v2719 = vpop.f32.mrb[0].mxu0
    %2720 = vmatprep.mubr.f32.mxu0 0.0
    %2721 = vmatmul.mubr.f32.gmra.mrb[0].mxu0 %v2565
    %v2722 = vpop.f32.mrb[0].mxu0
    %v2723 = vadd.f32 0.0, %v2722
    %v2724 = vpop.f32.mrb[0].mxu0
    %2725 = vmatprep.mubr.f32.mxu0 0.0
    %2726 = vmatmul.mubr.f32.gmra.mrb[0].mxu0 %v2568
    %v2727 = vpop.f32.mrb[0].mxu0
    %v2728 = vadd.f32 0.0, %v2727
    %v2729 = vpop.f32.mrb[0].mxu0
    %2730 = vmatprep.mubr.f32.mxu0 0.0
    %2731 = vmatmul.mubr.f32.gmra.mrb[0].mxu0 %v2571
    %v2732 = vpop.f32.mrb[0].mxu0
    %v2733 = vadd.f32 0.0, %v2732
    %v2734 = vpop.f32.mrb[0].mxu0
    %2735 = vmatprep.mubr.f32.mxu0 0.0
    %2736 = vmatmul.mubr.f32.gmra.mrb[0].mxu0 %v2574
    %v2737 = vpop.f32.mrb[0].mxu0
    %v2738 = vadd.f32 0.0, %v2737
    %v2739 = vpop.f32.mrb[0].mxu0
    %2740 = vmatprep.mubr.f32.mxu0 0.0
    %2741 = vmatmul.mubr.f32.gmra.mrb[0].mxu0 %v2577
    %v2742 = vpop.f32.mrb[0].mxu0
    %v2743 = vadd.f32 0.0, %v2742
    %v2744 = vpop.f32.mrb[0].mxu0
    %2745 = vmatprep.mubr.f32.mxu0 0.0
    %2746 = vmatmul.mubr.f32.gmra.mrb[0].mxu0 %v2580
    %v2747 = vpop.f32.mrb[0].mxu0
    %v2748 = vadd.f32 0.0, %v2747
    %v2749 = vpop.f32.mrb[0].mxu0
    %2750 = vmatprep.mubr.f32.mxu0 0.0
    %2751 = vmatmul.mubr.f32.gmra.mrb[0].mxu0 %v2583
    %v2752 = vpop.f32.mrb[0].mxu0
    %v2753 = vadd.f32 0.0, %v2752
    %v2754 = vpop.f32.mrb[0].mxu0
    %2755 = vmatprep.mubr.f32.mxu0 0.0
    %2756 = vmatmul.mubr.f32.gmra.mrb[0].mxu0 %v2586
    %v2757 = vpop.f32.mrb[0].mxu0
    %v2758 = vadd.f32 0.0, %v2757
    %v2759 = vpop.f32.mrb[0].mxu0
    %2760 = vmatprep.mubr.f32.mxu0 0.0
    %2761 = vmatmul.mubr.f32.gmra.mrb[0].mxu0 %v2589
    %v2762 = vpop.f32.mrb[0].mxu0
    %v2763 = vadd.f32 0.0, %v2762
    %v2764 = vpop.f32.mrb[0].mxu0
    %2765 = vmatprep.mubr.f32.mxu0 0.0
    %2766 = vmatmul.mubr.f32.gmra.mrb[0].mxu0 %v2592
    %v2767 = vpop.f32.mrb[0].mxu0
    %v2768 = vadd.f32 0.0, %v2767
    %v2769 = vpop.f32.mrb[0].mxu0
    %2770 = vmatprep.mubr.f32.mxu0 0.0
    %2771 = vmatmul.mubr.f32.gmra.mrb[0].mxu0 %v2595
    %v2772 = vpop.f32.mrb[0].mxu0
    %v2773 = vadd.f32 0.0, %v2772
    %v2774 = vpop.f32.mrb[0].mxu0
    %2775 = vmatprep.mubr.f32.mxu0 0.0
    %2776 = vmatmul.mubr.f32.gmra.mrb[0].mxu0 %v2598
    %v2777 = vpop.f32.mrb[0].mxu0
    %v2778 = vadd.f32 0.0, %v2777
    %v2779 = vpop.f32.mrb[0].mxu0
    %2780 = vmatprep.mubr.f32.mxu0 0.0
    %2781 = vmatmul.mubr.f32.gmra.mrb[0].mxu0 %v2601
    %v2782 = vpop.f32.mrb[0].mxu0
    %v2783 = vadd.f32 0.0, %v2782
    %v2784 = vpop.f32.mrb[0].mxu0
    %2785 = vmatprep.mubr.f32.mxu0 0.0
    %2786 = vmatmul.mubr.f32.gmra.mrb[0].mxu0 %v2604
    %v2787 = vpop.f32.mrb[0].mxu0
    %v2788 = vadd.f32 0.0, %v2787
    %v2789 = vpop.f32.mrb[0].mxu0
    %2790 = vdwg.mxu0
    %v2791 = vadd.f32 %v2481, %v2673
    %v2792 = vadd.f32 %v2482, %v2678
    %v2793 = vadd.f32 %v2483, %v2683
    %v2794 = vadd.f32 %v2484, %v2688
    %v2795 = vadd.f32 %v2485, %v2693
    %v2796 = vadd.f32 %v2486, %v2698
    %v2797 = vadd.f32 %v2487, %v2703
    %v2798 = vadd.f32 %v2488, %v2708
    %v2799 = vadd.f32 %v2489, %v2713
    %v2800 = vadd.f32 %v2490, %v2718
    %v2801 = vadd.f32 %v2491, %v2723
    %v2802 = vadd.f32 %v2492, %v2728
    %v2803 = vadd.f32 %v2493, %v2733
    %v2804 = vadd.f32 %v2494, %v2738
    %v2805 = vadd.f32 %v2495, %v2743
    %v2806 = vadd.f32 %v2496, %v2748
    %v2807 = vadd.f32 %v2497, %v2753
    %v2808 = vadd.f32 %v2498, %v2758
    %v2809 = vadd.f32 %v2499, %v2763
    %v2810 = vadd.f32 %v2500, %v2768
    %v2811 = vadd.f32 %v2501, %v2773
    %v2812 = vadd.f32 %v2502, %v2778
    %v2813 = vadd.f32 %v2503, %v2783
    %v2814 = vadd.f32 %v2504, %v2788
    %v2815 = vld [vmem:[#allocation2 + $0x4] sm:$0xff]
    %v2816 = vld [vmem:[#allocation2 + $0xc] sm:$0xff]
    %v2817 = vld [vmem:[#allocation2 + $0x14] sm:$0xff]
    %v2818 = vld [vmem:[#allocation2 + $0x1c] sm:$0xff]
    %v2819 = vld [vmem:[#allocation2 + $0x24] sm:$0xff]
    %v2820 = vld [vmem:[#allocation2 + $0x2c] sm:$0xff]
    %v2821 = vld [vmem:[#allocation2 + $0x34] sm:$0xff]
    %v2822 = vld [vmem:[#allocation2 + $0x3c] sm:$0xff]
    %v2823 = vld [vmem:[#allocation2 + $0x44] sm:$0xff]
    %v2824 = vld [vmem:[#allocation2 + $0x4c] sm:$0xff]
    %v2825 = vld [vmem:[#allocation2 + $0x54] sm:$0xff]
    %v2826 = vld [vmem:[#allocation2 + $0x5c] sm:$0xff]
    %v2827 = vld [vmem:[#allocation2 + $0x9c] sm:$0xff]
    %v2828 = vld [vmem:[#allocation2 + $0xa4] sm:$0xff]
    %v2829 = vld [vmem:[#allocation2 + $0xac] sm:$0xff]
    %v2830 = vld [vmem:[#allocation2 + $0xb4] sm:$0xff]
    %v2831 = vld [vmem:[#allocation2 + $0xbc] sm:$0xff]
    %v2832 = vld [vmem:[#allocation2 + $0xc4] sm:$0xff]
    %v2833 = vld [vmem:[#allocation2 + $0xcc] sm:$0xff]
    %v2834 = vld [vmem:[#allocation2 + $0xd4] sm:$0xff]
    %v2835 = vld [vmem:[#allocation2 + $0xdc] sm:$0xff]
    %v2836 = vld [vmem:[#allocation2 + $0xe4] sm:$0xff]
    %v2837 = vld [vmem:[#allocation2 + $0xec] sm:$0xff]
    %v2838 = vld [vmem:[#allocation2 + $0xf4] sm:$0xff]
    %s2839 = scalar_lea.vmem %s3, 128
    %v2840 = vld [vmem:[%s2839] sm:$0xff]
    %v2841 = vld [vmem:[%s2839 + $0x8] sm:$0xff]
    %v2842 = vld [vmem:[%s2839 + $0x10] sm:$0xff]
    %v2843 = vld [vmem:[%s2839 + $0x18] sm:$0xff]
    %v2845 = vsel %vm181, %v2815, 0
    %v2848 = vsel %vm181, %v2816, 0
    %v2851 = vsel %vm181, %v2817, 0
    %v2854 = vsel %vm181, %v2818, 0
    %v2857 = vsel %vm181, %v2819, 0
    %v2860 = vsel %vm181, %v2820, 0
    %v2863 = vsel %vm181, %v2821, 0
    %v2866 = vsel %vm181, %v2822, 0
    %v2869 = vsel %vm181, %v2823, 0
    %v2872 = vsel %vm181, %v2824, 0
    %v2875 = vsel %vm181, %v2825, 0
    %v2878 = vsel %vm181, %v2826, 0
    %v2881 = vsel %vm181, %v2827, 0
    %v2884 = vsel %vm181, %v2828, 0
    %v2887 = vsel %vm181, %v2829, 0
    %v2890 = vsel %vm181, %v2830, 0
    %v2893 = vsel %vm181, %v2831, 0
    %v2896 = vsel %vm181, %v2832, 0
    %v2899 = vsel %vm181, %v2833, 0
    %v2902 = vsel %vm181, %v2834, 0
    %v2905 = vsel %vm181, %v2835, 0
    %v2908 = vsel %vm181, %v2836, 0
    %v2911 = vsel %vm181, %v2837, 0
    %v2914 = vsel %vm181, %v2838, 0
    %2916 = vmatprep.subr.mxu0 0.0
    %2917 = vmatpush1.msra.mxu0 %v2840
    %2918 = vmatprep.subr.mxu0 0.0
    %2919 = vmatpush1.msra.mxu0 %v2841
    %2920 = vmatprep.subr.mxu0 0.0
    %2921 = vmatpush1.msra.mxu0 %v2842
    %2922 = vmatprep.subr.mxu0 0.0
    %2923 = vmatpush1.msra.mxu0 %v2843
    %2924 = vmatprep.subr.mxu0 0.0
    %2925 = vmatpush1.msra.mxu0 0.0
    %2926 = vmatprep.subr.mxu0 0.0
    %2927 = vmatpush1.msra.mxu0 0.0
    %2928 = vmatprep.subr.mxu0 0.0
    %2929 = vmatpush1.msra.mxu0 0.0
    %2930 = vmatprep.subr.mxu0 0.0
    %2931 = vmatpush1.msra.mxu0 0.0
    %2932 = vmatprep.subr.mxu0 0.0
    %2933 = vmatpush1.msra.mxu0 0.0
    %2934 = vmatprep.subr.mxu0 0.0
    %2935 = vmatpush1.msra.mxu0 0.0
    %2936 = vmatprep.subr.mxu0 0.0
    %2937 = vmatpush1.msra.mxu0 0.0
    %2938 = vmatprep.subr.mxu0 0.0
    %2939 = vmatpush1.msra.mxu0 0.0
    %2940 = vmatprep.subr.mxu0 0.0
    %2941 = vmatpush1.msra.mxu0 0.0
    %2942 = vmatprep.subr.mxu0 0.0
    %2943 = vmatpush1.msra.mxu0 0.0
    %2944 = vmatprep.subr.mxu0 0.0
    %2945 = vmatpush1.msra.mxu0 0.0
    %2946 = vmatprep.subr.mxu0 0.0
    %2947 = vmatpush1.msra.mxu0 0.0
    %2948 = vmatprep.subr.mxu0 0.0
    %2949 = vmatpush1.msra.mxu0 0.0
    %2950 = vmatprep.subr.mxu0 0.0
    %2951 = vmatpush1.msra.mxu0 0.0
    %2952 = vmatprep.subr.mxu0 0.0
    %2953 = vmatpush1.msra.mxu0 0.0
    %2954 = vmatprep.subr.mxu0 0.0
    %2955 = vmatpush1.msra.mxu0 0.0
    %2956 = vmatprep.subr.mxu0 0.0
    %2957 = vmatpush1.msra.mxu0 0.0
    %2958 = vmatprep.subr.mxu0 0.0
    %2959 = vmatpush1.msra.mxu0 0.0
    %2960 = vmatprep.subr.mxu0 0.0
    %2961 = vmatpush1.msra.mxu0 0.0
    %2962 = vmatprep.subr.mxu0 0.0
    %2963 = vmatpush1.msra.mxu0 0.0
    %2964 = vmatprep.subr.mxu0 0.0
    %2965 = vmatpush1.msra.mxu0 0.0
    %2966 = vmatprep.subr.mxu0 0.0
    %2967 = vmatpush1.msra.mxu0 0.0
    %2968 = vmatprep.subr.mxu0 0.0
    %2969 = vmatpush1.msra.mxu0 0.0
    %2970 = vmatprep.subr.mxu0 0.0
    %2971 = vmatpush1.msra.mxu0 0.0
    %2972 = vmatprep.subr.mxu0 0.0
    %2973 = vmatpush1.msra.mxu0 0.0
    %2974 = vmatprep.subr.mxu0 0.0
    %2975 = vmatpush1.msra.mxu0 0.0
    %2976 = vmatprep.subr.mxu0 0.0
    %2977 = vmatpush1.msra.mxu0 0.0
    %2978 = vmatprep.subr.mxu0 0.0
    %2979 = vmatpush1.msra.mxu0 0.0
    %2980 = vmatprep.mubr.f32.mxu0 0.0
    %2981 = vmatmul.mubr.f32.gmra.mrb[0].mxu0 %v2845
    %v2982 = vpop.f32.mrb[0].mxu0
    %v2983 = vadd.f32 0.0, %v2982
    %v2984 = vpop.f32.mrb[0].mxu0
    %2985 = vmatprep.mubr.f32.mxu0 0.0
    %2986 = vmatmul.mubr.f32.gmra.mrb[0].mxu0 %v2848
    %v2987 = vpop.f32.mrb[0].mxu0
    %v2988 = vadd.f32 0.0, %v2987
    %v2989 = vpop.f32.mrb[0].mxu0
    %2990 = vmatprep.mubr.f32.mxu0 0.0
    %2991 = vmatmul.mubr.f32.gmra.mrb[0].mxu0 %v2851
    %v2992 = vpop.f32.mrb[0].mxu0
    %v2993 = vadd.f32 0.0, %v2992
    %v2994 = vpop.f32.mrb[0].mxu0
    %2995 = vmatprep.mubr.f32.mxu0 0.0
    %2996 = vmatmul.mubr.f32.gmra.mrb[0].mxu0 %v2854
    %v2997 = vpop.f32.mrb[0].mxu0
    %v2998 = vadd.f32 0.0, %v2997
    %v2999 = vpop.f32.mrb[0].mxu0
    %3000 = vmatprep.mubr.f32.mxu0 0.0
    %3001 = vmatmul.mubr.f32.gmra.mrb[0].mxu0 %v2857
    %v3002 = vpop.f32.mrb[0].mxu0
    %v3003 = vadd.f32 0.0, %v3002
    %v3004 = vpop.f32.mrb[0].mxu0
    %3005 = vmatprep.mubr.f32.mxu0 0.0
    %3006 = vmatmul.mubr.f32.gmra.mrb[0].mxu0 %v2860
    %v3007 = vpop.f32.mrb[0].mxu0
    %v3008 = vadd.f32 0.0, %v3007
    %v3009 = vpop.f32.mrb[0].mxu0
    %3010 = vmatprep.mubr.f32.mxu0 0.0
    %3011 = vmatmul.mubr.f32.gmra.mrb[0].mxu0 %v2863
    %v3012 = vpop.f32.mrb[0].mxu0
    %v3013 = vadd.f32 0.0, %v3012
    %v3014 = vpop.f32.mrb[0].mxu0
    %3015 = vmatprep.mubr.f32.mxu0 0.0
    %3016 = vmatmul.mubr.f32.gmra.mrb[0].mxu0 %v2866
    %v3017 = vpop.f32.mrb[0].mxu0
    %v3018 = vadd.f32 0.0, %v3017
    %v3019 = vpop.f32.mrb[0].mxu0
    %3020 = vmatprep.mubr.f32.mxu0 0.0
    %3021 = vmatmul.mubr.f32.gmra.mrb[0].mxu0 %v2869
    %v3022 = vpop.f32.mrb[0].mxu0
    %v3023 = vadd.f32 0.0, %v3022
    %v3024 = vpop.f32.mrb[0].mxu0
    %3025 = vmatprep.mubr.f32.mxu0 0.0
    %3026 = vmatmul.mubr.f32.gmra.mrb[0].mxu0 %v2872
    %v3027 = vpop.f32.mrb[0].mxu0
    %v3028 = vadd.f32 0.0, %v3027
    %v3029 = vpop.f32.mrb[0].mxu0
    %3030 = vmatprep.mubr.f32.mxu0 0.0
    %3031 = vmatmul.mubr.f32.gmra.mrb[0].mxu0 %v2875
    %v3032 = vpop.f32.mrb[0].mxu0
    %v3033 = vadd.f32 0.0, %v3032
    %v3034 = vpop.f32.mrb[0].mxu0
    %3035 = vmatprep.mubr.f32.mxu0 0.0
    %3036 = vmatmul.mubr.f32.gmra.mrb[0].mxu0 %v2878
    %v3037 = vpop.f32.mrb[0].mxu0
    %v3038 = vadd.f32 0.0, %v3037
    %v3039 = vpop.f32.mrb[0].mxu0
    %3040 = vmatprep.mubr.f32.mxu0 0.0
    %3041 = vmatmul.mubr.f32.gmra.mrb[0].mxu0 %v2881
    %v3042 = vpop.f32.mrb[0].mxu0
    %v3043 = vadd.f32 0.0, %v3042
    %v3044 = vpop.f32.mrb[0].mxu0
    %3045 = vmatprep.mubr.f32.mxu0 0.0
    %3046 = vmatmul.mubr.f32.gmra.mrb[0].mxu0 %v2884
    %v3047 = vpop.f32.mrb[0].mxu0
    %v3048 = vadd.f32 0.0, %v3047
    %v3049 = vpop.f32.mrb[0].mxu0
    %3050 = vmatprep.mubr.f32.mxu0 0.0
    %3051 = vmatmul.mubr.f32.gmra.mrb[0].mxu0 %v2887
    %v3052 = vpop.f32.mrb[0].mxu0
    %v3053 = vadd.f32 0.0, %v3052
    %v3054 = vpop.f32.mrb[0].mxu0
    %3055 = vmatprep.mubr.f32.mxu0 0.0
    %3056 = vmatmul.mubr.f32.gmra.mrb[0].mxu0 %v2890
    %v3057 = vpop.f32.mrb[0].mxu0
    %v3058 = vadd.f32 0.0, %v3057
    %v3059 = vpop.f32.mrb[0].mxu0
    %3060 = vmatprep.mubr.f32.mxu0 0.0
    %3061 = vmatmul.mubr.f32.gmra.mrb[0].mxu0 %v2893
    %v3062 = vpop.f32.mrb[0].mxu0
    %v3063 = vadd.f32 0.0, %v3062
    %v3064 = vpop.f32.mrb[0].mxu0
    %3065 = vmatprep.mubr.f32.mxu0 0.0
    %3066 = vmatmul.mubr.f32.gmra.mrb[0].mxu0 %v2896
    %v3067 = vpop.f32.mrb[0].mxu0
    %v3068 = vadd.f32 0.0, %v3067
    %v3069 = vpop.f32.mrb[0].mxu0
    %3070 = vmatprep.mubr.f32.mxu0 0.0
    %3071 = vmatmul.mubr.f32.gmra.mrb[0].mxu0 %v2899
    %v3072 = vpop.f32.mrb[0].mxu0
    %v3073 = vadd.f32 0.0, %v3072
    %v3074 = vpop.f32.mrb[0].mxu0
    %3075 = vmatprep.mubr.f32.mxu0 0.0
    %3076 = vmatmul.mubr.f32.gmra.mrb[0].mxu0 %v2902
    %v3077 = vpop.f32.mrb[0].mxu0
    %v3078 = vadd.f32 0.0, %v3077
    %v3079 = vpop.f32.mrb[0].mxu0
    %3080 = vmatprep.mubr.f32.mxu0 0.0
    %3081 = vmatmul.mubr.f32.gmra.mrb[0].mxu0 %v2905
    %v3082 = vpop.f32.mrb[0].mxu0
    %v3083 = vadd.f32 0.0, %v3082
    %v3084 = vpop.f32.mrb[0].mxu0
    %3085 = vmatprep.mubr.f32.mxu0 0.0
    %3086 = vmatmul.mubr.f32.gmra.mrb[0].mxu0 %v2908
    %v3087 = vpop.f32.mrb[0].mxu0
    %v3088 = vadd.f32 0.0, %v3087
    %v3089 = vpop.f32.mrb[0].mxu0
    %3090 = vmatprep.mubr.f32.mxu0 0.0
    %3091 = vmatmul.mubr.f32.gmra.mrb[0].mxu0 %v2911
    %v3092 = vpop.f32.mrb[0].mxu0
    %v3093 = vadd.f32 0.0, %v3092
    %v3094 = vpop.f32.mrb[0].mxu0
    %3095 = vmatprep.mubr.f32.mxu0 0.0
    %3096 = vmatmul.mubr.f32.gmra.mrb[0].mxu0 %v2914
    %v3097 = vpop.f32.mrb[0].mxu0
    %v3098 = vadd.f32 0.0, %v3097
    %v3099 = vpop.f32.mrb[0].mxu0
    %3100 = vdwg.mxu0
    %v3101 = vadd.f32 %v2791, %v2983
    %v3102 = vadd.f32 %v2792, %v2988
    %v3103 = vadd.f32 %v2793, %v2993
    %v3104 = vadd.f32 %v2794, %v2998
    %v3105 = vadd.f32 %v2795, %v3003
    %v3106 = vadd.f32 %v2796, %v3008
    %v3107 = vadd.f32 %v2797, %v3013
    %v3108 = vadd.f32 %v2798, %v3018
    %v3109 = vadd.f32 %v2799, %v3023
    %v3110 = vadd.f32 %v2800, %v3028
    %v3111 = vadd.f32 %v2801, %v3033
    %v3112 = vadd.f32 %v2802, %v3038
    %v3113 = vadd.f32 %v2803, %v3043
    %v3114 = vadd.f32 %v2804, %v3048
    %v3115 = vadd.f32 %v2805, %v3053
    %v3116 = vadd.f32 %v2806, %v3058
    %v3117 = vadd.f32 %v2807, %v3063
    %v3118 = vadd.f32 %v2808, %v3068
    %v3119 = vadd.f32 %v2809, %v3073
    %v3120 = vadd.f32 %v2810, %v3078
    %v3121 = vadd.f32 %v2811, %v3083
    %v3122 = vadd.f32 %v2812, %v3088
    %v3123 = vadd.f32 %v2813, %v3093
    %v3124 = vadd.f32 %v2814, %v3098
    %v3125 = vld [vmem:[#allocation2 + $0xc] sm:$0xff]
    %v3126 = vld [vmem:[#allocation2 + $0x14] sm:$0xff]
    %v3127 = vld [vmem:[#allocation2 + $0x1c] sm:$0xff]
    %v3128 = vld [vmem:[#allocation2 + $0x24] sm:$0xff]
    %v3129 = vld [vmem:[#allocation2 + $0x2c] sm:$0xff]
    %v3130 = vld [vmem:[#allocation2 + $0x34] sm:$0xff]
    %v3131 = vld [vmem:[#allocation2 + $0x3c] sm:$0xff]
    %v3132 = vld [vmem:[#allocation2 + $0x44] sm:$0xff]
    %v3133 = vld [vmem:[#allocation2 + $0x4c] sm:$0xff]
    %v3134 = vld [vmem:[#allocation2 + $0x54] sm:$0xff]
    %v3135 = vld [vmem:[#allocation2 + $0x5c] sm:$0xff]
    %v3136 = vld [vmem:[#allocation2 + $0x64] sm:$0xff]
    %v3137 = vld [vmem:[#allocation2 + $0xa4] sm:$0xff]
    %v3138 = vld [vmem:[#allocation2 + $0xac] sm:$0xff]
    %v3139 = vld [vmem:[#allocation2 + $0xb4] sm:$0xff]
    %v3140 = vld [vmem:[#allocation2 + $0xbc] sm:$0xff]
    %v3141 = vld [vmem:[#allocation2 + $0xc4] sm:$0xff]
    %v3142 = vld [vmem:[#allocation2 + $0xcc] sm:$0xff]
    %v3143 = vld [vmem:[#allocation2 + $0xd4] sm:$0xff]
    %v3144 = vld [vmem:[#allocation2 + $0xdc] sm:$0xff]
    %v3145 = vld [vmem:[#allocation2 + $0xe4] sm:$0xff]
    %v3146 = vld [vmem:[#allocation2 + $0xec] sm:$0xff]
    %v3147 = vld [vmem:[#allocation2 + $0xf4] sm:$0xff]
    %v3148 = vld [vmem:[#allocation2 + $0xfc] sm:$0xff]
    %s3149 = scalar_lea.vmem %s3, 160
    %v3150 = vld [vmem:[%s3149] sm:$0xff]
    %v3151 = vld [vmem:[%s3149 + $0x8] sm:$0xff]
    %v3152 = vld [vmem:[%s3149 + $0x10] sm:$0xff]
    %v3153 = vld [vmem:[%s3149 + $0x18] sm:$0xff]
    %v3155 = vsel %vm181, %v3125, 0
    %v3158 = vsel %vm181, %v3126, 0
    %v3161 = vsel %vm181, %v3127, 0
    %v3164 = vsel %vm181, %v3128, 0
    %v3167 = vsel %vm181, %v3129, 0
    %v3170 = vsel %vm181, %v3130, 0
    %v3173 = vsel %vm181, %v3131, 0
    %v3176 = vsel %vm181, %v3132, 0
    %v3179 = vsel %vm181, %v3133, 0
    %v3182 = vsel %vm181, %v3134, 0
    %v3185 = vsel %vm181, %v3135, 0
    %v3188 = vsel %vm181, %v3136, 0
    %v3191 = vsel %vm181, %v3137, 0
    %v3194 = vsel %vm181, %v3138, 0
    %v3197 = vsel %vm181, %v3139, 0
    %v3200 = vsel %vm181, %v3140, 0
    %v3203 = vsel %vm181, %v3141, 0
    %v3206 = vsel %vm181, %v3142, 0
    %v3209 = vsel %vm181, %v3143, 0
    %v3212 = vsel %vm181, %v3144, 0
    %v3215 = vsel %vm181, %v3145, 0
    %v3218 = vsel %vm181, %v3146, 0
    %v3221 = vsel %vm181, %v3147, 0
    %v3224 = vsel %vm181, %v3148, 0
    %3226 = vmatprep.subr.mxu0 0.0
    %3227 = vmatpush1.msra.mxu0 %v3150
    %3228 = vmatprep.subr.mxu0 0.0
    %3229 = vmatpush1.msra.mxu0 %v3151
    %3230 = vmatprep.subr.mxu0 0.0
    %3231 = vmatpush1.msra.mxu0 %v3152
    %3232 = vmatprep.subr.mxu0 0.0
    %3233 = vmatpush1.msra.mxu0 %v3153
    %3234 = vmatprep.subr.mxu0 0.0
    %3235 = vmatpush1.msra.mxu0 0.0
    %3236 = vmatprep.subr.mxu0 0.0
    %3237 = vmatpush1.msra.mxu0 0.0
    %3238 = vmatprep.subr.mxu0 0.0
    %3239 = vmatpush1.msra.mxu0 0.0
    %3240 = vmatprep.subr.mxu0 0.0
    %3241 = vmatpush1.msra.mxu0 0.0
    %3242 = vmatprep.subr.mxu0 0.0
    %3243 = vmatpush1.msra.mxu0 0.0
    %3244 = vmatprep.subr.mxu0 0.0
    %3245 = vmatpush1.msra.mxu0 0.0
    %3246 = vmatprep.subr.mxu0 0.0
    %3247 = vmatpush1.msra.mxu0 0.0
    %3248 = vmatprep.subr.mxu0 0.0
    %3249 = vmatpush1.msra.mxu0 0.0
    %3250 = vmatprep.subr.mxu0 0.0
    %3251 = vmatpush1.msra.mxu0 0.0
    %3252 = vmatprep.subr.mxu0 0.0
    %3253 = vmatpush1.msra.mxu0 0.0
    %3254 = vmatprep.subr.mxu0 0.0
    %3255 = vmatpush1.msra.mxu0 0.0
    %3256 = vmatprep.subr.mxu0 0.0
    %3257 = vmatpush1.msra.mxu0 0.0
    %3258 = vmatprep.subr.mxu0 0.0
    %3259 = vmatpush1.msra.mxu0 0.0
    %3260 = vmatprep.subr.mxu0 0.0
    %3261 = vmatpush1.msra.mxu0 0.0
    %3262 = vmatprep.subr.mxu0 0.0
    %3263 = vmatpush1.msra.mxu0 0.0
    %3264 = vmatprep.subr.mxu0 0.0
    %3265 = vmatpush1.msra.mxu0 0.0
    %3266 = vmatprep.subr.mxu0 0.0
    %3267 = vmatpush1.msra.mxu0 0.0
    %3268 = vmatprep.subr.mxu0 0.0
    %3269 = vmatpush1.msra.mxu0 0.0
    %3270 = vmatprep.subr.mxu0 0.0
    %3271 = vmatpush1.msra.mxu0 0.0
    %3272 = vmatprep.subr.mxu0 0.0
    %3273 = vmatpush1.msra.mxu0 0.0
    %3274 = vmatprep.subr.mxu0 0.0
    %3275 = vmatpush1.msra.mxu0 0.0
    %3276 = vmatprep.subr.mxu0 0.0
    %3277 = vmatpush1.msra.mxu0 0.0
    %3278 = vmatprep.subr.mxu0 0.0
    %3279 = vmatpush1.msra.mxu0 0.0
    %3280 = vmatprep.subr.mxu0 0.0
    %3281 = vmatpush1.msra.mxu0 0.0
    %3282 = vmatprep.subr.mxu0 0.0
    %3283 = vmatpush1.msra.mxu0 0.0
    %3284 = vmatprep.subr.mxu0 0.0
    %3285 = vmatpush1.msra.mxu0 0.0
    %3286 = vmatprep.subr.mxu0 0.0
    %3287 = vmatpush1.msra.mxu0 0.0
    %3288 = vmatprep.subr.mxu0 0.0
    %3289 = vmatpush1.msra.mxu0 0.0
    %3290 = vmatprep.mubr.f32.mxu0 0.0
    %3291 = vmatmul.mubr.f32.gmra.mrb[0].mxu0 %v3155
    %v3292 = vpop.f32.mrb[0].mxu0
    %v3293 = vadd.f32 0.0, %v3292
    %v3294 = vpop.f32.mrb[0].mxu0
    %3295 = vmatprep.mubr.f32.mxu0 0.0
    %3296 = vmatmul.mubr.f32.gmra.mrb[0].mxu0 %v3158
    %v3297 = vpop.f32.mrb[0].mxu0
    %v3298 = vadd.f32 0.0, %v3297
    %v3299 = vpop.f32.mrb[0].mxu0
    %3300 = vmatprep.mubr.f32.mxu0 0.0
    %3301 = vmatmul.mubr.f32.gmra.mrb[0].mxu0 %v3161
    %v3302 = vpop.f32.mrb[0].mxu0
    %v3303 = vadd.f32 0.0, %v3302
    %v3304 = vpop.f32.mrb[0].mxu0
    %3305 = vmatprep.mubr.f32.mxu0 0.0
    %3306 = vmatmul.mubr.f32.gmra.mrb[0].mxu0 %v3164
    %v3307 = vpop.f32.mrb[0].mxu0
    %v3308 = vadd.f32 0.0, %v3307
    %v3309 = vpop.f32.mrb[0].mxu0
    %3310 = vmatprep.mubr.f32.mxu0 0.0
    %3311 = vmatmul.mubr.f32.gmra.mrb[0].mxu0 %v3167
    %v3312 = vpop.f32.mrb[0].mxu0
    %v3313 = vadd.f32 0.0, %v3312
    %v3314 = vpop.f32.mrb[0].mxu0
    %3315 = vmatprep.mubr.f32.mxu0 0.0
    %3316 = vmatmul.mubr.f32.gmra.mrb[0].mxu0 %v3170
    %v3317 = vpop.f32.mrb[0].mxu0
    %v3318 = vadd.f32 0.0, %v3317
    %v3319 = vpop.f32.mrb[0].mxu0
    %3320 = vmatprep.mubr.f32.mxu0 0.0
    %3321 = vmatmul.mubr.f32.gmra.mrb[0].mxu0 %v3173
    %v3322 = vpop.f32.mrb[0].mxu0
    %v3323 = vadd.f32 0.0, %v3322
    %v3324 = vpop.f32.mrb[0].mxu0
    %3325 = vmatprep.mubr.f32.mxu0 0.0
    %3326 = vmatmul.mubr.f32.gmra.mrb[0].mxu0 %v3176
    %v3327 = vpop.f32.mrb[0].mxu0
    %v3328 = vadd.f32 0.0, %v3327
    %v3329 = vpop.f32.mrb[0].mxu0
    %3330 = vmatprep.mubr.f32.mxu0 0.0
    %3331 = vmatmul.mubr.f32.gmra.mrb[0].mxu0 %v3179
    %v3332 = vpop.f32.mrb[0].mxu0
    %v3333 = vadd.f32 0.0, %v3332
    %v3334 = vpop.f32.mrb[0].mxu0
    %3335 = vmatprep.mubr.f32.mxu0 0.0
    %3336 = vmatmul.mubr.f32.gmra.mrb[0].mxu0 %v3182
    %v3337 = vpop.f32.mrb[0].mxu0
    %v3338 = vadd.f32 0.0, %v3337
    %v3339 = vpop.f32.mrb[0].mxu0
    %3340 = vmatprep.mubr.f32.mxu0 0.0
    %3341 = vmatmul.mubr.f32.gmra.mrb[0].mxu0 %v3185
    %v3342 = vpop.f32.mrb[0].mxu0
    %v3343 = vadd.f32 0.0, %v3342
    %v3344 = vpop.f32.mrb[0].mxu0
    %3345 = vmatprep.mubr.f32.mxu0 0.0
    %3346 = vmatmul.mubr.f32.gmra.mrb[0].mxu0 %v3188
    %v3347 = vpop.f32.mrb[0].mxu0
    %v3348 = vadd.f32 0.0, %v3347
    %v3349 = vpop.f32.mrb[0].mxu0
    %3350 = vmatprep.mubr.f32.mxu0 0.0
    %3351 = vmatmul.mubr.f32.gmra.mrb[0].mxu0 %v3191
    %v3352 = vpop.f32.mrb[0].mxu0
    %v3353 = vadd.f32 0.0, %v3352
    %v3354 = vpop.f32.mrb[0].mxu0
    %3355 = vmatprep.mubr.f32.mxu0 0.0
    %3356 = vmatmul.mubr.f32.gmra.mrb[0].mxu0 %v3194
    %v3357 = vpop.f32.mrb[0].mxu0
    %v3358 = vadd.f32 0.0, %v3357
    %v3359 = vpop.f32.mrb[0].mxu0
    %3360 = vmatprep.mubr.f32.mxu0 0.0
    %3361 = vmatmul.mubr.f32.gmra.mrb[0].mxu0 %v3197
    %v3362 = vpop.f32.mrb[0].mxu0
    %v3363 = vadd.f32 0.0, %v3362
    %v3364 = vpop.f32.mrb[0].mxu0
    %3365 = vmatprep.mubr.f32.mxu0 0.0
    %3366 = vmatmul.mubr.f32.gmra.mrb[0].mxu0 %v3200
    %v3367 = vpop.f32.mrb[0].mxu0
    %v3368 = vadd.f32 0.0, %v3367
    %v3369 = vpop.f32.mrb[0].mxu0
    %3370 = vmatprep.mubr.f32.mxu0 0.0
    %3371 = vmatmul.mubr.f32.gmra.mrb[0].mxu0 %v3203
    %v3372 = vpop.f32.mrb[0].mxu0
    %v3373 = vadd.f32 0.0, %v3372
    %v3374 = vpop.f32.mrb[0].mxu0
    %3375 = vmatprep.mubr.f32.mxu0 0.0
    %3376 = vmatmul.mubr.f32.gmra.mrb[0].mxu0 %v3206
    %v3377 = vpop.f32.mrb[0].mxu0
    %v3378 = vadd.f32 0.0, %v3377
    %v3379 = vpop.f32.mrb[0].mxu0
    %3380 = vmatprep.mubr.f32.mxu0 0.0
    %3381 = vmatmul.mubr.f32.gmra.mrb[0].mxu0 %v3209
    %v3382 = vpop.f32.mrb[0].mxu0
    %v3383 = vadd.f32 0.0, %v3382
    %v3384 = vpop.f32.mrb[0].mxu0
    %3385 = vmatprep.mubr.f32.mxu0 0.0
    %3386 = vmatmul.mubr.f32.gmra.mrb[0].mxu0 %v3212
    %v3387 = vpop.f32.mrb[0].mxu0
    %v3388 = vadd.f32 0.0, %v3387
    %v3389 = vpop.f32.mrb[0].mxu0
    %3390 = vmatprep.mubr.f32.mxu0 0.0
    %3391 = vmatmul.mubr.f32.gmra.mrb[0].mxu0 %v3215
    %v3392 = vpop.f32.mrb[0].mxu0
    %v3393 = vadd.f32 0.0, %v3392
    %v3394 = vpop.f32.mrb[0].mxu0
    %3395 = vmatprep.mubr.f32.mxu0 0.0
    %3396 = vmatmul.mubr.f32.gmra.mrb[0].mxu0 %v3218
    %v3397 = vpop.f32.mrb[0].mxu0
    %v3398 = vadd.f32 0.0, %v3397
    %v3399 = vpop.f32.mrb[0].mxu0
    %3400 = vmatprep.mubr.f32.mxu0 0.0
    %3401 = vmatmul.mubr.f32.gmra.mrb[0].mxu0 %v3221
    %v3402 = vpop.f32.mrb[0].mxu0
    %v3403 = vadd.f32 0.0, %v3402
    %v3404 = vpop.f32.mrb[0].mxu0
    %3405 = vmatprep.mubr.f32.mxu0 0.0
    %3406 = vmatmul.mubr.f32.gmra.mrb[0].mxu0 %v3224
    %v3407 = vpop.f32.mrb[0].mxu0
    %v3408 = vadd.f32 0.0, %v3407
    %v3409 = vpop.f32.mrb[0].mxu0
    %3410 = vdwg.mxu0
    %v3411 = vadd.f32 %v3101, %v3293
    %v3412 = vadd.f32 %v3102, %v3298
    %v3413 = vadd.f32 %v3103, %v3303
    %v3414 = vadd.f32 %v3104, %v3308
    %v3415 = vadd.f32 %v3105, %v3313
    %v3416 = vadd.f32 %v3106, %v3318
    %v3417 = vadd.f32 %v3107, %v3323
    %v3418 = vadd.f32 %v3108, %v3328
    %v3419 = vadd.f32 %v3109, %v3333
    %v3420 = vadd.f32 %v3110, %v3338
    %v3421 = vadd.f32 %v3111, %v3343
    %v3422 = vadd.f32 %v3112, %v3348
    %v3423 = vadd.f32 %v3113, %v3353
    %v3424 = vadd.f32 %v3114, %v3358
    %v3425 = vadd.f32 %v3115, %v3363
    %v3426 = vadd.f32 %v3116, %v3368
    %v3427 = vadd.f32 %v3117, %v3373
    %v3428 = vadd.f32 %v3118, %v3378
    %v3429 = vadd.f32 %v3119, %v3383
    %v3430 = vadd.f32 %v3120, %v3388
    %v3431 = vadd.f32 %v3121, %v3393
    %v3432 = vadd.f32 %v3122, %v3398
    %v3433 = vadd.f32 %v3123, %v3403
    %v3434 = vadd.f32 %v3124, %v3408
    %v3435 = vld [vmem:[#allocation2 + $0xd] sm:$0xff]
    %v3436 = vld [vmem:[#allocation2 + $0x15] sm:$0xff]
    %v3437 = vld [vmem:[#allocation2 + $0x1d] sm:$0xff]
    %v3438 = vld [vmem:[#allocation2 + $0x25] sm:$0xff]
    %v3439 = vld [vmem:[#allocation2 + $0x2d] sm:$0xff]
    %v3440 = vld [vmem:[#allocation2 + $0x35] sm:$0xff]
    %v3441 = vld [vmem:[#allocation2 + $0x3d] sm:$0xff]
    %v3442 = vld [vmem:[#allocation2 + $0x45] sm:$0xff]
    %v3443 = vld [vmem:[#allocation2 + $0x4d] sm:$0xff]
    %v3444 = vld [vmem:[#allocation2 + $0x55] sm:$0xff]
    %v3445 = vld [vmem:[#allocation2 + $0x5d] sm:$0xff]
    %v3446 = vld [vmem:[#allocation2 + $0x65] sm:$0xff]
    %v3447 = vld [vmem:[#allocation2 + $0xa5] sm:$0xff]
    %v3448 = vld [vmem:[#allocation2 + $0xad] sm:$0xff]
    %v3449 = vld [vmem:[#allocation2 + $0xb5] sm:$0xff]
    %v3450 = vld [vmem:[#allocation2 + $0xbd] sm:$0xff]
    %v3451 = vld [vmem:[#allocation2 + $0xc5] sm:$0xff]
    %v3452 = vld [vmem:[#allocation2 + $0xcd] sm:$0xff]
    %v3453 = vld [vmem:[#allocation2 + $0xd5] sm:$0xff]
    %v3454 = vld [vmem:[#allocation2 + $0xdd] sm:$0xff]
    %v3455 = vld [vmem:[#allocation2 + $0xe5] sm:$0xff]
    %v3456 = vld [vmem:[#allocation2 + $0xed] sm:$0xff]
    %v3457 = vld [vmem:[#allocation2 + $0xf5] sm:$0xff]
    %v3458 = vld [vmem:[#allocation2 + $0xfd] sm:$0xff]
    %s3459 = scalar_lea.vmem %s3, 192
    %v3460 = vld [vmem:[%s3459] sm:$0xff]
    %v3461 = vld [vmem:[%s3459 + $0x8] sm:$0xff]
    %v3462 = vld [vmem:[%s3459 + $0x10] sm:$0xff]
    %v3463 = vld [vmem:[%s3459 + $0x18] sm:$0xff]
    %v3465 = vsel %vm181, %v3435, 0
    %v3468 = vsel %vm181, %v3436, 0
    %v3471 = vsel %vm181, %v3437, 0
    %v3474 = vsel %vm181, %v3438, 0
    %v3477 = vsel %vm181, %v3439, 0
    %v3480 = vsel %vm181, %v3440, 0
    %v3483 = vsel %vm181, %v3441, 0
    %v3486 = vsel %vm181, %v3442, 0
    %v3489 = vsel %vm181, %v3443, 0
    %v3492 = vsel %vm181, %v3444, 0
    %v3495 = vsel %vm181, %v3445, 0
    %v3498 = vsel %vm181, %v3446, 0
    %v3501 = vsel %vm181, %v3447, 0
    %v3504 = vsel %vm181, %v3448, 0
    %v3507 = vsel %vm181, %v3449, 0
    %v3510 = vsel %vm181, %v3450, 0
    %v3513 = vsel %vm181, %v3451, 0
    %v3516 = vsel %vm181, %v3452, 0
    %v3519 = vsel %vm181, %v3453, 0
    %v3522 = vsel %vm181, %v3454, 0
    %v3525 = vsel %vm181, %v3455, 0
    %v3528 = vsel %vm181, %v3456, 0
    %v3531 = vsel %vm181, %v3457, 0
    %v3534 = vsel %vm181, %v3458, 0
    %3536 = vmatprep.subr.mxu0 0.0
    %3537 = vmatpush1.msra.mxu0 %v3460
    %3538 = vmatprep.subr.mxu0 0.0
    %3539 = vmatpush1.msra.mxu0 %v3461
    %3540 = vmatprep.subr.mxu0 0.0
    %3541 = vmatpush1.msra.mxu0 %v3462
    %3542 = vmatprep.subr.mxu0 0.0
    %3543 = vmatpush1.msra.mxu0 %v3463
    %3544 = vmatprep.subr.mxu0 0.0
    %3545 = vmatpush1.msra.mxu0 0.0
    %3546 = vmatprep.subr.mxu0 0.0
    %3547 = vmatpush1.msra.mxu0 0.0
    %3548 = vmatprep.subr.mxu0 0.0
    %3549 = vmatpush1.msra.mxu0 0.0
    %3550 = vmatprep.subr.mxu0 0.0
    %3551 = vmatpush1.msra.mxu0 0.0
    %3552 = vmatprep.subr.mxu0 0.0
    %3553 = vmatpush1.msra.mxu0 0.0
    %3554 = vmatprep.subr.mxu0 0.0
    %3555 = vmatpush1.msra.mxu0 0.0
    %3556 = vmatprep.subr.mxu0 0.0
    %3557 = vmatpush1.msra.mxu0 0.0
    %3558 = vmatprep.subr.mxu0 0.0
    %3559 = vmatpush1.msra.mxu0 0.0
    %3560 = vmatprep.subr.mxu0 0.0
    %3561 = vmatpush1.msra.mxu0 0.0
    %3562 = vmatprep.subr.mxu0 0.0
    %3563 = vmatpush1.msra.mxu0 0.0
    %3564 = vmatprep.subr.mxu0 0.0
    %3565 = vmatpush1.msra.mxu0 0.0
    %3566 = vmatprep.subr.mxu0 0.0
    %3567 = vmatpush1.msra.mxu0 0.0
    %3568 = vmatprep.subr.mxu0 0.0
    %3569 = vmatpush1.msra.mxu0 0.0
    %3570 = vmatprep.subr.mxu0 0.0
    %3571 = vmatpush1.msra.mxu0 0.0
    %3572 = vmatprep.subr.mxu0 0.0
    %3573 = vmatpush1.msra.mxu0 0.0
    %3574 = vmatprep.subr.mxu0 0.0
    %3575 = vmatpush1.msra.mxu0 0.0
    %3576 = vmatprep.subr.mxu0 0.0
    %3577 = vmatpush1.msra.mxu0 0.0
    %3578 = vmatprep.subr.mxu0 0.0
    %3579 = vmatpush1.msra.mxu0 0.0
    %3580 = vmatprep.subr.mxu0 0.0
    %3581 = vmatpush1.msra.mxu0 0.0
    %3582 = vmatprep.subr.mxu0 0.0
    %3583 = vmatpush1.msra.mxu0 0.0
    %3584 = vmatprep.subr.mxu0 0.0
    %3585 = vmatpush1.msra.mxu0 0.0
    %3586 = vmatprep.subr.mxu0 0.0
    %3587 = vmatpush1.msra.mxu0 0.0
    %3588 = vmatprep.subr.mxu0 0.0
    %3589 = vmatpush1.msra.mxu0 0.0
    %3590 = vmatprep.subr.mxu0 0.0
    %3591 = vmatpush1.msra.mxu0 0.0
    %3592 = vmatprep.subr.mxu0 0.0
    %3593 = vmatpush1.msra.mxu0 0.0
    %3594 = vmatprep.subr.mxu0 0.0
    %3595 = vmatpush1.msra.mxu0 0.0
    %3596 = vmatprep.subr.mxu0 0.0
    %3597 = vmatpush1.msra.mxu0 0.0
    %3598 = vmatprep.subr.mxu0 0.0
    %3599 = vmatpush1.msra.mxu0 0.0
    %3600 = vmatprep.mubr.f32.mxu0 0.0
    %3601 = vmatmul.mubr.f32.gmra.mrb[0].mxu0 %v3465
    %v3602 = vpop.f32.mrb[0].mxu0
    %v3603 = vadd.f32 0.0, %v3602
    %v3604 = vpop.f32.mrb[0].mxu0
    %3605 = vmatprep.mubr.f32.mxu0 0.0
    %3606 = vmatmul.mubr.f32.gmra.mrb[0].mxu0 %v3468
    %v3607 = vpop.f32.mrb[0].mxu0
    %v3608 = vadd.f32 0.0, %v3607
    %v3609 = vpop.f32.mrb[0].mxu0
    %3610 = vmatprep.mubr.f32.mxu0 0.0
    %3611 = vmatmul.mubr.f32.gmra.mrb[0].mxu0 %v3471
    %v3612 = vpop.f32.mrb[0].mxu0
    %v3613 = vadd.f32 0.0, %v3612
    %v3614 = vpop.f32.mrb[0].mxu0
    %3615 = vmatprep.mubr.f32.mxu0 0.0
    %3616 = vmatmul.mubr.f32.gmra.mrb[0].mxu0 %v3474
    %v3617 = vpop.f32.mrb[0].mxu0
    %v3618 = vadd.f32 0.0, %v3617
    %v3619 = vpop.f32.mrb[0].mxu0
    %3620 = vmatprep.mubr.f32.mxu0 0.0
    %3621 = vmatmul.mubr.f32.gmra.mrb[0].mxu0 %v3477
    %v3622 = vpop.f32.mrb[0].mxu0
    %v3623 = vadd.f32 0.0, %v3622
    %v3624 = vpop.f32.mrb[0].mxu0
    %3625 = vmatprep.mubr.f32.mxu0 0.0
    %3626 = vmatmul.mubr.f32.gmra.mrb[0].mxu0 %v3480
    %v3627 = vpop.f32.mrb[0].mxu0
    %v3628 = vadd.f32 0.0, %v3627
    %v3629 = vpop.f32.mrb[0].mxu0
    %3630 = vmatprep.mubr.f32.mxu0 0.0
    %3631 = vmatmul.mubr.f32.gmra.mrb[0].mxu0 %v3483
    %v3632 = vpop.f32.mrb[0].mxu0
    %v3633 = vadd.f32 0.0, %v3632
    %v3634 = vpop.f32.mrb[0].mxu0
    %3635 = vmatprep.mubr.f32.mxu0 0.0
    %3636 = vmatmul.mubr.f32.gmra.mrb[0].mxu0 %v3486
    %v3637 = vpop.f32.mrb[0].mxu0
    %v3638 = vadd.f32 0.0, %v3637
    %v3639 = vpop.f32.mrb[0].mxu0
    %3640 = vmatprep.mubr.f32.mxu0 0.0
    %3641 = vmatmul.mubr.f32.gmra.mrb[0].mxu0 %v3489
    %v3642 = vpop.f32.mrb[0].mxu0
    %v3643 = vadd.f32 0.0, %v3642
    %v3644 = vpop.f32.mrb[0].mxu0
    %3645 = vmatprep.mubr.f32.mxu0 0.0
    %3646 = vmatmul.mubr.f32.gmra.mrb[0].mxu0 %v3492
    %v3647 = vpop.f32.mrb[0].mxu0
    %v3648 = vadd.f32 0.0, %v3647
    %v3649 = vpop.f32.mrb[0].mxu0
    %3650 = vmatprep.mubr.f32.mxu0 0.0
    %3651 = vmatmul.mubr.f32.gmra.mrb[0].mxu0 %v3495
    %v3652 = vpop.f32.mrb[0].mxu0
    %v3653 = vadd.f32 0.0, %v3652
    %v3654 = vpop.f32.mrb[0].mxu0
    %3655 = vmatprep.mubr.f32.mxu0 0.0
    %3656 = vmatmul.mubr.f32.gmra.mrb[0].mxu0 %v3498
    %v3657 = vpop.f32.mrb[0].mxu0
    %v3658 = vadd.f32 0.0, %v3657
    %v3659 = vpop.f32.mrb[0].mxu0
    %3660 = vmatprep.mubr.f32.mxu0 0.0
    %3661 = vmatmul.mubr.f32.gmra.mrb[0].mxu0 %v3501
    %v3662 = vpop.f32.mrb[0].mxu0
    %v3663 = vadd.f32 0.0, %v3662
    %v3664 = vpop.f32.mrb[0].mxu0
    %3665 = vmatprep.mubr.f32.mxu0 0.0
    %3666 = vmatmul.mubr.f32.gmra.mrb[0].mxu0 %v3504
    %v3667 = vpop.f32.mrb[0].mxu0
    %v3668 = vadd.f32 0.0, %v3667
    %v3669 = vpop.f32.mrb[0].mxu0
    %3670 = vmatprep.mubr.f32.mxu0 0.0
    %3671 = vmatmul.mubr.f32.gmra.mrb[0].mxu0 %v3507
    %v3672 = vpop.f32.mrb[0].mxu0
    %v3673 = vadd.f32 0.0, %v3672
    %v3674 = vpop.f32.mrb[0].mxu0
    %3675 = vmatprep.mubr.f32.mxu0 0.0
    %3676 = vmatmul.mubr.f32.gmra.mrb[0].mxu0 %v3510
    %v3677 = vpop.f32.mrb[0].mxu0
    %v3678 = vadd.f32 0.0, %v3677
    %v3679 = vpop.f32.mrb[0].mxu0
    %3680 = vmatprep.mubr.f32.mxu0 0.0
    %3681 = vmatmul.mubr.f32.gmra.mrb[0].mxu0 %v3513
    %v3682 = vpop.f32.mrb[0].mxu0
    %v3683 = vadd.f32 0.0, %v3682
    %v3684 = vpop.f32.mrb[0].mxu0
    %3685 = vmatprep.mubr.f32.mxu0 0.0
    %3686 = vmatmul.mubr.f32.gmra.mrb[0].mxu0 %v3516
    %v3687 = vpop.f32.mrb[0].mxu0
    %v3688 = vadd.f32 0.0, %v3687
    %v3689 = vpop.f32.mrb[0].mxu0
    %3690 = vmatprep.mubr.f32.mxu0 0.0
    %3691 = vmatmul.mubr.f32.gmra.mrb[0].mxu0 %v3519
    %v3692 = vpop.f32.mrb[0].mxu0
    %v3693 = vadd.f32 0.0, %v3692
    %v3694 = vpop.f32.mrb[0].mxu0
    %3695 = vmatprep.mubr.f32.mxu0 0.0
    %3696 = vmatmul.mubr.f32.gmra.mrb[0].mxu0 %v3522
    %v3697 = vpop.f32.mrb[0].mxu0
    %v3698 = vadd.f32 0.0, %v3697
    %v3699 = vpop.f32.mrb[0].mxu0
    %3700 = vmatprep.mubr.f32.mxu0 0.0
    %3701 = vmatmul.mubr.f32.gmra.mrb[0].mxu0 %v3525
    %v3702 = vpop.f32.mrb[0].mxu0
    %v3703 = vadd.f32 0.0, %v3702
    %v3704 = vpop.f32.mrb[0].mxu0
    %3705 = vmatprep.mubr.f32.mxu0 0.0
    %3706 = vmatmul.mubr.f32.gmra.mrb[0].mxu0 %v3528
    %v3707 = vpop.f32.mrb[0].mxu0
    %v3708 = vadd.f32 0.0, %v3707
    %v3709 = vpop.f32.mrb[0].mxu0
    %3710 = vmatprep.mubr.f32.mxu0 0.0
    %3711 = vmatmul.mubr.f32.gmra.mrb[0].mxu0 %v3531
    %v3712 = vpop.f32.mrb[0].mxu0
    %v3713 = vadd.f32 0.0, %v3712
    %v3714 = vpop.f32.mrb[0].mxu0
    %3715 = vmatprep.mubr.f32.mxu0 0.0
    %3716 = vmatmul.mubr.f32.gmra.mrb[0].mxu0 %v3534
    %v3717 = vpop.f32.mrb[0].mxu0
    %v3718 = vadd.f32 0.0, %v3717
    %v3719 = vpop.f32.mrb[0].mxu0
    %3720 = vdwg.mxu0
    %v3721 = vadd.f32 %v3411, %v3603
    %v3722 = vadd.f32 %v3412, %v3608
    %v3723 = vadd.f32 %v3413, %v3613
    %v3724 = vadd.f32 %v3414, %v3618
    %v3725 = vadd.f32 %v3415, %v3623
    %v3726 = vadd.f32 %v3416, %v3628
    %v3727 = vadd.f32 %v3417, %v3633
    %v3728 = vadd.f32 %v3418, %v3638
    %v3729 = vadd.f32 %v3419, %v3643
    %v3730 = vadd.f32 %v3420, %v3648
    %v3731 = vadd.f32 %v3421, %v3653
    %v3732 = vadd.f32 %v3422, %v3658
    %v3733 = vadd.f32 %v3423, %v3663
    %v3734 = vadd.f32 %v3424, %v3668
    %v3735 = vadd.f32 %v3425, %v3673
    %v3736 = vadd.f32 %v3426, %v3678
    %v3737 = vadd.f32 %v3427, %v3683
    %v3738 = vadd.f32 %v3428, %v3688
    %v3739 = vadd.f32 %v3429, %v3693
    %v3740 = vadd.f32 %v3430, %v3698
    %v3741 = vadd.f32 %v3431, %v3703
    %v3742 = vadd.f32 %v3432, %v3708
    %v3743 = vadd.f32 %v3433, %v3713
    %v3744 = vadd.f32 %v3434, %v3718
    %v3745 = vld [vmem:[#allocation2 + $0xe] sm:$0xff]
    %v3746 = vld [vmem:[#allocation2 + $0x16] sm:$0xff]
    %v3747 = vld [vmem:[#allocation2 + $0x1e] sm:$0xff]
    %v3748 = vld [vmem:[#allocation2 + $0x26] sm:$0xff]
    %v3749 = vld [vmem:[#allocation2 + $0x2e] sm:$0xff]
    %v3750 = vld [vmem:[#allocation2 + $0x36] sm:$0xff]
    %v3751 = vld [vmem:[#allocation2 + $0x3e] sm:$0xff]
    %v3752 = vld [vmem:[#allocation2 + $0x46] sm:$0xff]
    %v3753 = vld [vmem:[#allocation2 + $0x4e] sm:$0xff]
    %v3754 = vld [vmem:[#allocation2 + $0x56] sm:$0xff]
    %v3755 = vld [vmem:[#allocation2 + $0x5e] sm:$0xff]
    %v3756 = vld [vmem:[#allocation2 + $0x66] sm:$0xff]
    %v3757 = vld [vmem:[#allocation2 + $0xa6] sm:$0xff]
    %v3758 = vld [vmem:[#allocation2 + $0xae] sm:$0xff]
    %v3759 = vld [vmem:[#allocation2 + $0xb6] sm:$0xff]
    %v3760 = vld [vmem:[#allocation2 + $0xbe] sm:$0xff]
    %v3761 = vld [vmem:[#allocation2 + $0xc6] sm:$0xff]
    %v3762 = vld [vmem:[#allocation2 + $0xce] sm:$0xff]
    %v3763 = vld [vmem:[#allocation2 + $0xd6] sm:$0xff]
    %v3764 = vld [vmem:[#allocation2 + $0xde] sm:$0xff]
    %v3765 = vld [vmem:[#allocation2 + $0xe6] sm:$0xff]
    %v3766 = vld [vmem:[#allocation2 + $0xee] sm:$0xff]
    %v3767 = vld [vmem:[#allocation2 + $0xf6] sm:$0xff]
    %v3768 = vld [vmem:[#allocation2 + $0xfe] sm:$0xff]
    %s3769 = scalar_lea.vmem %s3, 224
    %v3770 = vld [vmem:[%s3769] sm:$0xff]
    %v3771 = vld [vmem:[%s3769 + $0x8] sm:$0xff]
    %v3772 = vld [vmem:[%s3769 + $0x10] sm:$0xff]
    %v3773 = vld [vmem:[%s3769 + $0x18] sm:$0xff]
    %v3775 = vsel %vm181, %v3745, 0
    %v3778 = vsel %vm181, %v3746, 0
    %v3781 = vsel %vm181, %v3747, 0
    %v3784 = vsel %vm181, %v3748, 0
    %v3787 = vsel %vm181, %v3749, 0
    %v3790 = vsel %vm181, %v3750, 0
    %v3793 = vsel %vm181, %v3751, 0
    %v3796 = vsel %vm181, %v3752, 0
    %v3799 = vsel %vm181, %v3753, 0
    %v3802 = vsel %vm181, %v3754, 0
    %v3805 = vsel %vm181, %v3755, 0
    %v3808 = vsel %vm181, %v3756, 0
    %v3811 = vsel %vm181, %v3757, 0
    %v3814 = vsel %vm181, %v3758, 0
    %v3817 = vsel %vm181, %v3759, 0
    %v3820 = vsel %vm181, %v3760, 0
    %v3823 = vsel %vm181, %v3761, 0
    %v3826 = vsel %vm181, %v3762, 0
    %v3829 = vsel %vm181, %v3763, 0
    %v3832 = vsel %vm181, %v3764, 0
    %v3835 = vsel %vm181, %v3765, 0
    %v3838 = vsel %vm181, %v3766, 0
    %v3841 = vsel %vm181, %v3767, 0
    %v3844 = vsel %vm181, %v3768, 0
    %3846 = vmatprep.subr.mxu0 0.0
    %3847 = vmatpush1.msra.mxu0 %v3770
    %3848 = vmatprep.subr.mxu0 0.0
    %3849 = vmatpush1.msra.mxu0 %v3771
    %3850 = vmatprep.subr.mxu0 0.0
    %3851 = vmatpush1.msra.mxu0 %v3772
    %3852 = vmatprep.subr.mxu0 0.0
    %3853 = vmatpush1.msra.mxu0 %v3773
    %3854 = vmatprep.subr.mxu0 0.0
    %3855 = vmatpush1.msra.mxu0 0.0
    %3856 = vmatprep.subr.mxu0 0.0
    %3857 = vmatpush1.msra.mxu0 0.0
    %3858 = vmatprep.subr.mxu0 0.0
    %3859 = vmatpush1.msra.mxu0 0.0
    %3860 = vmatprep.subr.mxu0 0.0
    %3861 = vmatpush1.msra.mxu0 0.0
    %3862 = vmatprep.subr.mxu0 0.0
    %3863 = vmatpush1.msra.mxu0 0.0
    %3864 = vmatprep.subr.mxu0 0.0
    %3865 = vmatpush1.msra.mxu0 0.0
    %3866 = vmatprep.subr.mxu0 0.0
    %3867 = vmatpush1.msra.mxu0 0.0
    %3868 = vmatprep.subr.mxu0 0.0
    %3869 = vmatpush1.msra.mxu0 0.0
    %3870 = vmatprep.subr.mxu0 0.0
    %3871 = vmatpush1.msra.mxu0 0.0
    %3872 = vmatprep.subr.mxu0 0.0
    %3873 = vmatpush1.msra.mxu0 0.0
    %3874 = vmatprep.subr.mxu0 0.0
    %3875 = vmatpush1.msra.mxu0 0.0
    %3876 = vmatprep.subr.mxu0 0.0
    %3877 = vmatpush1.msra.mxu0 0.0
    %3878 = vmatprep.subr.mxu0 0.0
    %3879 = vmatpush1.msra.mxu0 0.0
    %3880 = vmatprep.subr.mxu0 0.0
    %3881 = vmatpush1.msra.mxu0 0.0
    %3882 = vmatprep.subr.mxu0 0.0
    %3883 = vmatpush1.msra.mxu0 0.0
    %3884 = vmatprep.subr.mxu0 0.0
    %3885 = vmatpush1.msra.mxu0 0.0
    %3886 = vmatprep.subr.mxu0 0.0
    %3887 = vmatpush1.msra.mxu0 0.0
    %3888 = vmatprep.subr.mxu0 0.0
    %3889 = vmatpush1.msra.mxu0 0.0
    %3890 = vmatprep.subr.mxu0 0.0
    %3891 = vmatpush1.msra.mxu0 0.0
    %3892 = vmatprep.subr.mxu0 0.0
    %3893 = vmatpush1.msra.mxu0 0.0
    %3894 = vmatprep.subr.mxu0 0.0
    %3895 = vmatpush1.msra.mxu0 0.0
    %3896 = vmatprep.subr.mxu0 0.0
    %3897 = vmatpush1.msra.mxu0 0.0
    %3898 = vmatprep.subr.mxu0 0.0
    %3899 = vmatpush1.msra.mxu0 0.0
    %3900 = vmatprep.subr.mxu0 0.0
    %3901 = vmatpush1.msra.mxu0 0.0
    %3902 = vmatprep.subr.mxu0 0.0
    %3903 = vmatpush1.msra.mxu0 0.0
    %3904 = vmatprep.subr.mxu0 0.0
    %3905 = vmatpush1.msra.mxu0 0.0
    %3906 = vmatprep.subr.mxu0 0.0
    %3907 = vmatpush1.msra.mxu0 0.0
    %3908 = vmatprep.subr.mxu0 0.0
    %3909 = vmatpush1.msra.mxu0 0.0
    %3910 = vmatprep.mubr.f32.mxu0 0.0
    %3911 = vmatmul.mubr.f32.gmra.mrb[0].mxu0 %v3775
    %v3912 = vpop.f32.mrb[0].mxu0
    %v3913 = vadd.f32 0.0, %v3912
    %v3914 = vpop.f32.mrb[0].mxu0
    %3915 = vmatprep.mubr.f32.mxu0 0.0
    %3916 = vmatmul.mubr.f32.gmra.mrb[0].mxu0 %v3778
    %v3917 = vpop.f32.mrb[0].mxu0
    %v3918 = vadd.f32 0.0, %v3917
    %v3919 = vpop.f32.mrb[0].mxu0
    %3920 = vmatprep.mubr.f32.mxu0 0.0
    %3921 = vmatmul.mubr.f32.gmra.mrb[0].mxu0 %v3781
    %v3922 = vpop.f32.mrb[0].mxu0
    %v3923 = vadd.f32 0.0, %v3922
    %v3924 = vpop.f32.mrb[0].mxu0
    %3925 = vmatprep.mubr.f32.mxu0 0.0
    %3926 = vmatmul.mubr.f32.gmra.mrb[0].mxu0 %v3784
    %v3927 = vpop.f32.mrb[0].mxu0
    %v3928 = vadd.f32 0.0, %v3927
    %v3929 = vpop.f32.mrb[0].mxu0
    %3930 = vmatprep.mubr.f32.mxu0 0.0
    %3931 = vmatmul.mubr.f32.gmra.mrb[0].mxu0 %v3787
    %v3932 = vpop.f32.mrb[0].mxu0
    %v3933 = vadd.f32 0.0, %v3932
    %v3934 = vpop.f32.mrb[0].mxu0
    %3935 = vmatprep.mubr.f32.mxu0 0.0
    %3936 = vmatmul.mubr.f32.gmra.mrb[0].mxu0 %v3790
    %v3937 = vpop.f32.mrb[0].mxu0
    %v3938 = vadd.f32 0.0, %v3937
    %v3939 = vpop.f32.mrb[0].mxu0
    %3940 = vmatprep.mubr.f32.mxu0 0.0
    %3941 = vmatmul.mubr.f32.gmra.mrb[0].mxu0 %v3793
    %v3942 = vpop.f32.mrb[0].mxu0
    %v3943 = vadd.f32 0.0, %v3942
    %v3944 = vpop.f32.mrb[0].mxu0
    %3945 = vmatprep.mubr.f32.mxu0 0.0
    %3946 = vmatmul.mubr.f32.gmra.mrb[0].mxu0 %v3796
    %v3947 = vpop.f32.mrb[0].mxu0
    %v3948 = vadd.f32 0.0, %v3947
    %v3949 = vpop.f32.mrb[0].mxu0
    %3950 = vmatprep.mubr.f32.mxu0 0.0
    %3951 = vmatmul.mubr.f32.gmra.mrb[0].mxu0 %v3799
    %v3952 = vpop.f32.mrb[0].mxu0
    %v3953 = vadd.f32 0.0, %v3952
    %v3954 = vpop.f32.mrb[0].mxu0
    %3955 = vmatprep.mubr.f32.mxu0 0.0
    %3956 = vmatmul.mubr.f32.gmra.mrb[0].mxu0 %v3802
    %v3957 = vpop.f32.mrb[0].mxu0
    %v3958 = vadd.f32 0.0, %v3957
    %v3959 = vpop.f32.mrb[0].mxu0
    %3960 = vmatprep.mubr.f32.mxu0 0.0
    %3961 = vmatmul.mubr.f32.gmra.mrb[0].mxu0 %v3805
    %v3962 = vpop.f32.mrb[0].mxu0
    %v3963 = vadd.f32 0.0, %v3962
    %v3964 = vpop.f32.mrb[0].mxu0
    %3965 = vmatprep.mubr.f32.mxu0 0.0
    %3966 = vmatmul.mubr.f32.gmra.mrb[0].mxu0 %v3808
    %v3967 = vpop.f32.mrb[0].mxu0
    %v3968 = vadd.f32 0.0, %v3967
    %v3969 = vpop.f32.mrb[0].mxu0
    %3970 = vmatprep.mubr.f32.mxu0 0.0
    %3971 = vmatmul.mubr.f32.gmra.mrb[0].mxu0 %v3811
    %v3972 = vpop.f32.mrb[0].mxu0
    %v3973 = vadd.f32 0.0, %v3972
    %v3974 = vpop.f32.mrb[0].mxu0
    %3975 = vmatprep.mubr.f32.mxu0 0.0
    %3976 = vmatmul.mubr.f32.gmra.mrb[0].mxu0 %v3814
    %v3977 = vpop.f32.mrb[0].mxu0
    %v3978 = vadd.f32 0.0, %v3977
    %v3979 = vpop.f32.mrb[0].mxu0
    %3980 = vmatprep.mubr.f32.mxu0 0.0
    %3981 = vmatmul.mubr.f32.gmra.mrb[0].mxu0 %v3817
    %v3982 = vpop.f32.mrb[0].mxu0
    %v3983 = vadd.f32 0.0, %v3982
    %v3984 = vpop.f32.mrb[0].mxu0
    %3985 = vmatprep.mubr.f32.mxu0 0.0
    %3986 = vmatmul.mubr.f32.gmra.mrb[0].mxu0 %v3820
    %v3987 = vpop.f32.mrb[0].mxu0
    %v3988 = vadd.f32 0.0, %v3987
    %v3989 = vpop.f32.mrb[0].mxu0
    %3990 = vmatprep.mubr.f32.mxu0 0.0
    %3991 = vmatmul.mubr.f32.gmra.mrb[0].mxu0 %v3823
    %v3992 = vpop.f32.mrb[0].mxu0
    %v3993 = vadd.f32 0.0, %v3992
    %v3994 = vpop.f32.mrb[0].mxu0
    %3995 = vmatprep.mubr.f32.mxu0 0.0
    %3996 = vmatmul.mubr.f32.gmra.mrb[0].mxu0 %v3826
    %v3997 = vpop.f32.mrb[0].mxu0
    %v3998 = vadd.f32 0.0, %v3997
    %v3999 = vpop.f32.mrb[0].mxu0
    %4000 = vmatprep.mubr.f32.mxu0 0.0
    %4001 = vmatmul.mubr.f32.gmra.mrb[0].mxu0 %v3829
    %v4002 = vpop.f32.mrb[0].mxu0
    %v4003 = vadd.f32 0.0, %v4002
    %v4004 = vpop.f32.mrb[0].mxu0
    %4005 = vmatprep.mubr.f32.mxu0 0.0
    %4006 = vmatmul.mubr.f32.gmra.mrb[0].mxu0 %v3832
    %v4007 = vpop.f32.mrb[0].mxu0
    %v4008 = vadd.f32 0.0, %v4007
    %v4009 = vpop.f32.mrb[0].mxu0
    %4010 = vmatprep.mubr.f32.mxu0 0.0
    %4011 = vmatmul.mubr.f32.gmra.mrb[0].mxu0 %v3835
    %v4012 = vpop.f32.mrb[0].mxu0
    %v4013 = vadd.f32 0.0, %v4012
    %v4014 = vpop.f32.mrb[0].mxu0
    %4015 = vmatprep.mubr.f32.mxu0 0.0
    %4016 = vmatmul.mubr.f32.gmra.mrb[0].mxu0 %v3838
    %v4017 = vpop.f32.mrb[0].mxu0
    %v4018 = vadd.f32 0.0, %v4017
    %v4019 = vpop.f32.mrb[0].mxu0
    %4020 = vmatprep.mubr.f32.mxu0 0.0
    %4021 = vmatmul.mubr.f32.gmra.mrb[0].mxu0 %v3841
    %v4022 = vpop.f32.mrb[0].mxu0
    %v4023 = vadd.f32 0.0, %v4022
    %v4024 = vpop.f32.mrb[0].mxu0
    %4025 = vmatprep.mubr.f32.mxu0 0.0
    %4026 = vmatmul.mubr.f32.gmra.mrb[0].mxu0 %v3844
    %v4027 = vpop.f32.mrb[0].mxu0
    %v4028 = vadd.f32 0.0, %v4027
    %v4029 = vpop.f32.mrb[0].mxu0
    %4030 = vdwg.mxu0
    %v4031 = vadd.f32 %v3721, %v3913
    %v4032 = vadd.f32 %v3722, %v3918
    %v4033 = vadd.f32 %v3723, %v3923
    %v4034 = vadd.f32 %v3724, %v3928
    %v4035 = vadd.f32 %v3725, %v3933
    %v4036 = vadd.f32 %v3726, %v3938
    %v4037 = vadd.f32 %v3727, %v3943
    %v4038 = vadd.f32 %v3728, %v3948
    %v4039 = vadd.f32 %v3729, %v3953
    %v4040 = vadd.f32 %v3730, %v3958
    %v4041 = vadd.f32 %v3731, %v3963
    %v4042 = vadd.f32 %v3732, %v3968
    %v4043 = vadd.f32 %v3733, %v3973
    %v4044 = vadd.f32 %v3734, %v3978
    %v4045 = vadd.f32 %v3735, %v3983
    %v4046 = vadd.f32 %v3736, %v3988
    %v4047 = vadd.f32 %v3737, %v3993
    %v4048 = vadd.f32 %v3738, %v3998
    %v4049 = vadd.f32 %v3739, %v4003
    %v4050 = vadd.f32 %v3740, %v4008
    %v4051 = vadd.f32 %v3741, %v4013
    %v4052 = vadd.f32 %v3742, %v4018
    %v4053 = vadd.f32 %v3743, %v4023
    %v4054 = vadd.f32 %v3744, %v4028
    %v4055 = vld [vmem:[#allocation2 + $0xf] sm:$0xff]
    %v4056 = vld [vmem:[#allocation2 + $0x17] sm:$0xff]
    %v4057 = vld [vmem:[#allocation2 + $0x1f] sm:$0xff]
    %v4058 = vld [vmem:[#allocation2 + $0x27] sm:$0xff]
    %v4059 = vld [vmem:[#allocation2 + $0x2f] sm:$0xff]
    %v4060 = vld [vmem:[#allocation2 + $0x37] sm:$0xff]
    %v4061 = vld [vmem:[#allocation2 + $0x3f] sm:$0xff]
    %v4062 = vld [vmem:[#allocation2 + $0x47] sm:$0xff]
    %v4063 = vld [vmem:[#allocation2 + $0x4f] sm:$0xff]
    %v4064 = vld [vmem:[#allocation2 + $0x57] sm:$0xff]
    %v4065 = vld [vmem:[#allocation2 + $0x5f] sm:$0xff]
    %v4066 = vld [vmem:[#allocation2 + $0x67] sm:$0xff]
    %v4067 = vld [vmem:[#allocation2 + $0xa7] sm:$0xff]
    %v4068 = vld [vmem:[#allocation2 + $0xaf] sm:$0xff]
    %v4069 = vld [vmem:[#allocation2 + $0xb7] sm:$0xff]
    %v4070 = vld [vmem:[#allocation2 + $0xbf] sm:$0xff]
    %v4071 = vld [vmem:[#allocation2 + $0xc7] sm:$0xff]
    %v4072 = vld [vmem:[#allocation2 + $0xcf] sm:$0xff]
    %v4073 = vld [vmem:[#allocation2 + $0xd7] sm:$0xff]
    %v4074 = vld [vmem:[#allocation2 + $0xdf] sm:$0xff]
    %v4075 = vld [vmem:[#allocation2 + $0xe7] sm:$0xff]
    %v4076 = vld [vmem:[#allocation2 + $0xef] sm:$0xff]
    %v4077 = vld [vmem:[#allocation2 + $0xf7] sm:$0xff]
    %v4078 = vld [vmem:[#allocation2 + $0xff] sm:$0xff]
    %s4079 = scalar_lea.vmem %s3, 256
    %v4080 = vld [vmem:[%s4079] sm:$0xff]
    %v4081 = vld [vmem:[%s4079 + $0x8] sm:$0xff]
    %v4082 = vld [vmem:[%s4079 + $0x10] sm:$0xff]
    %v4083 = vld [vmem:[%s4079 + $0x18] sm:$0xff]
    %v4085 = vsel %vm181, %v4055, 0
    %v4088 = vsel %vm181, %v4056, 0
    %v4091 = vsel %vm181, %v4057, 0
    %v4094 = vsel %vm181, %v4058, 0
    %v4097 = vsel %vm181, %v4059, 0
    %v4100 = vsel %vm181, %v4060, 0
    %v4103 = vsel %vm181, %v4061, 0
    %v4106 = vsel %vm181, %v4062, 0
    %v4109 = vsel %vm181, %v4063, 0
    %v4112 = vsel %vm181, %v4064, 0
    %v4115 = vsel %vm181, %v4065, 0
    %v4118 = vsel %vm181, %v4066, 0
    %v4121 = vsel %vm181, %v4067, 0
    %v4124 = vsel %vm181, %v4068, 0
    %v4127 = vsel %vm181, %v4069, 0
    %v4130 = vsel %vm181, %v4070, 0
    %v4133 = vsel %vm181, %v4071, 0
    %v4136 = vsel %vm181, %v4072, 0
    %v4139 = vsel %vm181, %v4073, 0
    %v4142 = vsel %vm181, %v4074, 0
    %v4145 = vsel %vm181, %v4075, 0
    %v4148 = vsel %vm181, %v4076, 0
    %v4151 = vsel %vm181, %v4077, 0
    %v4154 = vsel %vm181, %v4078, 0
    %4156 = vmatprep.subr.mxu0 0.0
    %4157 = vmatpush1.msra.mxu0 %v4080
    %4158 = vmatprep.subr.mxu0 0.0
    %4159 = vmatpush1.msra.mxu0 %v4081
    %4160 = vmatprep.subr.mxu0 0.0
    %4161 = vmatpush1.msra.mxu0 %v4082
    %4162 = vmatprep.subr.mxu0 0.0
    %4163 = vmatpush1.msra.mxu0 %v4083
    %4164 = vmatprep.subr.mxu0 0.0
    %4165 = vmatpush1.msra.mxu0 0.0
    %4166 = vmatprep.subr.mxu0 0.0
    %4167 = vmatpush1.msra.mxu0 0.0
    %4168 = vmatprep.subr.mxu0 0.0
    %4169 = vmatpush1.msra.mxu0 0.0
    %4170 = vmatprep.subr.mxu0 0.0
    %4171 = vmatpush1.msra.mxu0 0.0
    %4172 = vmatprep.subr.mxu0 0.0
    %4173 = vmatpush1.msra.mxu0 0.0
    %4174 = vmatprep.subr.mxu0 0.0
    %4175 = vmatpush1.msra.mxu0 0.0
    %4176 = vmatprep.subr.mxu0 0.0
    %4177 = vmatpush1.msra.mxu0 0.0
    %4178 = vmatprep.subr.mxu0 0.0
    %4179 = vmatpush1.msra.mxu0 0.0
    %4180 = vmatprep.subr.mxu0 0.0
    %4181 = vmatpush1.msra.mxu0 0.0
    %4182 = vmatprep.subr.mxu0 0.0
    %4183 = vmatpush1.msra.mxu0 0.0
    %4184 = vmatprep.subr.mxu0 0.0
    %4185 = vmatpush1.msra.mxu0 0.0
    %4186 = vmatprep.subr.mxu0 0.0
    %4187 = vmatpush1.msra.mxu0 0.0
    %4188 = vmatprep.subr.mxu0 0.0
    %4189 = vmatpush1.msra.mxu0 0.0
    %4190 = vmatprep.subr.mxu0 0.0
    %4191 = vmatpush1.msra.mxu0 0.0
    %4192 = vmatprep.subr.mxu0 0.0
    %4193 = vmatpush1.msra.mxu0 0.0
    %4194 = vmatprep.subr.mxu0 0.0
    %4195 = vmatpush1.msra.mxu0 0.0
    %4196 = vmatprep.subr.mxu0 0.0
    %4197 = vmatpush1.msra.mxu0 0.0
    %4198 = vmatprep.subr.mxu0 0.0
    %4199 = vmatpush1.msra.mxu0 0.0
    %4200 = vmatprep.subr.mxu0 0.0
    %4201 = vmatpush1.msra.mxu0 0.0
    %4202 = vmatprep.subr.mxu0 0.0
    %4203 = vmatpush1.msra.mxu0 0.0
    %4204 = vmatprep.subr.mxu0 0.0
    %4205 = vmatpush1.msra.mxu0 0.0
    %4206 = vmatprep.subr.mxu0 0.0
    %4207 = vmatpush1.msra.mxu0 0.0
    %4208 = vmatprep.subr.mxu0 0.0
    %4209 = vmatpush1.msra.mxu0 0.0
    %4210 = vmatprep.subr.mxu0 0.0
    %4211 = vmatpush1.msra.mxu0 0.0
    %4212 = vmatprep.subr.mxu0 0.0
    %4213 = vmatpush1.msra.mxu0 0.0
    %4214 = vmatprep.subr.mxu0 0.0
    %4215 = vmatpush1.msra.mxu0 0.0
    %4216 = vmatprep.subr.mxu0 0.0
    %4217 = vmatpush1.msra.mxu0 0.0
    %4218 = vmatprep.subr.mxu0 0.0
    %4219 = vmatpush1.msra.mxu0 0.0
    %4220 = vmatprep.mubr.f32.mxu0 0.0
    %4221 = vmatmul.mubr.f32.gmra.mrb[0].mxu0 %v4085
    %v4222 = vpop.f32.mrb[0].mxu0
    %v4223 = vadd.f32 0.0, %v4222
    %v4224 = vpop.f32.mrb[0].mxu0
    %4225 = vmatprep.mubr.f32.mxu0 0.0
    %4226 = vmatmul.mubr.f32.gmra.mrb[0].mxu0 %v4088
    %v4227 = vpop.f32.mrb[0].mxu0
    %v4228 = vadd.f32 0.0, %v4227
    %v4229 = vpop.f32.mrb[0].mxu0
    %4230 = vmatprep.mubr.f32.mxu0 0.0
    %4231 = vmatmul.mubr.f32.gmra.mrb[0].mxu0 %v4091
    %v4232 = vpop.f32.mrb[0].mxu0
    %v4233 = vadd.f32 0.0, %v4232
    %v4234 = vpop.f32.mrb[0].mxu0
    %4235 = vmatprep.mubr.f32.mxu0 0.0
    %4236 = vmatmul.mubr.f32.gmra.mrb[0].mxu0 %v4094
    %v4237 = vpop.f32.mrb[0].mxu0
    %v4238 = vadd.f32 0.0, %v4237
    %v4239 = vpop.f32.mrb[0].mxu0
    %4240 = vmatprep.mubr.f32.mxu0 0.0
    %4241 = vmatmul.mubr.f32.gmra.mrb[0].mxu0 %v4097
    %v4242 = vpop.f32.mrb[0].mxu0
    %v4243 = vadd.f32 0.0, %v4242
    %v4244 = vpop.f32.mrb[0].mxu0
    %4245 = vmatprep.mubr.f32.mxu0 0.0
    %4246 = vmatmul.mubr.f32.gmra.mrb[0].mxu0 %v4100
    %v4247 = vpop.f32.mrb[0].mxu0
    %v4248 = vadd.f32 0.0, %v4247
    %v4249 = vpop.f32.mrb[0].mxu0
    %4250 = vmatprep.mubr.f32.mxu0 0.0
    %4251 = vmatmul.mubr.f32.gmra.mrb[0].mxu0 %v4103
    %v4252 = vpop.f32.mrb[0].mxu0
    %v4253 = vadd.f32 0.0, %v4252
    %v4254 = vpop.f32.mrb[0].mxu0
    %4255 = vmatprep.mubr.f32.mxu0 0.0
    %4256 = vmatmul.mubr.f32.gmra.mrb[0].mxu0 %v4106
    %v4257 = vpop.f32.mrb[0].mxu0
    %v4258 = vadd.f32 0.0, %v4257
    %v4259 = vpop.f32.mrb[0].mxu0
    %4260 = vmatprep.mubr.f32.mxu0 0.0
    %4261 = vmatmul.mubr.f32.gmra.mrb[0].mxu0 %v4109
    %v4262 = vpop.f32.mrb[0].mxu0
    %v4263 = vadd.f32 0.0, %v4262
    %v4264 = vpop.f32.mrb[0].mxu0
    %4265 = vmatprep.mubr.f32.mxu0 0.0
    %4266 = vmatmul.mubr.f32.gmra.mrb[0].mxu0 %v4112
    %v4267 = vpop.f32.mrb[0].mxu0
    %v4268 = vadd.f32 0.0, %v4267
    %v4269 = vpop.f32.mrb[0].mxu0
    %4270 = vmatprep.mubr.f32.mxu0 0.0
    %4271 = vmatmul.mubr.f32.gmra.mrb[0].mxu0 %v4115
    %v4272 = vpop.f32.mrb[0].mxu0
    %v4273 = vadd.f32 0.0, %v4272
    %v4274 = vpop.f32.mrb[0].mxu0
    %4275 = vmatprep.mubr.f32.mxu0 0.0
    %4276 = vmatmul.mubr.f32.gmra.mrb[0].mxu0 %v4118
    %v4277 = vpop.f32.mrb[0].mxu0
    %v4278 = vadd.f32 0.0, %v4277
    %v4279 = vpop.f32.mrb[0].mxu0
    %4280 = vmatprep.mubr.f32.mxu0 0.0
    %4281 = vmatmul.mubr.f32.gmra.mrb[0].mxu0 %v4121
    %v4282 = vpop.f32.mrb[0].mxu0
    %v4283 = vadd.f32 0.0, %v4282
    %v4284 = vpop.f32.mrb[0].mxu0
    %4285 = vmatprep.mubr.f32.mxu0 0.0
    %4286 = vmatmul.mubr.f32.gmra.mrb[0].mxu0 %v4124
    %v4287 = vpop.f32.mrb[0].mxu0
    %v4288 = vadd.f32 0.0, %v4287
    %v4289 = vpop.f32.mrb[0].mxu0
    %4290 = vmatprep.mubr.f32.mxu0 0.0
    %4291 = vmatmul.mubr.f32.gmra.mrb[0].mxu0 %v4127
    %v4292 = vpop.f32.mrb[0].mxu0
    %v4293 = vadd.f32 0.0, %v4292
    %v4294 = vpop.f32.mrb[0].mxu0
    %4295 = vmatprep.mubr.f32.mxu0 0.0
    %4296 = vmatmul.mubr.f32.gmra.mrb[0].mxu0 %v4130
    %v4297 = vpop.f32.mrb[0].mxu0
    %v4298 = vadd.f32 0.0, %v4297
    %v4299 = vpop.f32.mrb[0].mxu0
    %4300 = vmatprep.mubr.f32.mxu0 0.0
    %4301 = vmatmul.mubr.f32.gmra.mrb[0].mxu0 %v4133
    %v4302 = vpop.f32.mrb[0].mxu0
    %v4303 = vadd.f32 0.0, %v4302
    %v4304 = vpop.f32.mrb[0].mxu0
    %4305 = vmatprep.mubr.f32.mxu0 0.0
    %4306 = vmatmul.mubr.f32.gmra.mrb[0].mxu0 %v4136
    %v4307 = vpop.f32.mrb[0].mxu0
    %v4308 = vadd.f32 0.0, %v4307
    %v4309 = vpop.f32.mrb[0].mxu0
    %4310 = vmatprep.mubr.f32.mxu0 0.0
    %4311 = vmatmul.mubr.f32.gmra.mrb[0].mxu0 %v4139
    %v4312 = vpop.f32.mrb[0].mxu0
    %v4313 = vadd.f32 0.0, %v4312
    %v4314 = vpop.f32.mrb[0].mxu0
    %4315 = vmatprep.mubr.f32.mxu0 0.0
    %4316 = vmatmul.mubr.f32.gmra.mrb[0].mxu0 %v4142
    %v4317 = vpop.f32.mrb[0].mxu0
    %v4318 = vadd.f32 0.0, %v4317
    %v4319 = vpop.f32.mrb[0].mxu0
    %4320 = vmatprep.mubr.f32.mxu0 0.0
    %4321 = vmatmul.mubr.f32.gmra.mrb[0].mxu0 %v4145
    %v4322 = vpop.f32.mrb[0].mxu0
    %v4323 = vadd.f32 0.0, %v4322
    %v4324 = vpop.f32.mrb[0].mxu0
    %4325 = vmatprep.mubr.f32.mxu0 0.0
    %4326 = vmatmul.mubr.f32.gmra.mrb[0].mxu0 %v4148
    %v4327 = vpop.f32.mrb[0].mxu0
    %v4328 = vadd.f32 0.0, %v4327
    %v4329 = vpop.f32.mrb[0].mxu0
    %4330 = vmatprep.mubr.f32.mxu0 0.0
    %4331 = vmatmul.mubr.f32.gmra.mrb[0].mxu0 %v4151
    %v4332 = vpop.f32.mrb[0].mxu0
    %v4333 = vadd.f32 0.0, %v4332
    %v4334 = vpop.f32.mrb[0].mxu0
    %4335 = vmatprep.mubr.f32.mxu0 0.0
    %4336 = vmatmul.mubr.f32.gmra.mrb[0].mxu0 %v4154
    %v4337 = vpop.f32.mrb[0].mxu0
    %v4338 = vadd.f32 0.0, %v4337
    %v4339 = vpop.f32.mrb[0].mxu0
    %4340 = vdwg.mxu0
    %v4341 = vadd.f32 %v4031, %v4223
    %v4342 = vadd.f32 %v4032, %v4228
    %v4343 = vadd.f32 %v4033, %v4233
    %v4344 = vadd.f32 %v4034, %v4238
    %v4345 = vadd.f32 %v4035, %v4243
    %v4346 = vadd.f32 %v4036, %v4248
    %v4347 = vadd.f32 %v4037, %v4253
    %v4348 = vadd.f32 %v4038, %v4258
    %v4349 = vadd.f32 %v4039, %v4263
    %v4350 = vadd.f32 %v4040, %v4268
    %v4351 = vadd.f32 %v4041, %v4273
    %v4352 = vadd.f32 %v4042, %v4278
    %v4353 = vadd.f32 %v4043, %v4283
    %v4354 = vadd.f32 %v4044, %v4288
    %v4355 = vadd.f32 %v4045, %v4293
    %v4356 = vadd.f32 %v4046, %v4298
    %v4357 = vadd.f32 %v4047, %v4303
    %v4358 = vadd.f32 %v4048, %v4308
    %v4359 = vadd.f32 %v4049, %v4313
    %v4360 = vadd.f32 %v4050, %v4318
    %v4361 = vadd.f32 %v4051, %v4323
    %v4362 = vadd.f32 %v4052, %v4328
    %v4363 = vadd.f32 %v4053, %v4333
    %v4364 = vadd.f32 %v4054, %v4338
    %v4365 = vld [vmem:[#allocation2 + $0x10] sm:$0xff]
    %v4366 = vld [vmem:[#allocation2 + $0x18] sm:$0xff]
    %v4367 = vld [vmem:[#allocation2 + $0x20] sm:$0xff]
    %v4368 = vld [vmem:[#allocation2 + $0x28] sm:$0xff]
    %v4369 = vld [vmem:[#allocation2 + $0x30] sm:$0xff]
    %v4370 = vld [vmem:[#allocation2 + $0x38] sm:$0xff]
    %v4371 = vld [vmem:[#allocation2 + $0x40] sm:$0xff]
    %v4372 = vld [vmem:[#allocation2 + $0x48] sm:$0xff]
    %v4373 = vld [vmem:[#allocation2 + $0x50] sm:$0xff]
    %v4374 = vld [vmem:[#allocation2 + $0x58] sm:$0xff]
    %v4375 = vld [vmem:[#allocation2 + $0x60] sm:$0xff]
    %v4376 = vld [vmem:[#allocation2 + $0x68] sm:$0xff]
    %v4377 = vld [vmem:[#allocation2 + $0xa8] sm:$0xff]
    %v4378 = vld [vmem:[#allocation2 + $0xb0] sm:$0xff]
    %v4379 = vld [vmem:[#allocation2 + $0xb8] sm:$0xff]
    %v4380 = vld [vmem:[#allocation2 + $0xc0] sm:$0xff]
    %v4381 = vld [vmem:[#allocation2 + $0xc8] sm:$0xff]
    %v4382 = vld [vmem:[#allocation2 + $0xd0] sm:$0xff]
    %v4383 = vld [vmem:[#allocation2 + $0xd8] sm:$0xff]
    %v4384 = vld [vmem:[#allocation2 + $0xe0] sm:$0xff]
    %v4385 = vld [vmem:[#allocation2 + $0xe8] sm:$0xff]
    %v4386 = vld [vmem:[#allocation2 + $0xf0] sm:$0xff]
    %v4387 = vld [vmem:[#allocation2 + $0xf8] sm:$0xff]
    %v4388 = vld [vmem:[#allocation2 + $0x100] sm:$0xff]
    %s4389 = scalar_lea.vmem %s3, 288
    %v4390 = vld [vmem:[%s4389] sm:$0xff]
    %v4391 = vld [vmem:[%s4389 + $0x8] sm:$0xff]
    %v4392 = vld [vmem:[%s4389 + $0x10] sm:$0xff]
    %v4393 = vld [vmem:[%s4389 + $0x18] sm:$0xff]
    %v4395 = vsel %vm181, %v4365, 0
    %v4398 = vsel %vm181, %v4366, 0
    %v4401 = vsel %vm181, %v4367, 0
    %v4404 = vsel %vm181, %v4368, 0
    %v4407 = vsel %vm181, %v4369, 0
    %v4410 = vsel %vm181, %v4370, 0
    %v4413 = vsel %vm181, %v4371, 0
    %v4416 = vsel %vm181, %v4372, 0
    %v4419 = vsel %vm181, %v4373, 0
    %v4422 = vsel %vm181, %v4374, 0
    %v4425 = vsel %vm181, %v4375, 0
    %v4428 = vsel %vm181, %v4376, 0
    %v4431 = vsel %vm181, %v4377, 0
    %v4434 = vsel %vm181, %v4378, 0
    %v4437 = vsel %vm181, %v4379, 0
    %v4440 = vsel %vm181, %v4380, 0
    %v4443 = vsel %vm181, %v4381, 0
    %v4446 = vsel %vm181, %v4382, 0
    %v4449 = vsel %vm181, %v4383, 0
    %v4452 = vsel %vm181, %v4384, 0
    %v4455 = vsel %vm181, %v4385, 0
    %v4458 = vsel %vm181, %v4386, 0
    %v4461 = vsel %vm181, %v4387, 0
    %v4464 = vsel %vm181, %v4388, 0
    %4466 = vmatprep.subr.mxu0 0.0
    %4467 = vmatpush1.msra.mxu0 %v4390
    %4468 = vmatprep.subr.mxu0 0.0
    %4469 = vmatpush1.msra.mxu0 %v4391
    %4470 = vmatprep.subr.mxu0 0.0
    %4471 = vmatpush1.msra.mxu0 %v4392
    %4472 = vmatprep.subr.mxu0 0.0
    %4473 = vmatpush1.msra.mxu0 %v4393
    %4474 = vmatprep.subr.mxu0 0.0
    %4475 = vmatpush1.msra.mxu0 0.0
    %4476 = vmatprep.subr.mxu0 0.0
    %4477 = vmatpush1.msra.mxu0 0.0
    %4478 = vmatprep.subr.mxu0 0.0
    %4479 = vmatpush1.msra.mxu0 0.0
    %4480 = vmatprep.subr.mxu0 0.0
    %4481 = vmatpush1.msra.mxu0 0.0
    %4482 = vmatprep.subr.mxu0 0.0
    %4483 = vmatpush1.msra.mxu0 0.0
    %4484 = vmatprep.subr.mxu0 0.0
    %4485 = vmatpush1.msra.mxu0 0.0
    %4486 = vmatprep.subr.mxu0 0.0
    %4487 = vmatpush1.msra.mxu0 0.0
    %4488 = vmatprep.subr.mxu0 0.0
    %4489 = vmatpush1.msra.mxu0 0.0
    %4490 = vmatprep.subr.mxu0 0.0
    %4491 = vmatpush1.msra.mxu0 0.0
    %4492 = vmatprep.subr.mxu0 0.0
    %4493 = vmatpush1.msra.mxu0 0.0
    %4494 = vmatprep.subr.mxu0 0.0
    %4495 = vmatpush1.msra.mxu0 0.0
    %4496 = vmatprep.subr.mxu0 0.0
    %4497 = vmatpush1.msra.mxu0 0.0
    %4498 = vmatprep.subr.mxu0 0.0
    %4499 = vmatpush1.msra.mxu0 0.0
    %4500 = vmatprep.subr.mxu0 0.0
    %4501 = vmatpush1.msra.mxu0 0.0
    %4502 = vmatprep.subr.mxu0 0.0
    %4503 = vmatpush1.msra.mxu0 0.0
    %4504 = vmatprep.subr.mxu0 0.0
    %4505 = vmatpush1.msra.mxu0 0.0
    %4506 = vmatprep.subr.mxu0 0.0
    %4507 = vmatpush1.msra.mxu0 0.0
    %4508 = vmatprep.subr.mxu0 0.0
    %4509 = vmatpush1.msra.mxu0 0.0
    %4510 = vmatprep.subr.mxu0 0.0
    %4511 = vmatpush1.msra.mxu0 0.0
    %4512 = vmatprep.subr.mxu0 0.0
    %4513 = vmatpush1.msra.mxu0 0.0
    %4514 = vmatprep.subr.mxu0 0.0
    %4515 = vmatpush1.msra.mxu0 0.0
    %4516 = vmatprep.subr.mxu0 0.0
    %4517 = vmatpush1.msra.mxu0 0.0
    %4518 = vmatprep.subr.mxu0 0.0
    %4519 = vmatpush1.msra.mxu0 0.0
    %4520 = vmatprep.subr.mxu0 0.0
    %4521 = vmatpush1.msra.mxu0 0.0
    %4522 = vmatprep.subr.mxu0 0.0
    %4523 = vmatpush1.msra.mxu0 0.0
    %4524 = vmatprep.subr.mxu0 0.0
    %4525 = vmatpush1.msra.mxu0 0.0
    %4526 = vmatprep.subr.mxu0 0.0
    %4527 = vmatpush1.msra.mxu0 0.0
    %4528 = vmatprep.subr.mxu0 0.0
    %4529 = vmatpush1.msra.mxu0 0.0
    %4530 = vmatprep.mubr.f32.mxu0 0.0
    %4531 = vmatmul.mubr.f32.gmra.mrb[0].mxu0 %v4395
    %v4532 = vpop.f32.mrb[0].mxu0
    %v4533 = vadd.f32 0.0, %v4532
    %v4534 = vpop.f32.mrb[0].mxu0
    %4535 = vmatprep.mubr.f32.mxu0 0.0
    %4536 = vmatmul.mubr.f32.gmra.mrb[0].mxu0 %v4398
    %v4537 = vpop.f32.mrb[0].mxu0
    %v4538 = vadd.f32 0.0, %v4537
    %v4539 = vpop.f32.mrb[0].mxu0
    %4540 = vmatprep.mubr.f32.mxu0 0.0
    %4541 = vmatmul.mubr.f32.gmra.mrb[0].mxu0 %v4401
    %v4542 = vpop.f32.mrb[0].mxu0
    %v4543 = vadd.f32 0.0, %v4542
    %v4544 = vpop.f32.mrb[0].mxu0
    %4545 = vmatprep.mubr.f32.mxu0 0.0
    %4546 = vmatmul.mubr.f32.gmra.mrb[0].mxu0 %v4404
    %v4547 = vpop.f32.mrb[0].mxu0
    %v4548 = vadd.f32 0.0, %v4547
    %v4549 = vpop.f32.mrb[0].mxu0
    %4550 = vmatprep.mubr.f32.mxu0 0.0
    %4551 = vmatmul.mubr.f32.gmra.mrb[0].mxu0 %v4407
    %v4552 = vpop.f32.mrb[0].mxu0
    %v4553 = vadd.f32 0.0, %v4552
    %v4554 = vpop.f32.mrb[0].mxu0
    %4555 = vmatprep.mubr.f32.mxu0 0.0
    %4556 = vmatmul.mubr.f32.gmra.mrb[0].mxu0 %v4410
    %v4557 = vpop.f32.mrb[0].mxu0
    %v4558 = vadd.f32 0.0, %v4557
    %v4559 = vpop.f32.mrb[0].mxu0
    %4560 = vmatprep.mubr.f32.mxu0 0.0
    %4561 = vmatmul.mubr.f32.gmra.mrb[0].mxu0 %v4413
    %v4562 = vpop.f32.mrb[0].mxu0
    %v4563 = vadd.f32 0.0, %v4562
    %v4564 = vpop.f32.mrb[0].mxu0
    %4565 = vmatprep.mubr.f32.mxu0 0.0
    %4566 = vmatmul.mubr.f32.gmra.mrb[0].mxu0 %v4416
    %v4567 = vpop.f32.mrb[0].mxu0
    %v4568 = vadd.f32 0.0, %v4567
    %v4569 = vpop.f32.mrb[0].mxu0
    %4570 = vmatprep.mubr.f32.mxu0 0.0
    %4571 = vmatmul.mubr.f32.gmra.mrb[0].mxu0 %v4419
    %v4572 = vpop.f32.mrb[0].mxu0
    %v4573 = vadd.f32 0.0, %v4572
    %v4574 = vpop.f32.mrb[0].mxu0
    %4575 = vmatprep.mubr.f32.mxu0 0.0
    %4576 = vmatmul.mubr.f32.gmra.mrb[0].mxu0 %v4422
    %v4577 = vpop.f32.mrb[0].mxu0
    %v4578 = vadd.f32 0.0, %v4577
    %v4579 = vpop.f32.mrb[0].mxu0
    %4580 = vmatprep.mubr.f32.mxu0 0.0
    %4581 = vmatmul.mubr.f32.gmra.mrb[0].mxu0 %v4425
    %v4582 = vpop.f32.mrb[0].mxu0
    %v4583 = vadd.f32 0.0, %v4582
    %v4584 = vpop.f32.mrb[0].mxu0
    %4585 = vmatprep.mubr.f32.mxu0 0.0
    %4586 = vmatmul.mubr.f32.gmra.mrb[0].mxu0 %v4428
    %v4587 = vpop.f32.mrb[0].mxu0
    %v4588 = vadd.f32 0.0, %v4587
    %v4589 = vpop.f32.mrb[0].mxu0
    %4590 = vmatprep.mubr.f32.mxu0 0.0
    %4591 = vmatmul.mubr.f32.gmra.mrb[0].mxu0 %v4431
    %v4592 = vpop.f32.mrb[0].mxu0
    %v4593 = vadd.f32 0.0, %v4592
    %v4594 = vpop.f32.mrb[0].mxu0
    %4595 = vmatprep.mubr.f32.mxu0 0.0
    %4596 = vmatmul.mubr.f32.gmra.mrb[0].mxu0 %v4434
    %v4597 = vpop.f32.mrb[0].mxu0
    %v4598 = vadd.f32 0.0, %v4597
    %v4599 = vpop.f32.mrb[0].mxu0
    %4600 = vmatprep.mubr.f32.mxu0 0.0
    %4601 = vmatmul.mubr.f32.gmra.mrb[0].mxu0 %v4437
    %v4602 = vpop.f32.mrb[0].mxu0
    %v4603 = vadd.f32 0.0, %v4602
    %v4604 = vpop.f32.mrb[0].mxu0
    %4605 = vmatprep.mubr.f32.mxu0 0.0
    %4606 = vmatmul.mubr.f32.gmra.mrb[0].mxu0 %v4440
    %v4607 = vpop.f32.mrb[0].mxu0
    %v4608 = vadd.f32 0.0, %v4607
    %v4609 = vpop.f32.mrb[0].mxu0
    %4610 = vmatprep.mubr.f32.mxu0 0.0
    %4611 = vmatmul.mubr.f32.gmra.mrb[0].mxu0 %v4443
    %v4612 = vpop.f32.mrb[0].mxu0
    %v4613 = vadd.f32 0.0, %v4612
    %v4614 = vpop.f32.mrb[0].mxu0
    %4615 = vmatprep.mubr.f32.mxu0 0.0
    %4616 = vmatmul.mubr.f32.gmra.mrb[0].mxu0 %v4446
    %v4617 = vpop.f32.mrb[0].mxu0
    %v4618 = vadd.f32 0.0, %v4617
    %v4619 = vpop.f32.mrb[0].mxu0
    %4620 = vmatprep.mubr.f32.mxu0 0.0
    %4621 = vmatmul.mubr.f32.gmra.mrb[0].mxu0 %v4449
    %v4622 = vpop.f32.mrb[0].mxu0
    %v4623 = vadd.f32 0.0, %v4622
    %v4624 = vpop.f32.mrb[0].mxu0
    %4625 = vmatprep.mubr.f32.mxu0 0.0
    %4626 = vmatmul.mubr.f32.gmra.mrb[0].mxu0 %v4452
    %v4627 = vpop.f32.mrb[0].mxu0
    %v4628 = vadd.f32 0.0, %v4627
    %v4629 = vpop.f32.mrb[0].mxu0
    %4630 = vmatprep.mubr.f32.mxu0 0.0
    %4631 = vmatmul.mubr.f32.gmra.mrb[0].mxu0 %v4455
    %v4632 = vpop.f32.mrb[0].mxu0
    %v4633 = vadd.f32 0.0, %v4632
    %v4634 = vpop.f32.mrb[0].mxu0
    %4635 = vmatprep.mubr.f32.mxu0 0.0
    %4636 = vmatmul.mubr.f32.gmra.mrb[0].mxu0 %v4458
    %v4637 = vpop.f32.mrb[0].mxu0
    %v4638 = vadd.f32 0.0, %v4637
    %v4639 = vpop.f32.mrb[0].mxu0
    %4640 = vmatprep.mubr.f32.mxu0 0.0
    %4641 = vmatmul.mubr.f32.gmra.mrb[0].mxu0 %v4461
    %v4642 = vpop.f32.mrb[0].mxu0
    %v4643 = vadd.f32 0.0, %v4642
    %v4644 = vpop.f32.mrb[0].mxu0
    %4645 = vmatprep.mubr.f32.mxu0 0.0
    %4646 = vmatmul.mubr.f32.gmra.mrb[0].mxu0 %v4464
    %v4647 = vpop.f32.mrb[0].mxu0
    %v4648 = vadd.f32 0.0, %v4647
    %v4649 = vpop.f32.mrb[0].mxu0
    %4650 = vdwg.mxu0
    %v4651 = vadd.f32 %v4341, %v4533
    %v4652 = vadd.f32 %v4342, %v4538
    %v4653 = vadd.f32 %v4343, %v4543
    %v4654 = vadd.f32 %v4344, %v4548
    %v4655 = vadd.f32 %v4345, %v4553
    %v4656 = vadd.f32 %v4346, %v4558
    %v4657 = vadd.f32 %v4347, %v4563
    %v4658 = vadd.f32 %v4348, %v4568
    %v4659 = vadd.f32 %v4349, %v4573
    %v4660 = vadd.f32 %v4350, %v4578
    %v4661 = vadd.f32 %v4351, %v4583
    %v4662 = vadd.f32 %v4352, %v4588
    %v4663 = vadd.f32 %v4353, %v4593
    %v4664 = vadd.f32 %v4354, %v4598
    %v4665 = vadd.f32 %v4355, %v4603
    %v4666 = vadd.f32 %v4356, %v4608
    %v4667 = vadd.f32 %v4357, %v4613
    %v4668 = vadd.f32 %v4358, %v4618
    %v4669 = vadd.f32 %v4359, %v4623
    %v4670 = vadd.f32 %v4360, %v4628
    %v4671 = vadd.f32 %v4361, %v4633
    %v4672 = vadd.f32 %v4362, %v4638
    %v4673 = vadd.f32 %v4363, %v4643
    %v4674 = vadd.f32 %v4364, %v4648
    %v4675 = vld [vmem:[#allocation2 + $0x18] sm:$0xff]
    %v4676 = vld [vmem:[#allocation2 + $0x20] sm:$0xff]
    %v4677 = vld [vmem:[#allocation2 + $0x28] sm:$0xff]
    %v4678 = vld [vmem:[#allocation2 + $0x30] sm:$0xff]
    %v4679 = vld [vmem:[#allocation2 + $0x38] sm:$0xff]
    %v4680 = vld [vmem:[#allocation2 + $0x40] sm:$0xff]
    %v4681 = vld [vmem:[#allocation2 + $0x48] sm:$0xff]
    %v4682 = vld [vmem:[#allocation2 + $0x50] sm:$0xff]
    %v4683 = vld [vmem:[#allocation2 + $0x58] sm:$0xff]
    %v4684 = vld [vmem:[#allocation2 + $0x60] sm:$0xff]
    %v4685 = vld [vmem:[#allocation2 + $0x68] sm:$0xff]
    %v4686 = vld [vmem:[#allocation2 + $0x70] sm:$0xff]
    %v4687 = vld [vmem:[#allocation2 + $0xb0] sm:$0xff]
    %v4688 = vld [vmem:[#allocation2 + $0xb8] sm:$0xff]
    %v4689 = vld [vmem:[#allocation2 + $0xc0] sm:$0xff]
    %v4690 = vld [vmem:[#allocation2 + $0xc8] sm:$0xff]
    %v4691 = vld [vmem:[#allocation2 + $0xd0] sm:$0xff]
    %v4692 = vld [vmem:[#allocation2 + $0xd8] sm:$0xff]
    %v4693 = vld [vmem:[#allocation2 + $0xe0] sm:$0xff]
    %v4694 = vld [vmem:[#allocation2 + $0xe8] sm:$0xff]
    %v4695 = vld [vmem:[#allocation2 + $0xf0] sm:$0xff]
    %v4696 = vld [vmem:[#allocation2 + $0xf8] sm:$0xff]
    %v4697 = vld [vmem:[#allocation2 + $0x100] sm:$0xff]
    %v4698 = vld [vmem:[#allocation2 + $0x108] sm:$0xff]
    %s4699 = scalar_lea.vmem %s3, 320
    %v4700 = vld [vmem:[%s4699] sm:$0xff]
    %v4701 = vld [vmem:[%s4699 + $0x8] sm:$0xff]
    %v4702 = vld [vmem:[%s4699 + $0x10] sm:$0xff]
    %v4703 = vld [vmem:[%s4699 + $0x18] sm:$0xff]
    %v4705 = vsel %vm181, %v4675, 0
    %v4708 = vsel %vm181, %v4676, 0
    %v4711 = vsel %vm181, %v4677, 0
    %v4714 = vsel %vm181, %v4678, 0
    %v4717 = vsel %vm181, %v4679, 0
    %v4720 = vsel %vm181, %v4680, 0
    %v4723 = vsel %vm181, %v4681, 0
    %v4726 = vsel %vm181, %v4682, 0
    %v4729 = vsel %vm181, %v4683, 0
    %v4732 = vsel %vm181, %v4684, 0
    %v4735 = vsel %vm181, %v4685, 0
    %v4738 = vsel %vm181, %v4686, 0
    %v4741 = vsel %vm181, %v4687, 0
    %v4744 = vsel %vm181, %v4688, 0
    %v4747 = vsel %vm181, %v4689, 0
    %v4750 = vsel %vm181, %v4690, 0
    %v4753 = vsel %vm181, %v4691, 0
    %v4756 = vsel %vm181, %v4692, 0
    %v4759 = vsel %vm181, %v4693, 0
    %v4762 = vsel %vm181, %v4694, 0
    %v4765 = vsel %vm181, %v4695, 0
    %v4768 = vsel %vm181, %v4696, 0
    %v4771 = vsel %vm181, %v4697, 0
    %v4774 = vsel %vm181, %v4698, 0
    %4776 = vmatprep.subr.mxu0 0.0
    %4777 = vmatpush1.msra.mxu0 %v4700
    %4778 = vmatprep.subr.mxu0 0.0
    %4779 = vmatpush1.msra.mxu0 %v4701
    %4780 = vmatprep.subr.mxu0 0.0
    %4781 = vmatpush1.msra.mxu0 %v4702
    %4782 = vmatprep.subr.mxu0 0.0
    %4783 = vmatpush1.msra.mxu0 %v4703
    %4784 = vmatprep.subr.mxu0 0.0
    %4785 = vmatpush1.msra.mxu0 0.0
    %4786 = vmatprep.subr.mxu0 0.0
    %4787 = vmatpush1.msra.mxu0 0.0
    %4788 = vmatprep.subr.mxu0 0.0
    %4789 = vmatpush1.msra.mxu0 0.0
    %4790 = vmatprep.subr.mxu0 0.0
    %4791 = vmatpush1.msra.mxu0 0.0
    %4792 = vmatprep.subr.mxu0 0.0
    %4793 = vmatpush1.msra.mxu0 0.0
    %4794 = vmatprep.subr.mxu0 0.0
    %4795 = vmatpush1.msra.mxu0 0.0
    %4796 = vmatprep.subr.mxu0 0.0
    %4797 = vmatpush1.msra.mxu0 0.0
    %4798 = vmatprep.subr.mxu0 0.0
    %4799 = vmatpush1.msra.mxu0 0.0
    %4800 = vmatprep.subr.mxu0 0.0
    %4801 = vmatpush1.msra.mxu0 0.0
    %4802 = vmatprep.subr.mxu0 0.0
    %4803 = vmatpush1.msra.mxu0 0.0
    %4804 = vmatprep.subr.mxu0 0.0
    %4805 = vmatpush1.msra.mxu0 0.0
    %4806 = vmatprep.subr.mxu0 0.0
    %4807 = vmatpush1.msra.mxu0 0.0
    %4808 = vmatprep.subr.mxu0 0.0
    %4809 = vmatpush1.msra.mxu0 0.0
    %4810 = vmatprep.subr.mxu0 0.0
    %4811 = vmatpush1.msra.mxu0 0.0
    %4812 = vmatprep.subr.mxu0 0.0
    %4813 = vmatpush1.msra.mxu0 0.0
    %4814 = vmatprep.subr.mxu0 0.0
    %4815 = vmatpush1.msra.mxu0 0.0
    %4816 = vmatprep.subr.mxu0 0.0
    %4817 = vmatpush1.msra.mxu0 0.0
    %4818 = vmatprep.subr.mxu0 0.0
    %4819 = vmatpush1.msra.mxu0 0.0
    %4820 = vmatprep.subr.mxu0 0.0
    %4821 = vmatpush1.msra.mxu0 0.0
    %4822 = vmatprep.subr.mxu0 0.0
    %4823 = vmatpush1.msra.mxu0 0.0
    %4824 = vmatprep.subr.mxu0 0.0
    %4825 = vmatpush1.msra.mxu0 0.0
    %4826 = vmatprep.subr.mxu0 0.0
    %4827 = vmatpush1.msra.mxu0 0.0
    %4828 = vmatprep.subr.mxu0 0.0
    %4829 = vmatpush1.msra.mxu0 0.0
    %4830 = vmatprep.subr.mxu0 0.0
    %4831 = vmatpush1.msra.mxu0 0.0
    %4832 = vmatprep.subr.mxu0 0.0
    %4833 = vmatpush1.msra.mxu0 0.0
    %4834 = vmatprep.subr.mxu0 0.0
    %4835 = vmatpush1.msra.mxu0 0.0
    %4836 = vmatprep.subr.mxu0 0.0
    %4837 = vmatpush1.msra.mxu0 0.0
    %4838 = vmatprep.subr.mxu0 0.0
    %4839 = vmatpush1.msra.mxu0 0.0
    %4840 = vmatprep.mubr.f32.mxu0 0.0
    %4841 = vmatmul.mubr.f32.gmra.mrb[0].mxu0 %v4705
    %v4842 = vpop.f32.mrb[0].mxu0
    %v4843 = vadd.f32 0.0, %v4842
    %v4844 = vpop.f32.mrb[0].mxu0
    %4845 = vmatprep.mubr.f32.mxu0 0.0
    %4846 = vmatmul.mubr.f32.gmra.mrb[0].mxu0 %v4708
    %v4847 = vpop.f32.mrb[0].mxu0
    %v4848 = vadd.f32 0.0, %v4847
    %v4849 = vpop.f32.mrb[0].mxu0
    %4850 = vmatprep.mubr.f32.mxu0 0.0
    %4851 = vmatmul.mubr.f32.gmra.mrb[0].mxu0 %v4711
    %v4852 = vpop.f32.mrb[0].mxu0
    %v4853 = vadd.f32 0.0, %v4852
    %v4854 = vpop.f32.mrb[0].mxu0
    %4855 = vmatprep.mubr.f32.mxu0 0.0
    %4856 = vmatmul.mubr.f32.gmra.mrb[0].mxu0 %v4714
    %v4857 = vpop.f32.mrb[0].mxu0
    %v4858 = vadd.f32 0.0, %v4857
    %v4859 = vpop.f32.mrb[0].mxu0
    %4860 = vmatprep.mubr.f32.mxu0 0.0
    %4861 = vmatmul.mubr.f32.gmra.mrb[0].mxu0 %v4717
    %v4862 = vpop.f32.mrb[0].mxu0
    %v4863 = vadd.f32 0.0, %v4862
    %v4864 = vpop.f32.mrb[0].mxu0
    %4865 = vmatprep.mubr.f32.mxu0 0.0
    %4866 = vmatmul.mubr.f32.gmra.mrb[0].mxu0 %v4720
    %v4867 = vpop.f32.mrb[0].mxu0
    %v4868 = vadd.f32 0.0, %v4867
    %v4869 = vpop.f32.mrb[0].mxu0
    %4870 = vmatprep.mubr.f32.mxu0 0.0
    %4871 = vmatmul.mubr.f32.gmra.mrb[0].mxu0 %v4723
    %v4872 = vpop.f32.mrb[0].mxu0
    %v4873 = vadd.f32 0.0, %v4872
    %v4874 = vpop.f32.mrb[0].mxu0
    %4875 = vmatprep.mubr.f32.mxu0 0.0
    %4876 = vmatmul.mubr.f32.gmra.mrb[0].mxu0 %v4726
    %v4877 = vpop.f32.mrb[0].mxu0
    %v4878 = vadd.f32 0.0, %v4877
    %v4879 = vpop.f32.mrb[0].mxu0
    %4880 = vmatprep.mubr.f32.mxu0 0.0
    %4881 = vmatmul.mubr.f32.gmra.mrb[0].mxu0 %v4729
    %v4882 = vpop.f32.mrb[0].mxu0
    %v4883 = vadd.f32 0.0, %v4882
    %v4884 = vpop.f32.mrb[0].mxu0
    %4885 = vmatprep.mubr.f32.mxu0 0.0
    %4886 = vmatmul.mubr.f32.gmra.mrb[0].mxu0 %v4732
    %v4887 = vpop.f32.mrb[0].mxu0
    %v4888 = vadd.f32 0.0, %v4887
    %v4889 = vpop.f32.mrb[0].mxu0
    %4890 = vmatprep.mubr.f32.mxu0 0.0
    %4891 = vmatmul.mubr.f32.gmra.mrb[0].mxu0 %v4735
    %v4892 = vpop.f32.mrb[0].mxu0
    %v4893 = vadd.f32 0.0, %v4892
    %v4894 = vpop.f32.mrb[0].mxu0
    %4895 = vmatprep.mubr.f32.mxu0 0.0
    %4896 = vmatmul.mubr.f32.gmra.mrb[0].mxu0 %v4738
    %v4897 = vpop.f32.mrb[0].mxu0
    %v4898 = vadd.f32 0.0, %v4897
    %v4899 = vpop.f32.mrb[0].mxu0
    %4900 = vmatprep.mubr.f32.mxu0 0.0
    %4901 = vmatmul.mubr.f32.gmra.mrb[0].mxu0 %v4741
    %v4902 = vpop.f32.mrb[0].mxu0
    %v4903 = vadd.f32 0.0, %v4902
    %v4904 = vpop.f32.mrb[0].mxu0
    %4905 = vmatprep.mubr.f32.mxu0 0.0
    %4906 = vmatmul.mubr.f32.gmra.mrb[0].mxu0 %v4744
    %v4907 = vpop.f32.mrb[0].mxu0
    %v4908 = vadd.f32 0.0, %v4907
    %v4909 = vpop.f32.mrb[0].mxu0
    %4910 = vmatprep.mubr.f32.mxu0 0.0
    %4911 = vmatmul.mubr.f32.gmra.mrb[0].mxu0 %v4747
    %v4912 = vpop.f32.mrb[0].mxu0
    %v4913 = vadd.f32 0.0, %v4912
    %v4914 = vpop.f32.mrb[0].mxu0
    %4915 = vmatprep.mubr.f32.mxu0 0.0
    %4916 = vmatmul.mubr.f32.gmra.mrb[0].mxu0 %v4750
    %v4917 = vpop.f32.mrb[0].mxu0
    %v4918 = vadd.f32 0.0, %v4917
    %v4919 = vpop.f32.mrb[0].mxu0
    %4920 = vmatprep.mubr.f32.mxu0 0.0
    %4921 = vmatmul.mubr.f32.gmra.mrb[0].mxu0 %v4753
    %v4922 = vpop.f32.mrb[0].mxu0
    %v4923 = vadd.f32 0.0, %v4922
    %v4924 = vpop.f32.mrb[0].mxu0
    %4925 = vmatprep.mubr.f32.mxu0 0.0
    %4926 = vmatmul.mubr.f32.gmra.mrb[0].mxu0 %v4756
    %v4927 = vpop.f32.mrb[0].mxu0
    %v4928 = vadd.f32 0.0, %v4927
    %v4929 = vpop.f32.mrb[0].mxu0
    %4930 = vmatprep.mubr.f32.mxu0 0.0
    %4931 = vmatmul.mubr.f32.gmra.mrb[0].mxu0 %v4759
    %v4932 = vpop.f32.mrb[0].mxu0
    %v4933 = vadd.f32 0.0, %v4932
    %v4934 = vpop.f32.mrb[0].mxu0
    %4935 = vmatprep.mubr.f32.mxu0 0.0
    %4936 = vmatmul.mubr.f32.gmra.mrb[0].mxu0 %v4762
    %v4937 = vpop.f32.mrb[0].mxu0
    %v4938 = vadd.f32 0.0, %v4937
    %v4939 = vpop.f32.mrb[0].mxu0
    %4940 = vmatprep.mubr.f32.mxu0 0.0
    %4941 = vmatmul.mubr.f32.gmra.mrb[0].mxu0 %v4765
    %v4942 = vpop.f32.mrb[0].mxu0
    %v4943 = vadd.f32 0.0, %v4942
    %v4944 = vpop.f32.mrb[0].mxu0
    %4945 = vmatprep.mubr.f32.mxu0 0.0
    %4946 = vmatmul.mubr.f32.gmra.mrb[0].mxu0 %v4768
    %v4947 = vpop.f32.mrb[0].mxu0
    %v4948 = vadd.f32 0.0, %v4947
    %v4949 = vpop.f32.mrb[0].mxu0
    %4950 = vmatprep.mubr.f32.mxu0 0.0
    %4951 = vmatmul.mubr.f32.gmra.mrb[0].mxu0 %v4771
    %v4952 = vpop.f32.mrb[0].mxu0
    %v4953 = vadd.f32 0.0, %v4952
    %v4954 = vpop.f32.mrb[0].mxu0
    %4955 = vmatprep.mubr.f32.mxu0 0.0
    %4956 = vmatmul.mubr.f32.gmra.mrb[0].mxu0 %v4774
    %v4957 = vpop.f32.mrb[0].mxu0
    %v4958 = vadd.f32 0.0, %v4957
    %v4959 = vpop.f32.mrb[0].mxu0
    %4960 = vdwg.mxu0
    %v4961 = vadd.f32 %v4651, %v4843
    %v4962 = vadd.f32 %v4652, %v4848
    %v4963 = vadd.f32 %v4653, %v4853
    %v4964 = vadd.f32 %v4654, %v4858
    %v4965 = vadd.f32 %v4655, %v4863
    %v4966 = vadd.f32 %v4656, %v4868
    %v4967 = vadd.f32 %v4657, %v4873
    %v4968 = vadd.f32 %v4658, %v4878
    %v4969 = vadd.f32 %v4659, %v4883
    %v4970 = vadd.f32 %v4660, %v4888
    %v4971 = vadd.f32 %v4661, %v4893
    %v4972 = vadd.f32 %v4662, %v4898
    %v4973 = vadd.f32 %v4663, %v4903
    %v4974 = vadd.f32 %v4664, %v4908
    %v4975 = vadd.f32 %v4665, %v4913
    %v4976 = vadd.f32 %v4666, %v4918
    %v4977 = vadd.f32 %v4667, %v4923
    %v4978 = vadd.f32 %v4668, %v4928
    %v4979 = vadd.f32 %v4669, %v4933
    %v4980 = vadd.f32 %v4670, %v4938
    %v4981 = vadd.f32 %v4671, %v4943
    %v4982 = vadd.f32 %v4672, %v4948
    %v4983 = vadd.f32 %v4673, %v4953
    %v4984 = vadd.f32 %v4674, %v4958
    %v4985 = vld [vmem:[#allocation2 + $0x19] sm:$0xff]
    %v4986 = vld [vmem:[#allocation2 + $0x21] sm:$0xff]
    %v4987 = vld [vmem:[#allocation2 + $0x29] sm:$0xff]
    %v4988 = vld [vmem:[#allocation2 + $0x31] sm:$0xff]
    %v4989 = vld [vmem:[#allocation2 + $0x39] sm:$0xff]
    %v4990 = vld [vmem:[#allocation2 + $0x41] sm:$0xff]
    %v4991 = vld [vmem:[#allocation2 + $0x49] sm:$0xff]
    %v4992 = vld [vmem:[#allocation2 + $0x51] sm:$0xff]
    %v4993 = vld [vmem:[#allocation2 + $0x59] sm:$0xff]
    %v4994 = vld [vmem:[#allocation2 + $0x61] sm:$0xff]
    %v4995 = vld [vmem:[#allocation2 + $0x69] sm:$0xff]
    %v4996 = vld [vmem:[#allocation2 + $0x71] sm:$0xff]
    %v4997 = vld [vmem:[#allocation2 + $0xb1] sm:$0xff]
    %v4998 = vld [vmem:[#allocation2 + $0xb9] sm:$0xff]
    %v4999 = vld [vmem:[#allocation2 + $0xc1] sm:$0xff]
    %v5000 = vld [vmem:[#allocation2 + $0xc9] sm:$0xff]
    %v5001 = vld [vmem:[#allocation2 + $0xd1] sm:$0xff]
    %v5002 = vld [vmem:[#allocation2 + $0xd9] sm:$0xff]
    %v5003 = vld [vmem:[#allocation2 + $0xe1] sm:$0xff]
    %v5004 = vld [vmem:[#allocation2 + $0xe9] sm:$0xff]
    %v5005 = vld [vmem:[#allocation2 + $0xf1] sm:$0xff]
    %v5006 = vld [vmem:[#allocation2 + $0xf9] sm:$0xff]
    %v5007 = vld [vmem:[#allocation2 + $0x101] sm:$0xff]
    %v5008 = vld [vmem:[#allocation2 + $0x109] sm:$0xff]
    %s5009 = scalar_lea.vmem %s3, 352
    %v5010 = vld [vmem:[%s5009] sm:$0xff]
    %v5011 = vld [vmem:[%s5009 + $0x8] sm:$0xff]
    %v5012 = vld [vmem:[%s5009 + $0x10] sm:$0xff]
    %v5013 = vld [vmem:[%s5009 + $0x18] sm:$0xff]
    %v5015 = vsel %vm181, %v4985, 0
    %v5018 = vsel %vm181, %v4986, 0
    %v5021 = vsel %vm181, %v4987, 0
    %v5024 = vsel %vm181, %v4988, 0
    %v5027 = vsel %vm181, %v4989, 0
    %v5030 = vsel %vm181, %v4990, 0
    %v5033 = vsel %vm181, %v4991, 0
    %v5036 = vsel %vm181, %v4992, 0
    %v5039 = vsel %vm181, %v4993, 0
    %v5042 = vsel %vm181, %v4994, 0
    %v5045 = vsel %vm181, %v4995, 0
    %v5048 = vsel %vm181, %v4996, 0
    %v5051 = vsel %vm181, %v4997, 0
    %v5054 = vsel %vm181, %v4998, 0
    %v5057 = vsel %vm181, %v4999, 0
    %v5060 = vsel %vm181, %v5000, 0
    %v5063 = vsel %vm181, %v5001, 0
    %v5066 = vsel %vm181, %v5002, 0
    %v5069 = vsel %vm181, %v5003, 0
    %v5072 = vsel %vm181, %v5004, 0
    %v5075 = vsel %vm181, %v5005, 0
    %v5078 = vsel %vm181, %v5006, 0
    %v5081 = vsel %vm181, %v5007, 0
    %v5084 = vsel %vm181, %v5008, 0
    %5086 = vmatprep.subr.mxu0 0.0
    %5087 = vmatpush1.msra.mxu0 %v5010
    %5088 = vmatprep.subr.mxu0 0.0
    %5089 = vmatpush1.msra.mxu0 %v5011
    %5090 = vmatprep.subr.mxu0 0.0
    %5091 = vmatpush1.msra.mxu0 %v5012
    %5092 = vmatprep.subr.mxu0 0.0
    %5093 = vmatpush1.msra.mxu0 %v5013
    %5094 = vmatprep.subr.mxu0 0.0
    %5095 = vmatpush1.msra.mxu0 0.0
    %5096 = vmatprep.subr.mxu0 0.0
    %5097 = vmatpush1.msra.mxu0 0.0
    %5098 = vmatprep.subr.mxu0 0.0
    %5099 = vmatpush1.msra.mxu0 0.0
    %5100 = vmatprep.subr.mxu0 0.0
    %5101 = vmatpush1.msra.mxu0 0.0
    %5102 = vmatprep.subr.mxu0 0.0
    %5103 = vmatpush1.msra.mxu0 0.0
    %5104 = vmatprep.subr.mxu0 0.0
    %5105 = vmatpush1.msra.mxu0 0.0
    %5106 = vmatprep.subr.mxu0 0.0
    %5107 = vmatpush1.msra.mxu0 0.0
    %5108 = vmatprep.subr.mxu0 0.0
    %5109 = vmatpush1.msra.mxu0 0.0
    %5110 = vmatprep.subr.mxu0 0.0
    %5111 = vmatpush1.msra.mxu0 0.0
    %5112 = vmatprep.subr.mxu0 0.0
    %5113 = vmatpush1.msra.mxu0 0.0
    %5114 = vmatprep.subr.mxu0 0.0
    %5115 = vmatpush1.msra.mxu0 0.0
    %5116 = vmatprep.subr.mxu0 0.0
    %5117 = vmatpush1.msra.mxu0 0.0
    %5118 = vmatprep.subr.mxu0 0.0
    %5119 = vmatpush1.msra.mxu0 0.0
    %5120 = vmatprep.subr.mxu0 0.0
    %5121 = vmatpush1.msra.mxu0 0.0
    %5122 = vmatprep.subr.mxu0 0.0
    %5123 = vmatpush1.msra.mxu0 0.0
    %5124 = vmatprep.subr.mxu0 0.0
    %5125 = vmatpush1.msra.mxu0 0.0
    %5126 = vmatprep.subr.mxu0 0.0
    %5127 = vmatpush1.msra.mxu0 0.0
    %5128 = vmatprep.subr.mxu0 0.0
    %5129 = vmatpush1.msra.mxu0 0.0
    %5130 = vmatprep.subr.mxu0 0.0
    %5131 = vmatpush1.msra.mxu0 0.0
    %5132 = vmatprep.subr.mxu0 0.0
    %5133 = vmatpush1.msra.mxu0 0.0
    %5134 = vmatprep.subr.mxu0 0.0
    %5135 = vmatpush1.msra.mxu0 0.0
    %5136 = vmatprep.subr.mxu0 0.0
    %5137 = vmatpush1.msra.mxu0 0.0
    %5138 = vmatprep.subr.mxu0 0.0
    %5139 = vmatpush1.msra.mxu0 0.0
    %5140 = vmatprep.subr.mxu0 0.0
    %5141 = vmatpush1.msra.mxu0 0.0
    %5142 = vmatprep.subr.mxu0 0.0
    %5143 = vmatpush1.msra.mxu0 0.0
    %5144 = vmatprep.subr.mxu0 0.0
    %5145 = vmatpush1.msra.mxu0 0.0
    %5146 = vmatprep.subr.mxu0 0.0
    %5147 = vmatpush1.msra.mxu0 0.0
    %5148 = vmatprep.subr.mxu0 0.0
    %5149 = vmatpush1.msra.mxu0 0.0
    %5150 = vmatprep.mubr.f32.mxu0 0.0
    %5151 = vmatmul.mubr.f32.gmra.mrb[0].mxu0 %v5015
    %v5152 = vpop.f32.mrb[0].mxu0
    %v5153 = vadd.f32 0.0, %v5152
    %v5154 = vpop.f32.mrb[0].mxu0
    %5155 = vmatprep.mubr.f32.mxu0 0.0
    %5156 = vmatmul.mubr.f32.gmra.mrb[0].mxu0 %v5018
    %v5157 = vpop.f32.mrb[0].mxu0
    %v5158 = vadd.f32 0.0, %v5157
    %v5159 = vpop.f32.mrb[0].mxu0
    %5160 = vmatprep.mubr.f32.mxu0 0.0
    %5161 = vmatmul.mubr.f32.gmra.mrb[0].mxu0 %v5021
    %v5162 = vpop.f32.mrb[0].mxu0
    %v5163 = vadd.f32 0.0, %v5162
    %v5164 = vpop.f32.mrb[0].mxu0
    %5165 = vmatprep.mubr.f32.mxu0 0.0
    %5166 = vmatmul.mubr.f32.gmra.mrb[0].mxu0 %v5024
    %v5167 = vpop.f32.mrb[0].mxu0
    %v5168 = vadd.f32 0.0, %v5167
    %v5169 = vpop.f32.mrb[0].mxu0
    %5170 = vmatprep.mubr.f32.mxu0 0.0
    %5171 = vmatmul.mubr.f32.gmra.mrb[0].mxu0 %v5027
    %v5172 = vpop.f32.mrb[0].mxu0
    %v5173 = vadd.f32 0.0, %v5172
    %v5174 = vpop.f32.mrb[0].mxu0
    %5175 = vmatprep.mubr.f32.mxu0 0.0
    %5176 = vmatmul.mubr.f32.gmra.mrb[0].mxu0 %v5030
    %v5177 = vpop.f32.mrb[0].mxu0
    %v5178 = vadd.f32 0.0, %v5177
    %v5179 = vpop.f32.mrb[0].mxu0
    %5180 = vmatprep.mubr.f32.mxu0 0.0
    %5181 = vmatmul.mubr.f32.gmra.mrb[0].mxu0 %v5033
    %v5182 = vpop.f32.mrb[0].mxu0
    %v5183 = vadd.f32 0.0, %v5182
    %v5184 = vpop.f32.mrb[0].mxu0
    %5185 = vmatprep.mubr.f32.mxu0 0.0
    %5186 = vmatmul.mubr.f32.gmra.mrb[0].mxu0 %v5036
    %v5187 = vpop.f32.mrb[0].mxu0
    %v5188 = vadd.f32 0.0, %v5187
    %v5189 = vpop.f32.mrb[0].mxu0
    %5190 = vmatprep.mubr.f32.mxu0 0.0
    %5191 = vmatmul.mubr.f32.gmra.mrb[0].mxu0 %v5039
    %v5192 = vpop.f32.mrb[0].mxu0
    %v5193 = vadd.f32 0.0, %v5192
    %v5194 = vpop.f32.mrb[0].mxu0
    %5195 = vmatprep.mubr.f32.mxu0 0.0
    %5196 = vmatmul.mubr.f32.gmra.mrb[0].mxu0 %v5042
    %v5197 = vpop.f32.mrb[0].mxu0
    %v5198 = vadd.f32 0.0, %v5197
    %v5199 = vpop.f32.mrb[0].mxu0
    %5200 = vmatprep.mubr.f32.mxu0 0.0
    %5201 = vmatmul.mubr.f32.gmra.mrb[0].mxu0 %v5045
    %v5202 = vpop.f32.mrb[0].mxu0
    %v5203 = vadd.f32 0.0, %v5202
    %v5204 = vpop.f32.mrb[0].mxu0
    %5205 = vmatprep.mubr.f32.mxu0 0.0
    %5206 = vmatmul.mubr.f32.gmra.mrb[0].mxu0 %v5048
    %v5207 = vpop.f32.mrb[0].mxu0
    %v5208 = vadd.f32 0.0, %v5207
    %v5209 = vpop.f32.mrb[0].mxu0
    %5210 = vmatprep.mubr.f32.mxu0 0.0
    %5211 = vmatmul.mubr.f32.gmra.mrb[0].mxu0 %v5051
    %v5212 = vpop.f32.mrb[0].mxu0
    %v5213 = vadd.f32 0.0, %v5212
    %v5214 = vpop.f32.mrb[0].mxu0
    %5215 = vmatprep.mubr.f32.mxu0 0.0
    %5216 = vmatmul.mubr.f32.gmra.mrb[0].mxu0 %v5054
    %v5217 = vpop.f32.mrb[0].mxu0
    %v5218 = vadd.f32 0.0, %v5217
    %v5219 = vpop.f32.mrb[0].mxu0
    %5220 = vmatprep.mubr.f32.mxu0 0.0
    %5221 = vmatmul.mubr.f32.gmra.mrb[0].mxu0 %v5057
    %v5222 = vpop.f32.mrb[0].mxu0
    %v5223 = vadd.f32 0.0, %v5222
    %v5224 = vpop.f32.mrb[0].mxu0
    %5225 = vmatprep.mubr.f32.mxu0 0.0
    %5226 = vmatmul.mubr.f32.gmra.mrb[0].mxu0 %v5060
    %v5227 = vpop.f32.mrb[0].mxu0
    %v5228 = vadd.f32 0.0, %v5227
    %v5229 = vpop.f32.mrb[0].mxu0
    %5230 = vmatprep.mubr.f32.mxu0 0.0
    %5231 = vmatmul.mubr.f32.gmra.mrb[0].mxu0 %v5063
    %v5232 = vpop.f32.mrb[0].mxu0
    %v5233 = vadd.f32 0.0, %v5232
    %v5234 = vpop.f32.mrb[0].mxu0
    %5235 = vmatprep.mubr.f32.mxu0 0.0
    %5236 = vmatmul.mubr.f32.gmra.mrb[0].mxu0 %v5066
    %v5237 = vpop.f32.mrb[0].mxu0
    %v5238 = vadd.f32 0.0, %v5237
    %v5239 = vpop.f32.mrb[0].mxu0
    %5240 = vmatprep.mubr.f32.mxu0 0.0
    %5241 = vmatmul.mubr.f32.gmra.mrb[0].mxu0 %v5069
    %v5242 = vpop.f32.mrb[0].mxu0
    %v5243 = vadd.f32 0.0, %v5242
    %v5244 = vpop.f32.mrb[0].mxu0
    %5245 = vmatprep.mubr.f32.mxu0 0.0
    %5246 = vmatmul.mubr.f32.gmra.mrb[0].mxu0 %v5072
    %v5247 = vpop.f32.mrb[0].mxu0
    %v5248 = vadd.f32 0.0, %v5247
    %v5249 = vpop.f32.mrb[0].mxu0
    %5250 = vmatprep.mubr.f32.mxu0 0.0
    %5251 = vmatmul.mubr.f32.gmra.mrb[0].mxu0 %v5075
    %v5252 = vpop.f32.mrb[0].mxu0
    %v5253 = vadd.f32 0.0, %v5252
    %v5254 = vpop.f32.mrb[0].mxu0
    %5255 = vmatprep.mubr.f32.mxu0 0.0
    %5256 = vmatmul.mubr.f32.gmra.mrb[0].mxu0 %v5078
    %v5257 = vpop.f32.mrb[0].mxu0
    %v5258 = vadd.f32 0.0, %v5257
    %v5259 = vpop.f32.mrb[0].mxu0
    %5260 = vmatprep.mubr.f32.mxu0 0.0
    %5261 = vmatmul.mubr.f32.gmra.mrb[0].mxu0 %v5081
    %v5262 = vpop.f32.mrb[0].mxu0
    %v5263 = vadd.f32 0.0, %v5262
    %v5264 = vpop.f32.mrb[0].mxu0
    %5265 = vmatprep.mubr.f32.mxu0 0.0
    %5266 = vmatmul.mubr.f32.gmra.mrb[0].mxu0 %v5084
    %v5267 = vpop.f32.mrb[0].mxu0
    %v5268 = vadd.f32 0.0, %v5267
    %v5269 = vpop.f32.mrb[0].mxu0
    %5270 = vdwg.mxu0
    %v5271 = vadd.f32 %v4961, %v5153
    %v5272 = vadd.f32 %v4962, %v5158
    %v5273 = vadd.f32 %v4963, %v5163
    %v5274 = vadd.f32 %v4964, %v5168
    %v5275 = vadd.f32 %v4965, %v5173
    %v5276 = vadd.f32 %v4966, %v5178
    %v5277 = vadd.f32 %v4967, %v5183
    %v5278 = vadd.f32 %v4968, %v5188
    %v5279 = vadd.f32 %v4969, %v5193
    %v5280 = vadd.f32 %v4970, %v5198
    %v5281 = vadd.f32 %v4971, %v5203
    %v5282 = vadd.f32 %v4972, %v5208
    %v5283 = vadd.f32 %v4973, %v5213
    %v5284 = vadd.f32 %v4974, %v5218
    %v5285 = vadd.f32 %v4975, %v5223
    %v5286 = vadd.f32 %v4976, %v5228
    %v5287 = vadd.f32 %v4977, %v5233
    %v5288 = vadd.f32 %v4978, %v5238
    %v5289 = vadd.f32 %v4979, %v5243
    %v5290 = vadd.f32 %v4980, %v5248
    %v5291 = vadd.f32 %v4981, %v5253
    %v5292 = vadd.f32 %v4982, %v5258
    %v5293 = vadd.f32 %v4983, %v5263
    %v5294 = vadd.f32 %v4984, %v5268
    %v5295 = vld [vmem:[#allocation2 + $0x1a] sm:$0xff]
    %v5296 = vld [vmem:[#allocation2 + $0x22] sm:$0xff]
    %v5297 = vld [vmem:[#allocation2 + $0x2a] sm:$0xff]
    %v5298 = vld [vmem:[#allocation2 + $0x32] sm:$0xff]
    %v5299 = vld [vmem:[#allocation2 + $0x3a] sm:$0xff]
    %v5300 = vld [vmem:[#allocation2 + $0x42] sm:$0xff]
    %v5301 = vld [vmem:[#allocation2 + $0x4a] sm:$0xff]
    %v5302 = vld [vmem:[#allocation2 + $0x52] sm:$0xff]
    %v5303 = vld [vmem:[#allocation2 + $0x5a] sm:$0xff]
    %v5304 = vld [vmem:[#allocation2 + $0x62] sm:$0xff]
    %v5305 = vld [vmem:[#allocation2 + $0x6a] sm:$0xff]
    %v5306 = vld [vmem:[#allocation2 + $0x72] sm:$0xff]
    %v5307 = vld [vmem:[#allocation2 + $0xb2] sm:$0xff]
    %v5308 = vld [vmem:[#allocation2 + $0xba] sm:$0xff]
    %v5309 = vld [vmem:[#allocation2 + $0xc2] sm:$0xff]
    %v5310 = vld [vmem:[#allocation2 + $0xca] sm:$0xff]
    %v5311 = vld [vmem:[#allocation2 + $0xd2] sm:$0xff]
    %v5312 = vld [vmem:[#allocation2 + $0xda] sm:$0xff]
    %v5313 = vld [vmem:[#allocation2 + $0xe2] sm:$0xff]
    %v5314 = vld [vmem:[#allocation2 + $0xea] sm:$0xff]
    %v5315 = vld [vmem:[#allocation2 + $0xf2] sm:$0xff]
    %v5316 = vld [vmem:[#allocation2 + $0xfa] sm:$0xff]
    %v5317 = vld [vmem:[#allocation2 + $0x102] sm:$0xff]
    %v5318 = vld [vmem:[#allocation2 + $0x10a] sm:$0xff]
    %s5319 = scalar_lea.vmem %s3, 384
    %v5320 = vld [vmem:[%s5319] sm:$0xff]
    %v5321 = vld [vmem:[%s5319 + $0x8] sm:$0xff]
    %v5322 = vld [vmem:[%s5319 + $0x10] sm:$0xff]
    %v5323 = vld [vmem:[%s5319 + $0x18] sm:$0xff]
    %v5325 = vsel %vm181, %v5295, 0
    %v5328 = vsel %vm181, %v5296, 0
    %v5331 = vsel %vm181, %v5297, 0
    %v5334 = vsel %vm181, %v5298, 0
    %v5337 = vsel %vm181, %v5299, 0
    %v5340 = vsel %vm181, %v5300, 0
    %v5343 = vsel %vm181, %v5301, 0
    %v5346 = vsel %vm181, %v5302, 0
    %v5349 = vsel %vm181, %v5303, 0
    %v5352 = vsel %vm181, %v5304, 0
    %v5355 = vsel %vm181, %v5305, 0
    %v5358 = vsel %vm181, %v5306, 0
    %v5361 = vsel %vm181, %v5307, 0
    %v5364 = vsel %vm181, %v5308, 0
    %v5367 = vsel %vm181, %v5309, 0
    %v5370 = vsel %vm181, %v5310, 0
    %v5373 = vsel %vm181, %v5311, 0
    %v5376 = vsel %vm181, %v5312, 0
    %v5379 = vsel %vm181, %v5313, 0
    %v5382 = vsel %vm181, %v5314, 0
    %v5385 = vsel %vm181, %v5315, 0
    %v5388 = vsel %vm181, %v5316, 0
    %v5391 = vsel %vm181, %v5317, 0
    %v5394 = vsel %vm181, %v5318, 0
    %5396 = vmatprep.subr.mxu0 0.0
    %5397 = vmatpush1.msra.mxu0 %v5320
    %5398 = vmatprep.subr.mxu0 0.0
    %5399 = vmatpush1.msra.mxu0 %v5321
    %5400 = vmatprep.subr.mxu0 0.0
    %5401 = vmatpush1.msra.mxu0 %v5322
    %5402 = vmatprep.subr.mxu0 0.0
    %5403 = vmatpush1.msra.mxu0 %v5323
    %5404 = vmatprep.subr.mxu0 0.0
    %5405 = vmatpush1.msra.mxu0 0.0
    %5406 = vmatprep.subr.mxu0 0.0
    %5407 = vmatpush1.msra.mxu0 0.0
    %5408 = vmatprep.subr.mxu0 0.0
    %5409 = vmatpush1.msra.mxu0 0.0
    %5410 = vmatprep.subr.mxu0 0.0
    %5411 = vmatpush1.msra.mxu0 0.0
    %5412 = vmatprep.subr.mxu0 0.0
    %5413 = vmatpush1.msra.mxu0 0.0
    %5414 = vmatprep.subr.mxu0 0.0
    %5415 = vmatpush1.msra.mxu0 0.0
    %5416 = vmatprep.subr.mxu0 0.0
    %5417 = vmatpush1.msra.mxu0 0.0
    %5418 = vmatprep.subr.mxu0 0.0
    %5419 = vmatpush1.msra.mxu0 0.0
    %5420 = vmatprep.subr.mxu0 0.0
    %5421 = vmatpush1.msra.mxu0 0.0
    %5422 = vmatprep.subr.mxu0 0.0
    %5423 = vmatpush1.msra.mxu0 0.0
    %5424 = vmatprep.subr.mxu0 0.0
    %5425 = vmatpush1.msra.mxu0 0.0
    %5426 = vmatprep.subr.mxu0 0.0
    %5427 = vmatpush1.msra.mxu0 0.0
    %5428 = vmatprep.subr.mxu0 0.0
    %5429 = vmatpush1.msra.mxu0 0.0
    %5430 = vmatprep.subr.mxu0 0.0
    %5431 = vmatpush1.msra.mxu0 0.0
    %5432 = vmatprep.subr.mxu0 0.0
    %5433 = vmatpush1.msra.mxu0 0.0
    %5434 = vmatprep.subr.mxu0 0.0
    %5435 = vmatpush1.msra.mxu0 0.0
    %5436 = vmatprep.subr.mxu0 0.0
    %5437 = vmatpush1.msra.mxu0 0.0
    %5438 = vmatprep.subr.mxu0 0.0
    %5439 = vmatpush1.msra.mxu0 0.0
    %5440 = vmatprep.subr.mxu0 0.0
    %5441 = vmatpush1.msra.mxu0 0.0
    %5442 = vmatprep.subr.mxu0 0.0
    %5443 = vmatpush1.msra.mxu0 0.0
    %5444 = vmatprep.subr.mxu0 0.0
    %5445 = vmatpush1.msra.mxu0 0.0
    %5446 = vmatprep.subr.mxu0 0.0
    %5447 = vmatpush1.msra.mxu0 0.0
    %5448 = vmatprep.subr.mxu0 0.0
    %5449 = vmatpush1.msra.mxu0 0.0
    %5450 = vmatprep.subr.mxu0 0.0
    %5451 = vmatpush1.msra.mxu0 0.0
    %5452 = vmatprep.subr.mxu0 0.0
    %5453 = vmatpush1.msra.mxu0 0.0
    %5454 = vmatprep.subr.mxu0 0.0
    %5455 = vmatpush1.msra.mxu0 0.0
    %5456 = vmatprep.subr.mxu0 0.0
    %5457 = vmatpush1.msra.mxu0 0.0
    %5458 = vmatprep.subr.mxu0 0.0
    %5459 = vmatpush1.msra.mxu0 0.0
    %5460 = vmatprep.mubr.f32.mxu0 0.0
    %5461 = vmatmul.mubr.f32.gmra.mrb[0].mxu0 %v5325
    %v5462 = vpop.f32.mrb[0].mxu0
    %v5463 = vadd.f32 0.0, %v5462
    %v5464 = vpop.f32.mrb[0].mxu0
    %5465 = vmatprep.mubr.f32.mxu0 0.0
    %5466 = vmatmul.mubr.f32.gmra.mrb[0].mxu0 %v5328
    %v5467 = vpop.f32.mrb[0].mxu0
    %v5468 = vadd.f32 0.0, %v5467
    %v5469 = vpop.f32.mrb[0].mxu0
    %5470 = vmatprep.mubr.f32.mxu0 0.0
    %5471 = vmatmul.mubr.f32.gmra.mrb[0].mxu0 %v5331
    %v5472 = vpop.f32.mrb[0].mxu0
    %v5473 = vadd.f32 0.0, %v5472
    %v5474 = vpop.f32.mrb[0].mxu0
    %5475 = vmatprep.mubr.f32.mxu0 0.0
    %5476 = vmatmul.mubr.f32.gmra.mrb[0].mxu0 %v5334
    %v5477 = vpop.f32.mrb[0].mxu0
    %v5478 = vadd.f32 0.0, %v5477
    %v5479 = vpop.f32.mrb[0].mxu0
    %5480 = vmatprep.mubr.f32.mxu0 0.0
    %5481 = vmatmul.mubr.f32.gmra.mrb[0].mxu0 %v5337
    %v5482 = vpop.f32.mrb[0].mxu0
    %v5483 = vadd.f32 0.0, %v5482
    %v5484 = vpop.f32.mrb[0].mxu0
    %5485 = vmatprep.mubr.f32.mxu0 0.0
    %5486 = vmatmul.mubr.f32.gmra.mrb[0].mxu0 %v5340
    %v5487 = vpop.f32.mrb[0].mxu0
    %v5488 = vadd.f32 0.0, %v5487
    %v5489 = vpop.f32.mrb[0].mxu0
    %5490 = vmatprep.mubr.f32.mxu0 0.0
    %5491 = vmatmul.mubr.f32.gmra.mrb[0].mxu0 %v5343
    %v5492 = vpop.f32.mrb[0].mxu0
    %v5493 = vadd.f32 0.0, %v5492
    %v5494 = vpop.f32.mrb[0].mxu0
    %5495 = vmatprep.mubr.f32.mxu0 0.0
    %5496 = vmatmul.mubr.f32.gmra.mrb[0].mxu0 %v5346
    %v5497 = vpop.f32.mrb[0].mxu0
    %v5498 = vadd.f32 0.0, %v5497
    %v5499 = vpop.f32.mrb[0].mxu0
    %5500 = vmatprep.mubr.f32.mxu0 0.0
    %5501 = vmatmul.mubr.f32.gmra.mrb[0].mxu0 %v5349
    %v5502 = vpop.f32.mrb[0].mxu0
    %v5503 = vadd.f32 0.0, %v5502
    %v5504 = vpop.f32.mrb[0].mxu0
    %5505 = vmatprep.mubr.f32.mxu0 0.0
    %5506 = vmatmul.mubr.f32.gmra.mrb[0].mxu0 %v5352
    %v5507 = vpop.f32.mrb[0].mxu0
    %v5508 = vadd.f32 0.0, %v5507
    %v5509 = vpop.f32.mrb[0].mxu0
    %5510 = vmatprep.mubr.f32.mxu0 0.0
    %5511 = vmatmul.mubr.f32.gmra.mrb[0].mxu0 %v5355
    %v5512 = vpop.f32.mrb[0].mxu0
    %v5513 = vadd.f32 0.0, %v5512
    %v5514 = vpop.f32.mrb[0].mxu0
    %5515 = vmatprep.mubr.f32.mxu0 0.0
    %5516 = vmatmul.mubr.f32.gmra.mrb[0].mxu0 %v5358
    %v5517 = vpop.f32.mrb[0].mxu0
    %v5518 = vadd.f32 0.0, %v5517
    %v5519 = vpop.f32.mrb[0].mxu0
    %5520 = vmatprep.mubr.f32.mxu0 0.0
    %5521 = vmatmul.mubr.f32.gmra.mrb[0].mxu0 %v5361
    %v5522 = vpop.f32.mrb[0].mxu0
    %v5523 = vadd.f32 0.0, %v5522
    %v5524 = vpop.f32.mrb[0].mxu0
    %5525 = vmatprep.mubr.f32.mxu0 0.0
    %5526 = vmatmul.mubr.f32.gmra.mrb[0].mxu0 %v5364
    %v5527 = vpop.f32.mrb[0].mxu0
    %v5528 = vadd.f32 0.0, %v5527
    %v5529 = vpop.f32.mrb[0].mxu0
    %5530 = vmatprep.mubr.f32.mxu0 0.0
    %5531 = vmatmul.mubr.f32.gmra.mrb[0].mxu0 %v5367
    %v5532 = vpop.f32.mrb[0].mxu0
    %v5533 = vadd.f32 0.0, %v5532
    %v5534 = vpop.f32.mrb[0].mxu0
    %5535 = vmatprep.mubr.f32.mxu0 0.0
    %5536 = vmatmul.mubr.f32.gmra.mrb[0].mxu0 %v5370
    %v5537 = vpop.f32.mrb[0].mxu0
    %v5538 = vadd.f32 0.0, %v5537
    %v5539 = vpop.f32.mrb[0].mxu0
    %5540 = vmatprep.mubr.f32.mxu0 0.0
    %5541 = vmatmul.mubr.f32.gmra.mrb[0].mxu0 %v5373
    %v5542 = vpop.f32.mrb[0].mxu0
    %v5543 = vadd.f32 0.0, %v5542
    %v5544 = vpop.f32.mrb[0].mxu0
    %5545 = vmatprep.mubr.f32.mxu0 0.0
    %5546 = vmatmul.mubr.f32.gmra.mrb[0].mxu0 %v5376
    %v5547 = vpop.f32.mrb[0].mxu0
    %v5548 = vadd.f32 0.0, %v5547
    %v5549 = vpop.f32.mrb[0].mxu0
    %5550 = vmatprep.mubr.f32.mxu0 0.0
    %5551 = vmatmul.mubr.f32.gmra.mrb[0].mxu0 %v5379
    %v5552 = vpop.f32.mrb[0].mxu0
    %v5553 = vadd.f32 0.0, %v5552
    %v5554 = vpop.f32.mrb[0].mxu0
    %5555 = vmatprep.mubr.f32.mxu0 0.0
    %5556 = vmatmul.mubr.f32.gmra.mrb[0].mxu0 %v5382
    %v5557 = vpop.f32.mrb[0].mxu0
    %v5558 = vadd.f32 0.0, %v5557
    %v5559 = vpop.f32.mrb[0].mxu0
    %5560 = vmatprep.mubr.f32.mxu0 0.0
    %5561 = vmatmul.mubr.f32.gmra.mrb[0].mxu0 %v5385
    %v5562 = vpop.f32.mrb[0].mxu0
    %v5563 = vadd.f32 0.0, %v5562
    %v5564 = vpop.f32.mrb[0].mxu0
    %5565 = vmatprep.mubr.f32.mxu0 0.0
    %5566 = vmatmul.mubr.f32.gmra.mrb[0].mxu0 %v5388
    %v5567 = vpop.f32.mrb[0].mxu0
    %v5568 = vadd.f32 0.0, %v5567
    %v5569 = vpop.f32.mrb[0].mxu0
    %5570 = vmatprep.mubr.f32.mxu0 0.0
    %5571 = vmatmul.mubr.f32.gmra.mrb[0].mxu0 %v5391
    %v5572 = vpop.f32.mrb[0].mxu0
    %v5573 = vadd.f32 0.0, %v5572
    %v5574 = vpop.f32.mrb[0].mxu0
    %5575 = vmatprep.mubr.f32.mxu0 0.0
    %5576 = vmatmul.mubr.f32.gmra.mrb[0].mxu0 %v5394
    %v5577 = vpop.f32.mrb[0].mxu0
    %v5578 = vadd.f32 0.0, %v5577
    %v5579 = vpop.f32.mrb[0].mxu0
    %5580 = vdwg.mxu0
    %v5581 = vadd.f32 %v5271, %v5463
    %v5582 = vadd.f32 %v5272, %v5468
    %v5583 = vadd.f32 %v5273, %v5473
    %v5584 = vadd.f32 %v5274, %v5478
    %v5585 = vadd.f32 %v5275, %v5483
    %v5586 = vadd.f32 %v5276, %v5488
    %v5587 = vadd.f32 %v5277, %v5493
    %v5588 = vadd.f32 %v5278, %v5498
    %v5589 = vadd.f32 %v5279, %v5503
    %v5590 = vadd.f32 %v5280, %v5508
    %v5591 = vadd.f32 %v5281, %v5513
    %v5592 = vadd.f32 %v5282, %v5518
    %v5593 = vadd.f32 %v5283, %v5523
    %v5594 = vadd.f32 %v5284, %v5528
    %v5595 = vadd.f32 %v5285, %v5533
    %v5596 = vadd.f32 %v5286, %v5538
    %v5597 = vadd.f32 %v5287, %v5543
    %v5598 = vadd.f32 %v5288, %v5548
    %v5599 = vadd.f32 %v5289, %v5553
    %v5600 = vadd.f32 %v5290, %v5558
    %v5601 = vadd.f32 %v5291, %v5563
    %v5602 = vadd.f32 %v5292, %v5568
    %v5603 = vadd.f32 %v5293, %v5573
    %v5604 = vadd.f32 %v5294, %v5578
    %v5605 = vld [vmem:[#allocation2 + $0x1b] sm:$0xff]
    %v5606 = vld [vmem:[#allocation2 + $0x23] sm:$0xff]
    %v5607 = vld [vmem:[#allocation2 + $0x2b] sm:$0xff]
    %v5608 = vld [vmem:[#allocation2 + $0x33] sm:$0xff]
    %v5609 = vld [vmem:[#allocation2 + $0x3b] sm:$0xff]
    %v5610 = vld [vmem:[#allocation2 + $0x43] sm:$0xff]
    %v5611 = vld [vmem:[#allocation2 + $0x4b] sm:$0xff]
    %v5612 = vld [vmem:[#allocation2 + $0x53] sm:$0xff]
    %v5613 = vld [vmem:[#allocation2 + $0x5b] sm:$0xff]
    %v5614 = vld [vmem:[#allocation2 + $0x63] sm:$0xff]
    %v5615 = vld [vmem:[#allocation2 + $0x6b] sm:$0xff]
    %v5616 = vld [vmem:[#allocation2 + $0x73] sm:$0xff]
    %v5617 = vld [vmem:[#allocation2 + $0xb3] sm:$0xff]
    %v5618 = vld [vmem:[#allocation2 + $0xbb] sm:$0xff]
    %v5619 = vld [vmem:[#allocation2 + $0xc3] sm:$0xff]
    %v5620 = vld [vmem:[#allocation2 + $0xcb] sm:$0xff]
    %v5621 = vld [vmem:[#allocation2 + $0xd3] sm:$0xff]
    %v5622 = vld [vmem:[#allocation2 + $0xdb] sm:$0xff]
    %v5623 = vld [vmem:[#allocation2 + $0xe3] sm:$0xff]
    %v5624 = vld [vmem:[#allocation2 + $0xeb] sm:$0xff]
    %v5625 = vld [vmem:[#allocation2 + $0xf3] sm:$0xff]
    %v5626 = vld [vmem:[#allocation2 + $0xfb] sm:$0xff]
    %v5627 = vld [vmem:[#allocation2 + $0x103] sm:$0xff]
    %v5628 = vld [vmem:[#allocation2 + $0x10b] sm:$0xff]
    %s5629 = scalar_lea.vmem %s3, 416
    %v5630 = vld [vmem:[%s5629] sm:$0xff]
    %v5631 = vld [vmem:[%s5629 + $0x8] sm:$0xff]
    %v5632 = vld [vmem:[%s5629 + $0x10] sm:$0xff]
    %v5633 = vld [vmem:[%s5629 + $0x18] sm:$0xff]
    %v5635 = vsel %vm181, %v5605, 0
    %v5638 = vsel %vm181, %v5606, 0
    %v5641 = vsel %vm181, %v5607, 0
    %v5644 = vsel %vm181, %v5608, 0
    %v5647 = vsel %vm181, %v5609, 0
    %v5650 = vsel %vm181, %v5610, 0
    %v5653 = vsel %vm181, %v5611, 0
    %v5656 = vsel %vm181, %v5612, 0
    %v5659 = vsel %vm181, %v5613, 0
    %v5662 = vsel %vm181, %v5614, 0
    %v5665 = vsel %vm181, %v5615, 0
    %v5668 = vsel %vm181, %v5616, 0
    %v5671 = vsel %vm181, %v5617, 0
    %v5674 = vsel %vm181, %v5618, 0
    %v5677 = vsel %vm181, %v5619, 0
    %v5680 = vsel %vm181, %v5620, 0
    %v5683 = vsel %vm181, %v5621, 0
    %v5686 = vsel %vm181, %v5622, 0
    %v5689 = vsel %vm181, %v5623, 0
    %v5692 = vsel %vm181, %v5624, 0
    %v5695 = vsel %vm181, %v5625, 0
    %v5698 = vsel %vm181, %v5626, 0
    %v5701 = vsel %vm181, %v5627, 0
    %v5704 = vsel %vm181, %v5628, 0
    %5706 = vmatprep.subr.mxu0 0.0
    %5707 = vmatpush1.msra.mxu0 %v5630
    %5708 = vmatprep.subr.mxu0 0.0
    %5709 = vmatpush1.msra.mxu0 %v5631
    %5710 = vmatprep.subr.mxu0 0.0
    %5711 = vmatpush1.msra.mxu0 %v5632
    %5712 = vmatprep.subr.mxu0 0.0
    %5713 = vmatpush1.msra.mxu0 %v5633
    %5714 = vmatprep.subr.mxu0 0.0
    %5715 = vmatpush1.msra.mxu0 0.0
    %5716 = vmatprep.subr.mxu0 0.0
    %5717 = vmatpush1.msra.mxu0 0.0
    %5718 = vmatprep.subr.mxu0 0.0
    %5719 = vmatpush1.msra.mxu0 0.0
    %5720 = vmatprep.subr.mxu0 0.0
    %5721 = vmatpush1.msra.mxu0 0.0
    %5722 = vmatprep.subr.mxu0 0.0
    %5723 = vmatpush1.msra.mxu0 0.0
    %5724 = vmatprep.subr.mxu0 0.0
    %5725 = vmatpush1.msra.mxu0 0.0
    %5726 = vmatprep.subr.mxu0 0.0
    %5727 = vmatpush1.msra.mxu0 0.0
    %5728 = vmatprep.subr.mxu0 0.0
    %5729 = vmatpush1.msra.mxu0 0.0
    %5730 = vmatprep.subr.mxu0 0.0
    %5731 = vmatpush1.msra.mxu0 0.0
    %5732 = vmatprep.subr.mxu0 0.0
    %5733 = vmatpush1.msra.mxu0 0.0
    %5734 = vmatprep.subr.mxu0 0.0
    %5735 = vmatpush1.msra.mxu0 0.0
    %5736 = vmatprep.subr.mxu0 0.0
    %5737 = vmatpush1.msra.mxu0 0.0
    %5738 = vmatprep.subr.mxu0 0.0
    %5739 = vmatpush1.msra.mxu0 0.0
    %5740 = vmatprep.subr.mxu0 0.0
    %5741 = vmatpush1.msra.mxu0 0.0
    %5742 = vmatprep.subr.mxu0 0.0
    %5743 = vmatpush1.msra.mxu0 0.0
    %5744 = vmatprep.subr.mxu0 0.0
    %5745 = vmatpush1.msra.mxu0 0.0
    %5746 = vmatprep.subr.mxu0 0.0
    %5747 = vmatpush1.msra.mxu0 0.0
    %5748 = vmatprep.subr.mxu0 0.0
    %5749 = vmatpush1.msra.mxu0 0.0
    %5750 = vmatprep.subr.mxu0 0.0
    %5751 = vmatpush1.msra.mxu0 0.0
    %5752 = vmatprep.subr.mxu0 0.0
    %5753 = vmatpush1.msra.mxu0 0.0
    %5754 = vmatprep.subr.mxu0 0.0
    %5755 = vmatpush1.msra.mxu0 0.0
    %5756 = vmatprep.subr.mxu0 0.0
    %5757 = vmatpush1.msra.mxu0 0.0
    %5758 = vmatprep.subr.mxu0 0.0
    %5759 = vmatpush1.msra.mxu0 0.0
    %5760 = vmatprep.subr.mxu0 0.0
    %5761 = vmatpush1.msra.mxu0 0.0
    %5762 = vmatprep.subr.mxu0 0.0
    %5763 = vmatpush1.msra.mxu0 0.0
    %5764 = vmatprep.subr.mxu0 0.0
    %5765 = vmatpush1.msra.mxu0 0.0
    %5766 = vmatprep.subr.mxu0 0.0
    %5767 = vmatpush1.msra.mxu0 0.0
    %5768 = vmatprep.subr.mxu0 0.0
    %5769 = vmatpush1.msra.mxu0 0.0
    %5770 = vmatprep.mubr.f32.mxu0 0.0
    %5771 = vmatmul.mubr.f32.gmra.mrb[0].mxu0 %v5635
    %v5772 = vpop.f32.mrb[0].mxu0
    %v5773 = vadd.f32 0.0, %v5772
    %v5774 = vpop.f32.mrb[0].mxu0
    %5775 = vmatprep.mubr.f32.mxu0 0.0
    %5776 = vmatmul.mubr.f32.gmra.mrb[0].mxu0 %v5638
    %v5777 = vpop.f32.mrb[0].mxu0
    %v5778 = vadd.f32 0.0, %v5777
    %v5779 = vpop.f32.mrb[0].mxu0
    %5780 = vmatprep.mubr.f32.mxu0 0.0
    %5781 = vmatmul.mubr.f32.gmra.mrb[0].mxu0 %v5641
    %v5782 = vpop.f32.mrb[0].mxu0
    %v5783 = vadd.f32 0.0, %v5782
    %v5784 = vpop.f32.mrb[0].mxu0
    %5785 = vmatprep.mubr.f32.mxu0 0.0
    %5786 = vmatmul.mubr.f32.gmra.mrb[0].mxu0 %v5644
    %v5787 = vpop.f32.mrb[0].mxu0
    %v5788 = vadd.f32 0.0, %v5787
    %v5789 = vpop.f32.mrb[0].mxu0
    %5790 = vmatprep.mubr.f32.mxu0 0.0
    %5791 = vmatmul.mubr.f32.gmra.mrb[0].mxu0 %v5647
    %v5792 = vpop.f32.mrb[0].mxu0
    %v5793 = vadd.f32 0.0, %v5792
    %v5794 = vpop.f32.mrb[0].mxu0
    %5795 = vmatprep.mubr.f32.mxu0 0.0
    %5796 = vmatmul.mubr.f32.gmra.mrb[0].mxu0 %v5650
    %v5797 = vpop.f32.mrb[0].mxu0
    %v5798 = vadd.f32 0.0, %v5797
    %v5799 = vpop.f32.mrb[0].mxu0
    %5800 = vmatprep.mubr.f32.mxu0 0.0
    %5801 = vmatmul.mubr.f32.gmra.mrb[0].mxu0 %v5653
    %v5802 = vpop.f32.mrb[0].mxu0
    %v5803 = vadd.f32 0.0, %v5802
    %v5804 = vpop.f32.mrb[0].mxu0
    %5805 = vmatprep.mubr.f32.mxu0 0.0
    %5806 = vmatmul.mubr.f32.gmra.mrb[0].mxu0 %v5656
    %v5807 = vpop.f32.mrb[0].mxu0
    %v5808 = vadd.f32 0.0, %v5807
    %v5809 = vpop.f32.mrb[0].mxu0
    %5810 = vmatprep.mubr.f32.mxu0 0.0
    %5811 = vmatmul.mubr.f32.gmra.mrb[0].mxu0 %v5659
    %v5812 = vpop.f32.mrb[0].mxu0
    %v5813 = vadd.f32 0.0, %v5812
    %v5814 = vpop.f32.mrb[0].mxu0
    %5815 = vmatprep.mubr.f32.mxu0 0.0
    %5816 = vmatmul.mubr.f32.gmra.mrb[0].mxu0 %v5662
    %v5817 = vpop.f32.mrb[0].mxu0
    %v5818 = vadd.f32 0.0, %v5817
    %v5819 = vpop.f32.mrb[0].mxu0
    %5820 = vmatprep.mubr.f32.mxu0 0.0
    %5821 = vmatmul.mubr.f32.gmra.mrb[0].mxu0 %v5665
    %v5822 = vpop.f32.mrb[0].mxu0
    %v5823 = vadd.f32 0.0, %v5822
    %v5824 = vpop.f32.mrb[0].mxu0
    %5825 = vmatprep.mubr.f32.mxu0 0.0
    %5826 = vmatmul.mubr.f32.gmra.mrb[0].mxu0 %v5668
    %v5827 = vpop.f32.mrb[0].mxu0
    %v5828 = vadd.f32 0.0, %v5827
    %v5829 = vpop.f32.mrb[0].mxu0
    %5830 = vmatprep.mubr.f32.mxu0 0.0
    %5831 = vmatmul.mubr.f32.gmra.mrb[0].mxu0 %v5671
    %v5832 = vpop.f32.mrb[0].mxu0
    %v5833 = vadd.f32 0.0, %v5832
    %v5834 = vpop.f32.mrb[0].mxu0
    %5835 = vmatprep.mubr.f32.mxu0 0.0
    %5836 = vmatmul.mubr.f32.gmra.mrb[0].mxu0 %v5674
    %v5837 = vpop.f32.mrb[0].mxu0
    %v5838 = vadd.f32 0.0, %v5837
    %v5839 = vpop.f32.mrb[0].mxu0
    %5840 = vmatprep.mubr.f32.mxu0 0.0
    %5841 = vmatmul.mubr.f32.gmra.mrb[0].mxu0 %v5677
    %v5842 = vpop.f32.mrb[0].mxu0
    %v5843 = vadd.f32 0.0, %v5842
    %v5844 = vpop.f32.mrb[0].mxu0
    %5845 = vmatprep.mubr.f32.mxu0 0.0
    %5846 = vmatmul.mubr.f32.gmra.mrb[0].mxu0 %v5680
    %v5847 = vpop.f32.mrb[0].mxu0
    %v5848 = vadd.f32 0.0, %v5847
    %v5849 = vpop.f32.mrb[0].mxu0
    %5850 = vmatprep.mubr.f32.mxu0 0.0
    %5851 = vmatmul.mubr.f32.gmra.mrb[0].mxu0 %v5683
    %v5852 = vpop.f32.mrb[0].mxu0
    %v5853 = vadd.f32 0.0, %v5852
    %v5854 = vpop.f32.mrb[0].mxu0
    %5855 = vmatprep.mubr.f32.mxu0 0.0
    %5856 = vmatmul.mubr.f32.gmra.mrb[0].mxu0 %v5686
    %v5857 = vpop.f32.mrb[0].mxu0
    %v5858 = vadd.f32 0.0, %v5857
    %v5859 = vpop.f32.mrb[0].mxu0
    %5860 = vmatprep.mubr.f32.mxu0 0.0
    %5861 = vmatmul.mubr.f32.gmra.mrb[0].mxu0 %v5689
    %v5862 = vpop.f32.mrb[0].mxu0
    %v5863 = vadd.f32 0.0, %v5862
    %v5864 = vpop.f32.mrb[0].mxu0
    %5865 = vmatprep.mubr.f32.mxu0 0.0
    %5866 = vmatmul.mubr.f32.gmra.mrb[0].mxu0 %v5692
    %v5867 = vpop.f32.mrb[0].mxu0
    %v5868 = vadd.f32 0.0, %v5867
    %v5869 = vpop.f32.mrb[0].mxu0
    %5870 = vmatprep.mubr.f32.mxu0 0.0
    %5871 = vmatmul.mubr.f32.gmra.mrb[0].mxu0 %v5695
    %v5872 = vpop.f32.mrb[0].mxu0
    %v5873 = vadd.f32 0.0, %v5872
    %v5874 = vpop.f32.mrb[0].mxu0
    %5875 = vmatprep.mubr.f32.mxu0 0.0
    %5876 = vmatmul.mubr.f32.gmra.mrb[0].mxu0 %v5698
    %v5877 = vpop.f32.mrb[0].mxu0
    %v5878 = vadd.f32 0.0, %v5877
    %v5879 = vpop.f32.mrb[0].mxu0
    %5880 = vmatprep.mubr.f32.mxu0 0.0
    %5881 = vmatmul.mubr.f32.gmra.mrb[0].mxu0 %v5701
    %v5882 = vpop.f32.mrb[0].mxu0
    %v5883 = vadd.f32 0.0, %v5882
    %v5884 = vpop.f32.mrb[0].mxu0
    %5885 = vmatprep.mubr.f32.mxu0 0.0
    %5886 = vmatmul.mubr.f32.gmra.mrb[0].mxu0 %v5704
    %v5887 = vpop.f32.mrb[0].mxu0
    %v5888 = vadd.f32 0.0, %v5887
    %v5889 = vpop.f32.mrb[0].mxu0
    %5890 = vdwg.mxu0
    %v5891 = vadd.f32 %v5581, %v5773
    %v5892 = vadd.f32 %v5582, %v5778
    %v5893 = vadd.f32 %v5583, %v5783
    %v5894 = vadd.f32 %v5584, %v5788
    %v5895 = vadd.f32 %v5585, %v5793
    %v5896 = vadd.f32 %v5586, %v5798
    %v5897 = vadd.f32 %v5587, %v5803
    %v5898 = vadd.f32 %v5588, %v5808
    %v5899 = vadd.f32 %v5589, %v5813
    %v5900 = vadd.f32 %v5590, %v5818
    %v5901 = vadd.f32 %v5591, %v5823
    %v5902 = vadd.f32 %v5592, %v5828
    %v5903 = vadd.f32 %v5593, %v5833
    %v5904 = vadd.f32 %v5594, %v5838
    %v5905 = vadd.f32 %v5595, %v5843
    %v5906 = vadd.f32 %v5596, %v5848
    %v5907 = vadd.f32 %v5597, %v5853
    %v5908 = vadd.f32 %v5598, %v5858
    %v5909 = vadd.f32 %v5599, %v5863
    %v5910 = vadd.f32 %v5600, %v5868
    %v5911 = vadd.f32 %v5601, %v5873
    %v5912 = vadd.f32 %v5602, %v5878
    %v5913 = vadd.f32 %v5603, %v5883
    %v5914 = vadd.f32 %v5604, %v5888
    %v5915 = vld [vmem:[#allocation2 + $0x1c] sm:$0xff]
    %v5916 = vld [vmem:[#allocation2 + $0x24] sm:$0xff]
    %v5917 = vld [vmem:[#allocation2 + $0x2c] sm:$0xff]
    %v5918 = vld [vmem:[#allocation2 + $0x34] sm:$0xff]
    %v5919 = vld [vmem:[#allocation2 + $0x3c] sm:$0xff]
    %v5920 = vld [vmem:[#allocation2 + $0x44] sm:$0xff]
    %v5921 = vld [vmem:[#allocation2 + $0x4c] sm:$0xff]
    %v5922 = vld [vmem:[#allocation2 + $0x54] sm:$0xff]
    %v5923 = vld [vmem:[#allocation2 + $0x5c] sm:$0xff]
    %v5924 = vld [vmem:[#allocation2 + $0x64] sm:$0xff]
    %v5925 = vld [vmem:[#allocation2 + $0x6c] sm:$0xff]
    %v5926 = vld [vmem:[#allocation2 + $0x74] sm:$0xff]
    %v5927 = vld [vmem:[#allocation2 + $0xb4] sm:$0xff]
    %v5928 = vld [vmem:[#allocation2 + $0xbc] sm:$0xff]
    %v5929 = vld [vmem:[#allocation2 + $0xc4] sm:$0xff]
    %v5930 = vld [vmem:[#allocation2 + $0xcc] sm:$0xff]
    %v5931 = vld [vmem:[#allocation2 + $0xd4] sm:$0xff]
    %v5932 = vld [vmem:[#allocation2 + $0xdc] sm:$0xff]
    %v5933 = vld [vmem:[#allocation2 + $0xe4] sm:$0xff]
    %v5934 = vld [vmem:[#allocation2 + $0xec] sm:$0xff]
    %v5935 = vld [vmem:[#allocation2 + $0xf4] sm:$0xff]
    %v5936 = vld [vmem:[#allocation2 + $0xfc] sm:$0xff]
    %v5937 = vld [vmem:[#allocation2 + $0x104] sm:$0xff]
    %v5938 = vld [vmem:[#allocation2 + $0x10c] sm:$0xff]
    %s5939 = scalar_lea.vmem %s3, 448
    %v5940 = vld [vmem:[%s5939] sm:$0xff]
    %v5941 = vld [vmem:[%s5939 + $0x8] sm:$0xff]
    %v5942 = vld [vmem:[%s5939 + $0x10] sm:$0xff]
    %v5943 = vld [vmem:[%s5939 + $0x18] sm:$0xff]
    %v5945 = vsel %vm181, %v5915, 0
    %v5948 = vsel %vm181, %v5916, 0
    %v5951 = vsel %vm181, %v5917, 0
    %v5954 = vsel %vm181, %v5918, 0
    %v5957 = vsel %vm181, %v5919, 0
    %v5960 = vsel %vm181, %v5920, 0
    %v5963 = vsel %vm181, %v5921, 0
    %v5966 = vsel %vm181, %v5922, 0
    %v5969 = vsel %vm181, %v5923, 0
    %v5972 = vsel %vm181, %v5924, 0
    %v5975 = vsel %vm181, %v5925, 0
    %v5978 = vsel %vm181, %v5926, 0
    %v5981 = vsel %vm181, %v5927, 0
    %v5984 = vsel %vm181, %v5928, 0
    %v5987 = vsel %vm181, %v5929, 0
    %v5990 = vsel %vm181, %v5930, 0
    %v5993 = vsel %vm181, %v5931, 0
    %v5996 = vsel %vm181, %v5932, 0
    %v5999 = vsel %vm181, %v5933, 0
    %v6002 = vsel %vm181, %v5934, 0
    %v6005 = vsel %vm181, %v5935, 0
    %v6008 = vsel %vm181, %v5936, 0
    %v6011 = vsel %vm181, %v5937, 0
    %v6014 = vsel %vm181, %v5938, 0
    %6016 = vmatprep.subr.mxu0 0.0
    %6017 = vmatpush1.msra.mxu0 %v5940
    %6018 = vmatprep.subr.mxu0 0.0
    %6019 = vmatpush1.msra.mxu0 %v5941
    %6020 = vmatprep.subr.mxu0 0.0
    %6021 = vmatpush1.msra.mxu0 %v5942
    %6022 = vmatprep.subr.mxu0 0.0
    %6023 = vmatpush1.msra.mxu0 %v5943
    %6024 = vmatprep.subr.mxu0 0.0
    %6025 = vmatpush1.msra.mxu0 0.0
    %6026 = vmatprep.subr.mxu0 0.0
    %6027 = vmatpush1.msra.mxu0 0.0
    %6028 = vmatprep.subr.mxu0 0.0
    %6029 = vmatpush1.msra.mxu0 0.0
    %6030 = vmatprep.subr.mxu0 0.0
    %6031 = vmatpush1.msra.mxu0 0.0
    %6032 = vmatprep.subr.mxu0 0.0
    %6033 = vmatpush1.msra.mxu0 0.0
    %6034 = vmatprep.subr.mxu0 0.0
    %6035 = vmatpush1.msra.mxu0 0.0
    %6036 = vmatprep.subr.mxu0 0.0
    %6037 = vmatpush1.msra.mxu0 0.0
    %6038 = vmatprep.subr.mxu0 0.0
    %6039 = vmatpush1.msra.mxu0 0.0
    %6040 = vmatprep.subr.mxu0 0.0
    %6041 = vmatpush1.msra.mxu0 0.0
    %6042 = vmatprep.subr.mxu0 0.0
    %6043 = vmatpush1.msra.mxu0 0.0
    %6044 = vmatprep.subr.mxu0 0.0
    %6045 = vmatpush1.msra.mxu0 0.0
    %6046 = vmatprep.subr.mxu0 0.0
    %6047 = vmatpush1.msra.mxu0 0.0
    %6048 = vmatprep.subr.mxu0 0.0
    %6049 = vmatpush1.msra.mxu0 0.0
    %6050 = vmatprep.subr.mxu0 0.0
    %6051 = vmatpush1.msra.mxu0 0.0
    %6052 = vmatprep.subr.mxu0 0.0
    %6053 = vmatpush1.msra.mxu0 0.0
    %6054 = vmatprep.subr.mxu0 0.0
    %6055 = vmatpush1.msra.mxu0 0.0
    %6056 = vmatprep.subr.mxu0 0.0
    %6057 = vmatpush1.msra.mxu0 0.0
    %6058 = vmatprep.subr.mxu0 0.0
    %6059 = vmatpush1.msra.mxu0 0.0
    %6060 = vmatprep.subr.mxu0 0.0
    %6061 = vmatpush1.msra.mxu0 0.0
    %6062 = vmatprep.subr.mxu0 0.0
    %6063 = vmatpush1.msra.mxu0 0.0
    %6064 = vmatprep.subr.mxu0 0.0
    %6065 = vmatpush1.msra.mxu0 0.0
    %6066 = vmatprep.subr.mxu0 0.0
    %6067 = vmatpush1.msra.mxu0 0.0
    %6068 = vmatprep.subr.mxu0 0.0
    %6069 = vmatpush1.msra.mxu0 0.0
    %6070 = vmatprep.subr.mxu0 0.0
    %6071 = vmatpush1.msra.mxu0 0.0
    %6072 = vmatprep.subr.mxu0 0.0
    %6073 = vmatpush1.msra.mxu0 0.0
    %6074 = vmatprep.subr.mxu0 0.0
    %6075 = vmatpush1.msra.mxu0 0.0
    %6076 = vmatprep.subr.mxu0 0.0
    %6077 = vmatpush1.msra.mxu0 0.0
    %6078 = vmatprep.subr.mxu0 0.0
    %6079 = vmatpush1.msra.mxu0 0.0
    %6080 = vmatprep.mubr.f32.mxu0 0.0
    %6081 = vmatmul.mubr.f32.gmra.mrb[0].mxu0 %v5945
    %v6082 = vpop.f32.mrb[0].mxu0
    %v6083 = vadd.f32 0.0, %v6082
    %v6084 = vpop.f32.mrb[0].mxu0
    %6085 = vmatprep.mubr.f32.mxu0 0.0
    %6086 = vmatmul.mubr.f32.gmra.mrb[0].mxu0 %v5948
    %v6087 = vpop.f32.mrb[0].mxu0
    %v6088 = vadd.f32 0.0, %v6087
    %v6089 = vpop.f32.mrb[0].mxu0
    %6090 = vmatprep.mubr.f32.mxu0 0.0
    %6091 = vmatmul.mubr.f32.gmra.mrb[0].mxu0 %v5951
    %v6092 = vpop.f32.mrb[0].mxu0
    %v6093 = vadd.f32 0.0, %v6092
    %v6094 = vpop.f32.mrb[0].mxu0
    %6095 = vmatprep.mubr.f32.mxu0 0.0
    %6096 = vmatmul.mubr.f32.gmra.mrb[0].mxu0 %v5954
    %v6097 = vpop.f32.mrb[0].mxu0
    %v6098 = vadd.f32 0.0, %v6097
    %v6099 = vpop.f32.mrb[0].mxu0
    %6100 = vmatprep.mubr.f32.mxu0 0.0
    %6101 = vmatmul.mubr.f32.gmra.mrb[0].mxu0 %v5957
    %v6102 = vpop.f32.mrb[0].mxu0
    %v6103 = vadd.f32 0.0, %v6102
    %v6104 = vpop.f32.mrb[0].mxu0
    %6105 = vmatprep.mubr.f32.mxu0 0.0
    %6106 = vmatmul.mubr.f32.gmra.mrb[0].mxu0 %v5960
    %v6107 = vpop.f32.mrb[0].mxu0
    %v6108 = vadd.f32 0.0, %v6107
    %v6109 = vpop.f32.mrb[0].mxu0
    %6110 = vmatprep.mubr.f32.mxu0 0.0
    %6111 = vmatmul.mubr.f32.gmra.mrb[0].mxu0 %v5963
    %v6112 = vpop.f32.mrb[0].mxu0
    %v6113 = vadd.f32 0.0, %v6112
    %v6114 = vpop.f32.mrb[0].mxu0
    %6115 = vmatprep.mubr.f32.mxu0 0.0
    %6116 = vmatmul.mubr.f32.gmra.mrb[0].mxu0 %v5966
    %v6117 = vpop.f32.mrb[0].mxu0
    %v6118 = vadd.f32 0.0, %v6117
    %v6119 = vpop.f32.mrb[0].mxu0
    %6120 = vmatprep.mubr.f32.mxu0 0.0
    %6121 = vmatmul.mubr.f32.gmra.mrb[0].mxu0 %v5969
    %v6122 = vpop.f32.mrb[0].mxu0
    %v6123 = vadd.f32 0.0, %v6122
    %v6124 = vpop.f32.mrb[0].mxu0
    %6125 = vmatprep.mubr.f32.mxu0 0.0
    %6126 = vmatmul.mubr.f32.gmra.mrb[0].mxu0 %v5972
    %v6127 = vpop.f32.mrb[0].mxu0
    %v6128 = vadd.f32 0.0, %v6127
    %v6129 = vpop.f32.mrb[0].mxu0
    %6130 = vmatprep.mubr.f32.mxu0 0.0
    %6131 = vmatmul.mubr.f32.gmra.mrb[0].mxu0 %v5975
    %v6132 = vpop.f32.mrb[0].mxu0
    %v6133 = vadd.f32 0.0, %v6132
    %v6134 = vpop.f32.mrb[0].mxu0
    %6135 = vmatprep.mubr.f32.mxu0 0.0
    %6136 = vmatmul.mubr.f32.gmra.mrb[0].mxu0 %v5978
    %v6137 = vpop.f32.mrb[0].mxu0
    %v6138 = vadd.f32 0.0, %v6137
    %v6139 = vpop.f32.mrb[0].mxu0
    %6140 = vmatprep.mubr.f32.mxu0 0.0
    %6141 = vmatmul.mubr.f32.gmra.mrb[0].mxu0 %v5981
    %v6142 = vpop.f32.mrb[0].mxu0
    %v6143 = vadd.f32 0.0, %v6142
    %v6144 = vpop.f32.mrb[0].mxu0
    %6145 = vmatprep.mubr.f32.mxu0 0.0
    %6146 = vmatmul.mubr.f32.gmra.mrb[0].mxu0 %v5984
    %v6147 = vpop.f32.mrb[0].mxu0
    %v6148 = vadd.f32 0.0, %v6147
    %v6149 = vpop.f32.mrb[0].mxu0
    %6150 = vmatprep.mubr.f32.mxu0 0.0
    %6151 = vmatmul.mubr.f32.gmra.mrb[0].mxu0 %v5987
    %v6152 = vpop.f32.mrb[0].mxu0
    %v6153 = vadd.f32 0.0, %v6152
    %v6154 = vpop.f32.mrb[0].mxu0
    %6155 = vmatprep.mubr.f32.mxu0 0.0
    %6156 = vmatmul.mubr.f32.gmra.mrb[0].mxu0 %v5990
    %v6157 = vpop.f32.mrb[0].mxu0
    %v6158 = vadd.f32 0.0, %v6157
    %v6159 = vpop.f32.mrb[0].mxu0
    %6160 = vmatprep.mubr.f32.mxu0 0.0
    %6161 = vmatmul.mubr.f32.gmra.mrb[0].mxu0 %v5993
    %v6162 = vpop.f32.mrb[0].mxu0
    %v6163 = vadd.f32 0.0, %v6162
    %v6164 = vpop.f32.mrb[0].mxu0
    %6165 = vmatprep.mubr.f32.mxu0 0.0
    %6166 = vmatmul.mubr.f32.gmra.mrb[0].mxu0 %v5996
    %v6167 = vpop.f32.mrb[0].mxu0
    %v6168 = vadd.f32 0.0, %v6167
    %v6169 = vpop.f32.mrb[0].mxu0
    %6170 = vmatprep.mubr.f32.mxu0 0.0
    %6171 = vmatmul.mubr.f32.gmra.mrb[0].mxu0 %v5999
    %v6172 = vpop.f32.mrb[0].mxu0
    %v6173 = vadd.f32 0.0, %v6172
    %v6174 = vpop.f32.mrb[0].mxu0
    %6175 = vmatprep.mubr.f32.mxu0 0.0
    %6176 = vmatmul.mubr.f32.gmra.mrb[0].mxu0 %v6002
    %v6177 = vpop.f32.mrb[0].mxu0
    %v6178 = vadd.f32 0.0, %v6177
    %v6179 = vpop.f32.mrb[0].mxu0
    %6180 = vmatprep.mubr.f32.mxu0 0.0
    %6181 = vmatmul.mubr.f32.gmra.mrb[0].mxu0 %v6005
    %v6182 = vpop.f32.mrb[0].mxu0
    %v6183 = vadd.f32 0.0, %v6182
    %v6184 = vpop.f32.mrb[0].mxu0
    %6185 = vmatprep.mubr.f32.mxu0 0.0
    %6186 = vmatmul.mubr.f32.gmra.mrb[0].mxu0 %v6008
    %v6187 = vpop.f32.mrb[0].mxu0
    %v6188 = vadd.f32 0.0, %v6187
    %v6189 = vpop.f32.mrb[0].mxu0
    %6190 = vmatprep.mubr.f32.mxu0 0.0
    %6191 = vmatmul.mubr.f32.gmra.mrb[0].mxu0 %v6011
    %v6192 = vpop.f32.mrb[0].mxu0
    %v6193 = vadd.f32 0.0, %v6192
    %v6194 = vpop.f32.mrb[0].mxu0
    %6195 = vmatprep.mubr.f32.mxu0 0.0
    %6196 = vmatmul.mubr.f32.gmra.mrb[0].mxu0 %v6014
    %v6197 = vpop.f32.mrb[0].mxu0
    %v6198 = vadd.f32 0.0, %v6197
    %v6199 = vpop.f32.mrb[0].mxu0
    %6200 = vdwg.mxu0
    %v6201 = vadd.f32 %v5891, %v6083
    %v6202 = vadd.f32 %v5892, %v6088
    %v6203 = vadd.f32 %v5893, %v6093
    %v6204 = vadd.f32 %v5894, %v6098
    %v6205 = vadd.f32 %v5895, %v6103
    %v6206 = vadd.f32 %v5896, %v6108
    %v6207 = vadd.f32 %v5897, %v6113
    %v6208 = vadd.f32 %v5898, %v6118
    %v6209 = vadd.f32 %v5899, %v6123
    %v6210 = vadd.f32 %v5900, %v6128
    %v6211 = vadd.f32 %v5901, %v6133
    %v6212 = vadd.f32 %v5902, %v6138
    %v6213 = vadd.f32 %v5903, %v6143
    %v6214 = vadd.f32 %v5904, %v6148
    %v6215 = vadd.f32 %v5905, %v6153
    %v6216 = vadd.f32 %v5906, %v6158
    %v6217 = vadd.f32 %v5907, %v6163
    %v6218 = vadd.f32 %v5908, %v6168
    %v6219 = vadd.f32 %v5909, %v6173
    %v6220 = vadd.f32 %v5910, %v6178
    %v6221 = vadd.f32 %v5911, %v6183
    %v6222 = vadd.f32 %v5912, %v6188
    %v6223 = vadd.f32 %v5913, %v6193
    %v6224 = vadd.f32 %v5914, %v6198
    %v6225 = vld [vmem:[#allocation2 + $0x24] sm:$0xff]
    %v6226 = vld [vmem:[#allocation2 + $0x2c] sm:$0xff]
    %v6227 = vld [vmem:[#allocation2 + $0x34] sm:$0xff]
    %v6228 = vld [vmem:[#allocation2 + $0x3c] sm:$0xff]
    %v6229 = vld [vmem:[#allocation2 + $0x44] sm:$0xff]
    %v6230 = vld [vmem:[#allocation2 + $0x4c] sm:$0xff]
    %v6231 = vld [vmem:[#allocation2 + $0x54] sm:$0xff]
    %v6232 = vld [vmem:[#allocation2 + $0x5c] sm:$0xff]
    %v6233 = vld [vmem:[#allocation2 + $0x64] sm:$0xff]
    %v6234 = vld [vmem:[#allocation2 + $0x6c] sm:$0xff]
    %v6235 = vld [vmem:[#allocation2 + $0x74] sm:$0xff]
    %v6236 = vld [vmem:[#allocation2 + $0x7c] sm:$0xff]
    %v6237 = vld [vmem:[#allocation2 + $0xbc] sm:$0xff]
    %v6238 = vld [vmem:[#allocation2 + $0xc4] sm:$0xff]
    %v6239 = vld [vmem:[#allocation2 + $0xcc] sm:$0xff]
    %v6240 = vld [vmem:[#allocation2 + $0xd4] sm:$0xff]
    %v6241 = vld [vmem:[#allocation2 + $0xdc] sm:$0xff]
    %v6242 = vld [vmem:[#allocation2 + $0xe4] sm:$0xff]
    %v6243 = vld [vmem:[#allocation2 + $0xec] sm:$0xff]
    %v6244 = vld [vmem:[#allocation2 + $0xf4] sm:$0xff]
    %v6245 = vld [vmem:[#allocation2 + $0xfc] sm:$0xff]
    %v6246 = vld [vmem:[#allocation2 + $0x104] sm:$0xff]
    %v6247 = vld [vmem:[#allocation2 + $0x10c] sm:$0xff]
    %v6248 = vld [vmem:[#allocation2 + $0x114] sm:$0xff]
    %s6249 = scalar_lea.vmem %s3, 480
    %v6250 = vld [vmem:[%s6249] sm:$0xff]
    %v6251 = vld [vmem:[%s6249 + $0x8] sm:$0xff]
    %v6252 = vld [vmem:[%s6249 + $0x10] sm:$0xff]
    %v6253 = vld [vmem:[%s6249 + $0x18] sm:$0xff]
    %v6255 = vsel %vm181, %v6225, 0
    %v6258 = vsel %vm181, %v6226, 0
    %v6261 = vsel %vm181, %v6227, 0
    %v6264 = vsel %vm181, %v6228, 0
    %v6267 = vsel %vm181, %v6229, 0
    %v6270 = vsel %vm181, %v6230, 0
    %v6273 = vsel %vm181, %v6231, 0
    %v6276 = vsel %vm181, %v6232, 0
    %v6279 = vsel %vm181, %v6233, 0
    %v6282 = vsel %vm181, %v6234, 0
    %v6285 = vsel %vm181, %v6235, 0
    %v6288 = vsel %vm181, %v6236, 0
    %v6291 = vsel %vm181, %v6237, 0
    %v6294 = vsel %vm181, %v6238, 0
    %v6297 = vsel %vm181, %v6239, 0
    %v6300 = vsel %vm181, %v6240, 0
    %v6303 = vsel %vm181, %v6241, 0
    %v6306 = vsel %vm181, %v6242, 0
    %v6309 = vsel %vm181, %v6243, 0
    %v6312 = vsel %vm181, %v6244, 0
    %v6315 = vsel %vm181, %v6245, 0
    %v6318 = vsel %vm181, %v6246, 0
    %v6321 = vsel %vm181, %v6247, 0
    %v6324 = vsel %vm181, %v6248, 0
    %6326 = vmatprep.subr.mxu0 0.0
    %6327 = vmatpush1.msra.mxu0 %v6250
    %6328 = vmatprep.subr.mxu0 0.0
    %6329 = vmatpush1.msra.mxu0 %v6251
    %6330 = vmatprep.subr.mxu0 0.0
    %6331 = vmatpush1.msra.mxu0 %v6252
    %6332 = vmatprep.subr.mxu0 0.0
    %6333 = vmatpush1.msra.mxu0 %v6253
    %6334 = vmatprep.subr.mxu0 0.0
    %6335 = vmatpush1.msra.mxu0 0.0
    %6336 = vmatprep.subr.mxu0 0.0
    %6337 = vmatpush1.msra.mxu0 0.0
    %6338 = vmatprep.subr.mxu0 0.0
    %6339 = vmatpush1.msra.mxu0 0.0
    %6340 = vmatprep.subr.mxu0 0.0
    %6341 = vmatpush1.msra.mxu0 0.0
    %6342 = vmatprep.subr.mxu0 0.0
    %6343 = vmatpush1.msra.mxu0 0.0
    %6344 = vmatprep.subr.mxu0 0.0
    %6345 = vmatpush1.msra.mxu0 0.0
    %6346 = vmatprep.subr.mxu0 0.0
    %6347 = vmatpush1.msra.mxu0 0.0
    %6348 = vmatprep.subr.mxu0 0.0
    %6349 = vmatpush1.msra.mxu0 0.0
    %6350 = vmatprep.subr.mxu0 0.0
    %6351 = vmatpush1.msra.mxu0 0.0
    %6352 = vmatprep.subr.mxu0 0.0
    %6353 = vmatpush1.msra.mxu0 0.0
    %6354 = vmatprep.subr.mxu0 0.0
    %6355 = vmatpush1.msra.mxu0 0.0
    %6356 = vmatprep.subr.mxu0 0.0
    %6357 = vmatpush1.msra.mxu0 0.0
    %6358 = vmatprep.subr.mxu0 0.0
    %6359 = vmatpush1.msra.mxu0 0.0
    %6360 = vmatprep.subr.mxu0 0.0
    %6361 = vmatpush1.msra.mxu0 0.0
    %6362 = vmatprep.subr.mxu0 0.0
    %6363 = vmatpush1.msra.mxu0 0.0
    %6364 = vmatprep.subr.mxu0 0.0
    %6365 = vmatpush1.msra.mxu0 0.0
    %6366 = vmatprep.subr.mxu0 0.0
    %6367 = vmatpush1.msra.mxu0 0.0
    %6368 = vmatprep.subr.mxu0 0.0
    %6369 = vmatpush1.msra.mxu0 0.0
    %6370 = vmatprep.subr.mxu0 0.0
    %6371 = vmatpush1.msra.mxu0 0.0
    %6372 = vmatprep.subr.mxu0 0.0
    %6373 = vmatpush1.msra.mxu0 0.0
    %6374 = vmatprep.subr.mxu0 0.0
    %6375 = vmatpush1.msra.mxu0 0.0
    %6376 = vmatprep.subr.mxu0 0.0
    %6377 = vmatpush1.msra.mxu0 0.0
    %6378 = vmatprep.subr.mxu0 0.0
    %6379 = vmatpush1.msra.mxu0 0.0
    %6380 = vmatprep.subr.mxu0 0.0
    %6381 = vmatpush1.msra.mxu0 0.0
    %6382 = vmatprep.subr.mxu0 0.0
    %6383 = vmatpush1.msra.mxu0 0.0
    %6384 = vmatprep.subr.mxu0 0.0
    %6385 = vmatpush1.msra.mxu0 0.0
    %6386 = vmatprep.subr.mxu0 0.0
    %6387 = vmatpush1.msra.mxu0 0.0
    %6388 = vmatprep.subr.mxu0 0.0
    %6389 = vmatpush1.msra.mxu0 0.0
    %6390 = vmatprep.mubr.f32.mxu0 0.0
    %6391 = vmatmul.mubr.f32.gmra.mrb[0].mxu0 %v6255
    %v6392 = vpop.f32.mrb[0].mxu0
    %v6393 = vadd.f32 0.0, %v6392
    %v6394 = vpop.f32.mrb[0].mxu0
    %6395 = vmatprep.mubr.f32.mxu0 0.0
    %6396 = vmatmul.mubr.f32.gmra.mrb[0].mxu0 %v6258
    %v6397 = vpop.f32.mrb[0].mxu0
    %v6398 = vadd.f32 0.0, %v6397
    %v6399 = vpop.f32.mrb[0].mxu0
    %6400 = vmatprep.mubr.f32.mxu0 0.0
    %6401 = vmatmul.mubr.f32.gmra.mrb[0].mxu0 %v6261
    %v6402 = vpop.f32.mrb[0].mxu0
    %v6403 = vadd.f32 0.0, %v6402
    %v6404 = vpop.f32.mrb[0].mxu0
    %6405 = vmatprep.mubr.f32.mxu0 0.0
    %6406 = vmatmul.mubr.f32.gmra.mrb[0].mxu0 %v6264
    %v6407 = vpop.f32.mrb[0].mxu0
    %v6408 = vadd.f32 0.0, %v6407
    %v6409 = vpop.f32.mrb[0].mxu0
    %6410 = vmatprep.mubr.f32.mxu0 0.0
    %6411 = vmatmul.mubr.f32.gmra.mrb[0].mxu0 %v6267
    %v6412 = vpop.f32.mrb[0].mxu0
    %v6413 = vadd.f32 0.0, %v6412
    %v6414 = vpop.f32.mrb[0].mxu0
    %6415 = vmatprep.mubr.f32.mxu0 0.0
    %6416 = vmatmul.mubr.f32.gmra.mrb[0].mxu0 %v6270
    %v6417 = vpop.f32.mrb[0].mxu0
    %v6418 = vadd.f32 0.0, %v6417
    %v6419 = vpop.f32.mrb[0].mxu0
    %6420 = vmatprep.mubr.f32.mxu0 0.0
    %6421 = vmatmul.mubr.f32.gmra.mrb[0].mxu0 %v6273
    %v6422 = vpop.f32.mrb[0].mxu0
    %v6423 = vadd.f32 0.0, %v6422
    %v6424 = vpop.f32.mrb[0].mxu0
    %6425 = vmatprep.mubr.f32.mxu0 0.0
    %6426 = vmatmul.mubr.f32.gmra.mrb[0].mxu0 %v6276
    %v6427 = vpop.f32.mrb[0].mxu0
    %v6428 = vadd.f32 0.0, %v6427
    %v6429 = vpop.f32.mrb[0].mxu0
    %6430 = vmatprep.mubr.f32.mxu0 0.0
    %6431 = vmatmul.mubr.f32.gmra.mrb[0].mxu0 %v6279
    %v6432 = vpop.f32.mrb[0].mxu0
    %v6433 = vadd.f32 0.0, %v6432
    %v6434 = vpop.f32.mrb[0].mxu0
    %6435 = vmatprep.mubr.f32.mxu0 0.0
    %6436 = vmatmul.mubr.f32.gmra.mrb[0].mxu0 %v6282
    %v6437 = vpop.f32.mrb[0].mxu0
    %v6438 = vadd.f32 0.0, %v6437
    %v6439 = vpop.f32.mrb[0].mxu0
    %6440 = vmatprep.mubr.f32.mxu0 0.0
    %6441 = vmatmul.mubr.f32.gmra.mrb[0].mxu0 %v6285
    %v6442 = vpop.f32.mrb[0].mxu0
    %v6443 = vadd.f32 0.0, %v6442
    %v6444 = vpop.f32.mrb[0].mxu0
    %6445 = vmatprep.mubr.f32.mxu0 0.0
    %6446 = vmatmul.mubr.f32.gmra.mrb[0].mxu0 %v6288
    %v6447 = vpop.f32.mrb[0].mxu0
    %v6448 = vadd.f32 0.0, %v6447
    %v6449 = vpop.f32.mrb[0].mxu0
    %6450 = vmatprep.mubr.f32.mxu0 0.0
    %6451 = vmatmul.mubr.f32.gmra.mrb[0].mxu0 %v6291
    %v6452 = vpop.f32.mrb[0].mxu0
    %v6453 = vadd.f32 0.0, %v6452
    %v6454 = vpop.f32.mrb[0].mxu0
    %6455 = vmatprep.mubr.f32.mxu0 0.0
    %6456 = vmatmul.mubr.f32.gmra.mrb[0].mxu0 %v6294
    %v6457 = vpop.f32.mrb[0].mxu0
    %v6458 = vadd.f32 0.0, %v6457
    %v6459 = vpop.f32.mrb[0].mxu0
    %6460 = vmatprep.mubr.f32.mxu0 0.0
    %6461 = vmatmul.mubr.f32.gmra.mrb[0].mxu0 %v6297
    %v6462 = vpop.f32.mrb[0].mxu0
    %v6463 = vadd.f32 0.0, %v6462
    %v6464 = vpop.f32.mrb[0].mxu0
    %6465 = vmatprep.mubr.f32.mxu0 0.0
    %6466 = vmatmul.mubr.f32.gmra.mrb[0].mxu0 %v6300
    %v6467 = vpop.f32.mrb[0].mxu0
    %v6468 = vadd.f32 0.0, %v6467
    %v6469 = vpop.f32.mrb[0].mxu0
    %6470 = vmatprep.mubr.f32.mxu0 0.0
    %6471 = vmatmul.mubr.f32.gmra.mrb[0].mxu0 %v6303
    %v6472 = vpop.f32.mrb[0].mxu0
    %v6473 = vadd.f32 0.0, %v6472
    %v6474 = vpop.f32.mrb[0].mxu0
    %6475 = vmatprep.mubr.f32.mxu0 0.0
    %6476 = vmatmul.mubr.f32.gmra.mrb[0].mxu0 %v6306
    %v6477 = vpop.f32.mrb[0].mxu0
    %v6478 = vadd.f32 0.0, %v6477
    %v6479 = vpop.f32.mrb[0].mxu0
    %6480 = vmatprep.mubr.f32.mxu0 0.0
    %6481 = vmatmul.mubr.f32.gmra.mrb[0].mxu0 %v6309
    %v6482 = vpop.f32.mrb[0].mxu0
    %v6483 = vadd.f32 0.0, %v6482
    %v6484 = vpop.f32.mrb[0].mxu0
    %6485 = vmatprep.mubr.f32.mxu0 0.0
    %6486 = vmatmul.mubr.f32.gmra.mrb[0].mxu0 %v6312
    %v6487 = vpop.f32.mrb[0].mxu0
    %v6488 = vadd.f32 0.0, %v6487
    %v6489 = vpop.f32.mrb[0].mxu0
    %6490 = vmatprep.mubr.f32.mxu0 0.0
    %6491 = vmatmul.mubr.f32.gmra.mrb[0].mxu0 %v6315
    %v6492 = vpop.f32.mrb[0].mxu0
    %v6493 = vadd.f32 0.0, %v6492
    %v6494 = vpop.f32.mrb[0].mxu0
    %6495 = vmatprep.mubr.f32.mxu0 0.0
    %6496 = vmatmul.mubr.f32.gmra.mrb[0].mxu0 %v6318
    %v6497 = vpop.f32.mrb[0].mxu0
    %v6498 = vadd.f32 0.0, %v6497
    %v6499 = vpop.f32.mrb[0].mxu0
    %6500 = vmatprep.mubr.f32.mxu0 0.0
    %6501 = vmatmul.mubr.f32.gmra.mrb[0].mxu0 %v6321
    %v6502 = vpop.f32.mrb[0].mxu0
    %v6503 = vadd.f32 0.0, %v6502
    %v6504 = vpop.f32.mrb[0].mxu0
    %6505 = vmatprep.mubr.f32.mxu0 0.0
    %6506 = vmatmul.mubr.f32.gmra.mrb[0].mxu0 %v6324
    %v6507 = vpop.f32.mrb[0].mxu0
    %v6508 = vadd.f32 0.0, %v6507
    %v6509 = vpop.f32.mrb[0].mxu0
    %6510 = vdwg.mxu0
    %v6511 = vadd.f32 %v6201, %v6393
    %v6512 = vadd.f32 %v6202, %v6398
    %v6513 = vadd.f32 %v6203, %v6403
    %v6514 = vadd.f32 %v6204, %v6408
    %v6515 = vadd.f32 %v6205, %v6413
    %v6516 = vadd.f32 %v6206, %v6418
    %v6517 = vadd.f32 %v6207, %v6423
    %v6518 = vadd.f32 %v6208, %v6428
    %v6519 = vadd.f32 %v6209, %v6433
    %v6520 = vadd.f32 %v6210, %v6438
    %v6521 = vadd.f32 %v6211, %v6443
    %v6522 = vadd.f32 %v6212, %v6448
    %v6523 = vadd.f32 %v6213, %v6453
    %v6524 = vadd.f32 %v6214, %v6458
    %v6525 = vadd.f32 %v6215, %v6463
    %v6526 = vadd.f32 %v6216, %v6468
    %v6527 = vadd.f32 %v6217, %v6473
    %v6528 = vadd.f32 %v6218, %v6478
    %v6529 = vadd.f32 %v6219, %v6483
    %v6530 = vadd.f32 %v6220, %v6488
    %v6531 = vadd.f32 %v6221, %v6493
    %v6532 = vadd.f32 %v6222, %v6498
    %v6533 = vadd.f32 %v6223, %v6503
    %v6534 = vadd.f32 %v6224, %v6508
    %v6535 = vld [vmem:[#allocation2 + $0x25] sm:$0xff]
    %v6536 = vld [vmem:[#allocation2 + $0x2d] sm:$0xff]
    %v6537 = vld [vmem:[#allocation2 + $0x35] sm:$0xff]
    %v6538 = vld [vmem:[#allocation2 + $0x3d] sm:$0xff]
    %v6539 = vld [vmem:[#allocation2 + $0x45] sm:$0xff]
    %v6540 = vld [vmem:[#allocation2 + $0x4d] sm:$0xff]
    %v6541 = vld [vmem:[#allocation2 + $0x55] sm:$0xff]
    %v6542 = vld [vmem:[#allocation2 + $0x5d] sm:$0xff]
    %v6543 = vld [vmem:[#allocation2 + $0x65] sm:$0xff]
    %v6544 = vld [vmem:[#allocation2 + $0x6d] sm:$0xff]
    %v6545 = vld [vmem:[#allocation2 + $0x75] sm:$0xff]
    %v6546 = vld [vmem:[#allocation2 + $0x7d] sm:$0xff]
    %v6547 = vld [vmem:[#allocation2 + $0xbd] sm:$0xff]
    %v6548 = vld [vmem:[#allocation2 + $0xc5] sm:$0xff]
    %v6549 = vld [vmem:[#allocation2 + $0xcd] sm:$0xff]
    %v6550 = vld [vmem:[#allocation2 + $0xd5] sm:$0xff]
    %v6551 = vld [vmem:[#allocation2 + $0xdd] sm:$0xff]
    %v6552 = vld [vmem:[#allocation2 + $0xe5] sm:$0xff]
    %v6553 = vld [vmem:[#allocation2 + $0xed] sm:$0xff]
    %v6554 = vld [vmem:[#allocation2 + $0xf5] sm:$0xff]
    %v6555 = vld [vmem:[#allocation2 + $0xfd] sm:$0xff]
    %v6556 = vld [vmem:[#allocation2 + $0x105] sm:$0xff]
    %v6557 = vld [vmem:[#allocation2 + $0x10d] sm:$0xff]
    %v6558 = vld [vmem:[#allocation2 + $0x115] sm:$0xff]
    %s6559 = scalar_lea.vmem %s3, 512
    %v6560 = vld [vmem:[%s6559] sm:$0xff]
    %v6561 = vld [vmem:[%s6559 + $0x8] sm:$0xff]
    %v6562 = vld [vmem:[%s6559 + $0x10] sm:$0xff]
    %v6563 = vld [vmem:[%s6559 + $0x18] sm:$0xff]
    %v6565 = vsel %vm181, %v6535, 0
    %v6568 = vsel %vm181, %v6536, 0
    %v6571 = vsel %vm181, %v6537, 0
    %v6574 = vsel %vm181, %v6538, 0
    %v6577 = vsel %vm181, %v6539, 0
    %v6580 = vsel %vm181, %v6540, 0
    %v6583 = vsel %vm181, %v6541, 0
    %v6586 = vsel %vm181, %v6542, 0
    %v6589 = vsel %vm181, %v6543, 0
    %v6592 = vsel %vm181, %v6544, 0
    %v6595 = vsel %vm181, %v6545, 0
    %v6598 = vsel %vm181, %v6546, 0
    %v6601 = vsel %vm181, %v6547, 0
    %v6604 = vsel %vm181, %v6548, 0
    %v6607 = vsel %vm181, %v6549, 0
    %v6610 = vsel %vm181, %v6550, 0
    %v6613 = vsel %vm181, %v6551, 0
    %v6616 = vsel %vm181, %v6552, 0
    %v6619 = vsel %vm181, %v6553, 0
    %v6622 = vsel %vm181, %v6554, 0
    %v6625 = vsel %vm181, %v6555, 0
    %v6628 = vsel %vm181, %v6556, 0
    %v6631 = vsel %vm181, %v6557, 0
    %v6634 = vsel %vm181, %v6558, 0
    %6636 = vmatprep.subr.mxu0 0.0
    %6637 = vmatpush1.msra.mxu0 %v6560
    %6638 = vmatprep.subr.mxu0 0.0
    %6639 = vmatpush1.msra.mxu0 %v6561
    %6640 = vmatprep.subr.mxu0 0.0
    %6641 = vmatpush1.msra.mxu0 %v6562
    %6642 = vmatprep.subr.mxu0 0.0
    %6643 = vmatpush1.msra.mxu0 %v6563
    %6644 = vmatprep.subr.mxu0 0.0
    %6645 = vmatpush1.msra.mxu0 0.0
    %6646 = vmatprep.subr.mxu0 0.0
    %6647 = vmatpush1.msra.mxu0 0.0
    %6648 = vmatprep.subr.mxu0 0.0
    %6649 = vmatpush1.msra.mxu0 0.0
    %6650 = vmatprep.subr.mxu0 0.0
    %6651 = vmatpush1.msra.mxu0 0.0
    %6652 = vmatprep.subr.mxu0 0.0
    %6653 = vmatpush1.msra.mxu0 0.0
    %6654 = vmatprep.subr.mxu0 0.0
    %6655 = vmatpush1.msra.mxu0 0.0
    %6656 = vmatprep.subr.mxu0 0.0
    %6657 = vmatpush1.msra.mxu0 0.0
    %6658 = vmatprep.subr.mxu0 0.0
    %6659 = vmatpush1.msra.mxu0 0.0
    %6660 = vmatprep.subr.mxu0 0.0
    %6661 = vmatpush1.msra.mxu0 0.0
    %6662 = vmatprep.subr.mxu0 0.0
    %6663 = vmatpush1.msra.mxu0 0.0
    %6664 = vmatprep.subr.mxu0 0.0
    %6665 = vmatpush1.msra.mxu0 0.0
    %6666 = vmatprep.subr.mxu0 0.0
    %6667 = vmatpush1.msra.mxu0 0.0
    %6668 = vmatprep.subr.mxu0 0.0
    %6669 = vmatpush1.msra.mxu0 0.0
    %6670 = vmatprep.subr.mxu0 0.0
    %6671 = vmatpush1.msra.mxu0 0.0
    %6672 = vmatprep.subr.mxu0 0.0
    %6673 = vmatpush1.msra.mxu0 0.0
    %6674 = vmatprep.subr.mxu0 0.0
    %6675 = vmatpush1.msra.mxu0 0.0
    %6676 = vmatprep.subr.mxu0 0.0
    %6677 = vmatpush1.msra.mxu0 0.0
    %6678 = vmatprep.subr.mxu0 0.0
    %6679 = vmatpush1.msra.mxu0 0.0
    %6680 = vmatprep.subr.mxu0 0.0
    %6681 = vmatpush1.msra.mxu0 0.0
    %6682 = vmatprep.subr.mxu0 0.0
    %6683 = vmatpush1.msra.mxu0 0.0
    %6684 = vmatprep.subr.mxu0 0.0
    %6685 = vmatpush1.msra.mxu0 0.0
    %6686 = vmatprep.subr.mxu0 0.0
    %6687 = vmatpush1.msra.mxu0 0.0
    %6688 = vmatprep.subr.mxu0 0.0
    %6689 = vmatpush1.msra.mxu0 0.0
    %6690 = vmatprep.subr.mxu0 0.0
    %6691 = vmatpush1.msra.mxu0 0.0
    %6692 = vmatprep.subr.mxu0 0.0
    %6693 = vmatpush1.msra.mxu0 0.0
    %6694 = vmatprep.subr.mxu0 0.0
    %6695 = vmatpush1.msra.mxu0 0.0
    %6696 = vmatprep.subr.mxu0 0.0
    %6697 = vmatpush1.msra.mxu0 0.0
    %6698 = vmatprep.subr.mxu0 0.0
    %6699 = vmatpush1.msra.mxu0 0.0
    %6700 = vmatprep.mubr.f32.mxu0 0.0
    %6701 = vmatmul.mubr.f32.gmra.mrb[0].mxu0 %v6565
    %v6702 = vpop.f32.mrb[0].mxu0
    %v6703 = vadd.f32 0.0, %v6702
    %v6704 = vpop.f32.mrb[0].mxu0
    %6705 = vmatprep.mubr.f32.mxu0 0.0
    %6706 = vmatmul.mubr.f32.gmra.mrb[0].mxu0 %v6568
    %v6707 = vpop.f32.mrb[0].mxu0
    %v6708 = vadd.f32 0.0, %v6707
    %v6709 = vpop.f32.mrb[0].mxu0
    %6710 = vmatprep.mubr.f32.mxu0 0.0
    %6711 = vmatmul.mubr.f32.gmra.mrb[0].mxu0 %v6571
    %v6712 = vpop.f32.mrb[0].mxu0
    %v6713 = vadd.f32 0.0, %v6712
    %v6714 = vpop.f32.mrb[0].mxu0
    %6715 = vmatprep.mubr.f32.mxu0 0.0
    %6716 = vmatmul.mubr.f32.gmra.mrb[0].mxu0 %v6574
    %v6717 = vpop.f32.mrb[0].mxu0
    %v6718 = vadd.f32 0.0, %v6717
    %v6719 = vpop.f32.mrb[0].mxu0
    %6720 = vmatprep.mubr.f32.mxu0 0.0
    %6721 = vmatmul.mubr.f32.gmra.mrb[0].mxu0 %v6577
    %v6722 = vpop.f32.mrb[0].mxu0
    %v6723 = vadd.f32 0.0, %v6722
    %v6724 = vpop.f32.mrb[0].mxu0
    %6725 = vmatprep.mubr.f32.mxu0 0.0
    %6726 = vmatmul.mubr.f32.gmra.mrb[0].mxu0 %v6580
    %v6727 = vpop.f32.mrb[0].mxu0
    %v6728 = vadd.f32 0.0, %v6727
    %v6729 = vpop.f32.mrb[0].mxu0
    %6730 = vmatprep.mubr.f32.mxu0 0.0
    %6731 = vmatmul.mubr.f32.gmra.mrb[0].mxu0 %v6583
    %v6732 = vpop.f32.mrb[0].mxu0
    %v6733 = vadd.f32 0.0, %v6732
    %v6734 = vpop.f32.mrb[0].mxu0
    %6735 = vmatprep.mubr.f32.mxu0 0.0
    %6736 = vmatmul.mubr.f32.gmra.mrb[0].mxu0 %v6586
    %v6737 = vpop.f32.mrb[0].mxu0
    %v6738 = vadd.f32 0.0, %v6737
    %v6739 = vpop.f32.mrb[0].mxu0
    %6740 = vmatprep.mubr.f32.mxu0 0.0
    %6741 = vmatmul.mubr.f32.gmra.mrb[0].mxu0 %v6589
    %v6742 = vpop.f32.mrb[0].mxu0
    %v6743 = vadd.f32 0.0, %v6742
    %v6744 = vpop.f32.mrb[0].mxu0
    %6745 = vmatprep.mubr.f32.mxu0 0.0
    %6746 = vmatmul.mubr.f32.gmra.mrb[0].mxu0 %v6592
    %v6747 = vpop.f32.mrb[0].mxu0
    %v6748 = vadd.f32 0.0, %v6747
    %v6749 = vpop.f32.mrb[0].mxu0
    %6750 = vmatprep.mubr.f32.mxu0 0.0
    %6751 = vmatmul.mubr.f32.gmra.mrb[0].mxu0 %v6595
    %v6752 = vpop.f32.mrb[0].mxu0
    %v6753 = vadd.f32 0.0, %v6752
    %v6754 = vpop.f32.mrb[0].mxu0
    %6755 = vmatprep.mubr.f32.mxu0 0.0
    %6756 = vmatmul.mubr.f32.gmra.mrb[0].mxu0 %v6598
    %v6757 = vpop.f32.mrb[0].mxu0
    %v6758 = vadd.f32 0.0, %v6757
    %v6759 = vpop.f32.mrb[0].mxu0
    %6760 = vmatprep.mubr.f32.mxu0 0.0
    %6761 = vmatmul.mubr.f32.gmra.mrb[0].mxu0 %v6601
    %v6762 = vpop.f32.mrb[0].mxu0
    %v6763 = vadd.f32 0.0, %v6762
    %v6764 = vpop.f32.mrb[0].mxu0
    %6765 = vmatprep.mubr.f32.mxu0 0.0
    %6766 = vmatmul.mubr.f32.gmra.mrb[0].mxu0 %v6604
    %v6767 = vpop.f32.mrb[0].mxu0
    %v6768 = vadd.f32 0.0, %v6767
    %v6769 = vpop.f32.mrb[0].mxu0
    %6770 = vmatprep.mubr.f32.mxu0 0.0
    %6771 = vmatmul.mubr.f32.gmra.mrb[0].mxu0 %v6607
    %v6772 = vpop.f32.mrb[0].mxu0
    %v6773 = vadd.f32 0.0, %v6772
    %v6774 = vpop.f32.mrb[0].mxu0
    %6775 = vmatprep.mubr.f32.mxu0 0.0
    %6776 = vmatmul.mubr.f32.gmra.mrb[0].mxu0 %v6610
    %v6777 = vpop.f32.mrb[0].mxu0
    %v6778 = vadd.f32 0.0, %v6777
    %v6779 = vpop.f32.mrb[0].mxu0
    %6780 = vmatprep.mubr.f32.mxu0 0.0
    %6781 = vmatmul.mubr.f32.gmra.mrb[0].mxu0 %v6613
    %v6782 = vpop.f32.mrb[0].mxu0
    %v6783 = vadd.f32 0.0, %v6782
    %v6784 = vpop.f32.mrb[0].mxu0
    %6785 = vmatprep.mubr.f32.mxu0 0.0
    %6786 = vmatmul.mubr.f32.gmra.mrb[0].mxu0 %v6616
    %v6787 = vpop.f32.mrb[0].mxu0
    %v6788 = vadd.f32 0.0, %v6787
    %v6789 = vpop.f32.mrb[0].mxu0
    %6790 = vmatprep.mubr.f32.mxu0 0.0
    %6791 = vmatmul.mubr.f32.gmra.mrb[0].mxu0 %v6619
    %v6792 = vpop.f32.mrb[0].mxu0
    %v6793 = vadd.f32 0.0, %v6792
    %v6794 = vpop.f32.mrb[0].mxu0
    %6795 = vmatprep.mubr.f32.mxu0 0.0
    %6796 = vmatmul.mubr.f32.gmra.mrb[0].mxu0 %v6622
    %v6797 = vpop.f32.mrb[0].mxu0
    %v6798 = vadd.f32 0.0, %v6797
    %v6799 = vpop.f32.mrb[0].mxu0
    %6800 = vmatprep.mubr.f32.mxu0 0.0
    %6801 = vmatmul.mubr.f32.gmra.mrb[0].mxu0 %v6625
    %v6802 = vpop.f32.mrb[0].mxu0
    %v6803 = vadd.f32 0.0, %v6802
    %v6804 = vpop.f32.mrb[0].mxu0
    %6805 = vmatprep.mubr.f32.mxu0 0.0
    %6806 = vmatmul.mubr.f32.gmra.mrb[0].mxu0 %v6628
    %v6807 = vpop.f32.mrb[0].mxu0
    %v6808 = vadd.f32 0.0, %v6807
    %v6809 = vpop.f32.mrb[0].mxu0
    %6810 = vmatprep.mubr.f32.mxu0 0.0
    %6811 = vmatmul.mubr.f32.gmra.mrb[0].mxu0 %v6631
    %v6812 = vpop.f32.mrb[0].mxu0
    %v6813 = vadd.f32 0.0, %v6812
    %v6814 = vpop.f32.mrb[0].mxu0
    %6815 = vmatprep.mubr.f32.mxu0 0.0
    %6816 = vmatmul.mubr.f32.gmra.mrb[0].mxu0 %v6634
    %v6817 = vpop.f32.mrb[0].mxu0
    %v6818 = vadd.f32 0.0, %v6817
    %v6819 = vpop.f32.mrb[0].mxu0
    %6820 = vdwg.mxu0
    %v6821 = vadd.f32 %v6511, %v6703
    %v6822 = vadd.f32 %v6512, %v6708
    %v6823 = vadd.f32 %v6513, %v6713
    %v6824 = vadd.f32 %v6514, %v6718
    %v6825 = vadd.f32 %v6515, %v6723
    %v6826 = vadd.f32 %v6516, %v6728
    %v6827 = vadd.f32 %v6517, %v6733
    %v6828 = vadd.f32 %v6518, %v6738
    %v6829 = vadd.f32 %v6519, %v6743
    %v6830 = vadd.f32 %v6520, %v6748
    %v6831 = vadd.f32 %v6521, %v6753
    %v6832 = vadd.f32 %v6522, %v6758
    %v6833 = vadd.f32 %v6523, %v6763
    %v6834 = vadd.f32 %v6524, %v6768
    %v6835 = vadd.f32 %v6525, %v6773
    %v6836 = vadd.f32 %v6526, %v6778
    %v6837 = vadd.f32 %v6527, %v6783
    %v6838 = vadd.f32 %v6528, %v6788
    %v6839 = vadd.f32 %v6529, %v6793
    %v6840 = vadd.f32 %v6530, %v6798
    %v6841 = vadd.f32 %v6531, %v6803
    %v6842 = vadd.f32 %v6532, %v6808
    %v6843 = vadd.f32 %v6533, %v6813
    %v6844 = vadd.f32 %v6534, %v6818
    %v6845 = vld [vmem:[#allocation2 + $0x26] sm:$0xff]
    %v6846 = vld [vmem:[#allocation2 + $0x2e] sm:$0xff]
    %v6847 = vld [vmem:[#allocation2 + $0x36] sm:$0xff]
    %v6848 = vld [vmem:[#allocation2 + $0x3e] sm:$0xff]
    %v6849 = vld [vmem:[#allocation2 + $0x46] sm:$0xff]
    %v6850 = vld [vmem:[#allocation2 + $0x4e] sm:$0xff]
    %v6851 = vld [vmem:[#allocation2 + $0x56] sm:$0xff]
    %v6852 = vld [vmem:[#allocation2 + $0x5e] sm:$0xff]
    %v6853 = vld [vmem:[#allocation2 + $0x66] sm:$0xff]
    %v6854 = vld [vmem:[#allocation2 + $0x6e] sm:$0xff]
    %v6855 = vld [vmem:[#allocation2 + $0x76] sm:$0xff]
    %v6856 = vld [vmem:[#allocation2 + $0x7e] sm:$0xff]
    %v6857 = vld [vmem:[#allocation2 + $0xbe] sm:$0xff]
    %v6858 = vld [vmem:[#allocation2 + $0xc6] sm:$0xff]
    %v6859 = vld [vmem:[#allocation2 + $0xce] sm:$0xff]
    %v6860 = vld [vmem:[#allocation2 + $0xd6] sm:$0xff]
    %v6861 = vld [vmem:[#allocation2 + $0xde] sm:$0xff]
    %v6862 = vld [vmem:[#allocation2 + $0xe6] sm:$0xff]
    %v6863 = vld [vmem:[#allocation2 + $0xee] sm:$0xff]
    %v6864 = vld [vmem:[#allocation2 + $0xf6] sm:$0xff]
    %v6865 = vld [vmem:[#allocation2 + $0xfe] sm:$0xff]
    %v6866 = vld [vmem:[#allocation2 + $0x106] sm:$0xff]
    %v6867 = vld [vmem:[#allocation2 + $0x10e] sm:$0xff]
    %v6868 = vld [vmem:[#allocation2 + $0x116] sm:$0xff]
    %s6869 = scalar_lea.vmem %s3, 544
    %v6870 = vld [vmem:[%s6869] sm:$0xff]
    %v6871 = vld [vmem:[%s6869 + $0x8] sm:$0xff]
    %v6872 = vld [vmem:[%s6869 + $0x10] sm:$0xff]
    %v6873 = vld [vmem:[%s6869 + $0x18] sm:$0xff]
    %v6875 = vsel %vm181, %v6845, 0
    %v6878 = vsel %vm181, %v6846, 0
    %v6881 = vsel %vm181, %v6847, 0
    %v6884 = vsel %vm181, %v6848, 0
    %v6887 = vsel %vm181, %v6849, 0
    %v6890 = vsel %vm181, %v6850, 0
    %v6893 = vsel %vm181, %v6851, 0
    %v6896 = vsel %vm181, %v6852, 0
    %v6899 = vsel %vm181, %v6853, 0
    %v6902 = vsel %vm181, %v6854, 0
    %v6905 = vsel %vm181, %v6855, 0
    %v6908 = vsel %vm181, %v6856, 0
    %v6911 = vsel %vm181, %v6857, 0
    %v6914 = vsel %vm181, %v6858, 0
    %v6917 = vsel %vm181, %v6859, 0
    %v6920 = vsel %vm181, %v6860, 0
    %v6923 = vsel %vm181, %v6861, 0
    %v6926 = vsel %vm181, %v6862, 0
    %v6929 = vsel %vm181, %v6863, 0
    %v6932 = vsel %vm181, %v6864, 0
    %v6935 = vsel %vm181, %v6865, 0
    %v6938 = vsel %vm181, %v6866, 0
    %v6941 = vsel %vm181, %v6867, 0
    %v6944 = vsel %vm181, %v6868, 0
    %6946 = vmatprep.subr.mxu0 0.0
    %6947 = vmatpush1.msra.mxu0 %v6870
    %6948 = vmatprep.subr.mxu0 0.0
    %6949 = vmatpush1.msra.mxu0 %v6871
    %6950 = vmatprep.subr.mxu0 0.0
    %6951 = vmatpush1.msra.mxu0 %v6872
    %6952 = vmatprep.subr.mxu0 0.0
    %6953 = vmatpush1.msra.mxu0 %v6873
    %6954 = vmatprep.subr.mxu0 0.0
    %6955 = vmatpush1.msra.mxu0 0.0
    %6956 = vmatprep.subr.mxu0 0.0
    %6957 = vmatpush1.msra.mxu0 0.0
    %6958 = vmatprep.subr.mxu0 0.0
    %6959 = vmatpush1.msra.mxu0 0.0
    %6960 = vmatprep.subr.mxu0 0.0
    %6961 = vmatpush1.msra.mxu0 0.0
    %6962 = vmatprep.subr.mxu0 0.0
    %6963 = vmatpush1.msra.mxu0 0.0
    %6964 = vmatprep.subr.mxu0 0.0
    %6965 = vmatpush1.msra.mxu0 0.0
    %6966 = vmatprep.subr.mxu0 0.0
    %6967 = vmatpush1.msra.mxu0 0.0
    %6968 = vmatprep.subr.mxu0 0.0
    %6969 = vmatpush1.msra.mxu0 0.0
    %6970 = vmatprep.subr.mxu0 0.0
    %6971 = vmatpush1.msra.mxu0 0.0
    %6972 = vmatprep.subr.mxu0 0.0
    %6973 = vmatpush1.msra.mxu0 0.0
    %6974 = vmatprep.subr.mxu0 0.0
    %6975 = vmatpush1.msra.mxu0 0.0
    %6976 = vmatprep.subr.mxu0 0.0
    %6977 = vmatpush1.msra.mxu0 0.0
    %6978 = vmatprep.subr.mxu0 0.0
    %6979 = vmatpush1.msra.mxu0 0.0
    %6980 = vmatprep.subr.mxu0 0.0
    %6981 = vmatpush1.msra.mxu0 0.0
    %6982 = vmatprep.subr.mxu0 0.0
    %6983 = vmatpush1.msra.mxu0 0.0
    %6984 = vmatprep.subr.mxu0 0.0
    %6985 = vmatpush1.msra.mxu0 0.0
    %6986 = vmatprep.subr.mxu0 0.0
    %6987 = vmatpush1.msra.mxu0 0.0
    %6988 = vmatprep.subr.mxu0 0.0
    %6989 = vmatpush1.msra.mxu0 0.0
    %6990 = vmatprep.subr.mxu0 0.0
    %6991 = vmatpush1.msra.mxu0 0.0
    %6992 = vmatprep.subr.mxu0 0.0
    %6993 = vmatpush1.msra.mxu0 0.0
    %6994 = vmatprep.subr.mxu0 0.0
    %6995 = vmatpush1.msra.mxu0 0.0
    %6996 = vmatprep.subr.mxu0 0.0
    %6997 = vmatpush1.msra.mxu0 0.0
    %6998 = vmatprep.subr.mxu0 0.0
    %6999 = vmatpush1.msra.mxu0 0.0
    %7000 = vmatprep.subr.mxu0 0.0
    %7001 = vmatpush1.msra.mxu0 0.0
    %7002 = vmatprep.subr.mxu0 0.0
    %7003 = vmatpush1.msra.mxu0 0.0
    %7004 = vmatprep.subr.mxu0 0.0
    %7005 = vmatpush1.msra.mxu0 0.0
    %7006 = vmatprep.subr.mxu0 0.0
    %7007 = vmatpush1.msra.mxu0 0.0
    %7008 = vmatprep.subr.mxu0 0.0
    %7009 = vmatpush1.msra.mxu0 0.0
    %7010 = vmatprep.mubr.f32.mxu0 0.0
    %7011 = vmatmul.mubr.f32.gmra.mrb[0].mxu0 %v6875
    %v7012 = vpop.f32.mrb[0].mxu0
    %v7013 = vadd.f32 0.0, %v7012
    %v7014 = vpop.f32.mrb[0].mxu0
    %7015 = vmatprep.mubr.f32.mxu0 0.0
    %7016 = vmatmul.mubr.f32.gmra.mrb[0].mxu0 %v6878
    %v7017 = vpop.f32.mrb[0].mxu0
    %v7018 = vadd.f32 0.0, %v7017
    %v7019 = vpop.f32.mrb[0].mxu0
    %7020 = vmatprep.mubr.f32.mxu0 0.0
    %7021 = vmatmul.mubr.f32.gmra.mrb[0].mxu0 %v6881
    %v7022 = vpop.f32.mrb[0].mxu0
    %v7023 = vadd.f32 0.0, %v7022
    %v7024 = vpop.f32.mrb[0].mxu0
    %7025 = vmatprep.mubr.f32.mxu0 0.0
    %7026 = vmatmul.mubr.f32.gmra.mrb[0].mxu0 %v6884
    %v7027 = vpop.f32.mrb[0].mxu0
    %v7028 = vadd.f32 0.0, %v7027
    %v7029 = vpop.f32.mrb[0].mxu0
    %7030 = vmatprep.mubr.f32.mxu0 0.0
    %7031 = vmatmul.mubr.f32.gmra.mrb[0].mxu0 %v6887
    %v7032 = vpop.f32.mrb[0].mxu0
    %v7033 = vadd.f32 0.0, %v7032
    %v7034 = vpop.f32.mrb[0].mxu0
    %7035 = vmatprep.mubr.f32.mxu0 0.0
    %7036 = vmatmul.mubr.f32.gmra.mrb[0].mxu0 %v6890
    %v7037 = vpop.f32.mrb[0].mxu0
    %v7038 = vadd.f32 0.0, %v7037
    %v7039 = vpop.f32.mrb[0].mxu0
    %7040 = vmatprep.mubr.f32.mxu0 0.0
    %7041 = vmatmul.mubr.f32.gmra.mrb[0].mxu0 %v6893
    %v7042 = vpop.f32.mrb[0].mxu0
    %v7043 = vadd.f32 0.0, %v7042
    %v7044 = vpop.f32.mrb[0].mxu0
    %7045 = vmatprep.mubr.f32.mxu0 0.0
    %7046 = vmatmul.mubr.f32.gmra.mrb[0].mxu0 %v6896
    %v7047 = vpop.f32.mrb[0].mxu0
    %v7048 = vadd.f32 0.0, %v7047
    %v7049 = vpop.f32.mrb[0].mxu0
    %7050 = vmatprep.mubr.f32.mxu0 0.0
    %7051 = vmatmul.mubr.f32.gmra.mrb[0].mxu0 %v6899
    %v7052 = vpop.f32.mrb[0].mxu0
    %v7053 = vadd.f32 0.0, %v7052
    %v7054 = vpop.f32.mrb[0].mxu0
    %7055 = vmatprep.mubr.f32.mxu0 0.0
    %7056 = vmatmul.mubr.f32.gmra.mrb[0].mxu0 %v6902
    %v7057 = vpop.f32.mrb[0].mxu0
    %v7058 = vadd.f32 0.0, %v7057
    %v7059 = vpop.f32.mrb[0].mxu0
    %7060 = vmatprep.mubr.f32.mxu0 0.0
    %7061 = vmatmul.mubr.f32.gmra.mrb[0].mxu0 %v6905
    %v7062 = vpop.f32.mrb[0].mxu0
    %v7063 = vadd.f32 0.0, %v7062
    %v7064 = vpop.f32.mrb[0].mxu0
    %7065 = vmatprep.mubr.f32.mxu0 0.0
    %7066 = vmatmul.mubr.f32.gmra.mrb[0].mxu0 %v6908
    %v7067 = vpop.f32.mrb[0].mxu0
    %v7068 = vadd.f32 0.0, %v7067
    %v7069 = vpop.f32.mrb[0].mxu0
    %7070 = vmatprep.mubr.f32.mxu0 0.0
    %7071 = vmatmul.mubr.f32.gmra.mrb[0].mxu0 %v6911
    %v7072 = vpop.f32.mrb[0].mxu0
    %v7073 = vadd.f32 0.0, %v7072
    %v7074 = vpop.f32.mrb[0].mxu0
    %7075 = vmatprep.mubr.f32.mxu0 0.0
    %7076 = vmatmul.mubr.f32.gmra.mrb[0].mxu0 %v6914
    %v7077 = vpop.f32.mrb[0].mxu0
    %v7078 = vadd.f32 0.0, %v7077
    %v7079 = vpop.f32.mrb[0].mxu0
    %7080 = vmatprep.mubr.f32.mxu0 0.0
    %7081 = vmatmul.mubr.f32.gmra.mrb[0].mxu0 %v6917
    %v7082 = vpop.f32.mrb[0].mxu0
    %v7083 = vadd.f32 0.0, %v7082
    %v7084 = vpop.f32.mrb[0].mxu0
    %7085 = vmatprep.mubr.f32.mxu0 0.0
    %7086 = vmatmul.mubr.f32.gmra.mrb[0].mxu0 %v6920
    %v7087 = vpop.f32.mrb[0].mxu0
    %v7088 = vadd.f32 0.0, %v7087
    %v7089 = vpop.f32.mrb[0].mxu0
    %7090 = vmatprep.mubr.f32.mxu0 0.0
    %7091 = vmatmul.mubr.f32.gmra.mrb[0].mxu0 %v6923
    %v7092 = vpop.f32.mrb[0].mxu0
    %v7093 = vadd.f32 0.0, %v7092
    %v7094 = vpop.f32.mrb[0].mxu0
    %7095 = vmatprep.mubr.f32.mxu0 0.0
    %7096 = vmatmul.mubr.f32.gmra.mrb[0].mxu0 %v6926
    %v7097 = vpop.f32.mrb[0].mxu0
    %v7098 = vadd.f32 0.0, %v7097
    %v7099 = vpop.f32.mrb[0].mxu0
    %7100 = vmatprep.mubr.f32.mxu0 0.0
    %7101 = vmatmul.mubr.f32.gmra.mrb[0].mxu0 %v6929
    %v7102 = vpop.f32.mrb[0].mxu0
    %v7103 = vadd.f32 0.0, %v7102
    %v7104 = vpop.f32.mrb[0].mxu0
    %7105 = vmatprep.mubr.f32.mxu0 0.0
    %7106 = vmatmul.mubr.f32.gmra.mrb[0].mxu0 %v6932
    %v7107 = vpop.f32.mrb[0].mxu0
    %v7108 = vadd.f32 0.0, %v7107
    %v7109 = vpop.f32.mrb[0].mxu0
    %7110 = vmatprep.mubr.f32.mxu0 0.0
    %7111 = vmatmul.mubr.f32.gmra.mrb[0].mxu0 %v6935
    %v7112 = vpop.f32.mrb[0].mxu0
    %v7113 = vadd.f32 0.0, %v7112
    %v7114 = vpop.f32.mrb[0].mxu0
    %7115 = vmatprep.mubr.f32.mxu0 0.0
    %7116 = vmatmul.mubr.f32.gmra.mrb[0].mxu0 %v6938
    %v7117 = vpop.f32.mrb[0].mxu0
    %v7118 = vadd.f32 0.0, %v7117
    %v7119 = vpop.f32.mrb[0].mxu0
    %7120 = vmatprep.mubr.f32.mxu0 0.0
    %7121 = vmatmul.mubr.f32.gmra.mrb[0].mxu0 %v6941
    %v7122 = vpop.f32.mrb[0].mxu0
    %v7123 = vadd.f32 0.0, %v7122
    %v7124 = vpop.f32.mrb[0].mxu0
    %7125 = vmatprep.mubr.f32.mxu0 0.0
    %7126 = vmatmul.mubr.f32.gmra.mrb[0].mxu0 %v6944
    %v7127 = vpop.f32.mrb[0].mxu0
    %v7128 = vadd.f32 0.0, %v7127
    %v7129 = vpop.f32.mrb[0].mxu0
    %7130 = vdwg.mxu0
    %v7131 = vadd.f32 %v6821, %v7013
    %v7132 = vadd.f32 %v6822, %v7018
    %v7133 = vadd.f32 %v6823, %v7023
    %v7134 = vadd.f32 %v6824, %v7028
    %v7135 = vadd.f32 %v6825, %v7033
    %v7136 = vadd.f32 %v6826, %v7038
    %v7137 = vadd.f32 %v6827, %v7043
    %v7138 = vadd.f32 %v6828, %v7048
    %v7139 = vadd.f32 %v6829, %v7053
    %v7140 = vadd.f32 %v6830, %v7058
    %v7141 = vadd.f32 %v6831, %v7063
    %v7142 = vadd.f32 %v6832, %v7068
    %v7143 = vadd.f32 %v6833, %v7073
    %v7144 = vadd.f32 %v6834, %v7078
    %v7145 = vadd.f32 %v6835, %v7083
    %v7146 = vadd.f32 %v6836, %v7088
    %v7147 = vadd.f32 %v6837, %v7093
    %v7148 = vadd.f32 %v6838, %v7098
    %v7149 = vadd.f32 %v6839, %v7103
    %v7150 = vadd.f32 %v6840, %v7108
    %v7151 = vadd.f32 %v6841, %v7113
    %v7152 = vadd.f32 %v6842, %v7118
    %v7153 = vadd.f32 %v6843, %v7123
    %v7154 = vadd.f32 %v6844, %v7128
    %v7155 = vld [vmem:[#allocation2 + $0x27] sm:$0xff]
    %v7156 = vld [vmem:[#allocation2 + $0x2f] sm:$0xff]
    %v7157 = vld [vmem:[#allocation2 + $0x37] sm:$0xff]
    %v7158 = vld [vmem:[#allocation2 + $0x3f] sm:$0xff]
    %v7159 = vld [vmem:[#allocation2 + $0x47] sm:$0xff]
    %v7160 = vld [vmem:[#allocation2 + $0x4f] sm:$0xff]
    %v7161 = vld [vmem:[#allocation2 + $0x57] sm:$0xff]
    %v7162 = vld [vmem:[#allocation2 + $0x5f] sm:$0xff]
    %v7163 = vld [vmem:[#allocation2 + $0x67] sm:$0xff]
    %v7164 = vld [vmem:[#allocation2 + $0x6f] sm:$0xff]
    %v7165 = vld [vmem:[#allocation2 + $0x77] sm:$0xff]
    %v7166 = vld [vmem:[#allocation2 + $0x7f] sm:$0xff]
    %v7167 = vld [vmem:[#allocation2 + $0xbf] sm:$0xff]
    %v7168 = vld [vmem:[#allocation2 + $0xc7] sm:$0xff]
    %v7169 = vld [vmem:[#allocation2 + $0xcf] sm:$0xff]
    %v7170 = vld [vmem:[#allocation2 + $0xd7] sm:$0xff]
    %v7171 = vld [vmem:[#allocation2 + $0xdf] sm:$0xff]
    %v7172 = vld [vmem:[#allocation2 + $0xe7] sm:$0xff]
    %v7173 = vld [vmem:[#allocation2 + $0xef] sm:$0xff]
    %v7174 = vld [vmem:[#allocation2 + $0xf7] sm:$0xff]
    %v7175 = vld [vmem:[#allocation2 + $0xff] sm:$0xff]
    %v7176 = vld [vmem:[#allocation2 + $0x107] sm:$0xff]
    %v7177 = vld [vmem:[#allocation2 + $0x10f] sm:$0xff]
    %v7178 = vld [vmem:[#allocation2 + $0x117] sm:$0xff]
    %s7179 = scalar_lea.vmem %s3, 576
    %v7180 = vld [vmem:[%s7179] sm:$0xff]
    %v7181 = vld [vmem:[%s7179 + $0x8] sm:$0xff]
    %v7182 = vld [vmem:[%s7179 + $0x10] sm:$0xff]
    %v7183 = vld [vmem:[%s7179 + $0x18] sm:$0xff]
    %v7185 = vsel %vm181, %v7155, 0
    %v7188 = vsel %vm181, %v7156, 0
    %v7191 = vsel %vm181, %v7157, 0
    %v7194 = vsel %vm181, %v7158, 0
    %v7197 = vsel %vm181, %v7159, 0
    %v7200 = vsel %vm181, %v7160, 0
    %v7203 = vsel %vm181, %v7161, 0
    %v7206 = vsel %vm181, %v7162, 0
    %v7209 = vsel %vm181, %v7163, 0
    %v7212 = vsel %vm181, %v7164, 0
    %v7215 = vsel %vm181, %v7165, 0
    %v7218 = vsel %vm181, %v7166, 0
    %v7221 = vsel %vm181, %v7167, 0
    %v7224 = vsel %vm181, %v7168, 0
    %v7227 = vsel %vm181, %v7169, 0
    %v7230 = vsel %vm181, %v7170, 0
    %v7233 = vsel %vm181, %v7171, 0
    %v7236 = vsel %vm181, %v7172, 0
    %v7239 = vsel %vm181, %v7173, 0
    %v7242 = vsel %vm181, %v7174, 0
    %v7245 = vsel %vm181, %v7175, 0
    %v7248 = vsel %vm181, %v7176, 0
    %v7251 = vsel %vm181, %v7177, 0
    %v7254 = vsel %vm181, %v7178, 0
    %7256 = vmatprep.subr.mxu0 0.0
    %7257 = vmatpush1.msra.mxu0 %v7180
    %7258 = vmatprep.subr.mxu0 0.0
    %7259 = vmatpush1.msra.mxu0 %v7181
    %7260 = vmatprep.subr.mxu0 0.0
    %7261 = vmatpush1.msra.mxu0 %v7182
    %7262 = vmatprep.subr.mxu0 0.0
    %7263 = vmatpush1.msra.mxu0 %v7183
    %7264 = vmatprep.subr.mxu0 0.0
    %7265 = vmatpush1.msra.mxu0 0.0
    %7266 = vmatprep.subr.mxu0 0.0
    %7267 = vmatpush1.msra.mxu0 0.0
    %7268 = vmatprep.subr.mxu0 0.0
    %7269 = vmatpush1.msra.mxu0 0.0
    %7270 = vmatprep.subr.mxu0 0.0
    %7271 = vmatpush1.msra.mxu0 0.0
    %7272 = vmatprep.subr.mxu0 0.0
    %7273 = vmatpush1.msra.mxu0 0.0
    %7274 = vmatprep.subr.mxu0 0.0
    %7275 = vmatpush1.msra.mxu0 0.0
    %7276 = vmatprep.subr.mxu0 0.0
    %7277 = vmatpush1.msra.mxu0 0.0
    %7278 = vmatprep.subr.mxu0 0.0
    %7279 = vmatpush1.msra.mxu0 0.0
    %7280 = vmatprep.subr.mxu0 0.0
    %7281 = vmatpush1.msra.mxu0 0.0
    %7282 = vmatprep.subr.mxu0 0.0
    %7283 = vmatpush1.msra.mxu0 0.0
    %7284 = vmatprep.subr.mxu0 0.0
    %7285 = vmatpush1.msra.mxu0 0.0
    %7286 = vmatprep.subr.mxu0 0.0
    %7287 = vmatpush1.msra.mxu0 0.0
    %7288 = vmatprep.subr.mxu0 0.0
    %7289 = vmatpush1.msra.mxu0 0.0
    %7290 = vmatprep.subr.mxu0 0.0
    %7291 = vmatpush1.msra.mxu0 0.0
    %7292 = vmatprep.subr.mxu0 0.0
    %7293 = vmatpush1.msra.mxu0 0.0
    %7294 = vmatprep.subr.mxu0 0.0
    %7295 = vmatpush1.msra.mxu0 0.0
    %7296 = vmatprep.subr.mxu0 0.0
    %7297 = vmatpush1.msra.mxu0 0.0
    %7298 = vmatprep.subr.mxu0 0.0
    %7299 = vmatpush1.msra.mxu0 0.0
    %7300 = vmatprep.subr.mxu0 0.0
    %7301 = vmatpush1.msra.mxu0 0.0
    %7302 = vmatprep.subr.mxu0 0.0
    %7303 = vmatpush1.msra.mxu0 0.0
    %7304 = vmatprep.subr.mxu0 0.0
    %7305 = vmatpush1.msra.mxu0 0.0
    %7306 = vmatprep.subr.mxu0 0.0
    %7307 = vmatpush1.msra.mxu0 0.0
    %7308 = vmatprep.subr.mxu0 0.0
    %7309 = vmatpush1.msra.mxu0 0.0
    %7310 = vmatprep.subr.mxu0 0.0
    %7311 = vmatpush1.msra.mxu0 0.0
    %7312 = vmatprep.subr.mxu0 0.0
    %7313 = vmatpush1.msra.mxu0 0.0
    %7314 = vmatprep.subr.mxu0 0.0
    %7315 = vmatpush1.msra.mxu0 0.0
    %7316 = vmatprep.subr.mxu0 0.0
    %7317 = vmatpush1.msra.mxu0 0.0
    %7318 = vmatprep.subr.mxu0 0.0
    %7319 = vmatpush1.msra.mxu0 0.0
    %7320 = vmatprep.mubr.f32.mxu0 0.0
    %7321 = vmatmul.mubr.f32.gmra.mrb[0].mxu0 %v7185
    %v7322 = vpop.f32.mrb[0].mxu0
    %v7323 = vadd.f32 0.0, %v7322
    %v7324 = vpop.f32.mrb[0].mxu0
    %7325 = vmatprep.mubr.f32.mxu0 0.0
    %7326 = vmatmul.mubr.f32.gmra.mrb[0].mxu0 %v7188
    %v7327 = vpop.f32.mrb[0].mxu0
    %v7328 = vadd.f32 0.0, %v7327
    %v7329 = vpop.f32.mrb[0].mxu0
    %7330 = vmatprep.mubr.f32.mxu0 0.0
    %7331 = vmatmul.mubr.f32.gmra.mrb[0].mxu0 %v7191
    %v7332 = vpop.f32.mrb[0].mxu0
    %v7333 = vadd.f32 0.0, %v7332
    %v7334 = vpop.f32.mrb[0].mxu0
    %7335 = vmatprep.mubr.f32.mxu0 0.0
    %7336 = vmatmul.mubr.f32.gmra.mrb[0].mxu0 %v7194
    %v7337 = vpop.f32.mrb[0].mxu0
    %v7338 = vadd.f32 0.0, %v7337
    %v7339 = vpop.f32.mrb[0].mxu0
    %7340 = vmatprep.mubr.f32.mxu0 0.0
    %7341 = vmatmul.mubr.f32.gmra.mrb[0].mxu0 %v7197
    %v7342 = vpop.f32.mrb[0].mxu0
    %v7343 = vadd.f32 0.0, %v7342
    %v7344 = vpop.f32.mrb[0].mxu0
    %7345 = vmatprep.mubr.f32.mxu0 0.0
    %7346 = vmatmul.mubr.f32.gmra.mrb[0].mxu0 %v7200
    %v7347 = vpop.f32.mrb[0].mxu0
    %v7348 = vadd.f32 0.0, %v7347
    %v7349 = vpop.f32.mrb[0].mxu0
    %7350 = vmatprep.mubr.f32.mxu0 0.0
    %7351 = vmatmul.mubr.f32.gmra.mrb[0].mxu0 %v7203
    %v7352 = vpop.f32.mrb[0].mxu0
    %v7353 = vadd.f32 0.0, %v7352
    %v7354 = vpop.f32.mrb[0].mxu0
    %7355 = vmatprep.mubr.f32.mxu0 0.0
    %7356 = vmatmul.mubr.f32.gmra.mrb[0].mxu0 %v7206
    %v7357 = vpop.f32.mrb[0].mxu0
    %v7358 = vadd.f32 0.0, %v7357
    %v7359 = vpop.f32.mrb[0].mxu0
    %7360 = vmatprep.mubr.f32.mxu0 0.0
    %7361 = vmatmul.mubr.f32.gmra.mrb[0].mxu0 %v7209
    %v7362 = vpop.f32.mrb[0].mxu0
    %v7363 = vadd.f32 0.0, %v7362
    %v7364 = vpop.f32.mrb[0].mxu0
    %7365 = vmatprep.mubr.f32.mxu0 0.0
    %7366 = vmatmul.mubr.f32.gmra.mrb[0].mxu0 %v7212
    %v7367 = vpop.f32.mrb[0].mxu0
    %v7368 = vadd.f32 0.0, %v7367
    %v7369 = vpop.f32.mrb[0].mxu0
    %7370 = vmatprep.mubr.f32.mxu0 0.0
    %7371 = vmatmul.mubr.f32.gmra.mrb[0].mxu0 %v7215
    %v7372 = vpop.f32.mrb[0].mxu0
    %v7373 = vadd.f32 0.0, %v7372
    %v7374 = vpop.f32.mrb[0].mxu0
    %7375 = vmatprep.mubr.f32.mxu0 0.0
    %7376 = vmatmul.mubr.f32.gmra.mrb[0].mxu0 %v7218
    %v7377 = vpop.f32.mrb[0].mxu0
    %v7378 = vadd.f32 0.0, %v7377
    %v7379 = vpop.f32.mrb[0].mxu0
    %7380 = vmatprep.mubr.f32.mxu0 0.0
    %7381 = vmatmul.mubr.f32.gmra.mrb[0].mxu0 %v7221
    %v7382 = vpop.f32.mrb[0].mxu0
    %v7383 = vadd.f32 0.0, %v7382
    %v7384 = vpop.f32.mrb[0].mxu0
    %7385 = vmatprep.mubr.f32.mxu0 0.0
    %7386 = vmatmul.mubr.f32.gmra.mrb[0].mxu0 %v7224
    %v7387 = vpop.f32.mrb[0].mxu0
    %v7388 = vadd.f32 0.0, %v7387
    %v7389 = vpop.f32.mrb[0].mxu0
    %7390 = vmatprep.mubr.f32.mxu0 0.0
    %7391 = vmatmul.mubr.f32.gmra.mrb[0].mxu0 %v7227
    %v7392 = vpop.f32.mrb[0].mxu0
    %v7393 = vadd.f32 0.0, %v7392
    %v7394 = vpop.f32.mrb[0].mxu0
    %7395 = vmatprep.mubr.f32.mxu0 0.0
    %7396 = vmatmul.mubr.f32.gmra.mrb[0].mxu0 %v7230
    %v7397 = vpop.f32.mrb[0].mxu0
    %v7398 = vadd.f32 0.0, %v7397
    %v7399 = vpop.f32.mrb[0].mxu0
    %7400 = vmatprep.mubr.f32.mxu0 0.0
    %7401 = vmatmul.mubr.f32.gmra.mrb[0].mxu0 %v7233
    %v7402 = vpop.f32.mrb[0].mxu0
    %v7403 = vadd.f32 0.0, %v7402
    %v7404 = vpop.f32.mrb[0].mxu0
    %7405 = vmatprep.mubr.f32.mxu0 0.0
    %7406 = vmatmul.mubr.f32.gmra.mrb[0].mxu0 %v7236
    %v7407 = vpop.f32.mrb[0].mxu0
    %v7408 = vadd.f32 0.0, %v7407
    %v7409 = vpop.f32.mrb[0].mxu0
    %7410 = vmatprep.mubr.f32.mxu0 0.0
    %7411 = vmatmul.mubr.f32.gmra.mrb[0].mxu0 %v7239
    %v7412 = vpop.f32.mrb[0].mxu0
    %v7413 = vadd.f32 0.0, %v7412
    %v7414 = vpop.f32.mrb[0].mxu0
    %7415 = vmatprep.mubr.f32.mxu0 0.0
    %7416 = vmatmul.mubr.f32.gmra.mrb[0].mxu0 %v7242
    %v7417 = vpop.f32.mrb[0].mxu0
    %v7418 = vadd.f32 0.0, %v7417
    %v7419 = vpop.f32.mrb[0].mxu0
    %7420 = vmatprep.mubr.f32.mxu0 0.0
    %7421 = vmatmul.mubr.f32.gmra.mrb[0].mxu0 %v7245
    %v7422 = vpop.f32.mrb[0].mxu0
    %v7423 = vadd.f32 0.0, %v7422
    %v7424 = vpop.f32.mrb[0].mxu0
    %7425 = vmatprep.mubr.f32.mxu0 0.0
    %7426 = vmatmul.mubr.f32.gmra.mrb[0].mxu0 %v7248
    %v7427 = vpop.f32.mrb[0].mxu0
    %v7428 = vadd.f32 0.0, %v7427
    %v7429 = vpop.f32.mrb[0].mxu0
    %7430 = vmatprep.mubr.f32.mxu0 0.0
    %7431 = vmatmul.mubr.f32.gmra.mrb[0].mxu0 %v7251
    %v7432 = vpop.f32.mrb[0].mxu0
    %v7433 = vadd.f32 0.0, %v7432
    %v7434 = vpop.f32.mrb[0].mxu0
    %7435 = vmatprep.mubr.f32.mxu0 0.0
    %7436 = vmatmul.mubr.f32.gmra.mrb[0].mxu0 %v7254
    %v7437 = vpop.f32.mrb[0].mxu0
    %v7438 = vadd.f32 0.0, %v7437
    %v7439 = vpop.f32.mrb[0].mxu0
    %7440 = vdwg.mxu0
    %v7441 = vadd.f32 %v7131, %v7323
    %v7442 = vadd.f32 %v7132, %v7328
    %v7443 = vadd.f32 %v7133, %v7333
    %v7444 = vadd.f32 %v7134, %v7338
    %v7445 = vadd.f32 %v7135, %v7343
    %v7446 = vadd.f32 %v7136, %v7348
    %v7447 = vadd.f32 %v7137, %v7353
    %v7448 = vadd.f32 %v7138, %v7358
    %v7449 = vadd.f32 %v7139, %v7363
    %v7450 = vadd.f32 %v7140, %v7368
    %v7451 = vadd.f32 %v7141, %v7373
    %v7452 = vadd.f32 %v7142, %v7378
    %v7453 = vadd.f32 %v7143, %v7383
    %v7454 = vadd.f32 %v7144, %v7388
    %v7455 = vadd.f32 %v7145, %v7393
    %v7456 = vadd.f32 %v7146, %v7398
    %v7457 = vadd.f32 %v7147, %v7403
    %v7458 = vadd.f32 %v7148, %v7408
    %v7459 = vadd.f32 %v7149, %v7413
    %v7460 = vadd.f32 %v7150, %v7418
    %v7461 = vadd.f32 %v7151, %v7423
    %v7462 = vadd.f32 %v7152, %v7428
    %v7463 = vadd.f32 %v7153, %v7433
    %v7464 = vadd.f32 %v7154, %v7438
    %v7465 = vld [vmem:[#allocation2 + $0x28] sm:$0xff]
    %v7466 = vld [vmem:[#allocation2 + $0x30] sm:$0xff]
    %v7467 = vld [vmem:[#allocation2 + $0x38] sm:$0xff]
    %v7468 = vld [vmem:[#allocation2 + $0x40] sm:$0xff]
    %v7469 = vld [vmem:[#allocation2 + $0x48] sm:$0xff]
    %v7470 = vld [vmem:[#allocation2 + $0x50] sm:$0xff]
    %v7471 = vld [vmem:[#allocation2 + $0x58] sm:$0xff]
    %v7472 = vld [vmem:[#allocation2 + $0x60] sm:$0xff]
    %v7473 = vld [vmem:[#allocation2 + $0x68] sm:$0xff]
    %v7474 = vld [vmem:[#allocation2 + $0x70] sm:$0xff]
    %v7475 = vld [vmem:[#allocation2 + $0x78] sm:$0xff]
    %v7476 = vld [vmem:[#allocation2 + $0x80] sm:$0xff]
    %v7477 = vld [vmem:[#allocation2 + $0xc0] sm:$0xff]
    %v7478 = vld [vmem:[#allocation2 + $0xc8] sm:$0xff]
    %v7479 = vld [vmem:[#allocation2 + $0xd0] sm:$0xff]
    %v7480 = vld [vmem:[#allocation2 + $0xd8] sm:$0xff]
    %v7481 = vld [vmem:[#allocation2 + $0xe0] sm:$0xff]
    %v7482 = vld [vmem:[#allocation2 + $0xe8] sm:$0xff]
    %v7483 = vld [vmem:[#allocation2 + $0xf0] sm:$0xff]
    %v7484 = vld [vmem:[#allocation2 + $0xf8] sm:$0xff]
    %v7485 = vld [vmem:[#allocation2 + $0x100] sm:$0xff]
    %v7486 = vld [vmem:[#allocation2 + $0x108] sm:$0xff]
    %v7487 = vld [vmem:[#allocation2 + $0x110] sm:$0xff]
    %v7488 = vld [vmem:[#allocation2 + $0x118] sm:$0xff]
    %s7489 = scalar_lea.vmem %s3, 608
    %v7490 = vld [vmem:[%s7489] sm:$0xff]
    %v7491 = vld [vmem:[%s7489 + $0x8] sm:$0xff]
    %v7492 = vld [vmem:[%s7489 + $0x10] sm:$0xff]
    %v7493 = vld [vmem:[%s7489 + $0x18] sm:$0xff]
    %v7495 = vsel %vm181, %v7465, 0
    %v7498 = vsel %vm181, %v7466, 0
    %v7501 = vsel %vm181, %v7467, 0
    %v7504 = vsel %vm181, %v7468, 0
    %v7507 = vsel %vm181, %v7469, 0
    %v7510 = vsel %vm181, %v7470, 0
    %v7513 = vsel %vm181, %v7471, 0
    %v7516 = vsel %vm181, %v7472, 0
    %v7519 = vsel %vm181, %v7473, 0
    %v7522 = vsel %vm181, %v7474, 0
    %v7525 = vsel %vm181, %v7475, 0
    %v7528 = vsel %vm181, %v7476, 0
    %v7531 = vsel %vm181, %v7477, 0
    %v7534 = vsel %vm181, %v7478, 0
    %v7537 = vsel %vm181, %v7479, 0
    %v7540 = vsel %vm181, %v7480, 0
    %v7543 = vsel %vm181, %v7481, 0
    %v7546 = vsel %vm181, %v7482, 0
    %v7549 = vsel %vm181, %v7483, 0
    %v7552 = vsel %vm181, %v7484, 0
    %v7555 = vsel %vm181, %v7485, 0
    %v7558 = vsel %vm181, %v7486, 0
    %v7561 = vsel %vm181, %v7487, 0
    %v7564 = vsel %vm181, %v7488, 0
    %7566 = vmatprep.subr.mxu0 0.0
    %7567 = vmatpush1.msra.mxu0 %v7490
    %7568 = vmatprep.subr.mxu0 0.0
    %7569 = vmatpush1.msra.mxu0 %v7491
    %7570 = vmatprep.subr.mxu0 0.0
    %7571 = vmatpush1.msra.mxu0 %v7492
    %7572 = vmatprep.subr.mxu0 0.0
    %7573 = vmatpush1.msra.mxu0 %v7493
    %7574 = vmatprep.subr.mxu0 0.0
    %7575 = vmatpush1.msra.mxu0 0.0
    %7576 = vmatprep.subr.mxu0 0.0
    %7577 = vmatpush1.msra.mxu0 0.0
    %7578 = vmatprep.subr.mxu0 0.0
    %7579 = vmatpush1.msra.mxu0 0.0
    %7580 = vmatprep.subr.mxu0 0.0
    %7581 = vmatpush1.msra.mxu0 0.0
    %7582 = vmatprep.subr.mxu0 0.0
    %7583 = vmatpush1.msra.mxu0 0.0
    %7584 = vmatprep.subr.mxu0 0.0
    %7585 = vmatpush1.msra.mxu0 0.0
    %7586 = vmatprep.subr.mxu0 0.0
    %7587 = vmatpush1.msra.mxu0 0.0
    %7588 = vmatprep.subr.mxu0 0.0
    %7589 = vmatpush1.msra.mxu0 0.0
    %7590 = vmatprep.subr.mxu0 0.0
    %7591 = vmatpush1.msra.mxu0 0.0
    %7592 = vmatprep.subr.mxu0 0.0
    %7593 = vmatpush1.msra.mxu0 0.0
    %7594 = vmatprep.subr.mxu0 0.0
    %7595 = vmatpush1.msra.mxu0 0.0
    %7596 = vmatprep.subr.mxu0 0.0
    %7597 = vmatpush1.msra.mxu0 0.0
    %7598 = vmatprep.subr.mxu0 0.0
    %7599 = vmatpush1.msra.mxu0 0.0
    %7600 = vmatprep.subr.mxu0 0.0
    %7601 = vmatpush1.msra.mxu0 0.0
    %7602 = vmatprep.subr.mxu0 0.0
    %7603 = vmatpush1.msra.mxu0 0.0
    %7604 = vmatprep.subr.mxu0 0.0
    %7605 = vmatpush1.msra.mxu0 0.0
    %7606 = vmatprep.subr.mxu0 0.0
    %7607 = vmatpush1.msra.mxu0 0.0
    %7608 = vmatprep.subr.mxu0 0.0
    %7609 = vmatpush1.msra.mxu0 0.0
    %7610 = vmatprep.subr.mxu0 0.0
    %7611 = vmatpush1.msra.mxu0 0.0
    %7612 = vmatprep.subr.mxu0 0.0
    %7613 = vmatpush1.msra.mxu0 0.0
    %7614 = vmatprep.subr.mxu0 0.0
    %7615 = vmatpush1.msra.mxu0 0.0
    %7616 = vmatprep.subr.mxu0 0.0
    %7617 = vmatpush1.msra.mxu0 0.0
    %7618 = vmatprep.subr.mxu0 0.0
    %7619 = vmatpush1.msra.mxu0 0.0
    %7620 = vmatprep.subr.mxu0 0.0
    %7621 = vmatpush1.msra.mxu0 0.0
    %7622 = vmatprep.subr.mxu0 0.0
    %7623 = vmatpush1.msra.mxu0 0.0
    %7624 = vmatprep.subr.mxu0 0.0
    %7625 = vmatpush1.msra.mxu0 0.0
    %7626 = vmatprep.subr.mxu0 0.0
    %7627 = vmatpush1.msra.mxu0 0.0
    %7628 = vmatprep.subr.mxu0 0.0
    %7629 = vmatpush1.msra.mxu0 0.0
    %7630 = vmatprep.mubr.f32.mxu0 0.0
    %7631 = vmatmul.mubr.f32.gmra.mrb[0].mxu0 %v7495
    %v7632 = vpop.f32.mrb[0].mxu0
    %v7633 = vadd.f32 0.0, %v7632
    %v7634 = vpop.f32.mrb[0].mxu0
    %7635 = vmatprep.mubr.f32.mxu0 0.0
    %7636 = vmatmul.mubr.f32.gmra.mrb[0].mxu0 %v7498
    %v7637 = vpop.f32.mrb[0].mxu0
    %v7638 = vadd.f32 0.0, %v7637
    %v7639 = vpop.f32.mrb[0].mxu0
    %7640 = vmatprep.mubr.f32.mxu0 0.0
    %7641 = vmatmul.mubr.f32.gmra.mrb[0].mxu0 %v7501
    %v7642 = vpop.f32.mrb[0].mxu0
    %v7643 = vadd.f32 0.0, %v7642
    %v7644 = vpop.f32.mrb[0].mxu0
    %7645 = vmatprep.mubr.f32.mxu0 0.0
    %7646 = vmatmul.mubr.f32.gmra.mrb[0].mxu0 %v7504
    %v7647 = vpop.f32.mrb[0].mxu0
    %v7648 = vadd.f32 0.0, %v7647
    %v7649 = vpop.f32.mrb[0].mxu0
    %7650 = vmatprep.mubr.f32.mxu0 0.0
    %7651 = vmatmul.mubr.f32.gmra.mrb[0].mxu0 %v7507
    %v7652 = vpop.f32.mrb[0].mxu0
    %v7653 = vadd.f32 0.0, %v7652
    %v7654 = vpop.f32.mrb[0].mxu0
    %7655 = vmatprep.mubr.f32.mxu0 0.0
    %7656 = vmatmul.mubr.f32.gmra.mrb[0].mxu0 %v7510
    %v7657 = vpop.f32.mrb[0].mxu0
    %v7658 = vadd.f32 0.0, %v7657
    %v7659 = vpop.f32.mrb[0].mxu0
    %7660 = vmatprep.mubr.f32.mxu0 0.0
    %7661 = vmatmul.mubr.f32.gmra.mrb[0].mxu0 %v7513
    %v7662 = vpop.f32.mrb[0].mxu0
    %v7663 = vadd.f32 0.0, %v7662
    %v7664 = vpop.f32.mrb[0].mxu0
    %7665 = vmatprep.mubr.f32.mxu0 0.0
    %7666 = vmatmul.mubr.f32.gmra.mrb[0].mxu0 %v7516
    %v7667 = vpop.f32.mrb[0].mxu0
    %v7668 = vadd.f32 0.0, %v7667
    %v7669 = vpop.f32.mrb[0].mxu0
    %7670 = vmatprep.mubr.f32.mxu0 0.0
    %7671 = vmatmul.mubr.f32.gmra.mrb[0].mxu0 %v7519
    %v7672 = vpop.f32.mrb[0].mxu0
    %v7673 = vadd.f32 0.0, %v7672
    %v7674 = vpop.f32.mrb[0].mxu0
    %7675 = vmatprep.mubr.f32.mxu0 0.0
    %7676 = vmatmul.mubr.f32.gmra.mrb[0].mxu0 %v7522
    %v7677 = vpop.f32.mrb[0].mxu0
    %v7678 = vadd.f32 0.0, %v7677
    %v7679 = vpop.f32.mrb[0].mxu0
    %7680 = vmatprep.mubr.f32.mxu0 0.0
    %7681 = vmatmul.mubr.f32.gmra.mrb[0].mxu0 %v7525
    %v7682 = vpop.f32.mrb[0].mxu0
    %v7683 = vadd.f32 0.0, %v7682
    %v7684 = vpop.f32.mrb[0].mxu0
    %7685 = vmatprep.mubr.f32.mxu0 0.0
    %7686 = vmatmul.mubr.f32.gmra.mrb[0].mxu0 %v7528
    %v7687 = vpop.f32.mrb[0].mxu0
    %v7688 = vadd.f32 0.0, %v7687
    %v7689 = vpop.f32.mrb[0].mxu0
    %7690 = vmatprep.mubr.f32.mxu0 0.0
    %7691 = vmatmul.mubr.f32.gmra.mrb[0].mxu0 %v7531
    %v7692 = vpop.f32.mrb[0].mxu0
    %v7693 = vadd.f32 0.0, %v7692
    %v7694 = vpop.f32.mrb[0].mxu0
    %7695 = vmatprep.mubr.f32.mxu0 0.0
    %7696 = vmatmul.mubr.f32.gmra.mrb[0].mxu0 %v7534
    %v7697 = vpop.f32.mrb[0].mxu0
    %v7698 = vadd.f32 0.0, %v7697
    %v7699 = vpop.f32.mrb[0].mxu0
    %7700 = vmatprep.mubr.f32.mxu0 0.0
    %7701 = vmatmul.mubr.f32.gmra.mrb[0].mxu0 %v7537
    %v7702 = vpop.f32.mrb[0].mxu0
    %v7703 = vadd.f32 0.0, %v7702
    %v7704 = vpop.f32.mrb[0].mxu0
    %7705 = vmatprep.mubr.f32.mxu0 0.0
    %7706 = vmatmul.mubr.f32.gmra.mrb[0].mxu0 %v7540
    %v7707 = vpop.f32.mrb[0].mxu0
    %v7708 = vadd.f32 0.0, %v7707
    %v7709 = vpop.f32.mrb[0].mxu0
    %7710 = vmatprep.mubr.f32.mxu0 0.0
    %7711 = vmatmul.mubr.f32.gmra.mrb[0].mxu0 %v7543
    %v7712 = vpop.f32.mrb[0].mxu0
    %v7713 = vadd.f32 0.0, %v7712
    %v7714 = vpop.f32.mrb[0].mxu0
    %7715 = vmatprep.mubr.f32.mxu0 0.0
    %7716 = vmatmul.mubr.f32.gmra.mrb[0].mxu0 %v7546
    %v7717 = vpop.f32.mrb[0].mxu0
    %v7718 = vadd.f32 0.0, %v7717
    %v7719 = vpop.f32.mrb[0].mxu0
    %7720 = vmatprep.mubr.f32.mxu0 0.0
    %7721 = vmatmul.mubr.f32.gmra.mrb[0].mxu0 %v7549
    %v7722 = vpop.f32.mrb[0].mxu0
    %v7723 = vadd.f32 0.0, %v7722
    %v7724 = vpop.f32.mrb[0].mxu0
    %7725 = vmatprep.mubr.f32.mxu0 0.0
    %7726 = vmatmul.mubr.f32.gmra.mrb[0].mxu0 %v7552
    %v7727 = vpop.f32.mrb[0].mxu0
    %v7728 = vadd.f32 0.0, %v7727
    %v7729 = vpop.f32.mrb[0].mxu0
    %7730 = vmatprep.mubr.f32.mxu0 0.0
    %7731 = vmatmul.mubr.f32.gmra.mrb[0].mxu0 %v7555
    %v7732 = vpop.f32.mrb[0].mxu0
    %v7733 = vadd.f32 0.0, %v7732
    %v7734 = vpop.f32.mrb[0].mxu0
    %7735 = vmatprep.mubr.f32.mxu0 0.0
    %7736 = vmatmul.mubr.f32.gmra.mrb[0].mxu0 %v7558
    %v7737 = vpop.f32.mrb[0].mxu0
    %v7738 = vadd.f32 0.0, %v7737
    %v7739 = vpop.f32.mrb[0].mxu0
    %7740 = vmatprep.mubr.f32.mxu0 0.0
    %7741 = vmatmul.mubr.f32.gmra.mrb[0].mxu0 %v7561
    %v7742 = vpop.f32.mrb[0].mxu0
    %v7743 = vadd.f32 0.0, %v7742
    %v7744 = vpop.f32.mrb[0].mxu0
    %7745 = vmatprep.mubr.f32.mxu0 0.0
    %7746 = vmatmul.mubr.f32.gmra.mrb[0].mxu0 %v7564
    %v7747 = vpop.f32.mrb[0].mxu0
    %v7748 = vadd.f32 0.0, %v7747
    %v7749 = vpop.f32.mrb[0].mxu0
    %7750 = vdwg.mxu0
    %v7751 = vadd.f32 %v7441, %v7633
    %v7752 = vadd.f32 %v7442, %v7638
    %v7753 = vadd.f32 %v7443, %v7643
    %v7754 = vadd.f32 %v7444, %v7648
    %v7755 = vadd.f32 %v7445, %v7653
    %v7756 = vadd.f32 %v7446, %v7658
    %v7757 = vadd.f32 %v7447, %v7663
    %v7758 = vadd.f32 %v7448, %v7668
    %v7759 = vadd.f32 %v7449, %v7673
    %v7760 = vadd.f32 %v7450, %v7678
    %v7761 = vadd.f32 %v7451, %v7683
    %v7762 = vadd.f32 %v7452, %v7688
    %v7763 = vadd.f32 %v7453, %v7693
    %v7764 = vadd.f32 %v7454, %v7698
    %v7765 = vadd.f32 %v7455, %v7703
    %v7766 = vadd.f32 %v7456, %v7708
    %v7767 = vadd.f32 %v7457, %v7713
    %v7768 = vadd.f32 %v7458, %v7718
    %v7769 = vadd.f32 %v7459, %v7723
    %v7770 = vadd.f32 %v7460, %v7728
    %v7771 = vadd.f32 %v7461, %v7733
    %v7772 = vadd.f32 %v7462, %v7738
    %v7773 = vadd.f32 %v7463, %v7743
    %v7774 = vadd.f32 %v7464, %v7748
    %v7775 = vld [vmem:[#allocation2 + $0x30] sm:$0xff]
    %v7776 = vld [vmem:[#allocation2 + $0x38] sm:$0xff]
    %v7777 = vld [vmem:[#allocation2 + $0x40] sm:$0xff]
    %v7778 = vld [vmem:[#allocation2 + $0x48] sm:$0xff]
    %v7779 = vld [vmem:[#allocation2 + $0x50] sm:$0xff]
    %v7780 = vld [vmem:[#allocation2 + $0x58] sm:$0xff]
    %v7781 = vld [vmem:[#allocation2 + $0x60] sm:$0xff]
    %v7782 = vld [vmem:[#allocation2 + $0x68] sm:$0xff]
    %v7783 = vld [vmem:[#allocation2 + $0x70] sm:$0xff]
    %v7784 = vld [vmem:[#allocation2 + $0x78] sm:$0xff]
    %v7785 = vld [vmem:[#allocation2 + $0x80] sm:$0xff]
    %v7786 = vld [vmem:[#allocation2 + $0x88] sm:$0xff]
    %v7787 = vld [vmem:[#allocation2 + $0xc8] sm:$0xff]
    %v7788 = vld [vmem:[#allocation2 + $0xd0] sm:$0xff]
    %v7789 = vld [vmem:[#allocation2 + $0xd8] sm:$0xff]
    %v7790 = vld [vmem:[#allocation2 + $0xe0] sm:$0xff]
    %v7791 = vld [vmem:[#allocation2 + $0xe8] sm:$0xff]
    %v7792 = vld [vmem:[#allocation2 + $0xf0] sm:$0xff]
    %v7793 = vld [vmem:[#allocation2 + $0xf8] sm:$0xff]
    %v7794 = vld [vmem:[#allocation2 + $0x100] sm:$0xff]
    %v7795 = vld [vmem:[#allocation2 + $0x108] sm:$0xff]
    %v7796 = vld [vmem:[#allocation2 + $0x110] sm:$0xff]
    %v7797 = vld [vmem:[#allocation2 + $0x118] sm:$0xff]
    %v7798 = vld [vmem:[#allocation2 + $0x120] sm:$0xff]
    %s7799 = scalar_lea.vmem %s3, 640
    %v7800 = vld [vmem:[%s7799] sm:$0xff]
    %v7801 = vld [vmem:[%s7799 + $0x8] sm:$0xff]
    %v7802 = vld [vmem:[%s7799 + $0x10] sm:$0xff]
    %v7803 = vld [vmem:[%s7799 + $0x18] sm:$0xff]
    %v7805 = vsel %vm181, %v7775, 0
    %v7808 = vsel %vm181, %v7776, 0
    %v7811 = vsel %vm181, %v7777, 0
    %v7814 = vsel %vm181, %v7778, 0
    %v7817 = vsel %vm181, %v7779, 0
    %v7820 = vsel %vm181, %v7780, 0
    %v7823 = vsel %vm181, %v7781, 0
    %v7826 = vsel %vm181, %v7782, 0
    %v7829 = vsel %vm181, %v7783, 0
    %v7832 = vsel %vm181, %v7784, 0
    %v7835 = vsel %vm181, %v7785, 0
    %v7838 = vsel %vm181, %v7786, 0
    %v7841 = vsel %vm181, %v7787, 0
    %v7844 = vsel %vm181, %v7788, 0
    %v7847 = vsel %vm181, %v7789, 0
    %v7850 = vsel %vm181, %v7790, 0
    %v7853 = vsel %vm181, %v7791, 0
    %v7856 = vsel %vm181, %v7792, 0
    %v7859 = vsel %vm181, %v7793, 0
    %v7862 = vsel %vm181, %v7794, 0
    %v7865 = vsel %vm181, %v7795, 0
    %v7868 = vsel %vm181, %v7796, 0
    %v7871 = vsel %vm181, %v7797, 0
    %v7874 = vsel %vm181, %v7798, 0
    %7876 = vmatprep.subr.mxu0 0.0
    %7877 = vmatpush1.msra.mxu0 %v7800
    %7878 = vmatprep.subr.mxu0 0.0
    %7879 = vmatpush1.msra.mxu0 %v7801
    %7880 = vmatprep.subr.mxu0 0.0
    %7881 = vmatpush1.msra.mxu0 %v7802
    %7882 = vmatprep.subr.mxu0 0.0
    %7883 = vmatpush1.msra.mxu0 %v7803
    %7884 = vmatprep.subr.mxu0 0.0
    %7885 = vmatpush1.msra.mxu0 0.0
    %7886 = vmatprep.subr.mxu0 0.0
    %7887 = vmatpush1.msra.mxu0 0.0
    %7888 = vmatprep.subr.mxu0 0.0
    %7889 = vmatpush1.msra.mxu0 0.0
    %7890 = vmatprep.subr.mxu0 0.0
    %7891 = vmatpush1.msra.mxu0 0.0
    %7892 = vmatprep.subr.mxu0 0.0
    %7893 = vmatpush1.msra.mxu0 0.0
    %7894 = vmatprep.subr.mxu0 0.0
    %7895 = vmatpush1.msra.mxu0 0.0
    %7896 = vmatprep.subr.mxu0 0.0
    %7897 = vmatpush1.msra.mxu0 0.0
    %7898 = vmatprep.subr.mxu0 0.0
    %7899 = vmatpush1.msra.mxu0 0.0
    %7900 = vmatprep.subr.mxu0 0.0
    %7901 = vmatpush1.msra.mxu0 0.0
    %7902 = vmatprep.subr.mxu0 0.0
    %7903 = vmatpush1.msra.mxu0 0.0
    %7904 = vmatprep.subr.mxu0 0.0
    %7905 = vmatpush1.msra.mxu0 0.0
    %7906 = vmatprep.subr.mxu0 0.0
    %7907 = vmatpush1.msra.mxu0 0.0
    %7908 = vmatprep.subr.mxu0 0.0
    %7909 = vmatpush1.msra.mxu0 0.0
    %7910 = vmatprep.subr.mxu0 0.0
    %7911 = vmatpush1.msra.mxu0 0.0
    %7912 = vmatprep.subr.mxu0 0.0
    %7913 = vmatpush1.msra.mxu0 0.0
    %7914 = vmatprep.subr.mxu0 0.0
    %7915 = vmatpush1.msra.mxu0 0.0
    %7916 = vmatprep.subr.mxu0 0.0
    %7917 = vmatpush1.msra.mxu0 0.0
    %7918 = vmatprep.subr.mxu0 0.0
    %7919 = vmatpush1.msra.mxu0 0.0
    %7920 = vmatprep.subr.mxu0 0.0
    %7921 = vmatpush1.msra.mxu0 0.0
    %7922 = vmatprep.subr.mxu0 0.0
    %7923 = vmatpush1.msra.mxu0 0.0
    %7924 = vmatprep.subr.mxu0 0.0
    %7925 = vmatpush1.msra.mxu0 0.0
    %7926 = vmatprep.subr.mxu0 0.0
    %7927 = vmatpush1.msra.mxu0 0.0
    %7928 = vmatprep.subr.mxu0 0.0
    %7929 = vmatpush1.msra.mxu0 0.0
    %7930 = vmatprep.subr.mxu0 0.0
    %7931 = vmatpush1.msra.mxu0 0.0
    %7932 = vmatprep.subr.mxu0 0.0
    %7933 = vmatpush1.msra.mxu0 0.0
    %7934 = vmatprep.subr.mxu0 0.0
    %7935 = vmatpush1.msra.mxu0 0.0
    %7936 = vmatprep.subr.mxu0 0.0
    %7937 = vmatpush1.msra.mxu0 0.0
    %7938 = vmatprep.subr.mxu0 0.0
    %7939 = vmatpush1.msra.mxu0 0.0
    %7940 = vmatprep.mubr.f32.mxu0 0.0
    %7941 = vmatmul.mubr.f32.gmra.mrb[0].mxu0 %v7805
    %v7942 = vpop.f32.mrb[0].mxu0
    %v7943 = vadd.f32 0.0, %v7942
    %v7944 = vpop.f32.mrb[0].mxu0
    %7945 = vmatprep.mubr.f32.mxu0 0.0
    %7946 = vmatmul.mubr.f32.gmra.mrb[0].mxu0 %v7808
    %v7947 = vpop.f32.mrb[0].mxu0
    %v7948 = vadd.f32 0.0, %v7947
    %v7949 = vpop.f32.mrb[0].mxu0
    %7950 = vmatprep.mubr.f32.mxu0 0.0
    %7951 = vmatmul.mubr.f32.gmra.mrb[0].mxu0 %v7811
    %v7952 = vpop.f32.mrb[0].mxu0
    %v7953 = vadd.f32 0.0, %v7952
    %v7954 = vpop.f32.mrb[0].mxu0
    %7955 = vmatprep.mubr.f32.mxu0 0.0
    %7956 = vmatmul.mubr.f32.gmra.mrb[0].mxu0 %v7814
    %v7957 = vpop.f32.mrb[0].mxu0
    %v7958 = vadd.f32 0.0, %v7957
    %v7959 = vpop.f32.mrb[0].mxu0
    %7960 = vmatprep.mubr.f32.mxu0 0.0
    %7961 = vmatmul.mubr.f32.gmra.mrb[0].mxu0 %v7817
    %v7962 = vpop.f32.mrb[0].mxu0
    %v7963 = vadd.f32 0.0, %v7962
    %v7964 = vpop.f32.mrb[0].mxu0
    %7965 = vmatprep.mubr.f32.mxu0 0.0
    %7966 = vmatmul.mubr.f32.gmra.mrb[0].mxu0 %v7820
    %v7967 = vpop.f32.mrb[0].mxu0
    %v7968 = vadd.f32 0.0, %v7967
    %v7969 = vpop.f32.mrb[0].mxu0
    %7970 = vmatprep.mubr.f32.mxu0 0.0
    %7971 = vmatmul.mubr.f32.gmra.mrb[0].mxu0 %v7823
    %v7972 = vpop.f32.mrb[0].mxu0
    %v7973 = vadd.f32 0.0, %v7972
    %v7974 = vpop.f32.mrb[0].mxu0
    %7975 = vmatprep.mubr.f32.mxu0 0.0
    %7976 = vmatmul.mubr.f32.gmra.mrb[0].mxu0 %v7826
    %v7977 = vpop.f32.mrb[0].mxu0
    %v7978 = vadd.f32 0.0, %v7977
    %v7979 = vpop.f32.mrb[0].mxu0
    %7980 = vmatprep.mubr.f32.mxu0 0.0
    %7981 = vmatmul.mubr.f32.gmra.mrb[0].mxu0 %v7829
    %v7982 = vpop.f32.mrb[0].mxu0
    %v7983 = vadd.f32 0.0, %v7982
    %v7984 = vpop.f32.mrb[0].mxu0
    %7985 = vmatprep.mubr.f32.mxu0 0.0
    %7986 = vmatmul.mubr.f32.gmra.mrb[0].mxu0 %v7832
    %v7987 = vpop.f32.mrb[0].mxu0
    %v7988 = vadd.f32 0.0, %v7987
    %v7989 = vpop.f32.mrb[0].mxu0
    %7990 = vmatprep.mubr.f32.mxu0 0.0
    %7991 = vmatmul.mubr.f32.gmra.mrb[0].mxu0 %v7835
    %v7992 = vpop.f32.mrb[0].mxu0
    %v7993 = vadd.f32 0.0, %v7992
    %v7994 = vpop.f32.mrb[0].mxu0
    %7995 = vmatprep.mubr.f32.mxu0 0.0
    %7996 = vmatmul.mubr.f32.gmra.mrb[0].mxu0 %v7838
    %v7997 = vpop.f32.mrb[0].mxu0
    %v7998 = vadd.f32 0.0, %v7997
    %v7999 = vpop.f32.mrb[0].mxu0
    %8000 = vmatprep.mubr.f32.mxu0 0.0
    %8001 = vmatmul.mubr.f32.gmra.mrb[0].mxu0 %v7841
    %v8002 = vpop.f32.mrb[0].mxu0
    %v8003 = vadd.f32 0.0, %v8002
    %v8004 = vpop.f32.mrb[0].mxu0
    %8005 = vmatprep.mubr.f32.mxu0 0.0
    %8006 = vmatmul.mubr.f32.gmra.mrb[0].mxu0 %v7844
    %v8007 = vpop.f32.mrb[0].mxu0
    %v8008 = vadd.f32 0.0, %v8007
    %v8009 = vpop.f32.mrb[0].mxu0
    %8010 = vmatprep.mubr.f32.mxu0 0.0
    %8011 = vmatmul.mubr.f32.gmra.mrb[0].mxu0 %v7847
    %v8012 = vpop.f32.mrb[0].mxu0
    %v8013 = vadd.f32 0.0, %v8012
    %v8014 = vpop.f32.mrb[0].mxu0
    %8015 = vmatprep.mubr.f32.mxu0 0.0
    %8016 = vmatmul.mubr.f32.gmra.mrb[0].mxu0 %v7850
    %v8017 = vpop.f32.mrb[0].mxu0
    %v8018 = vadd.f32 0.0, %v8017
    %v8019 = vpop.f32.mrb[0].mxu0
    %8020 = vmatprep.mubr.f32.mxu0 0.0
    %8021 = vmatmul.mubr.f32.gmra.mrb[0].mxu0 %v7853
    %v8022 = vpop.f32.mrb[0].mxu0
    %v8023 = vadd.f32 0.0, %v8022
    %v8024 = vpop.f32.mrb[0].mxu0
    %8025 = vmatprep.mubr.f32.mxu0 0.0
    %8026 = vmatmul.mubr.f32.gmra.mrb[0].mxu0 %v7856
    %v8027 = vpop.f32.mrb[0].mxu0
    %v8028 = vadd.f32 0.0, %v8027
    %v8029 = vpop.f32.mrb[0].mxu0
    %8030 = vmatprep.mubr.f32.mxu0 0.0
    %8031 = vmatmul.mubr.f32.gmra.mrb[0].mxu0 %v7859
    %v8032 = vpop.f32.mrb[0].mxu0
    %v8033 = vadd.f32 0.0, %v8032
    %v8034 = vpop.f32.mrb[0].mxu0
    %8035 = vmatprep.mubr.f32.mxu0 0.0
    %8036 = vmatmul.mubr.f32.gmra.mrb[0].mxu0 %v7862
    %v8037 = vpop.f32.mrb[0].mxu0
    %v8038 = vadd.f32 0.0, %v8037
    %v8039 = vpop.f32.mrb[0].mxu0
    %8040 = vmatprep.mubr.f32.mxu0 0.0
    %8041 = vmatmul.mubr.f32.gmra.mrb[0].mxu0 %v7865
    %v8042 = vpop.f32.mrb[0].mxu0
    %v8043 = vadd.f32 0.0, %v8042
    %v8044 = vpop.f32.mrb[0].mxu0
    %8045 = vmatprep.mubr.f32.mxu0 0.0
    %8046 = vmatmul.mubr.f32.gmra.mrb[0].mxu0 %v7868
    %v8047 = vpop.f32.mrb[0].mxu0
    %v8048 = vadd.f32 0.0, %v8047
    %v8049 = vpop.f32.mrb[0].mxu0
    %8050 = vmatprep.mubr.f32.mxu0 0.0
    %8051 = vmatmul.mubr.f32.gmra.mrb[0].mxu0 %v7871
    %v8052 = vpop.f32.mrb[0].mxu0
    %v8053 = vadd.f32 0.0, %v8052
    %v8054 = vpop.f32.mrb[0].mxu0
    %8055 = vmatprep.mubr.f32.mxu0 0.0
    %8056 = vmatmul.mubr.f32.gmra.mrb[0].mxu0 %v7874
    %v8057 = vpop.f32.mrb[0].mxu0
    %v8058 = vadd.f32 0.0, %v8057
    %v8059 = vpop.f32.mrb[0].mxu0
    %8060 = vdwg.mxu0
    %v8061 = vadd.f32 %v7751, %v7943
    %v8062 = vadd.f32 %v7752, %v7948
    %v8063 = vadd.f32 %v7753, %v7953
    %v8064 = vadd.f32 %v7754, %v7958
    %v8065 = vadd.f32 %v7755, %v7963
    %v8066 = vadd.f32 %v7756, %v7968
    %v8067 = vadd.f32 %v7757, %v7973
    %v8068 = vadd.f32 %v7758, %v7978
    %v8069 = vadd.f32 %v7759, %v7983
    %v8070 = vadd.f32 %v7760, %v7988
    %v8071 = vadd.f32 %v7761, %v7993
    %v8072 = vadd.f32 %v7762, %v7998
    %v8073 = vadd.f32 %v7763, %v8003
    %v8074 = vadd.f32 %v7764, %v8008
    %v8075 = vadd.f32 %v7765, %v8013
    %v8076 = vadd.f32 %v7766, %v8018
    %v8077 = vadd.f32 %v7767, %v8023
    %v8078 = vadd.f32 %v7768, %v8028
    %v8079 = vadd.f32 %v7769, %v8033
    %v8080 = vadd.f32 %v7770, %v8038
    %v8081 = vadd.f32 %v7771, %v8043
    %v8082 = vadd.f32 %v7772, %v8048
    %v8083 = vadd.f32 %v7773, %v8053
    %v8084 = vadd.f32 %v7774, %v8058
    %v8085 = vld [vmem:[#allocation2 + $0x31] sm:$0xff]
    %v8086 = vld [vmem:[#allocation2 + $0x39] sm:$0xff]
    %v8087 = vld [vmem:[#allocation2 + $0x41] sm:$0xff]
    %v8088 = vld [vmem:[#allocation2 + $0x49] sm:$0xff]
    %v8089 = vld [vmem:[#allocation2 + $0x51] sm:$0xff]
    %v8090 = vld [vmem:[#allocation2 + $0x59] sm:$0xff]
    %v8091 = vld [vmem:[#allocation2 + $0x61] sm:$0xff]
    %v8092 = vld [vmem:[#allocation2 + $0x69] sm:$0xff]
    %v8093 = vld [vmem:[#allocation2 + $0x71] sm:$0xff]
    %v8094 = vld [vmem:[#allocation2 + $0x79] sm:$0xff]
    %v8095 = vld [vmem:[#allocation2 + $0x81] sm:$0xff]
    %v8096 = vld [vmem:[#allocation2 + $0x89] sm:$0xff]
    %v8097 = vld [vmem:[#allocation2 + $0xc9] sm:$0xff]
    %v8098 = vld [vmem:[#allocation2 + $0xd1] sm:$0xff]
    %v8099 = vld [vmem:[#allocation2 + $0xd9] sm:$0xff]
    %v8100 = vld [vmem:[#allocation2 + $0xe1] sm:$0xff]
    %v8101 = vld [vmem:[#allocation2 + $0xe9] sm:$0xff]
    %v8102 = vld [vmem:[#allocation2 + $0xf1] sm:$0xff]
    %v8103 = vld [vmem:[#allocation2 + $0xf9] sm:$0xff]
    %v8104 = vld [vmem:[#allocation2 + $0x101] sm:$0xff]
    %v8105 = vld [vmem:[#allocation2 + $0x109] sm:$0xff]
    %v8106 = vld [vmem:[#allocation2 + $0x111] sm:$0xff]
    %v8107 = vld [vmem:[#allocation2 + $0x119] sm:$0xff]
    %v8108 = vld [vmem:[#allocation2 + $0x121] sm:$0xff]
    %s8109 = scalar_lea.vmem %s3, 672
    %v8110 = vld [vmem:[%s8109] sm:$0xff]
    %v8111 = vld [vmem:[%s8109 + $0x8] sm:$0xff]
    %v8112 = vld [vmem:[%s8109 + $0x10] sm:$0xff]
    %v8113 = vld [vmem:[%s8109 + $0x18] sm:$0xff]
    %v8115 = vsel %vm181, %v8085, 0
    %v8118 = vsel %vm181, %v8086, 0
    %v8121 = vsel %vm181, %v8087, 0
    %v8124 = vsel %vm181, %v8088, 0
    %v8127 = vsel %vm181, %v8089, 0
    %v8130 = vsel %vm181, %v8090, 0
    %v8133 = vsel %vm181, %v8091, 0
    %v8136 = vsel %vm181, %v8092, 0
    %v8139 = vsel %vm181, %v8093, 0
    %v8142 = vsel %vm181, %v8094, 0
    %v8145 = vsel %vm181, %v8095, 0
    %v8148 = vsel %vm181, %v8096, 0
    %v8151 = vsel %vm181, %v8097, 0
    %v8154 = vsel %vm181, %v8098, 0
    %v8157 = vsel %vm181, %v8099, 0
    %v8160 = vsel %vm181, %v8100, 0
    %v8163 = vsel %vm181, %v8101, 0
    %v8166 = vsel %vm181, %v8102, 0
    %v8169 = vsel %vm181, %v8103, 0
    %v8172 = vsel %vm181, %v8104, 0
    %v8175 = vsel %vm181, %v8105, 0
    %v8178 = vsel %vm181, %v8106, 0
    %v8181 = vsel %vm181, %v8107, 0
    %v8184 = vsel %vm181, %v8108, 0
    %8186 = vmatprep.subr.mxu0 0.0
    %8187 = vmatpush1.msra.mxu0 %v8110
    %8188 = vmatprep.subr.mxu0 0.0
    %8189 = vmatpush1.msra.mxu0 %v8111
    %8190 = vmatprep.subr.mxu0 0.0
    %8191 = vmatpush1.msra.mxu0 %v8112
    %8192 = vmatprep.subr.mxu0 0.0
    %8193 = vmatpush1.msra.mxu0 %v8113
    %8194 = vmatprep.subr.mxu0 0.0
    %8195 = vmatpush1.msra.mxu0 0.0
    %8196 = vmatprep.subr.mxu0 0.0
    %8197 = vmatpush1.msra.mxu0 0.0
    %8198 = vmatprep.subr.mxu0 0.0
    %8199 = vmatpush1.msra.mxu0 0.0
    %8200 = vmatprep.subr.mxu0 0.0
    %8201 = vmatpush1.msra.mxu0 0.0
    %8202 = vmatprep.subr.mxu0 0.0
    %8203 = vmatpush1.msra.mxu0 0.0
    %8204 = vmatprep.subr.mxu0 0.0
    %8205 = vmatpush1.msra.mxu0 0.0
    %8206 = vmatprep.subr.mxu0 0.0
    %8207 = vmatpush1.msra.mxu0 0.0
    %8208 = vmatprep.subr.mxu0 0.0
    %8209 = vmatpush1.msra.mxu0 0.0
    %8210 = vmatprep.subr.mxu0 0.0
    %8211 = vmatpush1.msra.mxu0 0.0
    %8212 = vmatprep.subr.mxu0 0.0
    %8213 = vmatpush1.msra.mxu0 0.0
    %8214 = vmatprep.subr.mxu0 0.0
    %8215 = vmatpush1.msra.mxu0 0.0
    %8216 = vmatprep.subr.mxu0 0.0
    %8217 = vmatpush1.msra.mxu0 0.0
    %8218 = vmatprep.subr.mxu0 0.0
    %8219 = vmatpush1.msra.mxu0 0.0
    %8220 = vmatprep.subr.mxu0 0.0
    %8221 = vmatpush1.msra.mxu0 0.0
    %8222 = vmatprep.subr.mxu0 0.0
    %8223 = vmatpush1.msra.mxu0 0.0
    %8224 = vmatprep.subr.mxu0 0.0
    %8225 = vmatpush1.msra.mxu0 0.0
    %8226 = vmatprep.subr.mxu0 0.0
    %8227 = vmatpush1.msra.mxu0 0.0
    %8228 = vmatprep.subr.mxu0 0.0
    %8229 = vmatpush1.msra.mxu0 0.0
    %8230 = vmatprep.subr.mxu0 0.0
    %8231 = vmatpush1.msra.mxu0 0.0
    %8232 = vmatprep.subr.mxu0 0.0
    %8233 = vmatpush1.msra.mxu0 0.0
    %8234 = vmatprep.subr.mxu0 0.0
    %8235 = vmatpush1.msra.mxu0 0.0
    %8236 = vmatprep.subr.mxu0 0.0
    %8237 = vmatpush1.msra.mxu0 0.0
    %8238 = vmatprep.subr.mxu0 0.0
    %8239 = vmatpush1.msra.mxu0 0.0
    %8240 = vmatprep.subr.mxu0 0.0
    %8241 = vmatpush1.msra.mxu0 0.0
    %8242 = vmatprep.subr.mxu0 0.0
    %8243 = vmatpush1.msra.mxu0 0.0
    %8244 = vmatprep.subr.mxu0 0.0
    %8245 = vmatpush1.msra.mxu0 0.0
    %8246 = vmatprep.subr.mxu0 0.0
    %8247 = vmatpush1.msra.mxu0 0.0
    %8248 = vmatprep.subr.mxu0 0.0
    %8249 = vmatpush1.msra.mxu0 0.0
    %8250 = vmatprep.mubr.f32.mxu0 0.0
    %8251 = vmatmul.mubr.f32.gmra.mrb[0].mxu0 %v8115
    %v8252 = vpop.f32.mrb[0].mxu0
    %v8253 = vadd.f32 0.0, %v8252
    %v8254 = vpop.f32.mrb[0].mxu0
    %8255 = vmatprep.mubr.f32.mxu0 0.0
    %8256 = vmatmul.mubr.f32.gmra.mrb[0].mxu0 %v8118
    %v8257 = vpop.f32.mrb[0].mxu0
    %v8258 = vadd.f32 0.0, %v8257
    %v8259 = vpop.f32.mrb[0].mxu0
    %8260 = vmatprep.mubr.f32.mxu0 0.0
    %8261 = vmatmul.mubr.f32.gmra.mrb[0].mxu0 %v8121
    %v8262 = vpop.f32.mrb[0].mxu0
    %v8263 = vadd.f32 0.0, %v8262
    %v8264 = vpop.f32.mrb[0].mxu0
    %8265 = vmatprep.mubr.f32.mxu0 0.0
    %8266 = vmatmul.mubr.f32.gmra.mrb[0].mxu0 %v8124
    %v8267 = vpop.f32.mrb[0].mxu0
    %v8268 = vadd.f32 0.0, %v8267
    %v8269 = vpop.f32.mrb[0].mxu0
    %8270 = vmatprep.mubr.f32.mxu0 0.0
    %8271 = vmatmul.mubr.f32.gmra.mrb[0].mxu0 %v8127
    %v8272 = vpop.f32.mrb[0].mxu0
    %v8273 = vadd.f32 0.0, %v8272
    %v8274 = vpop.f32.mrb[0].mxu0
    %8275 = vmatprep.mubr.f32.mxu0 0.0
    %8276 = vmatmul.mubr.f32.gmra.mrb[0].mxu0 %v8130
    %v8277 = vpop.f32.mrb[0].mxu0
    %v8278 = vadd.f32 0.0, %v8277
    %v8279 = vpop.f32.mrb[0].mxu0
    %8280 = vmatprep.mubr.f32.mxu0 0.0
    %8281 = vmatmul.mubr.f32.gmra.mrb[0].mxu0 %v8133
    %v8282 = vpop.f32.mrb[0].mxu0
    %v8283 = vadd.f32 0.0, %v8282
    %v8284 = vpop.f32.mrb[0].mxu0
    %8285 = vmatprep.mubr.f32.mxu0 0.0
    %8286 = vmatmul.mubr.f32.gmra.mrb[0].mxu0 %v8136
    %v8287 = vpop.f32.mrb[0].mxu0
    %v8288 = vadd.f32 0.0, %v8287
    %v8289 = vpop.f32.mrb[0].mxu0
    %8290 = vmatprep.mubr.f32.mxu0 0.0
    %8291 = vmatmul.mubr.f32.gmra.mrb[0].mxu0 %v8139
    %v8292 = vpop.f32.mrb[0].mxu0
    %v8293 = vadd.f32 0.0, %v8292
    %v8294 = vpop.f32.mrb[0].mxu0
    %8295 = vmatprep.mubr.f32.mxu0 0.0
    %8296 = vmatmul.mubr.f32.gmra.mrb[0].mxu0 %v8142
    %v8297 = vpop.f32.mrb[0].mxu0
    %v8298 = vadd.f32 0.0, %v8297
    %v8299 = vpop.f32.mrb[0].mxu0
    %8300 = vmatprep.mubr.f32.mxu0 0.0
    %8301 = vmatmul.mubr.f32.gmra.mrb[0].mxu0 %v8145
    %v8302 = vpop.f32.mrb[0].mxu0
    %v8303 = vadd.f32 0.0, %v8302
    %v8304 = vpop.f32.mrb[0].mxu0
    %8305 = vmatprep.mubr.f32.mxu0 0.0
    %8306 = vmatmul.mubr.f32.gmra.mrb[0].mxu0 %v8148
    %v8307 = vpop.f32.mrb[0].mxu0
    %v8308 = vadd.f32 0.0, %v8307
    %v8309 = vpop.f32.mrb[0].mxu0
    %8310 = vmatprep.mubr.f32.mxu0 0.0
    %8311 = vmatmul.mubr.f32.gmra.mrb[0].mxu0 %v8151
    %v8312 = vpop.f32.mrb[0].mxu0
    %v8313 = vadd.f32 0.0, %v8312
    %v8314 = vpop.f32.mrb[0].mxu0
    %8315 = vmatprep.mubr.f32.mxu0 0.0
    %8316 = vmatmul.mubr.f32.gmra.mrb[0].mxu0 %v8154
    %v8317 = vpop.f32.mrb[0].mxu0
    %v8318 = vadd.f32 0.0, %v8317
    %v8319 = vpop.f32.mrb[0].mxu0
    %8320 = vmatprep.mubr.f32.mxu0 0.0
    %8321 = vmatmul.mubr.f32.gmra.mrb[0].mxu0 %v8157
    %v8322 = vpop.f32.mrb[0].mxu0
    %v8323 = vadd.f32 0.0, %v8322
    %v8324 = vpop.f32.mrb[0].mxu0
    %8325 = vmatprep.mubr.f32.mxu0 0.0
    %8326 = vmatmul.mubr.f32.gmra.mrb[0].mxu0 %v8160
    %v8327 = vpop.f32.mrb[0].mxu0
    %v8328 = vadd.f32 0.0, %v8327
    %v8329 = vpop.f32.mrb[0].mxu0
    %8330 = vmatprep.mubr.f32.mxu0 0.0
    %8331 = vmatmul.mubr.f32.gmra.mrb[0].mxu0 %v8163
    %v8332 = vpop.f32.mrb[0].mxu0
    %v8333 = vadd.f32 0.0, %v8332
    %v8334 = vpop.f32.mrb[0].mxu0
    %8335 = vmatprep.mubr.f32.mxu0 0.0
    %8336 = vmatmul.mubr.f32.gmra.mrb[0].mxu0 %v8166
    %v8337 = vpop.f32.mrb[0].mxu0
    %v8338 = vadd.f32 0.0, %v8337
    %v8339 = vpop.f32.mrb[0].mxu0
    %8340 = vmatprep.mubr.f32.mxu0 0.0
    %8341 = vmatmul.mubr.f32.gmra.mrb[0].mxu0 %v8169
    %v8342 = vpop.f32.mrb[0].mxu0
    %v8343 = vadd.f32 0.0, %v8342
    %v8344 = vpop.f32.mrb[0].mxu0
    %8345 = vmatprep.mubr.f32.mxu0 0.0
    %8346 = vmatmul.mubr.f32.gmra.mrb[0].mxu0 %v8172
    %v8347 = vpop.f32.mrb[0].mxu0
    %v8348 = vadd.f32 0.0, %v8347
    %v8349 = vpop.f32.mrb[0].mxu0
    %8350 = vmatprep.mubr.f32.mxu0 0.0
    %8351 = vmatmul.mubr.f32.gmra.mrb[0].mxu0 %v8175
    %v8352 = vpop.f32.mrb[0].mxu0
    %v8353 = vadd.f32 0.0, %v8352
    %v8354 = vpop.f32.mrb[0].mxu0
    %8355 = vmatprep.mubr.f32.mxu0 0.0
    %8356 = vmatmul.mubr.f32.gmra.mrb[0].mxu0 %v8178
    %v8357 = vpop.f32.mrb[0].mxu0
    %v8358 = vadd.f32 0.0, %v8357
    %v8359 = vpop.f32.mrb[0].mxu0
    %8360 = vmatprep.mubr.f32.mxu0 0.0
    %8361 = vmatmul.mubr.f32.gmra.mrb[0].mxu0 %v8181
    %v8362 = vpop.f32.mrb[0].mxu0
    %v8363 = vadd.f32 0.0, %v8362
    %v8364 = vpop.f32.mrb[0].mxu0
    %8365 = vmatprep.mubr.f32.mxu0 0.0
    %8366 = vmatmul.mubr.f32.gmra.mrb[0].mxu0 %v8184
    %v8367 = vpop.f32.mrb[0].mxu0
    %v8368 = vadd.f32 0.0, %v8367
    %v8369 = vpop.f32.mrb[0].mxu0
    %8370 = vdwg.mxu0
    %v8371 = vadd.f32 %v8061, %v8253
    %v8372 = vadd.f32 %v8062, %v8258
    %v8373 = vadd.f32 %v8063, %v8263
    %v8374 = vadd.f32 %v8064, %v8268
    %v8375 = vadd.f32 %v8065, %v8273
    %v8376 = vadd.f32 %v8066, %v8278
    %v8377 = vadd.f32 %v8067, %v8283
    %v8378 = vadd.f32 %v8068, %v8288
    %v8379 = vadd.f32 %v8069, %v8293
    %v8380 = vadd.f32 %v8070, %v8298
    %v8381 = vadd.f32 %v8071, %v8303
    %v8382 = vadd.f32 %v8072, %v8308
    %v8383 = vadd.f32 %v8073, %v8313
    %v8384 = vadd.f32 %v8074, %v8318
    %v8385 = vadd.f32 %v8075, %v8323
    %v8386 = vadd.f32 %v8076, %v8328
    %v8387 = vadd.f32 %v8077, %v8333
    %v8388 = vadd.f32 %v8078, %v8338
    %v8389 = vadd.f32 %v8079, %v8343
    %v8390 = vadd.f32 %v8080, %v8348
    %v8391 = vadd.f32 %v8081, %v8353
    %v8392 = vadd.f32 %v8082, %v8358
    %v8393 = vadd.f32 %v8083, %v8363
    %v8394 = vadd.f32 %v8084, %v8368
    %v8395 = vld [vmem:[#allocation2 + $0x32] sm:$0xff]
    %v8396 = vld [vmem:[#allocation2 + $0x3a] sm:$0xff]
    %v8397 = vld [vmem:[#allocation2 + $0x42] sm:$0xff]
    %v8398 = vld [vmem:[#allocation2 + $0x4a] sm:$0xff]
    %v8399 = vld [vmem:[#allocation2 + $0x52] sm:$0xff]
    %v8400 = vld [vmem:[#allocation2 + $0x5a] sm:$0xff]
    %v8401 = vld [vmem:[#allocation2 + $0x62] sm:$0xff]
    %v8402 = vld [vmem:[#allocation2 + $0x6a] sm:$0xff]
    %v8403 = vld [vmem:[#allocation2 + $0x72] sm:$0xff]
    %v8404 = vld [vmem:[#allocation2 + $0x7a] sm:$0xff]
    %v8405 = vld [vmem:[#allocation2 + $0x82] sm:$0xff]
    %v8406 = vld [vmem:[#allocation2 + $0x8a] sm:$0xff]
    %v8407 = vld [vmem:[#allocation2 + $0xca] sm:$0xff]
    %v8408 = vld [vmem:[#allocation2 + $0xd2] sm:$0xff]
    %v8409 = vld [vmem:[#allocation2 + $0xda] sm:$0xff]
    %v8410 = vld [vmem:[#allocation2 + $0xe2] sm:$0xff]
    %v8411 = vld [vmem:[#allocation2 + $0xea] sm:$0xff]
    %v8412 = vld [vmem:[#allocation2 + $0xf2] sm:$0xff]
    %v8413 = vld [vmem:[#allocation2 + $0xfa] sm:$0xff]
    %v8414 = vld [vmem:[#allocation2 + $0x102] sm:$0xff]
    %v8415 = vld [vmem:[#allocation2 + $0x10a] sm:$0xff]
    %v8416 = vld [vmem:[#allocation2 + $0x112] sm:$0xff]
    %v8417 = vld [vmem:[#allocation2 + $0x11a] sm:$0xff]
    %v8418 = vld [vmem:[#allocation2 + $0x122] sm:$0xff]
    %s8419 = scalar_lea.vmem %s3, 704
    %v8420 = vld [vmem:[%s8419] sm:$0xff]
    %v8421 = vld [vmem:[%s8419 + $0x8] sm:$0xff]
    %v8422 = vld [vmem:[%s8419 + $0x10] sm:$0xff]
    %v8423 = vld [vmem:[%s8419 + $0x18] sm:$0xff]
    %v8425 = vsel %vm181, %v8395, 0
    %v8428 = vsel %vm181, %v8396, 0
    %v8431 = vsel %vm181, %v8397, 0
    %v8434 = vsel %vm181, %v8398, 0
    %v8437 = vsel %vm181, %v8399, 0
    %v8440 = vsel %vm181, %v8400, 0
    %v8443 = vsel %vm181, %v8401, 0
    %v8446 = vsel %vm181, %v8402, 0
    %v8449 = vsel %vm181, %v8403, 0
    %v8452 = vsel %vm181, %v8404, 0
    %v8455 = vsel %vm181, %v8405, 0
    %v8458 = vsel %vm181, %v8406, 0
    %v8461 = vsel %vm181, %v8407, 0
    %v8464 = vsel %vm181, %v8408, 0
    %v8467 = vsel %vm181, %v8409, 0
    %v8470 = vsel %vm181, %v8410, 0
    %v8473 = vsel %vm181, %v8411, 0
    %v8476 = vsel %vm181, %v8412, 0
    %v8479 = vsel %vm181, %v8413, 0
    %v8482 = vsel %vm181, %v8414, 0
    %v8485 = vsel %vm181, %v8415, 0
    %v8488 = vsel %vm181, %v8416, 0
    %v8491 = vsel %vm181, %v8417, 0
    %v8494 = vsel %vm181, %v8418, 0
    %8496 = vmatprep.subr.mxu0 0.0
    %8497 = vmatpush1.msra.mxu0 %v8420
    %8498 = vmatprep.subr.mxu0 0.0
    %8499 = vmatpush1.msra.mxu0 %v8421
    %8500 = vmatprep.subr.mxu0 0.0
    %8501 = vmatpush1.msra.mxu0 %v8422
    %8502 = vmatprep.subr.mxu0 0.0
    %8503 = vmatpush1.msra.mxu0 %v8423
    %8504 = vmatprep.subr.mxu0 0.0
    %8505 = vmatpush1.msra.mxu0 0.0
    %8506 = vmatprep.subr.mxu0 0.0
    %8507 = vmatpush1.msra.mxu0 0.0
    %8508 = vmatprep.subr.mxu0 0.0
    %8509 = vmatpush1.msra.mxu0 0.0
    %8510 = vmatprep.subr.mxu0 0.0
    %8511 = vmatpush1.msra.mxu0 0.0
    %8512 = vmatprep.subr.mxu0 0.0
    %8513 = vmatpush1.msra.mxu0 0.0
    %8514 = vmatprep.subr.mxu0 0.0
    %8515 = vmatpush1.msra.mxu0 0.0
    %8516 = vmatprep.subr.mxu0 0.0
    %8517 = vmatpush1.msra.mxu0 0.0
    %8518 = vmatprep.subr.mxu0 0.0
    %8519 = vmatpush1.msra.mxu0 0.0
    %8520 = vmatprep.subr.mxu0 0.0
    %8521 = vmatpush1.msra.mxu0 0.0
    %8522 = vmatprep.subr.mxu0 0.0
    %8523 = vmatpush1.msra.mxu0 0.0
    %8524 = vmatprep.subr.mxu0 0.0
    %8525 = vmatpush1.msra.mxu0 0.0
    %8526 = vmatprep.subr.mxu0 0.0
    %8527 = vmatpush1.msra.mxu0 0.0
    %8528 = vmatprep.subr.mxu0 0.0
    %8529 = vmatpush1.msra.mxu0 0.0
    %8530 = vmatprep.subr.mxu0 0.0
    %8531 = vmatpush1.msra.mxu0 0.0
    %8532 = vmatprep.subr.mxu0 0.0
    %8533 = vmatpush1.msra.mxu0 0.0
    %8534 = vmatprep.subr.mxu0 0.0
    %8535 = vmatpush1.msra.mxu0 0.0
    %8536 = vmatprep.subr.mxu0 0.0
    %8537 = vmatpush1.msra.mxu0 0.0
    %8538 = vmatprep.subr.mxu0 0.0
    %8539 = vmatpush1.msra.mxu0 0.0
    %8540 = vmatprep.subr.mxu0 0.0
    %8541 = vmatpush1.msra.mxu0 0.0
    %8542 = vmatprep.subr.mxu0 0.0
    %8543 = vmatpush1.msra.mxu0 0.0
    %8544 = vmatprep.subr.mxu0 0.0
    %8545 = vmatpush1.msra.mxu0 0.0
    %8546 = vmatprep.subr.mxu0 0.0
    %8547 = vmatpush1.msra.mxu0 0.0
    %8548 = vmatprep.subr.mxu0 0.0
    %8549 = vmatpush1.msra.mxu0 0.0
    %8550 = vmatprep.subr.mxu0 0.0
    %8551 = vmatpush1.msra.mxu0 0.0
    %8552 = vmatprep.subr.mxu0 0.0
    %8553 = vmatpush1.msra.mxu0 0.0
    %8554 = vmatprep.subr.mxu0 0.0
    %8555 = vmatpush1.msra.mxu0 0.0
    %8556 = vmatprep.subr.mxu0 0.0
    %8557 = vmatpush1.msra.mxu0 0.0
    %8558 = vmatprep.subr.mxu0 0.0
    %8559 = vmatpush1.msra.mxu0 0.0
    %8560 = vmatprep.mubr.f32.mxu0 0.0
    %8561 = vmatmul.mubr.f32.gmra.mrb[0].mxu0 %v8425
    %v8562 = vpop.f32.mrb[0].mxu0
    %v8563 = vadd.f32 0.0, %v8562
    %v8564 = vpop.f32.mrb[0].mxu0
    %8565 = vmatprep.mubr.f32.mxu0 0.0
    %8566 = vmatmul.mubr.f32.gmra.mrb[0].mxu0 %v8428
    %v8567 = vpop.f32.mrb[0].mxu0
    %v8568 = vadd.f32 0.0, %v8567
    %v8569 = vpop.f32.mrb[0].mxu0
    %8570 = vmatprep.mubr.f32.mxu0 0.0
    %8571 = vmatmul.mubr.f32.gmra.mrb[0].mxu0 %v8431
    %v8572 = vpop.f32.mrb[0].mxu0
    %v8573 = vadd.f32 0.0, %v8572
    %v8574 = vpop.f32.mrb[0].mxu0
    %8575 = vmatprep.mubr.f32.mxu0 0.0
    %8576 = vmatmul.mubr.f32.gmra.mrb[0].mxu0 %v8434
    %v8577 = vpop.f32.mrb[0].mxu0
    %v8578 = vadd.f32 0.0, %v8577
    %v8579 = vpop.f32.mrb[0].mxu0
    %8580 = vmatprep.mubr.f32.mxu0 0.0
    %8581 = vmatmul.mubr.f32.gmra.mrb[0].mxu0 %v8437
    %v8582 = vpop.f32.mrb[0].mxu0
    %v8583 = vadd.f32 0.0, %v8582
    %v8584 = vpop.f32.mrb[0].mxu0
    %8585 = vmatprep.mubr.f32.mxu0 0.0
    %8586 = vmatmul.mubr.f32.gmra.mrb[0].mxu0 %v8440
    %v8587 = vpop.f32.mrb[0].mxu0
    %v8588 = vadd.f32 0.0, %v8587
    %v8589 = vpop.f32.mrb[0].mxu0
    %8590 = vmatprep.mubr.f32.mxu0 0.0
    %8591 = vmatmul.mubr.f32.gmra.mrb[0].mxu0 %v8443
    %v8592 = vpop.f32.mrb[0].mxu0
    %v8593 = vadd.f32 0.0, %v8592
    %v8594 = vpop.f32.mrb[0].mxu0
    %8595 = vmatprep.mubr.f32.mxu0 0.0
    %8596 = vmatmul.mubr.f32.gmra.mrb[0].mxu0 %v8446
    %v8597 = vpop.f32.mrb[0].mxu0
    %v8598 = vadd.f32 0.0, %v8597
    %v8599 = vpop.f32.mrb[0].mxu0
    %8600 = vmatprep.mubr.f32.mxu0 0.0
    %8601 = vmatmul.mubr.f32.gmra.mrb[0].mxu0 %v8449
    %v8602 = vpop.f32.mrb[0].mxu0
    %v8603 = vadd.f32 0.0, %v8602
    %v8604 = vpop.f32.mrb[0].mxu0
    %8605 = vmatprep.mubr.f32.mxu0 0.0
    %8606 = vmatmul.mubr.f32.gmra.mrb[0].mxu0 %v8452
    %v8607 = vpop.f32.mrb[0].mxu0
    %v8608 = vadd.f32 0.0, %v8607
    %v8609 = vpop.f32.mrb[0].mxu0
    %8610 = vmatprep.mubr.f32.mxu0 0.0
    %8611 = vmatmul.mubr.f32.gmra.mrb[0].mxu0 %v8455
    %v8612 = vpop.f32.mrb[0].mxu0
    %v8613 = vadd.f32 0.0, %v8612
    %v8614 = vpop.f32.mrb[0].mxu0
    %8615 = vmatprep.mubr.f32.mxu0 0.0
    %8616 = vmatmul.mubr.f32.gmra.mrb[0].mxu0 %v8458
    %v8617 = vpop.f32.mrb[0].mxu0
    %v8618 = vadd.f32 0.0, %v8617
    %v8619 = vpop.f32.mrb[0].mxu0
    %8620 = vmatprep.mubr.f32.mxu0 0.0
    %8621 = vmatmul.mubr.f32.gmra.mrb[0].mxu0 %v8461
    %v8622 = vpop.f32.mrb[0].mxu0
    %v8623 = vadd.f32 0.0, %v8622
    %v8624 = vpop.f32.mrb[0].mxu0
    %8625 = vmatprep.mubr.f32.mxu0 0.0
    %8626 = vmatmul.mubr.f32.gmra.mrb[0].mxu0 %v8464
    %v8627 = vpop.f32.mrb[0].mxu0
    %v8628 = vadd.f32 0.0, %v8627
    %v8629 = vpop.f32.mrb[0].mxu0
    %8630 = vmatprep.mubr.f32.mxu0 0.0
    %8631 = vmatmul.mubr.f32.gmra.mrb[0].mxu0 %v8467
    %v8632 = vpop.f32.mrb[0].mxu0
    %v8633 = vadd.f32 0.0, %v8632
    %v8634 = vpop.f32.mrb[0].mxu0
    %8635 = vmatprep.mubr.f32.mxu0 0.0
    %8636 = vmatmul.mubr.f32.gmra.mrb[0].mxu0 %v8470
    %v8637 = vpop.f32.mrb[0].mxu0
    %v8638 = vadd.f32 0.0, %v8637
    %v8639 = vpop.f32.mrb[0].mxu0
    %8640 = vmatprep.mubr.f32.mxu0 0.0
    %8641 = vmatmul.mubr.f32.gmra.mrb[0].mxu0 %v8473
    %v8642 = vpop.f32.mrb[0].mxu0
    %v8643 = vadd.f32 0.0, %v8642
    %v8644 = vpop.f32.mrb[0].mxu0
    %8645 = vmatprep.mubr.f32.mxu0 0.0
    %8646 = vmatmul.mubr.f32.gmra.mrb[0].mxu0 %v8476
    %v8647 = vpop.f32.mrb[0].mxu0
    %v8648 = vadd.f32 0.0, %v8647
    %v8649 = vpop.f32.mrb[0].mxu0
    %8650 = vmatprep.mubr.f32.mxu0 0.0
    %8651 = vmatmul.mubr.f32.gmra.mrb[0].mxu0 %v8479
    %v8652 = vpop.f32.mrb[0].mxu0
    %v8653 = vadd.f32 0.0, %v8652
    %v8654 = vpop.f32.mrb[0].mxu0
    %8655 = vmatprep.mubr.f32.mxu0 0.0
    %8656 = vmatmul.mubr.f32.gmra.mrb[0].mxu0 %v8482
    %v8657 = vpop.f32.mrb[0].mxu0
    %v8658 = vadd.f32 0.0, %v8657
    %v8659 = vpop.f32.mrb[0].mxu0
    %8660 = vmatprep.mubr.f32.mxu0 0.0
    %8661 = vmatmul.mubr.f32.gmra.mrb[0].mxu0 %v8485
    %v8662 = vpop.f32.mrb[0].mxu0
    %v8663 = vadd.f32 0.0, %v8662
    %v8664 = vpop.f32.mrb[0].mxu0
    %8665 = vmatprep.mubr.f32.mxu0 0.0
    %8666 = vmatmul.mubr.f32.gmra.mrb[0].mxu0 %v8488
    %v8667 = vpop.f32.mrb[0].mxu0
    %v8668 = vadd.f32 0.0, %v8667
    %v8669 = vpop.f32.mrb[0].mxu0
    %8670 = vmatprep.mubr.f32.mxu0 0.0
    %8671 = vmatmul.mubr.f32.gmra.mrb[0].mxu0 %v8491
    %v8672 = vpop.f32.mrb[0].mxu0
    %v8673 = vadd.f32 0.0, %v8672
    %v8674 = vpop.f32.mrb[0].mxu0
    %8675 = vmatprep.mubr.f32.mxu0 0.0
    %8676 = vmatmul.mubr.f32.gmra.mrb[0].mxu0 %v8494
    %v8677 = vpop.f32.mrb[0].mxu0
    %v8678 = vadd.f32 0.0, %v8677
    %v8679 = vpop.f32.mrb[0].mxu0
    %8680 = vdwg.mxu0
    %v8681 = vadd.f32 %v8371, %v8563
    %v8682 = vadd.f32 %v8372, %v8568
    %v8683 = vadd.f32 %v8373, %v8573
    %v8684 = vadd.f32 %v8374, %v8578
    %v8685 = vadd.f32 %v8375, %v8583
    %v8686 = vadd.f32 %v8376, %v8588
    %v8687 = vadd.f32 %v8377, %v8593
    %v8688 = vadd.f32 %v8378, %v8598
    %v8689 = vadd.f32 %v8379, %v8603
    %v8690 = vadd.f32 %v8380, %v8608
    %v8691 = vadd.f32 %v8381, %v8613
    %v8692 = vadd.f32 %v8382, %v8618
    %v8693 = vadd.f32 %v8383, %v8623
    %v8694 = vadd.f32 %v8384, %v8628
    %v8695 = vadd.f32 %v8385, %v8633
    %v8696 = vadd.f32 %v8386, %v8638
    %v8697 = vadd.f32 %v8387, %v8643
    %v8698 = vadd.f32 %v8388, %v8648
    %v8699 = vadd.f32 %v8389, %v8653
    %v8700 = vadd.f32 %v8390, %v8658
    %v8701 = vadd.f32 %v8391, %v8663
    %v8702 = vadd.f32 %v8392, %v8668
    %v8703 = vadd.f32 %v8393, %v8673
    %v8704 = vadd.f32 %v8394, %v8678
    %v8705 = vld [vmem:[#allocation2 + $0x33] sm:$0xff]
    %v8706 = vld [vmem:[#allocation2 + $0x3b] sm:$0xff]
    %v8707 = vld [vmem:[#allocation2 + $0x43] sm:$0xff]
    %v8708 = vld [vmem:[#allocation2 + $0x4b] sm:$0xff]
    %v8709 = vld [vmem:[#allocation2 + $0x53] sm:$0xff]
    %v8710 = vld [vmem:[#allocation2 + $0x5b] sm:$0xff]
    %v8711 = vld [vmem:[#allocation2 + $0x63] sm:$0xff]
    %v8712 = vld [vmem:[#allocation2 + $0x6b] sm:$0xff]
    %v8713 = vld [vmem:[#allocation2 + $0x73] sm:$0xff]
    %v8714 = vld [vmem:[#allocation2 + $0x7b] sm:$0xff]
    %v8715 = vld [vmem:[#allocation2 + $0x83] sm:$0xff]
    %v8716 = vld [vmem:[#allocation2 + $0x8b] sm:$0xff]
    %v8717 = vld [vmem:[#allocation2 + $0xcb] sm:$0xff]
    %v8718 = vld [vmem:[#allocation2 + $0xd3] sm:$0xff]
    %v8719 = vld [vmem:[#allocation2 + $0xdb] sm:$0xff]
    %v8720 = vld [vmem:[#allocation2 + $0xe3] sm:$0xff]
    %v8721 = vld [vmem:[#allocation2 + $0xeb] sm:$0xff]
    %v8722 = vld [vmem:[#allocation2 + $0xf3] sm:$0xff]
    %v8723 = vld [vmem:[#allocation2 + $0xfb] sm:$0xff]
    %v8724 = vld [vmem:[#allocation2 + $0x103] sm:$0xff]
    %v8725 = vld [vmem:[#allocation2 + $0x10b] sm:$0xff]
    %v8726 = vld [vmem:[#allocation2 + $0x113] sm:$0xff]
    %v8727 = vld [vmem:[#allocation2 + $0x11b] sm:$0xff]
    %v8728 = vld [vmem:[#allocation2 + $0x123] sm:$0xff]
    %s8729 = scalar_lea.vmem %s3, 736
    %v8730 = vld [vmem:[%s8729] sm:$0xff]
    %v8731 = vld [vmem:[%s8729 + $0x8] sm:$0xff]
    %v8732 = vld [vmem:[%s8729 + $0x10] sm:$0xff]
    %v8733 = vld [vmem:[%s8729 + $0x18] sm:$0xff]
    %v8735 = vsel %vm181, %v8705, 0
    %v8738 = vsel %vm181, %v8706, 0
    %v8741 = vsel %vm181, %v8707, 0
    %v8744 = vsel %vm181, %v8708, 0
    %v8747 = vsel %vm181, %v8709, 0
    %v8750 = vsel %vm181, %v8710, 0
    %v8753 = vsel %vm181, %v8711, 0
    %v8756 = vsel %vm181, %v8712, 0
    %v8759 = vsel %vm181, %v8713, 0
    %v8762 = vsel %vm181, %v8714, 0
    %v8765 = vsel %vm181, %v8715, 0
    %v8768 = vsel %vm181, %v8716, 0
    %v8771 = vsel %vm181, %v8717, 0
    %v8774 = vsel %vm181, %v8718, 0
    %v8777 = vsel %vm181, %v8719, 0
    %v8780 = vsel %vm181, %v8720, 0
    %v8783 = vsel %vm181, %v8721, 0
    %v8786 = vsel %vm181, %v8722, 0
    %v8789 = vsel %vm181, %v8723, 0
    %v8792 = vsel %vm181, %v8724, 0
    %v8795 = vsel %vm181, %v8725, 0
    %v8798 = vsel %vm181, %v8726, 0
    %v8801 = vsel %vm181, %v8727, 0
    %v8804 = vsel %vm181, %v8728, 0
    %8806 = vmatprep.subr.mxu0 0.0
    %8807 = vmatpush1.msra.mxu0 %v8730
    %8808 = vmatprep.subr.mxu0 0.0
    %8809 = vmatpush1.msra.mxu0 %v8731
    %8810 = vmatprep.subr.mxu0 0.0
    %8811 = vmatpush1.msra.mxu0 %v8732
    %8812 = vmatprep.subr.mxu0 0.0
    %8813 = vmatpush1.msra.mxu0 %v8733
    %8814 = vmatprep.subr.mxu0 0.0
    %8815 = vmatpush1.msra.mxu0 0.0
    %8816 = vmatprep.subr.mxu0 0.0
    %8817 = vmatpush1.msra.mxu0 0.0
    %8818 = vmatprep.subr.mxu0 0.0
    %8819 = vmatpush1.msra.mxu0 0.0
    %8820 = vmatprep.subr.mxu0 0.0
    %8821 = vmatpush1.msra.mxu0 0.0
    %8822 = vmatprep.subr.mxu0 0.0
    %8823 = vmatpush1.msra.mxu0 0.0
    %8824 = vmatprep.subr.mxu0 0.0
    %8825 = vmatpush1.msra.mxu0 0.0
    %8826 = vmatprep.subr.mxu0 0.0
    %8827 = vmatpush1.msra.mxu0 0.0
    %8828 = vmatprep.subr.mxu0 0.0
    %8829 = vmatpush1.msra.mxu0 0.0
    %8830 = vmatprep.subr.mxu0 0.0
    %8831 = vmatpush1.msra.mxu0 0.0
    %8832 = vmatprep.subr.mxu0 0.0
    %8833 = vmatpush1.msra.mxu0 0.0
    %8834 = vmatprep.subr.mxu0 0.0
    %8835 = vmatpush1.msra.mxu0 0.0
    %8836 = vmatprep.subr.mxu0 0.0
    %8837 = vmatpush1.msra.mxu0 0.0
    %8838 = vmatprep.subr.mxu0 0.0
    %8839 = vmatpush1.msra.mxu0 0.0
    %8840 = vmatprep.subr.mxu0 0.0
    %8841 = vmatpush1.msra.mxu0 0.0
    %8842 = vmatprep.subr.mxu0 0.0
    %8843 = vmatpush1.msra.mxu0 0.0
    %8844 = vmatprep.subr.mxu0 0.0
    %8845 = vmatpush1.msra.mxu0 0.0
    %8846 = vmatprep.subr.mxu0 0.0
    %8847 = vmatpush1.msra.mxu0 0.0
    %8848 = vmatprep.subr.mxu0 0.0
    %8849 = vmatpush1.msra.mxu0 0.0
    %8850 = vmatprep.subr.mxu0 0.0
    %8851 = vmatpush1.msra.mxu0 0.0
    %8852 = vmatprep.subr.mxu0 0.0
    %8853 = vmatpush1.msra.mxu0 0.0
    %8854 = vmatprep.subr.mxu0 0.0
    %8855 = vmatpush1.msra.mxu0 0.0
    %8856 = vmatprep.subr.mxu0 0.0
    %8857 = vmatpush1.msra.mxu0 0.0
    %8858 = vmatprep.subr.mxu0 0.0
    %8859 = vmatpush1.msra.mxu0 0.0
    %8860 = vmatprep.subr.mxu0 0.0
    %8861 = vmatpush1.msra.mxu0 0.0
    %8862 = vmatprep.subr.mxu0 0.0
    %8863 = vmatpush1.msra.mxu0 0.0
    %8864 = vmatprep.subr.mxu0 0.0
    %8865 = vmatpush1.msra.mxu0 0.0
    %8866 = vmatprep.subr.mxu0 0.0
    %8867 = vmatpush1.msra.mxu0 0.0
    %8868 = vmatprep.subr.mxu0 0.0
    %8869 = vmatpush1.msra.mxu0 0.0
    %8870 = vmatprep.mubr.f32.mxu0 0.0
    %8871 = vmatmul.mubr.f32.gmra.mrb[0].mxu0 %v8735
    %v8872 = vpop.f32.mrb[0].mxu0
    %v8873 = vadd.f32 0.0, %v8872
    %v8874 = vpop.f32.mrb[0].mxu0
    %8875 = vmatprep.mubr.f32.mxu0 0.0
    %8876 = vmatmul.mubr.f32.gmra.mrb[0].mxu0 %v8738
    %v8877 = vpop.f32.mrb[0].mxu0
    %v8878 = vadd.f32 0.0, %v8877
    %v8879 = vpop.f32.mrb[0].mxu0
    %8880 = vmatprep.mubr.f32.mxu0 0.0
    %8881 = vmatmul.mubr.f32.gmra.mrb[0].mxu0 %v8741
    %v8882 = vpop.f32.mrb[0].mxu0
    %v8883 = vadd.f32 0.0, %v8882
    %v8884 = vpop.f32.mrb[0].mxu0
    %8885 = vmatprep.mubr.f32.mxu0 0.0
    %8886 = vmatmul.mubr.f32.gmra.mrb[0].mxu0 %v8744
    %v8887 = vpop.f32.mrb[0].mxu0
    %v8888 = vadd.f32 0.0, %v8887
    %v8889 = vpop.f32.mrb[0].mxu0
    %8890 = vmatprep.mubr.f32.mxu0 0.0
    %8891 = vmatmul.mubr.f32.gmra.mrb[0].mxu0 %v8747
    %v8892 = vpop.f32.mrb[0].mxu0
    %v8893 = vadd.f32 0.0, %v8892
    %v8894 = vpop.f32.mrb[0].mxu0
    %8895 = vmatprep.mubr.f32.mxu0 0.0
    %8896 = vmatmul.mubr.f32.gmra.mrb[0].mxu0 %v8750
    %v8897 = vpop.f32.mrb[0].mxu0
    %v8898 = vadd.f32 0.0, %v8897
    %v8899 = vpop.f32.mrb[0].mxu0
    %8900 = vmatprep.mubr.f32.mxu0 0.0
    %8901 = vmatmul.mubr.f32.gmra.mrb[0].mxu0 %v8753
    %v8902 = vpop.f32.mrb[0].mxu0
    %v8903 = vadd.f32 0.0, %v8902
    %v8904 = vpop.f32.mrb[0].mxu0
    %8905 = vmatprep.mubr.f32.mxu0 0.0
    %8906 = vmatmul.mubr.f32.gmra.mrb[0].mxu0 %v8756
    %v8907 = vpop.f32.mrb[0].mxu0
    %v8908 = vadd.f32 0.0, %v8907
    %v8909 = vpop.f32.mrb[0].mxu0
    %8910 = vmatprep.mubr.f32.mxu0 0.0
    %8911 = vmatmul.mubr.f32.gmra.mrb[0].mxu0 %v8759
    %v8912 = vpop.f32.mrb[0].mxu0
    %v8913 = vadd.f32 0.0, %v8912
    %v8914 = vpop.f32.mrb[0].mxu0
    %8915 = vmatprep.mubr.f32.mxu0 0.0
    %8916 = vmatmul.mubr.f32.gmra.mrb[0].mxu0 %v8762
    %v8917 = vpop.f32.mrb[0].mxu0
    %v8918 = vadd.f32 0.0, %v8917
    %v8919 = vpop.f32.mrb[0].mxu0
    %8920 = vmatprep.mubr.f32.mxu0 0.0
    %8921 = vmatmul.mubr.f32.gmra.mrb[0].mxu0 %v8765
    %v8922 = vpop.f32.mrb[0].mxu0
    %v8923 = vadd.f32 0.0, %v8922
    %v8924 = vpop.f32.mrb[0].mxu0
    %8925 = vmatprep.mubr.f32.mxu0 0.0
    %8926 = vmatmul.mubr.f32.gmra.mrb[0].mxu0 %v8768
    %v8927 = vpop.f32.mrb[0].mxu0
    %v8928 = vadd.f32 0.0, %v8927
    %v8929 = vpop.f32.mrb[0].mxu0
    %8930 = vmatprep.mubr.f32.mxu0 0.0
    %8931 = vmatmul.mubr.f32.gmra.mrb[0].mxu0 %v8771
    %v8932 = vpop.f32.mrb[0].mxu0
    %v8933 = vadd.f32 0.0, %v8932
    %v8934 = vpop.f32.mrb[0].mxu0
    %8935 = vmatprep.mubr.f32.mxu0 0.0
    %8936 = vmatmul.mubr.f32.gmra.mrb[0].mxu0 %v8774
    %v8937 = vpop.f32.mrb[0].mxu0
    %v8938 = vadd.f32 0.0, %v8937
    %v8939 = vpop.f32.mrb[0].mxu0
    %8940 = vmatprep.mubr.f32.mxu0 0.0
    %8941 = vmatmul.mubr.f32.gmra.mrb[0].mxu0 %v8777
    %v8942 = vpop.f32.mrb[0].mxu0
    %v8943 = vadd.f32 0.0, %v8942
    %v8944 = vpop.f32.mrb[0].mxu0
    %8945 = vmatprep.mubr.f32.mxu0 0.0
    %8946 = vmatmul.mubr.f32.gmra.mrb[0].mxu0 %v8780
    %v8947 = vpop.f32.mrb[0].mxu0
    %v8948 = vadd.f32 0.0, %v8947
    %v8949 = vpop.f32.mrb[0].mxu0
    %8950 = vmatprep.mubr.f32.mxu0 0.0
    %8951 = vmatmul.mubr.f32.gmra.mrb[0].mxu0 %v8783
    %v8952 = vpop.f32.mrb[0].mxu0
    %v8953 = vadd.f32 0.0, %v8952
    %v8954 = vpop.f32.mrb[0].mxu0
    %8955 = vmatprep.mubr.f32.mxu0 0.0
    %8956 = vmatmul.mubr.f32.gmra.mrb[0].mxu0 %v8786
    %v8957 = vpop.f32.mrb[0].mxu0
    %v8958 = vadd.f32 0.0, %v8957
    %v8959 = vpop.f32.mrb[0].mxu0
    %8960 = vmatprep.mubr.f32.mxu0 0.0
    %8961 = vmatmul.mubr.f32.gmra.mrb[0].mxu0 %v8789
    %v8962 = vpop.f32.mrb[0].mxu0
    %v8963 = vadd.f32 0.0, %v8962
    %v8964 = vpop.f32.mrb[0].mxu0
    %8965 = vmatprep.mubr.f32.mxu0 0.0
    %8966 = vmatmul.mubr.f32.gmra.mrb[0].mxu0 %v8792
    %v8967 = vpop.f32.mrb[0].mxu0
    %v8968 = vadd.f32 0.0, %v8967
    %v8969 = vpop.f32.mrb[0].mxu0
    %8970 = vmatprep.mubr.f32.mxu0 0.0
    %8971 = vmatmul.mubr.f32.gmra.mrb[0].mxu0 %v8795
    %v8972 = vpop.f32.mrb[0].mxu0
    %v8973 = vadd.f32 0.0, %v8972
    %v8974 = vpop.f32.mrb[0].mxu0
    %8975 = vmatprep.mubr.f32.mxu0 0.0
    %8976 = vmatmul.mubr.f32.gmra.mrb[0].mxu0 %v8798
    %v8977 = vpop.f32.mrb[0].mxu0
    %v8978 = vadd.f32 0.0, %v8977
    %v8979 = vpop.f32.mrb[0].mxu0
    %8980 = vmatprep.mubr.f32.mxu0 0.0
    %8981 = vmatmul.mubr.f32.gmra.mrb[0].mxu0 %v8801
    %v8982 = vpop.f32.mrb[0].mxu0
    %v8983 = vadd.f32 0.0, %v8982
    %v8984 = vpop.f32.mrb[0].mxu0
    %8985 = vmatprep.mubr.f32.mxu0 0.0
    %8986 = vmatmul.mubr.f32.gmra.mrb[0].mxu0 %v8804
    %v8987 = vpop.f32.mrb[0].mxu0
    %v8988 = vadd.f32 0.0, %v8987
    %v8989 = vpop.f32.mrb[0].mxu0
    %8990 = vdwg.mxu0
    %v8991 = vadd.f32 %v8681, %v8873
    %v8992 = vadd.f32 %v8682, %v8878
    %v8993 = vadd.f32 %v8683, %v8883
    %v8994 = vadd.f32 %v8684, %v8888
    %v8995 = vadd.f32 %v8685, %v8893
    %v8996 = vadd.f32 %v8686, %v8898
    %v8997 = vadd.f32 %v8687, %v8903
    %v8998 = vadd.f32 %v8688, %v8908
    %v8999 = vadd.f32 %v8689, %v8913
    %v9000 = vadd.f32 %v8690, %v8918
    %v9001 = vadd.f32 %v8691, %v8923
    %v9002 = vadd.f32 %v8692, %v8928
    %v9003 = vadd.f32 %v8693, %v8933
    %v9004 = vadd.f32 %v8694, %v8938
    %v9005 = vadd.f32 %v8695, %v8943
    %v9006 = vadd.f32 %v8696, %v8948
    %v9007 = vadd.f32 %v8697, %v8953
    %v9008 = vadd.f32 %v8698, %v8958
    %v9009 = vadd.f32 %v8699, %v8963
    %v9010 = vadd.f32 %v8700, %v8968
    %v9011 = vadd.f32 %v8701, %v8973
    %v9012 = vadd.f32 %v8702, %v8978
    %v9013 = vadd.f32 %v8703, %v8983
    %v9014 = vadd.f32 %v8704, %v8988
    %v9015 = vld [vmem:[#allocation2 + $0x34] sm:$0xff]
    %v9016 = vld [vmem:[#allocation2 + $0x3c] sm:$0xff]
    %v9017 = vld [vmem:[#allocation2 + $0x44] sm:$0xff]
    %v9018 = vld [vmem:[#allocation2 + $0x4c] sm:$0xff]
    %v9019 = vld [vmem:[#allocation2 + $0x54] sm:$0xff]
    %v9020 = vld [vmem:[#allocation2 + $0x5c] sm:$0xff]
    %v9021 = vld [vmem:[#allocation2 + $0x64] sm:$0xff]
    %v9022 = vld [vmem:[#allocation2 + $0x6c] sm:$0xff]
    %v9023 = vld [vmem:[#allocation2 + $0x74] sm:$0xff]
    %v9024 = vld [vmem:[#allocation2 + $0x7c] sm:$0xff]
    %v9025 = vld [vmem:[#allocation2 + $0x84] sm:$0xff]
    %v9026 = vld [vmem:[#allocation2 + $0x8c] sm:$0xff]
    %v9027 = vld [vmem:[#allocation2 + $0xcc] sm:$0xff]
    %v9028 = vld [vmem:[#allocation2 + $0xd4] sm:$0xff]
    %v9029 = vld [vmem:[#allocation2 + $0xdc] sm:$0xff]
    %v9030 = vld [vmem:[#allocation2 + $0xe4] sm:$0xff]
    %v9031 = vld [vmem:[#allocation2 + $0xec] sm:$0xff]
    %v9032 = vld [vmem:[#allocation2 + $0xf4] sm:$0xff]
    %v9033 = vld [vmem:[#allocation2 + $0xfc] sm:$0xff]
    %v9034 = vld [vmem:[#allocation2 + $0x104] sm:$0xff]
    %v9035 = vld [vmem:[#allocation2 + $0x10c] sm:$0xff]
    %v9036 = vld [vmem:[#allocation2 + $0x114] sm:$0xff]
    %v9037 = vld [vmem:[#allocation2 + $0x11c] sm:$0xff]
    %v9038 = vld [vmem:[#allocation2 + $0x124] sm:$0xff]
    %s9039 = scalar_lea.vmem %s3, 768
    %v9040 = vld [vmem:[%s9039] sm:$0xff]
    %v9041 = vld [vmem:[%s9039 + $0x8] sm:$0xff]
    %v9042 = vld [vmem:[%s9039 + $0x10] sm:$0xff]
    %v9043 = vld [vmem:[%s9039 + $0x18] sm:$0xff]
    %v9045 = vsel %vm181, %v9015, 0
    %v9048 = vsel %vm181, %v9016, 0
    %v9051 = vsel %vm181, %v9017, 0
    %v9054 = vsel %vm181, %v9018, 0
    %v9057 = vsel %vm181, %v9019, 0
    %v9060 = vsel %vm181, %v9020, 0
    %v9063 = vsel %vm181, %v9021, 0
    %v9066 = vsel %vm181, %v9022, 0
    %v9069 = vsel %vm181, %v9023, 0
    %v9072 = vsel %vm181, %v9024, 0
    %v9075 = vsel %vm181, %v9025, 0
    %v9078 = vsel %vm181, %v9026, 0
    %v9081 = vsel %vm181, %v9027, 0
    %v9084 = vsel %vm181, %v9028, 0
    %v9087 = vsel %vm181, %v9029, 0
    %v9090 = vsel %vm181, %v9030, 0
    %v9093 = vsel %vm181, %v9031, 0
    %v9096 = vsel %vm181, %v9032, 0
    %v9099 = vsel %vm181, %v9033, 0
    %v9102 = vsel %vm181, %v9034, 0
    %v9105 = vsel %vm181, %v9035, 0
    %v9108 = vsel %vm181, %v9036, 0
    %v9111 = vsel %vm181, %v9037, 0
    %v9114 = vsel %vm181, %v9038, 0
    %9116 = vmatprep.subr.mxu0 0.0
    %9117 = vmatpush1.msra.mxu0 %v9040
    %9118 = vmatprep.subr.mxu0 0.0
    %9119 = vmatpush1.msra.mxu0 %v9041
    %9120 = vmatprep.subr.mxu0 0.0
    %9121 = vmatpush1.msra.mxu0 %v9042
    %9122 = vmatprep.subr.mxu0 0.0
    %9123 = vmatpush1.msra.mxu0 %v9043
    %9124 = vmatprep.subr.mxu0 0.0
    %9125 = vmatpush1.msra.mxu0 0.0
    %9126 = vmatprep.subr.mxu0 0.0
    %9127 = vmatpush1.msra.mxu0 0.0
    %9128 = vmatprep.subr.mxu0 0.0
    %9129 = vmatpush1.msra.mxu0 0.0
    %9130 = vmatprep.subr.mxu0 0.0
    %9131 = vmatpush1.msra.mxu0 0.0
    %9132 = vmatprep.subr.mxu0 0.0
    %9133 = vmatpush1.msra.mxu0 0.0
    %9134 = vmatprep.subr.mxu0 0.0
    %9135 = vmatpush1.msra.mxu0 0.0
    %9136 = vmatprep.subr.mxu0 0.0
    %9137 = vmatpush1.msra.mxu0 0.0
    %9138 = vmatprep.subr.mxu0 0.0
    %9139 = vmatpush1.msra.mxu0 0.0
    %9140 = vmatprep.subr.mxu0 0.0
    %9141 = vmatpush1.msra.mxu0 0.0
    %9142 = vmatprep.subr.mxu0 0.0
    %9143 = vmatpush1.msra.mxu0 0.0
    %9144 = vmatprep.subr.mxu0 0.0
    %9145 = vmatpush1.msra.mxu0 0.0
    %9146 = vmatprep.subr.mxu0 0.0
    %9147 = vmatpush1.msra.mxu0 0.0
    %9148 = vmatprep.subr.mxu0 0.0
    %9149 = vmatpush1.msra.mxu0 0.0
    %9150 = vmatprep.subr.mxu0 0.0
    %9151 = vmatpush1.msra.mxu0 0.0
    %9152 = vmatprep.subr.mxu0 0.0
    %9153 = vmatpush1.msra.mxu0 0.0
    %9154 = vmatprep.subr.mxu0 0.0
    %9155 = vmatpush1.msra.mxu0 0.0
    %9156 = vmatprep.subr.mxu0 0.0
    %9157 = vmatpush1.msra.mxu0 0.0
    %9158 = vmatprep.subr.mxu0 0.0
    %9159 = vmatpush1.msra.mxu0 0.0
    %9160 = vmatprep.subr.mxu0 0.0
    %9161 = vmatpush1.msra.mxu0 0.0
    %9162 = vmatprep.subr.mxu0 0.0
    %9163 = vmatpush1.msra.mxu0 0.0
    %9164 = vmatprep.subr.mxu0 0.0
    %9165 = vmatpush1.msra.mxu0 0.0
    %9166 = vmatprep.subr.mxu0 0.0
    %9167 = vmatpush1.msra.mxu0 0.0
    %9168 = vmatprep.subr.mxu0 0.0
    %9169 = vmatpush1.msra.mxu0 0.0
    %9170 = vmatprep.subr.mxu0 0.0
    %9171 = vmatpush1.msra.mxu0 0.0
    %9172 = vmatprep.subr.mxu0 0.0
    %9173 = vmatpush1.msra.mxu0 0.0
    %9174 = vmatprep.subr.mxu0 0.0
    %9175 = vmatpush1.msra.mxu0 0.0
    %9176 = vmatprep.subr.mxu0 0.0
    %9177 = vmatpush1.msra.mxu0 0.0
    %9178 = vmatprep.subr.mxu0 0.0
    %9179 = vmatpush1.msra.mxu0 0.0
    %9180 = vmatprep.mubr.f32.mxu0 0.0
    %9181 = vmatmul.mubr.f32.gmra.mrb[0].mxu0 %v9045
    %v9182 = vpop.f32.mrb[0].mxu0
    %v9183 = vadd.f32 0.0, %v9182
    %v9184 = vpop.f32.mrb[0].mxu0
    %9185 = vmatprep.mubr.f32.mxu0 0.0
    %9186 = vmatmul.mubr.f32.gmra.mrb[0].mxu0 %v9048
    %v9187 = vpop.f32.mrb[0].mxu0
    %v9188 = vadd.f32 0.0, %v9187
    %v9189 = vpop.f32.mrb[0].mxu0
    %9190 = vmatprep.mubr.f32.mxu0 0.0
    %9191 = vmatmul.mubr.f32.gmra.mrb[0].mxu0 %v9051
    %v9192 = vpop.f32.mrb[0].mxu0
    %v9193 = vadd.f32 0.0, %v9192
    %v9194 = vpop.f32.mrb[0].mxu0
    %9195 = vmatprep.mubr.f32.mxu0 0.0
    %9196 = vmatmul.mubr.f32.gmra.mrb[0].mxu0 %v9054
    %v9197 = vpop.f32.mrb[0].mxu0
    %v9198 = vadd.f32 0.0, %v9197
    %v9199 = vpop.f32.mrb[0].mxu0
    %9200 = vmatprep.mubr.f32.mxu0 0.0
    %9201 = vmatmul.mubr.f32.gmra.mrb[0].mxu0 %v9057
    %v9202 = vpop.f32.mrb[0].mxu0
    %v9203 = vadd.f32 0.0, %v9202
    %v9204 = vpop.f32.mrb[0].mxu0
    %9205 = vmatprep.mubr.f32.mxu0 0.0
    %9206 = vmatmul.mubr.f32.gmra.mrb[0].mxu0 %v9060
    %v9207 = vpop.f32.mrb[0].mxu0
    %v9208 = vadd.f32 0.0, %v9207
    %v9209 = vpop.f32.mrb[0].mxu0
    %9210 = vmatprep.mubr.f32.mxu0 0.0
    %9211 = vmatmul.mubr.f32.gmra.mrb[0].mxu0 %v9063
    %v9212 = vpop.f32.mrb[0].mxu0
    %v9213 = vadd.f32 0.0, %v9212
    %v9214 = vpop.f32.mrb[0].mxu0
    %9215 = vmatprep.mubr.f32.mxu0 0.0
    %9216 = vmatmul.mubr.f32.gmra.mrb[0].mxu0 %v9066
    %v9217 = vpop.f32.mrb[0].mxu0
    %v9218 = vadd.f32 0.0, %v9217
    %v9219 = vpop.f32.mrb[0].mxu0
    %9220 = vmatprep.mubr.f32.mxu0 0.0
    %9221 = vmatmul.mubr.f32.gmra.mrb[0].mxu0 %v9069
    %v9222 = vpop.f32.mrb[0].mxu0
    %v9223 = vadd.f32 0.0, %v9222
    %v9224 = vpop.f32.mrb[0].mxu0
    %9225 = vmatprep.mubr.f32.mxu0 0.0
    %9226 = vmatmul.mubr.f32.gmra.mrb[0].mxu0 %v9072
    %v9227 = vpop.f32.mrb[0].mxu0
    %v9228 = vadd.f32 0.0, %v9227
    %v9229 = vpop.f32.mrb[0].mxu0
    %9230 = vmatprep.mubr.f32.mxu0 0.0
    %9231 = vmatmul.mubr.f32.gmra.mrb[0].mxu0 %v9075
    %v9232 = vpop.f32.mrb[0].mxu0
    %v9233 = vadd.f32 0.0, %v9232
    %v9234 = vpop.f32.mrb[0].mxu0
    %9235 = vmatprep.mubr.f32.mxu0 0.0
    %9236 = vmatmul.mubr.f32.gmra.mrb[0].mxu0 %v9078
    %v9237 = vpop.f32.mrb[0].mxu0
    %v9238 = vadd.f32 0.0, %v9237
    %v9239 = vpop.f32.mrb[0].mxu0
    %9240 = vmatprep.mubr.f32.mxu0 0.0
    %9241 = vmatmul.mubr.f32.gmra.mrb[0].mxu0 %v9081
    %v9242 = vpop.f32.mrb[0].mxu0
    %v9243 = vadd.f32 0.0, %v9242
    %v9244 = vpop.f32.mrb[0].mxu0
    %9245 = vmatprep.mubr.f32.mxu0 0.0
    %9246 = vmatmul.mubr.f32.gmra.mrb[0].mxu0 %v9084
    %v9247 = vpop.f32.mrb[0].mxu0
    %v9248 = vadd.f32 0.0, %v9247
    %v9249 = vpop.f32.mrb[0].mxu0
    %9250 = vmatprep.mubr.f32.mxu0 0.0
    %9251 = vmatmul.mubr.f32.gmra.mrb[0].mxu0 %v9087
    %v9252 = vpop.f32.mrb[0].mxu0
    %v9253 = vadd.f32 0.0, %v9252
    %v9254 = vpop.f32.mrb[0].mxu0
    %9255 = vmatprep.mubr.f32.mxu0 0.0
    %9256 = vmatmul.mubr.f32.gmra.mrb[0].mxu0 %v9090
    %v9257 = vpop.f32.mrb[0].mxu0
    %v9258 = vadd.f32 0.0, %v9257
    %v9259 = vpop.f32.mrb[0].mxu0
    %9260 = vmatprep.mubr.f32.mxu0 0.0
    %9261 = vmatmul.mubr.f32.gmra.mrb[0].mxu0 %v9093
    %v9262 = vpop.f32.mrb[0].mxu0
    %v9263 = vadd.f32 0.0, %v9262
    %v9264 = vpop.f32.mrb[0].mxu0
    %9265 = vmatprep.mubr.f32.mxu0 0.0
    %9266 = vmatmul.mubr.f32.gmra.mrb[0].mxu0 %v9096
    %v9267 = vpop.f32.mrb[0].mxu0
    %v9268 = vadd.f32 0.0, %v9267
    %v9269 = vpop.f32.mrb[0].mxu0
    %9270 = vmatprep.mubr.f32.mxu0 0.0
    %9271 = vmatmul.mubr.f32.gmra.mrb[0].mxu0 %v9099
    %v9272 = vpop.f32.mrb[0].mxu0
    %v9273 = vadd.f32 0.0, %v9272
    %v9274 = vpop.f32.mrb[0].mxu0
    %9275 = vmatprep.mubr.f32.mxu0 0.0
    %9276 = vmatmul.mubr.f32.gmra.mrb[0].mxu0 %v9102
    %v9277 = vpop.f32.mrb[0].mxu0
    %v9278 = vadd.f32 0.0, %v9277
    %v9279 = vpop.f32.mrb[0].mxu0
    %9280 = vmatprep.mubr.f32.mxu0 0.0
    %9281 = vmatmul.mubr.f32.gmra.mrb[0].mxu0 %v9105
    %v9282 = vpop.f32.mrb[0].mxu0
    %v9283 = vadd.f32 0.0, %v9282
    %v9284 = vpop.f32.mrb[0].mxu0
    %9285 = vmatprep.mubr.f32.mxu0 0.0
    %9286 = vmatmul.mubr.f32.gmra.mrb[0].mxu0 %v9108
    %v9287 = vpop.f32.mrb[0].mxu0
    %v9288 = vadd.f32 0.0, %v9287
    %v9289 = vpop.f32.mrb[0].mxu0
    %9290 = vmatprep.mubr.f32.mxu0 0.0
    %9291 = vmatmul.mubr.f32.gmra.mrb[0].mxu0 %v9111
    %v9292 = vpop.f32.mrb[0].mxu0
    %v9293 = vadd.f32 0.0, %v9292
    %v9294 = vpop.f32.mrb[0].mxu0
    %9295 = vmatprep.mubr.f32.mxu0 0.0
    %9296 = vmatmul.mubr.f32.gmra.mrb[0].mxu0 %v9114
    %v9297 = vpop.f32.mrb[0].mxu0
    %v9298 = vadd.f32 0.0, %v9297
    %v9299 = vpop.f32.mrb[0].mxu0
    %9300 = vdwg.mxu0
    %v9301 = vadd.f32 %v8991, %v9183
    %v9302 = vadd.f32 %v8992, %v9188
    %v9303 = vadd.f32 %v8993, %v9193
    %v9304 = vadd.f32 %v8994, %v9198
    %v9305 = vadd.f32 %v8995, %v9203
    %v9306 = vadd.f32 %v8996, %v9208
    %v9307 = vadd.f32 %v8997, %v9213
    %v9308 = vadd.f32 %v8998, %v9218
    %v9309 = vadd.f32 %v8999, %v9223
    %v9310 = vadd.f32 %v9000, %v9228
    %v9311 = vadd.f32 %v9001, %v9233
    %v9312 = vadd.f32 %v9002, %v9238
    %v9313 = vadd.f32 %v9003, %v9243
    %v9314 = vadd.f32 %v9004, %v9248
    %v9315 = vadd.f32 %v9005, %v9253
    %v9316 = vadd.f32 %v9006, %v9258
    %v9317 = vadd.f32 %v9007, %v9263
    %v9318 = vadd.f32 %v9008, %v9268
    %v9319 = vadd.f32 %v9009, %v9273
    %v9320 = vadd.f32 %v9010, %v9278
    %v9321 = vadd.f32 %v9011, %v9283
    %v9322 = vadd.f32 %v9012, %v9288
    %v9323 = vadd.f32 %v9013, %v9293
    %v9324 = vadd.f32 %v9014, %v9298
    %vm9325 = vcmask 523264
    %9326 = vst.msk [vmem:[#allocation3] sm:$0xff] %vm9325, %v9301
    %9327 = vst.msk [vmem:[#allocation3 + $0x8] sm:$0xff] %vm9325, %v9302
    %9328 = vst.msk [vmem:[#allocation3 + $0x10] sm:$0xff] %vm9325, %v9303
    %9329 = vst.msk [vmem:[#allocation3 + $0x18] sm:$0xff] %vm9325, %v9304
    %9330 = vst.msk [vmem:[#allocation3 + $0x20] sm:$0xff] %vm9325, %v9305
    %9331 = vst.msk [vmem:[#allocation3 + $0x28] sm:$0xff] %vm9325, %v9306
    %9332 = vst.msk [vmem:[#allocation3 + $0x30] sm:$0xff] %vm9325, %v9307
    %9333 = vst.msk [vmem:[#allocation3 + $0x38] sm:$0xff] %vm9325, %v9308
    %9334 = vst.msk [vmem:[#allocation3 + $0x40] sm:$0xff] %vm9325, %v9309
    %9335 = vst.msk [vmem:[#allocation3 + $0x48] sm:$0xff] %vm9325, %v9310
    %9336 = vst.msk [vmem:[#allocation3 + $0x50] sm:$0xff] %vm9325, %v9311
    %9337 = vst.msk [vmem:[#allocation3 + $0x58] sm:$0xff] %vm9325, %v9312
    %9338 = vst.msk [vmem:[#allocation3 + $0x60] sm:$0xff] %vm9325, %v9313
    %9339 = vst.msk [vmem:[#allocation3 + $0x68] sm:$0xff] %vm9325, %v9314
    %9340 = vst.msk [vmem:[#allocation3 + $0x70] sm:$0xff] %vm9325, %v9315
    %9341 = vst.msk [vmem:[#allocation3 + $0x78] sm:$0xff] %vm9325, %v9316
    %9342 = vst.msk [vmem:[#allocation3 + $0x80] sm:$0xff] %vm9325, %v9317
    %9343 = vst.msk [vmem:[#allocation3 + $0x88] sm:$0xff] %vm9325, %v9318
    %9344 = vst.msk [vmem:[#allocation3 + $0x90] sm:$0xff] %vm9325, %v9319
    %9345 = vst.msk [vmem:[#allocation3 + $0x98] sm:$0xff] %vm9325, %v9320
    %9346 = vst.msk [vmem:[#allocation3 + $0xa0] sm:$0xff] %vm9325, %v9321
    %9347 = vst.msk [vmem:[#allocation3 + $0xa8] sm:$0xff] %vm9325, %v9322
    %9348 = vst.msk [vmem:[#allocation3 + $0xb0] sm:$0xff] %vm9325, %v9323
    %9349 = vst.msk [vmem:[#allocation3 + $0xb8] sm:$0xff] %vm9325, %v9324
    %v9350 = vld [vmem:[#allocation3] sm:$0x1]
    %v9351 = vld [vmem:[#allocation3 + $0x60] sm:$0x1]
    %v9352 = vld [vmem:[#allocation3 + $0x1] sm:$0x1]
    %v9353 = vld [vmem:[#allocation3 + $0x61] sm:$0x1]
    %v9354 = vmax.f32 %v9350, %v9352
    %v9355 = vmax.f32 %v9351, %v9353
    %v9356 = vld [vmem:[#allocation3 + $0xc] sm:$0x1]
    %v9357 = vld [vmem:[#allocation3 + $0x6c] sm:$0x1]
    %v9358 = vld [vmem:[#allocation3 + $0xd] sm:$0x1]
    %v9359 = vld [vmem:[#allocation3 + $0x6d] sm:$0x1]
    %v9360 = vmax.f32 %v9356, %v9358
    %v9361 = vmax.f32 %v9357, %v9359
    %v9362 = vmax.f32 %v9354, %v9360
    %v9363 = vmax.f32 %v9355, %v9361
    %v9364 = vld [vmem:[%s4] sm:$0x1]
    %v9366 = vlaneseq
    %v9367 = vshrl.u32 %v9366, 7
    %v9368 = vsub.s32 0, %v9367
    %v9369 = vrot.slane %v9364, %v9368
    %v9371 = vadd.f32 %v9362, %v9369
    %v9372 = vadd.f32 %v9363, %v9369
    %v9373 = vmax.f32 %v9371, 0.0
    %v9374 = vmax.f32 %v9372, 0.0
    %v9378 = vunpack.c.l.s4 1983009808
    %v9379 = vunpack.c.0.s8 %v9378
    %v9380 = vlaneseq
    %v9381 = vshrl.u32 %v9380, 7
    %v9382 = vsub.s32 %v9379, %v9381
    %v9383 = vrot.slane %v9373, %v9382
    %v9385 = vunpack.c.l.s4 1983009808
    %v9386 = vunpack.c.0.s8 %v9385
    %v9387 = vlaneseq
    %v9388 = vshrl.u32 %v9387, 7
    %v9389 = vsub.s32 %v9386, %v9388
    %v9390 = vrot.slane %v9374, %v9389
    %vm9391 = vcmask 1044484
    %v9392 = vsel %vm9391, %v9383, %v9383
    %vm9393 = vcmask 1046534
    %v9394 = vsel %vm9393, %v9383, %v9392
    %v9395 = vrot.slane %v9390, 7
    %vm9396 = vcmask 1041409
    %v9397 = vsel %vm9396, %v9395, %v9394
    %vm9398 = vcmask 1043459
    %v9399 = vsel %vm9398, %v9395, %v9397
    %vm9400 = vcmask 1045509
    %v9401 = vsel %vm9400, %v9395, %v9399
    %vm9402 = vcmask 1047559
    %v9403 = vsel %vm9402, %v9395, %v9401
    %vm9405 = vcmask 517120
    %9406 = vst.msk [vmem:[#allocation4] sm:$0x3] %vm9405, %v9403
    %v9407 = vld [vmem:[#allocation3 + $0x2] sm:$0x1]
    %v9408 = vld [vmem:[#allocation3 + $0x62] sm:$0x1]
    %v9409 = vld [vmem:[#allocation3 + $0x3] sm:$0x1]
    %v9410 = vld [vmem:[#allocation3 + $0x63] sm:$0x1]
    %v9411 = vmax.f32 %v9407, %v9409
    %v9412 = vmax.f32 %v9408, %v9410
    %v9413 = vld [vmem:[#allocation3 + $0xe] sm:$0x1]
    %v9414 = vld [vmem:[#allocation3 + $0x6e] sm:$0x1]
    %v9415 = vld [vmem:[#allocation3 + $0xf] sm:$0x1]
    %v9416 = vld [vmem:[#allocation3 + $0x6f] sm:$0x1]
    %v9417 = vmax.f32 %v9413, %v9415
    %v9418 = vmax.f32 %v9414, %v9416
    %v9419 = vmax.f32 %v9411, %v9417
    %v9420 = vmax.f32 %v9412, %v9418
    %v9421 = vld [vmem:[%s4] sm:$0x1]
    %v9423 = vlaneseq
    %v9424 = vshrl.u32 %v9423, 7
    %v9425 = vsub.s32 0, %v9424
    %v9426 = vrot.slane %v9421, %v9425
    %v9428 = vadd.f32 %v9419, %v9426
    %v9429 = vadd.f32 %v9420, %v9426
    %v9430 = vmax.f32 %v9428, 0.0
    %v9431 = vmax.f32 %v9429, 0.0
    %v9435 = vunpack.c.l.s4 1983009808
    %v9436 = vunpack.c.0.s8 %v9435
    %v9437 = vlaneseq
    %v9438 = vshrl.u32 %v9437, 7
    %v9439 = vsub.s32 %v9436, %v9438
    %v9440 = vrot.slane %v9430, %v9439
    %v9442 = vunpack.c.l.s4 1983009808
    %v9443 = vunpack.c.0.s8 %v9442
    %v9444 = vlaneseq
    %v9445 = vshrl.u32 %v9444, 7
    %v9446 = vsub.s32 %v9443, %v9445
    %v9447 = vrot.slane %v9431, %v9446
    %v9448 = vsel %vm9391, %v9440, %v9440
    %v9449 = vsel %vm9393, %v9440, %v9448
    %v9450 = vrot.slane %v9447, 7
    %v9451 = vsel %vm9396, %v9450, %v9449
    %v9452 = vsel %vm9398, %v9450, %v9451
    %v9453 = vsel %vm9400, %v9450, %v9452
    %v9454 = vsel %vm9402, %v9450, %v9453
    %9455 = vrot.lane.b32.xlu0 %v9454, 64
    %v9456 = vpop.permute.xlu0 %9455
    %vm9458 = vcmask 1041920
    %9459 = vst.msk [vmem:[#allocation4] sm:$0x3] %vm9458, %v9456
    %v9460 = vld [vmem:[#allocation3 + $0x4] sm:$0x1]
    %v9461 = vld [vmem:[#allocation3 + $0x64] sm:$0x1]
    %v9462 = vld [vmem:[#allocation3 + $0x5] sm:$0x1]
    %v9463 = vld [vmem:[#allocation3 + $0x65] sm:$0x1]
    %v9464 = vmax.f32 %v9460, %v9462
    %v9465 = vmax.f32 %v9461, %v9463
    %v9466 = vld [vmem:[#allocation3 + $0x10] sm:$0x1]
    %v9467 = vld [vmem:[#allocation3 + $0x70] sm:$0x1]
    %v9468 = vld [vmem:[#allocation3 + $0x11] sm:$0x1]
    %v9469 = vld [vmem:[#allocation3 + $0x71] sm:$0x1]
    %v9470 = vmax.f32 %v9466, %v9468
    %v9471 = vmax.f32 %v9467, %v9469
    %v9472 = vmax.f32 %v9464, %v9470
    %v9473 = vmax.f32 %v9465, %v9471
    %v9474 = vld [vmem:[%s4] sm:$0x1]
    %v9476 = vlaneseq
    %v9477 = vshrl.u32 %v9476, 7
    %v9478 = vsub.s32 0, %v9477
    %v9479 = vrot.slane %v9474, %v9478
    %v9481 = vadd.f32 %v9472, %v9479
    %v9482 = vadd.f32 %v9473, %v9479
    %v9483 = vmax.f32 %v9481, 0.0
    %v9484 = vmax.f32 %v9482, 0.0
    %v9488 = vunpack.c.l.s4 1983009808
    %v9489 = vunpack.c.0.s8 %v9488
    %v9490 = vlaneseq
    %v9491 = vshrl.u32 %v9490, 7
    %v9492 = vsub.s32 %v9489, %v9491
    %v9493 = vrot.slane %v9483, %v9492
    %v9495 = vunpack.c.l.s4 1983009808
    %v9496 = vunpack.c.0.s8 %v9495
    %v9497 = vlaneseq
    %v9498 = vshrl.u32 %v9497, 7
    %v9499 = vsub.s32 %v9496, %v9498
    %v9500 = vrot.slane %v9484, %v9499
    %v9501 = vsel %vm9391, %v9493, %v9493
    %v9502 = vsel %vm9393, %v9493, %v9501
    %v9503 = vrot.slane %v9500, 7
    %v9504 = vsel %vm9396, %v9503, %v9502
    %v9505 = vsel %vm9398, %v9503, %v9504
    %v9506 = vsel %vm9400, %v9503, %v9505
    %v9507 = vsel %vm9402, %v9503, %v9506
    %9509 = vst.msk [vmem:[#allocation4 + $0x2] sm:$0x3] %vm9405, %v9507
    %v9510 = vld [vmem:[#allocation3 + $0x6] sm:$0x1]
    %v9511 = vld [vmem:[#allocation3 + $0x66] sm:$0x1]
    %v9512 = vld [vmem:[#allocation3 + $0x7] sm:$0x1]
    %v9513 = vld [vmem:[#allocation3 + $0x67] sm:$0x1]
    %v9514 = vmax.f32 %v9510, %v9512
    %v9515 = vmax.f32 %v9511, %v9513
    %v9516 = vld [vmem:[#allocation3 + $0x12] sm:$0x1]
    %v9517 = vld [vmem:[#allocation3 + $0x72] sm:$0x1]
    %v9518 = vld [vmem:[#allocation3 + $0x13] sm:$0x1]
    %v9519 = vld [vmem:[#allocation3 + $0x73] sm:$0x1]
    %v9520 = vmax.f32 %v9516, %v9518
    %v9521 = vmax.f32 %v9517, %v9519
    %v9522 = vmax.f32 %v9514, %v9520
    %v9523 = vmax.f32 %v9515, %v9521
    %v9524 = vld [vmem:[%s4] sm:$0x1]
    %v9526 = vlaneseq
    %v9527 = vshrl.u32 %v9526, 7
    %v9528 = vsub.s32 0, %v9527
    %v9529 = vrot.slane %v9524, %v9528
    %v9531 = vadd.f32 %v9522, %v9529
    %v9532 = vadd.f32 %v9523, %v9529
    %v9533 = vmax.f32 %v9531, 0.0
    %v9534 = vmax.f32 %v9532, 0.0
    %v9538 = vunpack.c.l.s4 1983009808
    %v9539 = vunpack.c.0.s8 %v9538
    %v9540 = vlaneseq
    %v9541 = vshrl.u32 %v9540, 7
    %v9542 = vsub.s32 %v9539, %v9541
    %v9543 = vrot.slane %v9533, %v9542
    %v9545 = vunpack.c.l.s4 1983009808
    %v9546 = vunpack.c.0.s8 %v9545
    %v9547 = vlaneseq
    %v9548 = vshrl.u32 %v9547, 7
    %v9549 = vsub.s32 %v9546, %v9548
    %v9550 = vrot.slane %v9534, %v9549
    %v9551 = vsel %vm9391, %v9543, %v9543
    %v9552 = vsel %vm9393, %v9543, %v9551
    %v9553 = vrot.slane %v9550, 7
    %v9554 = vsel %vm9396, %v9553, %v9552
    %v9555 = vsel %vm9398, %v9553, %v9554
    %v9556 = vsel %vm9400, %v9553, %v9555
    %v9557 = vsel %vm9402, %v9553, %v9556
    %9558 = vrot.lane.b32.xlu0 %v9557, 64
    %v9559 = vpop.permute.xlu0 %9558
    %9561 = vst.msk [vmem:[#allocation4 + $0x2] sm:$0x3] %vm9458, %v9559
    %v9562 = vld [vmem:[#allocation3 + $0x18] sm:$0x1]
    %v9563 = vld [vmem:[#allocation3 + $0x78] sm:$0x1]
    %v9564 = vld [vmem:[#allocation3 + $0x19] sm:$0x1]
    %v9565 = vld [vmem:[#allocation3 + $0x79] sm:$0x1]
    %v9566 = vmax.f32 %v9562, %v9564
    %v9567 = vmax.f32 %v9563, %v9565
    %v9568 = vld [vmem:[#allocation3 + $0x24] sm:$0x1]
    %v9569 = vld [vmem:[#allocation3 + $0x84] sm:$0x1]
    %v9570 = vld [vmem:[#allocation3 + $0x25] sm:$0x1]
    %v9571 = vld [vmem:[#allocation3 + $0x85] sm:$0x1]
    %v9572 = vmax.f32 %v9568, %v9570
    %v9573 = vmax.f32 %v9569, %v9571
    %v9574 = vmax.f32 %v9566, %v9572
    %v9575 = vmax.f32 %v9567, %v9573
    %v9576 = vld [vmem:[%s4] sm:$0x1]
    %v9578 = vlaneseq
    %v9579 = vshrl.u32 %v9578, 7
    %v9580 = vsub.s32 0, %v9579
    %v9581 = vrot.slane %v9576, %v9580
    %v9583 = vadd.f32 %v9574, %v9581
    %v9584 = vadd.f32 %v9575, %v9581
    %v9585 = vmax.f32 %v9583, 0.0
    %v9586 = vmax.f32 %v9584, 0.0
    %v9590 = vunpack.c.l.s4 1983009808
    %v9591 = vunpack.c.0.s8 %v9590
    %v9592 = vlaneseq
    %v9593 = vshrl.u32 %v9592, 7
    %v9594 = vsub.s32 %v9591, %v9593
    %v9595 = vrot.slane %v9585, %v9594
    %v9597 = vunpack.c.l.s4 1983009808
    %v9598 = vunpack.c.0.s8 %v9597
    %v9599 = vlaneseq
    %v9600 = vshrl.u32 %v9599, 7
    %v9601 = vsub.s32 %v9598, %v9600
    %v9602 = vrot.slane %v9586, %v9601
    %v9603 = vsel %vm9391, %v9595, %v9595
    %v9604 = vsel %vm9393, %v9595, %v9603
    %v9605 = vrot.slane %v9602, 7
    %v9606 = vsel %vm9396, %v9605, %v9604
    %v9607 = vsel %vm9398, %v9605, %v9606
    %v9608 = vsel %vm9400, %v9605, %v9607
    %v9609 = vsel %vm9402, %v9605, %v9608
    %9611 = vst.msk [vmem:[#allocation4 + $0x4] sm:$0x3] %vm9405, %v9609
    %v9612 = vld [vmem:[#allocation3 + $0x1a] sm:$0x1]
    %v9613 = vld [vmem:[#allocation3 + $0x7a] sm:$0x1]
    %v9614 = vld [vmem:[#allocation3 + $0x1b] sm:$0x1]
    %v9615 = vld [vmem:[#allocation3 + $0x7b] sm:$0x1]
    %v9616 = vmax.f32 %v9612, %v9614
    %v9617 = vmax.f32 %v9613, %v9615
    %v9618 = vld [vmem:[#allocation3 + $0x26] sm:$0x1]
    %v9619 = vld [vmem:[#allocation3 + $0x86] sm:$0x1]
    %v9620 = vld [vmem:[#allocation3 + $0x27] sm:$0x1]
    %v9621 = vld [vmem:[#allocation3 + $0x87] sm:$0x1]
    %v9622 = vmax.f32 %v9618, %v9620
    %v9623 = vmax.f32 %v9619, %v9621
    %v9624 = vmax.f32 %v9616, %v9622
    %v9625 = vmax.f32 %v9617, %v9623
    %v9626 = vld [vmem:[%s4] sm:$0x1]
    %v9628 = vlaneseq
    %v9629 = vshrl.u32 %v9628, 7
    %v9630 = vsub.s32 0, %v9629
    %v9631 = vrot.slane %v9626, %v9630
    %v9633 = vadd.f32 %v9624, %v9631
    %v9634 = vadd.f32 %v9625, %v9631
    %v9635 = vmax.f32 %v9633, 0.0
    %v9636 = vmax.f32 %v9634, 0.0
    %v9640 = vunpack.c.l.s4 1983009808
    %v9641 = vunpack.c.0.s8 %v9640
    %v9642 = vlaneseq
    %v9643 = vshrl.u32 %v9642, 7
    %v9644 = vsub.s32 %v9641, %v9643
    %v9645 = vrot.slane %v9635, %v9644
    %v9647 = vunpack.c.l.s4 1983009808
    %v9648 = vunpack.c.0.s8 %v9647
    %v9649 = vlaneseq
    %v9650 = vshrl.u32 %v9649, 7
    %v9651 = vsub.s32 %v9648, %v9650
    %v9652 = vrot.slane %v9636, %v9651
    %v9653 = vsel %vm9391, %v9645, %v9645
    %v9654 = vsel %vm9393, %v9645, %v9653
    %v9655 = vrot.slane %v9652, 7
    %v9656 = vsel %vm9396, %v9655, %v9654
    %v9657 = vsel %vm9398, %v9655, %v9656
    %v9658 = vsel %vm9400, %v9655, %v9657
    %v9659 = vsel %vm9402, %v9655, %v9658
    %9660 = vrot.lane.b32.xlu0 %v9659, 64
    %v9661 = vpop.permute.xlu0 %9660
    %9663 = vst.msk [vmem:[#allocation4 + $0x4] sm:$0x3] %vm9458, %v9661
    %v9664 = vld [vmem:[#allocation3 + $0x1c] sm:$0x1]
    %v9665 = vld [vmem:[#allocation3 + $0x7c] sm:$0x1]
    %v9666 = vld [vmem:[#allocation3 + $0x1d] sm:$0x1]
    %v9667 = vld [vmem:[#allocation3 + $0x7d] sm:$0x1]
    %v9668 = vmax.f32 %v9664, %v9666
    %v9669 = vmax.f32 %v9665, %v9667
    %v9670 = vld [vmem:[#allocation3 + $0x28] sm:$0x1]
    %v9671 = vld [vmem:[#allocation3 + $0x88] sm:$0x1]
    %v9672 = vld [vmem:[#allocation3 + $0x29] sm:$0x1]
    %v9673 = vld [vmem:[#allocation3 + $0x89] sm:$0x1]
    %v9674 = vmax.f32 %v9670, %v9672
    %v9675 = vmax.f32 %v9671, %v9673
    %v9676 = vmax.f32 %v9668, %v9674
    %v9677 = vmax.f32 %v9669, %v9675
    %v9678 = vld [vmem:[%s4] sm:$0x1]
    %v9680 = vlaneseq
    %v9681 = vshrl.u32 %v9680, 7
    %v9682 = vsub.s32 0, %v9681
    %v9683 = vrot.slane %v9678, %v9682
    %v9685 = vadd.f32 %v9676, %v9683
    %v9686 = vadd.f32 %v9677, %v9683
    %v9687 = vmax.f32 %v9685, 0.0
    %v9688 = vmax.f32 %v9686, 0.0
    %v9692 = vunpack.c.l.s4 1983009808
    %v9693 = vunpack.c.0.s8 %v9692
    %v9694 = vlaneseq
    %v9695 = vshrl.u32 %v9694, 7
    %v9696 = vsub.s32 %v9693, %v9695
    %v9697 = vrot.slane %v9687, %v9696
    %v9699 = vunpack.c.l.s4 1983009808
    %v9700 = vunpack.c.0.s8 %v9699
    %v9701 = vlaneseq
    %v9702 = vshrl.u32 %v9701, 7
    %v9703 = vsub.s32 %v9700, %v9702
    %v9704 = vrot.slane %v9688, %v9703
    %v9705 = vsel %vm9391, %v9697, %v9697
    %v9706 = vsel %vm9393, %v9697, %v9705
    %v9707 = vrot.slane %v9704, 7
    %v9708 = vsel %vm9396, %v9707, %v9706
    %v9709 = vsel %vm9398, %v9707, %v9708
    %v9710 = vsel %vm9400, %v9707, %v9709
    %v9711 = vsel %vm9402, %v9707, %v9710
    %9713 = vst.msk [vmem:[#allocation4 + $0x6] sm:$0x3] %vm9405, %v9711
    %v9714 = vld [vmem:[#allocation3 + $0x1e] sm:$0x1]
    %v9715 = vld [vmem:[#allocation3 + $0x7e] sm:$0x1]
    %v9716 = vld [vmem:[#allocation3 + $0x1f] sm:$0x1]
    %v9717 = vld [vmem:[#allocation3 + $0x7f] sm:$0x1]
    %v9718 = vmax.f32 %v9714, %v9716
    %v9719 = vmax.f32 %v9715, %v9717
    %v9720 = vld [vmem:[#allocation3 + $0x2a] sm:$0x1]
    %v9721 = vld [vmem:[#allocation3 + $0x8a] sm:$0x1]
    %v9722 = vld [vmem:[#allocation3 + $0x2b] sm:$0x1]
    %v9723 = vld [vmem:[#allocation3 + $0x8b] sm:$0x1]
    %v9724 = vmax.f32 %v9720, %v9722
    %v9725 = vmax.f32 %v9721, %v9723
    %v9726 = vmax.f32 %v9718, %v9724
    %v9727 = vmax.f32 %v9719, %v9725
    %v9728 = vld [vmem:[%s4] sm:$0x1]
    %v9730 = vlaneseq
    %v9731 = vshrl.u32 %v9730, 7
    %v9732 = vsub.s32 0, %v9731
    %v9733 = vrot.slane %v9728, %v9732
    %v9735 = vadd.f32 %v9726, %v9733
    %v9736 = vadd.f32 %v9727, %v9733
    %v9737 = vmax.f32 %v9735, 0.0
    %v9738 = vmax.f32 %v9736, 0.0
    %v9742 = vunpack.c.l.s4 1983009808
    %v9743 = vunpack.c.0.s8 %v9742
    %v9744 = vlaneseq
    %v9745 = vshrl.u32 %v9744, 7
    %v9746 = vsub.s32 %v9743, %v9745
    %v9747 = vrot.slane %v9737, %v9746
    %v9749 = vunpack.c.l.s4 1983009808
    %v9750 = vunpack.c.0.s8 %v9749
    %v9751 = vlaneseq
    %v9752 = vshrl.u32 %v9751, 7
    %v9753 = vsub.s32 %v9750, %v9752
    %v9754 = vrot.slane %v9738, %v9753
    %v9755 = vsel %vm9391, %v9747, %v9747
    %v9756 = vsel %vm9393, %v9747, %v9755
    %v9757 = vrot.slane %v9754, 7
    %v9758 = vsel %vm9396, %v9757, %v9756
    %v9759 = vsel %vm9398, %v9757, %v9758
    %v9760 = vsel %vm9400, %v9757, %v9759
    %v9761 = vsel %vm9402, %v9757, %v9760
    %9762 = vrot.lane.b32.xlu0 %v9761, 64
    %v9763 = vpop.permute.xlu0 %9762
    %9765 = vst.msk [vmem:[#allocation4 + $0x6] sm:$0x3] %vm9458, %v9763
    %v9766 = vld [vmem:[#allocation3 + $0x30] sm:$0x1]
    %v9767 = vld [vmem:[#allocation3 + $0x90] sm:$0x1]
    %v9768 = vld [vmem:[#allocation3 + $0x31] sm:$0x1]
    %v9769 = vld [vmem:[#allocation3 + $0x91] sm:$0x1]
    %v9770 = vmax.f32 %v9766, %v9768
    %v9771 = vmax.f32 %v9767, %v9769
    %v9772 = vld [vmem:[#allocation3 + $0x3c] sm:$0x1]
    %v9773 = vld [vmem:[#allocation3 + $0x9c] sm:$0x1]
    %v9774 = vld [vmem:[#allocation3 + $0x3d] sm:$0x1]
    %v9775 = vld [vmem:[#allocation3 + $0x9d] sm:$0x1]
    %v9776 = vmax.f32 %v9772, %v9774
    %v9777 = vmax.f32 %v9773, %v9775
    %v9778 = vmax.f32 %v9770, %v9776
    %v9779 = vmax.f32 %v9771, %v9777
    %v9780 = vld [vmem:[%s4] sm:$0x1]
    %v9782 = vlaneseq
    %v9783 = vshrl.u32 %v9782, 7
    %v9784 = vsub.s32 0, %v9783
    %v9785 = vrot.slane %v9780, %v9784
    %v9787 = vadd.f32 %v9778, %v9785
    %v9788 = vadd.f32 %v9779, %v9785
    %v9789 = vmax.f32 %v9787, 0.0
    %v9790 = vmax.f32 %v9788, 0.0
    %v9794 = vunpack.c.l.s4 1983009808
    %v9795 = vunpack.c.0.s8 %v9794
    %v9796 = vlaneseq
    %v9797 = vshrl.u32 %v9796, 7
    %v9798 = vsub.s32 %v9795, %v9797
    %v9799 = vrot.slane %v9789, %v9798
    %v9801 = vunpack.c.l.s4 1983009808
    %v9802 = vunpack.c.0.s8 %v9801
    %v9803 = vlaneseq
    %v9804 = vshrl.u32 %v9803, 7
    %v9805 = vsub.s32 %v9802, %v9804
    %v9806 = vrot.slane %v9790, %v9805
    %v9807 = vsel %vm9391, %v9799, %v9799
    %v9808 = vsel %vm9393, %v9799, %v9807
    %v9809 = vrot.slane %v9806, 7
    %v9810 = vsel %vm9396, %v9809, %v9808
    %v9811 = vsel %vm9398, %v9809, %v9810
    %v9812 = vsel %vm9400, %v9809, %v9811
    %v9813 = vsel %vm9402, %v9809, %v9812
    %9815 = vst.msk [vmem:[#allocation4 + $0x8] sm:$0x3] %vm9405, %v9813
    %v9816 = vld [vmem:[#allocation3 + $0x32] sm:$0x1]
    %v9817 = vld [vmem:[#allocation3 + $0x92] sm:$0x1]
    %v9818 = vld [vmem:[#allocation3 + $0x33] sm:$0x1]
    %v9819 = vld [vmem:[#allocation3 + $0x93] sm:$0x1]
    %v9820 = vmax.f32 %v9816, %v9818
    %v9821 = vmax.f32 %v9817, %v9819
    %v9822 = vld [vmem:[#allocation3 + $0x3e] sm:$0x1]
    %v9823 = vld [vmem:[#allocation3 + $0x9e] sm:$0x1]
    %v9824 = vld [vmem:[#allocation3 + $0x3f] sm:$0x1]
    %v9825 = vld [vmem:[#allocation3 + $0x9f] sm:$0x1]
    %v9826 = vmax.f32 %v9822, %v9824
    %v9827 = vmax.f32 %v9823, %v9825
    %v9828 = vmax.f32 %v9820, %v9826
    %v9829 = vmax.f32 %v9821, %v9827
    %v9830 = vld [vmem:[%s4] sm:$0x1]
    %v9832 = vlaneseq
    %v9833 = vshrl.u32 %v9832, 7
    %v9834 = vsub.s32 0, %v9833
    %v9835 = vrot.slane %v9830, %v9834
    %v9837 = vadd.f32 %v9828, %v9835
    %v9838 = vadd.f32 %v9829, %v9835
    %v9839 = vmax.f32 %v9837, 0.0
    %v9840 = vmax.f32 %v9838, 0.0
    %v9844 = vunpack.c.l.s4 1983009808
    %v9845 = vunpack.c.0.s8 %v9844
    %v9846 = vlaneseq
    %v9847 = vshrl.u32 %v9846, 7
    %v9848 = vsub.s32 %v9845, %v9847
    %v9849 = vrot.slane %v9839, %v9848
    %v9851 = vunpack.c.l.s4 1983009808
    %v9852 = vunpack.c.0.s8 %v9851
    %v9853 = vlaneseq
    %v9854 = vshrl.u32 %v9853, 7
    %v9855 = vsub.s32 %v9852, %v9854
    %v9856 = vrot.slane %v9840, %v9855
    %v9857 = vsel %vm9391, %v9849, %v9849
    %v9858 = vsel %vm9393, %v9849, %v9857
    %v9859 = vrot.slane %v9856, 7
    %v9860 = vsel %vm9396, %v9859, %v9858
    %v9861 = vsel %vm9398, %v9859, %v9860
    %v9862 = vsel %vm9400, %v9859, %v9861
    %v9863 = vsel %vm9402, %v9859, %v9862
    %9864 = vrot.lane.b32.xlu0 %v9863, 64
    %v9865 = vpop.permute.xlu0 %9864
    %9867 = vst.msk [vmem:[#allocation4 + $0x8] sm:$0x3] %vm9458, %v9865
    %v9868 = vld [vmem:[#allocation3 + $0x34] sm:$0x1]
    %v9869 = vld [vmem:[#allocation3 + $0x94] sm:$0x1]
    %v9870 = vld [vmem:[#allocation3 + $0x35] sm:$0x1]
    %v9871 = vld [vmem:[#allocation3 + $0x95] sm:$0x1]
    %v9872 = vmax.f32 %v9868, %v9870
    %v9873 = vmax.f32 %v9869, %v9871
    %v9874 = vld [vmem:[#allocation3 + $0x40] sm:$0x1]
    %v9875 = vld [vmem:[#allocation3 + $0xa0] sm:$0x1]
    %v9876 = vld [vmem:[#allocation3 + $0x41] sm:$0x1]
    %v9877 = vld [vmem:[#allocation3 + $0xa1] sm:$0x1]
    %v9878 = vmax.f32 %v9874, %v9876
    %v9879 = vmax.f32 %v9875, %v9877
    %v9880 = vmax.f32 %v9872, %v9878
    %v9881 = vmax.f32 %v9873, %v9879
    %v9882 = vld [vmem:[%s4] sm:$0x1]
    %v9884 = vlaneseq
    %v9885 = vshrl.u32 %v9884, 7
    %v9886 = vsub.s32 0, %v9885
    %v9887 = vrot.slane %v9882, %v9886
    %v9889 = vadd.f32 %v9880, %v9887
    %v9890 = vadd.f32 %v9881, %v9887
    %v9891 = vmax.f32 %v9889, 0.0
    %v9892 = vmax.f32 %v9890, 0.0
    %v9896 = vunpack.c.l.s4 1983009808
    %v9897 = vunpack.c.0.s8 %v9896
    %v9898 = vlaneseq
    %v9899 = vshrl.u32 %v9898, 7
    %v9900 = vsub.s32 %v9897, %v9899
    %v9901 = vrot.slane %v9891, %v9900
    %v9903 = vunpack.c.l.s4 1983009808
    %v9904 = vunpack.c.0.s8 %v9903
    %v9905 = vlaneseq
    %v9906 = vshrl.u32 %v9905, 7
    %v9907 = vsub.s32 %v9904, %v9906
    %v9908 = vrot.slane %v9892, %v9907
    %v9909 = vsel %vm9391, %v9901, %v9901
    %v9910 = vsel %vm9393, %v9901, %v9909
    %v9911 = vrot.slane %v9908, 7
    %v9912 = vsel %vm9396, %v9911, %v9910
    %v9913 = vsel %vm9398, %v9911, %v9912
    %v9914 = vsel %vm9400, %v9911, %v9913
    %v9915 = vsel %vm9402, %v9911, %v9914
    %9917 = vst.msk [vmem:[#allocation4 + $0xa] sm:$0x3] %vm9405, %v9915
    %v9918 = vld [vmem:[#allocation3 + $0x36] sm:$0x1]
    %v9919 = vld [vmem:[#allocation3 + $0x96] sm:$0x1]
    %v9920 = vld [vmem:[#allocation3 + $0x37] sm:$0x1]
    %v9921 = vld [vmem:[#allocation3 + $0x97] sm:$0x1]
    %v9922 = vmax.f32 %v9918, %v9920
    %v9923 = vmax.f32 %v9919, %v9921
    %v9924 = vld [vmem:[#allocation3 + $0x42] sm:$0x1]
    %v9925 = vld [vmem:[#allocation3 + $0xa2] sm:$0x1]
    %v9926 = vld [vmem:[#allocation3 + $0x43] sm:$0x1]
    %v9927 = vld [vmem:[#allocation3 + $0xa3] sm:$0x1]
    %v9928 = vmax.f32 %v9924, %v9926
    %v9929 = vmax.f32 %v9925, %v9927
    %v9930 = vmax.f32 %v9922, %v9928
    %v9931 = vmax.f32 %v9923, %v9929
    %v9932 = vld [vmem:[%s4] sm:$0x1]
    %v9934 = vlaneseq
    %v9935 = vshrl.u32 %v9934, 7
    %v9936 = vsub.s32 0, %v9935
    %v9937 = vrot.slane %v9932, %v9936
    %v9939 = vadd.f32 %v9930, %v9937
    %v9940 = vadd.f32 %v9931, %v9937
    %v9941 = vmax.f32 %v9939, 0.0
    %v9942 = vmax.f32 %v9940, 0.0
    %v9946 = vunpack.c.l.s4 1983009808
    %v9947 = vunpack.c.0.s8 %v9946
    %v9948 = vlaneseq
    %v9949 = vshrl.u32 %v9948, 7
    %v9950 = vsub.s32 %v9947, %v9949
    %v9951 = vrot.slane %v9941, %v9950
    %v9953 = vunpack.c.l.s4 1983009808
    %v9954 = vunpack.c.0.s8 %v9953
    %v9955 = vlaneseq
    %v9956 = vshrl.u32 %v9955, 7
    %v9957 = vsub.s32 %v9954, %v9956
    %v9958 = vrot.slane %v9942, %v9957
    %v9959 = vsel %vm9391, %v9951, %v9951
    %v9960 = vsel %vm9393, %v9951, %v9959
    %v9961 = vrot.slane %v9958, 7
    %v9962 = vsel %vm9396, %v9961, %v9960
    %v9963 = vsel %vm9398, %v9961, %v9962
    %v9964 = vsel %vm9400, %v9961, %v9963
    %v9965 = vsel %vm9402, %v9961, %v9964
    %9966 = vrot.lane.b32.xlu0 %v9965, 64
    %v9967 = vpop.permute.xlu0 %9966
    %9969 = vst.msk [vmem:[#allocation4 + $0xa] sm:$0x3] %vm9458, %v9967
    %v9970 = vld [vmem:[#allocation3 + $0x48] sm:$0x1]
    %v9971 = vld [vmem:[#allocation3 + $0xa8] sm:$0x1]
    %v9972 = vld [vmem:[#allocation3 + $0x49] sm:$0x1]
    %v9973 = vld [vmem:[#allocation3 + $0xa9] sm:$0x1]
    %v9974 = vmax.f32 %v9970, %v9972
    %v9975 = vmax.f32 %v9971, %v9973
    %v9976 = vld [vmem:[#allocation3 + $0x54] sm:$0x1]
    %v9977 = vld [vmem:[#allocation3 + $0xb4] sm:$0x1]
    %v9978 = vld [vmem:[#allocation3 + $0x55] sm:$0x1]
    %v9979 = vld [vmem:[#allocation3 + $0xb5] sm:$0x1]
    %v9980 = vmax.f32 %v9976, %v9978
    %v9981 = vmax.f32 %v9977, %v9979
    %v9982 = vmax.f32 %v9974, %v9980
    %v9983 = vmax.f32 %v9975, %v9981
    %v9984 = vld [vmem:[%s4] sm:$0x1]
    %v9986 = vlaneseq
    %v9987 = vshrl.u32 %v9986, 7
    %v9988 = vsub.s32 0, %v9987
    %v9989 = vrot.slane %v9984, %v9988
    %v9991 = vadd.f32 %v9982, %v9989
    %v9992 = vadd.f32 %v9983, %v9989
    %v9993 = vmax.f32 %v9991, 0.0
    %v9994 = vmax.f32 %v9992, 0.0
    %v9998 = vunpack.c.l.s4 1983009808
    %v9999 = vunpack.c.0.s8 %v9998
    %v10000 = vlaneseq
    %v10001 = vshrl.u32 %v10000, 7
    %v10002 = vsub.s32 %v9999, %v10001
    %v10003 = vrot.slane %v9993, %v10002
    %v10005 = vunpack.c.l.s4 1983009808
    %v10006 = vunpack.c.0.s8 %v10005
    %v10007 = vlaneseq
    %v10008 = vshrl.u32 %v10007, 7
    %v10009 = vsub.s32 %v10006, %v10008
    %v10010 = vrot.slane %v9994, %v10009
    %v10011 = vsel %vm9391, %v10003, %v10003
    %v10012 = vsel %vm9393, %v10003, %v10011
    %v10013 = vrot.slane %v10010, 7
    %v10014 = vsel %vm9396, %v10013, %v10012
    %v10015 = vsel %vm9398, %v10013, %v10014
    %v10016 = vsel %vm9400, %v10013, %v10015
    %v10017 = vsel %vm9402, %v10013, %v10016
    %10019 = vst.msk [vmem:[#allocation4 + $0xc] sm:$0x3] %vm9405, %v10017
    %v10020 = vld [vmem:[#allocation3 + $0x4a] sm:$0x1]
    %v10021 = vld [vmem:[#allocation3 + $0xaa] sm:$0x1]
    %v10022 = vld [vmem:[#allocation3 + $0x4b] sm:$0x1]
    %v10023 = vld [vmem:[#allocation3 + $0xab] sm:$0x1]
    %v10024 = vmax.f32 %v10020, %v10022
    %v10025 = vmax.f32 %v10021, %v10023
    %v10026 = vld [vmem:[#allocation3 + $0x56] sm:$0x1]
    %v10027 = vld [vmem:[#allocation3 + $0xb6] sm:$0x1]
    %v10028 = vld [vmem:[#allocation3 + $0x57] sm:$0x1]
    %v10029 = vld [vmem:[#allocation3 + $0xb7] sm:$0x1]
    %v10030 = vmax.f32 %v10026, %v10028
    %v10031 = vmax.f32 %v10027, %v10029
    %v10032 = vmax.f32 %v10024, %v10030
    %v10033 = vmax.f32 %v10025, %v10031
    %v10034 = vld [vmem:[%s4] sm:$0x1]
    %v10036 = vlaneseq
    %v10037 = vshrl.u32 %v10036, 7
    %v10038 = vsub.s32 0, %v10037
    %v10039 = vrot.slane %v10034, %v10038
    %v10041 = vadd.f32 %v10032, %v10039
    %v10042 = vadd.f32 %v10033, %v10039
    %v10043 = vmax.f32 %v10041, 0.0
    %v10044 = vmax.f32 %v10042, 0.0
    %v10048 = vunpack.c.l.s4 1983009808
    %v10049 = vunpack.c.0.s8 %v10048
    %v10050 = vlaneseq
    %v10051 = vshrl.u32 %v10050, 7
    %v10052 = vsub.s32 %v10049, %v10051
    %v10053 = vrot.slane %v10043, %v10052
    %v10055 = vunpack.c.l.s4 1983009808
    %v10056 = vunpack.c.0.s8 %v10055
    %v10057 = vlaneseq
    %v10058 = vshrl.u32 %v10057, 7
    %v10059 = vsub.s32 %v10056, %v10058
    %v10060 = vrot.slane %v10044, %v10059
    %v10061 = vsel %vm9391, %v10053, %v10053
    %v10062 = vsel %vm9393, %v10053, %v10061
    %v10063 = vrot.slane %v10060, 7
    %v10064 = vsel %vm9396, %v10063, %v10062
    %v10065 = vsel %vm9398, %v10063, %v10064
    %v10066 = vsel %vm9400, %v10063, %v10065
    %v10067 = vsel %vm9402, %v10063, %v10066
    %10068 = vrot.lane.b32.xlu0 %v10067, 64
    %v10069 = vpop.permute.xlu0 %10068
    %10071 = vst.msk [vmem:[#allocation4 + $0xc] sm:$0x3] %vm9458, %v10069
    %v10072 = vld [vmem:[#allocation3 + $0x4c] sm:$0x1]
    %v10073 = vld [vmem:[#allocation3 + $0xac] sm:$0x1]
    %v10074 = vld [vmem:[#allocation3 + $0x4d] sm:$0x1]
    %v10075 = vld [vmem:[#allocation3 + $0xad] sm:$0x1]
    %v10076 = vmax.f32 %v10072, %v10074
    %v10077 = vmax.f32 %v10073, %v10075
    %v10078 = vld [vmem:[#allocation3 + $0x58] sm:$0x1]
    %v10079 = vld [vmem:[#allocation3 + $0xb8] sm:$0x1]
    %v10080 = vld [vmem:[#allocation3 + $0x59] sm:$0x1]
    %v10081 = vld [vmem:[#allocation3 + $0xb9] sm:$0x1]
    %v10082 = vmax.f32 %v10078, %v10080
    %v10083 = vmax.f32 %v10079, %v10081
    %v10084 = vmax.f32 %v10076, %v10082
    %v10085 = vmax.f32 %v10077, %v10083
    %v10086 = vld [vmem:[%s4] sm:$0x1]
    %v10088 = vlaneseq
    %v10089 = vshrl.u32 %v10088, 7
    %v10090 = vsub.s32 0, %v10089
    %v10091 = vrot.slane %v10086, %v10090
    %v10093 = vadd.f32 %v10084, %v10091
    %v10094 = vadd.f32 %v10085, %v10091
    %v10095 = vmax.f32 %v10093, 0.0
    %v10096 = vmax.f32 %v10094, 0.0
    %v10100 = vunpack.c.l.s4 1983009808
    %v10101 = vunpack.c.0.s8 %v10100
    %v10102 = vlaneseq
    %v10103 = vshrl.u32 %v10102, 7
    %v10104 = vsub.s32 %v10101, %v10103
    %v10105 = vrot.slane %v10095, %v10104
    %v10107 = vunpack.c.l.s4 1983009808
    %v10108 = vunpack.c.0.s8 %v10107
    %v10109 = vlaneseq
    %v10110 = vshrl.u32 %v10109, 7
    %v10111 = vsub.s32 %v10108, %v10110
    %v10112 = vrot.slane %v10096, %v10111
    %v10113 = vsel %vm9391, %v10105, %v10105
    %v10114 = vsel %vm9393, %v10105, %v10113
    %v10115 = vrot.slane %v10112, 7
    %v10116 = vsel %vm9396, %v10115, %v10114
    %v10117 = vsel %vm9398, %v10115, %v10116
    %v10118 = vsel %vm9400, %v10115, %v10117
    %v10119 = vsel %vm9402, %v10115, %v10118
    %10121 = vst.msk [vmem:[#allocation4 + $0xe] sm:$0x3] %vm9405, %v10119
    %v10122 = vld [vmem:[#allocation3 + $0x4e] sm:$0x1]
    %v10123 = vld [vmem:[#allocation3 + $0xae] sm:$0x1]
    %v10124 = vld [vmem:[#allocation3 + $0x4f] sm:$0x1]
    %v10125 = vld [vmem:[#allocation3 + $0xaf] sm:$0x1]
    %v10126 = vmax.f32 %v10122, %v10124
    %v10127 = vmax.f32 %v10123, %v10125
    %v10128 = vld [vmem:[#allocation3 + $0x5a] sm:$0x1]
    %v10129 = vld [vmem:[#allocation3 + $0xba] sm:$0x1]
    %v10130 = vld [vmem:[#allocation3 + $0x5b] sm:$0x1]
    %v10131 = vld [vmem:[#allocation3 + $0xbb] sm:$0x1]
    %v10132 = vmax.f32 %v10128, %v10130
    %v10133 = vmax.f32 %v10129, %v10131
    %v10134 = vmax.f32 %v10126, %v10132
    %v10135 = vmax.f32 %v10127, %v10133
    %v10136 = vld [vmem:[%s4] sm:$0x1]
    %v10138 = vlaneseq
    %v10139 = vshrl.u32 %v10138, 7
    %v10140 = vsub.s32 0, %v10139
    %v10141 = vrot.slane %v10136, %v10140
    %v10143 = vadd.f32 %v10134, %v10141
    %v10144 = vadd.f32 %v10135, %v10141
    %v10145 = vmax.f32 %v10143, 0.0
    %v10146 = vmax.f32 %v10144, 0.0
    %v10150 = vunpack.c.l.s4 1983009808
    %v10151 = vunpack.c.0.s8 %v10150
    %v10152 = vlaneseq
    %v10153 = vshrl.u32 %v10152, 7
    %v10154 = vsub.s32 %v10151, %v10153
    %v10155 = vrot.slane %v10145, %v10154
    %v10157 = vunpack.c.l.s4 1983009808
    %v10158 = vunpack.c.0.s8 %v10157
    %v10159 = vlaneseq
    %v10160 = vshrl.u32 %v10159, 7
    %v10161 = vsub.s32 %v10158, %v10160
    %v10162 = vrot.slane %v10146, %v10161
    %v10163 = vsel %vm9391, %v10155, %v10155
    %v10164 = vsel %vm9393, %v10155, %v10163
    %v10165 = vrot.slane %v10162, 7
    %v10166 = vsel %vm9396, %v10165, %v10164
    %v10167 = vsel %vm9398, %v10165, %v10166
    %v10168 = vsel %vm9400, %v10165, %v10167
    %v10169 = vsel %vm9402, %v10165, %v10168
    %10170 = vrot.lane.b32.xlu0 %v10169, 64
    %v10171 = vpop.permute.xlu0 %10170
    %10173 = vst.msk [vmem:[#allocation4 + $0xe] sm:$0x3] %vm9458, %v10171
    %v10174 = vld [vmem:[#allocation4] sm:$0xff]
    %v10175 = vld [vmem:[#allocation4 + $0x8] sm:$0xff]
    %v10176 = vld [vmem:[%s5] sm:$0xff]
    %v10177 = vld [vmem:[%s5 + $0x8] sm:$0xff]
    %v10178 = vld [vmem:[%s5 + $0x10] sm:$0xff]
    %v10179 = vld [vmem:[%s5 + $0x18] sm:$0xff]
    %v10180 = vld [vmem:[%s5 + $0x20] sm:$0xff]
    %v10181 = vld [vmem:[%s5 + $0x28] sm:$0xff]
    %v10182 = vld [vmem:[%s5 + $0x30] sm:$0xff]
    %v10183 = vld [vmem:[%s5 + $0x38] sm:$0xff]
    %v10184 = vld [vmem:[%s5 + $0x40] sm:$0xff]
    %v10185 = vld [vmem:[%s5 + $0x48] sm:$0xff]
    %v10186 = vld [vmem:[%s5 + $0x50] sm:$0xff]
    %v10187 = vld [vmem:[%s5 + $0x58] sm:$0xff]
    %v10188 = vld [vmem:[%s5 + $0x60] sm:$0xff]
    %v10189 = vld [vmem:[%s5 + $0x68] sm:$0xff]
    %v10190 = vld [vmem:[%s5 + $0x70] sm:$0xff]
    %v10191 = vld [vmem:[%s5 + $0x78] sm:$0xff]
    %v10192 = vld [vmem:[%s5 + $0x80] sm:$0xff]
    %v10193 = vld [vmem:[%s5 + $0x88] sm:$0xff]
    %v10194 = vld [vmem:[%s5 + $0x90] sm:$0xff]
    %v10195 = vld [vmem:[%s5 + $0x98] sm:$0xff]
    %v10196 = vld [vmem:[%s5 + $0xa0] sm:$0xff]
    %v10197 = vld [vmem:[%s5 + $0xa8] sm:$0xff]
    %v10198 = vld [vmem:[%s5 + $0xb0] sm:$0xff]
    %v10199 = vld [vmem:[%s5 + $0xb8] sm:$0xff]
    %v10200 = vld [vmem:[%s5 + $0xc0] sm:$0xff]
    %v10201 = vld [vmem:[%s5 + $0xc8] sm:$0xff]
    %v10202 = vld [vmem:[%s5 + $0xd0] sm:$0xff]
    %v10203 = vld [vmem:[%s5 + $0xd8] sm:$0xff]
    %v10204 = vld [vmem:[%s5 + $0xe0] sm:$0xff]
    %v10205 = vld [vmem:[%s5 + $0xe8] sm:$0xff]
    %v10206 = vld [vmem:[%s5 + $0xf0] sm:$0xff]
    %v10207 = vld [vmem:[%s5 + $0xf8] sm:$0xff]
    %v10208 = vld [vmem:[%s5 + $0x100] sm:$0xff]
    %v10209 = vld [vmem:[%s5 + $0x108] sm:$0xff]
    %v10210 = vld [vmem:[%s5 + $0x110] sm:$0xff]
    %v10211 = vld [vmem:[%s5 + $0x118] sm:$0xff]
    %v10212 = vld [vmem:[%s5 + $0x120] sm:$0xff]
    %v10213 = vld [vmem:[%s5 + $0x128] sm:$0xff]
    %v10214 = vld [vmem:[%s5 + $0x130] sm:$0xff]
    %v10215 = vld [vmem:[%s5 + $0x138] sm:$0xff]
    %v10216 = vld [vmem:[%s5 + $0x140] sm:$0xff]
    %v10217 = vld [vmem:[%s5 + $0x148] sm:$0xff]
    %v10218 = vld [vmem:[%s5 + $0x150] sm:$0xff]
    %v10219 = vld [vmem:[%s5 + $0x158] sm:$0xff]
    %v10220 = vld [vmem:[%s5 + $0x160] sm:$0xff]
    %v10221 = vld [vmem:[%s5 + $0x168] sm:$0xff]
    %v10222 = vld [vmem:[%s5 + $0x170] sm:$0xff]
    %v10223 = vld [vmem:[%s5 + $0x178] sm:$0xff]
    %v10224 = vld [vmem:[%s5 + $0x180] sm:$0xff]
    %v10225 = vld [vmem:[%s5 + $0x188] sm:$0xff]
    %v10226 = vld [vmem:[%s5 + $0x190] sm:$0xff]
    %v10227 = vld [vmem:[%s5 + $0x198] sm:$0xff]
    %v10228 = vld [vmem:[%s5 + $0x1a0] sm:$0xff]
    %v10229 = vld [vmem:[%s5 + $0x1a8] sm:$0xff]
    %v10230 = vld [vmem:[%s5 + $0x1b0] sm:$0xff]
    %v10231 = vld [vmem:[%s5 + $0x1b8] sm:$0xff]
    %v10232 = vld [vmem:[%s5 + $0x1c0] sm:$0xff]
    %v10233 = vld [vmem:[%s5 + $0x1c8] sm:$0xff]
    %v10234 = vld [vmem:[%s5 + $0x1d0] sm:$0xff]
    %v10235 = vld [vmem:[%s5 + $0x1d8] sm:$0xff]
    %v10236 = vld [vmem:[%s5 + $0x1e0] sm:$0xff]
    %v10237 = vld [vmem:[%s5 + $0x1e8] sm:$0xff]
    %v10238 = vld [vmem:[%s5 + $0x1f0] sm:$0xff]
    %v10239 = vld [vmem:[%s5 + $0x1f8] sm:$0xff]
    %v10240 = vld [vmem:[%s5 + $0x200] sm:$0xff]
    %v10241 = vld [vmem:[%s5 + $0x208] sm:$0xff]
    %v10242 = vld [vmem:[%s5 + $0x210] sm:$0xff]
    %v10243 = vld [vmem:[%s5 + $0x218] sm:$0xff]
    %v10244 = vld [vmem:[%s5 + $0x220] sm:$0xff]
    %v10245 = vld [vmem:[%s5 + $0x228] sm:$0xff]
    %v10246 = vld [vmem:[%s5 + $0x230] sm:$0xff]
    %v10247 = vld [vmem:[%s5 + $0x238] sm:$0xff]
    %v10248 = vld [vmem:[%s5 + $0x240] sm:$0xff]
    %v10249 = vld [vmem:[%s5 + $0x248] sm:$0xff]
    %v10250 = vld [vmem:[%s5 + $0x250] sm:$0xff]
    %v10251 = vld [vmem:[%s5 + $0x258] sm:$0xff]
    %v10252 = vld [vmem:[%s5 + $0x260] sm:$0xff]
    %v10253 = vld [vmem:[%s5 + $0x268] sm:$0xff]
    %v10254 = vld [vmem:[%s5 + $0x270] sm:$0xff]
    %v10255 = vld [vmem:[%s5 + $0x278] sm:$0xff]
    %v10256 = vld [vmem:[%s5 + $0x280] sm:$0xff]
    %v10257 = vld [vmem:[%s5 + $0x288] sm:$0xff]
    %v10258 = vld [vmem:[%s5 + $0x290] sm:$0xff]
    %v10259 = vld [vmem:[%s5 + $0x298] sm:$0xff]
    %v10260 = vld [vmem:[%s5 + $0x2a0] sm:$0xff]
    %v10261 = vld [vmem:[%s5 + $0x2a8] sm:$0xff]
    %v10262 = vld [vmem:[%s5 + $0x2b0] sm:$0xff]
    %v10263 = vld [vmem:[%s5 + $0x2b8] sm:$0xff]
    %v10264 = vld [vmem:[%s5 + $0x2c0] sm:$0xff]
    %v10265 = vld [vmem:[%s5 + $0x2c8] sm:$0xff]
    %v10266 = vld [vmem:[%s5 + $0x2d0] sm:$0xff]
    %v10267 = vld [vmem:[%s5 + $0x2d8] sm:$0xff]
    %v10268 = vld [vmem:[%s5 + $0x2e0] sm:$0xff]
    %v10269 = vld [vmem:[%s5 + $0x2e8] sm:$0xff]
    %v10270 = vld [vmem:[%s5 + $0x2f0] sm:$0xff]
    %v10271 = vld [vmem:[%s5 + $0x2f8] sm:$0xff]
    %v10272 = vld [vmem:[%s5 + $0x300] sm:$0xff]
    %v10273 = vld [vmem:[%s5 + $0x308] sm:$0xff]
    %v10274 = vld [vmem:[%s5 + $0x310] sm:$0xff]
    %v10275 = vld [vmem:[%s5 + $0x318] sm:$0xff]
    %v10276 = vld [vmem:[%s5 + $0x320] sm:$0xff]
    %v10277 = vld [vmem:[%s5 + $0x328] sm:$0xff]
    %v10278 = vld [vmem:[%s5 + $0x330] sm:$0xff]
    %v10279 = vld [vmem:[%s5 + $0x338] sm:$0xff]
    %v10280 = vld [vmem:[%s5 + $0x340] sm:$0xff]
    %v10281 = vld [vmem:[%s5 + $0x348] sm:$0xff]
    %v10282 = vld [vmem:[%s5 + $0x350] sm:$0xff]
    %v10283 = vld [vmem:[%s5 + $0x358] sm:$0xff]
    %v10284 = vld [vmem:[%s5 + $0x360] sm:$0xff]
    %v10285 = vld [vmem:[%s5 + $0x368] sm:$0xff]
    %v10286 = vld [vmem:[%s5 + $0x370] sm:$0xff]
    %v10287 = vld [vmem:[%s5 + $0x378] sm:$0xff]
    %v10288 = vld [vmem:[%s5 + $0x380] sm:$0xff]
    %v10289 = vld [vmem:[%s5 + $0x388] sm:$0xff]
    %v10290 = vld [vmem:[%s5 + $0x390] sm:$0xff]
    %v10291 = vld [vmem:[%s5 + $0x398] sm:$0xff]
    %v10292 = vld [vmem:[%s5 + $0x3a0] sm:$0xff]
    %v10293 = vld [vmem:[%s5 + $0x3a8] sm:$0xff]
    %v10294 = vld [vmem:[%s5 + $0x3b0] sm:$0xff]
    %v10295 = vld [vmem:[%s5 + $0x3b8] sm:$0xff]
    %v10296 = vld [vmem:[%s5 + $0x3c0] sm:$0xff]
    %v10297 = vld [vmem:[%s5 + $0x3c8] sm:$0xff]
    %v10298 = vld [vmem:[%s5 + $0x3d0] sm:$0xff]
    %v10299 = vld [vmem:[%s5 + $0x3d8] sm:$0xff]
    %v10300 = vld [vmem:[%s5 + $0x3e0] sm:$0xff]
    %v10301 = vld [vmem:[%s5 + $0x3e8] sm:$0xff]
    %v10302 = vld [vmem:[%s5 + $0x3f0] sm:$0xff]
    %v10303 = vld [vmem:[%s5 + $0x3f8] sm:$0xff]
    %v10304 = vld [vmem:[%s5 + $0x400] sm:$0xff]
    %v10305 = vld [vmem:[%s5 + $0x408] sm:$0xff]
    %v10306 = vld [vmem:[%s5 + $0x410] sm:$0xff]
    %v10307 = vld [vmem:[%s5 + $0x418] sm:$0xff]
    %v10308 = vld [vmem:[%s5 + $0x420] sm:$0xff]
    %v10309 = vld [vmem:[%s5 + $0x428] sm:$0xff]
    %v10310 = vld [vmem:[%s5 + $0x430] sm:$0xff]
    %v10311 = vld [vmem:[%s5 + $0x438] sm:$0xff]
    %v10312 = vld [vmem:[%s5 + $0x440] sm:$0xff]
    %v10313 = vld [vmem:[%s5 + $0x448] sm:$0xff]
    %v10314 = vld [vmem:[%s5 + $0x450] sm:$0xff]
    %v10315 = vld [vmem:[%s5 + $0x458] sm:$0xff]
    %v10316 = vld [vmem:[%s5 + $0x460] sm:$0xff]
    %v10317 = vld [vmem:[%s5 + $0x468] sm:$0xff]
    %v10318 = vld [vmem:[%s5 + $0x470] sm:$0xff]
    %v10319 = vld [vmem:[%s5 + $0x478] sm:$0xff]
    %v10320 = vld [vmem:[%s5 + $0x480] sm:$0xff]
    %v10321 = vld [vmem:[%s5 + $0x488] sm:$0xff]
    %v10322 = vld [vmem:[%s5 + $0x490] sm:$0xff]
    %v10323 = vld [vmem:[%s5 + $0x498] sm:$0xff]
    %v10324 = vld [vmem:[%s5 + $0x4a0] sm:$0xff]
    %v10325 = vld [vmem:[%s5 + $0x4a8] sm:$0xff]
    %v10326 = vld [vmem:[%s5 + $0x4b0] sm:$0xff]
    %v10327 = vld [vmem:[%s5 + $0x4b8] sm:$0xff]
    %v10328 = vld [vmem:[%s5 + $0x4c0] sm:$0xff]
    %v10329 = vld [vmem:[%s5 + $0x4c8] sm:$0xff]
    %v10330 = vld [vmem:[%s5 + $0x4d0] sm:$0xff]
    %v10331 = vld [vmem:[%s5 + $0x4d8] sm:$0xff]
    %v10332 = vld [vmem:[%s5 + $0x4e0] sm:$0xff]
    %v10333 = vld [vmem:[%s5 + $0x4e8] sm:$0xff]
    %v10334 = vld [vmem:[%s5 + $0x4f0] sm:$0xff]
    %v10335 = vld [vmem:[%s5 + $0x4f8] sm:$0xff]
    %v10336 = vld [vmem:[%s5 + $0x500] sm:$0xff]
    %v10337 = vld [vmem:[%s5 + $0x508] sm:$0xff]
    %v10338 = vld [vmem:[%s5 + $0x510] sm:$0xff]
    %v10339 = vld [vmem:[%s5 + $0x518] sm:$0xff]
    %v10340 = vld [vmem:[%s5 + $0x520] sm:$0xff]
    %v10341 = vld [vmem:[%s5 + $0x528] sm:$0xff]
    %v10342 = vld [vmem:[%s5 + $0x530] sm:$0xff]
    %v10343 = vld [vmem:[%s5 + $0x538] sm:$0xff]
    %v10344 = vld [vmem:[%s5 + $0x540] sm:$0xff]
    %v10345 = vld [vmem:[%s5 + $0x548] sm:$0xff]
    %v10346 = vld [vmem:[%s5 + $0x550] sm:$0xff]
    %v10347 = vld [vmem:[%s5 + $0x558] sm:$0xff]
    %v10348 = vld [vmem:[%s5 + $0x560] sm:$0xff]
    %v10349 = vld [vmem:[%s5 + $0x568] sm:$0xff]
    %v10350 = vld [vmem:[%s5 + $0x570] sm:$0xff]
    %v10351 = vld [vmem:[%s5 + $0x578] sm:$0xff]
    %v10352 = vld [vmem:[%s5 + $0x580] sm:$0xff]
    %v10353 = vld [vmem:[%s5 + $0x588] sm:$0xff]
    %v10354 = vld [vmem:[%s5 + $0x590] sm:$0xff]
    %v10355 = vld [vmem:[%s5 + $0x598] sm:$0xff]
    %v10356 = vld [vmem:[%s5 + $0x5a0] sm:$0xff]
    %v10357 = vld [vmem:[%s5 + $0x5a8] sm:$0xff]
    %v10358 = vld [vmem:[%s5 + $0x5b0] sm:$0xff]
    %v10359 = vld [vmem:[%s5 + $0x5b8] sm:$0xff]
    %v10360 = vld [vmem:[%s5 + $0x5c0] sm:$0xff]
    %v10361 = vld [vmem:[%s5 + $0x5c8] sm:$0xff]
    %v10362 = vld [vmem:[%s5 + $0x5d0] sm:$0xff]
    %v10363 = vld [vmem:[%s5 + $0x5d8] sm:$0xff]
    %v10364 = vld [vmem:[%s5 + $0x5e0] sm:$0xff]
    %v10365 = vld [vmem:[%s5 + $0x5e8] sm:$0xff]
    %v10366 = vld [vmem:[%s5 + $0x5f0] sm:$0xff]
    %v10367 = vld [vmem:[%s5 + $0x5f8] sm:$0xff]
    %v10368 = vld [vmem:[%s5 + $0x600] sm:$0xff]
    %v10369 = vld [vmem:[%s5 + $0x608] sm:$0xff]
    %v10370 = vld [vmem:[%s5 + $0x610] sm:$0xff]
    %v10371 = vld [vmem:[%s5 + $0x618] sm:$0xff]
    %v10372 = vld [vmem:[%s5 + $0x620] sm:$0xff]
    %v10373 = vld [vmem:[%s5 + $0x628] sm:$0xff]
    %v10374 = vld [vmem:[%s5 + $0x630] sm:$0xff]
    %v10375 = vld [vmem:[%s5 + $0x638] sm:$0xff]
    %v10376 = vld [vmem:[%s5 + $0x640] sm:$0xff]
    %v10377 = vld [vmem:[%s5 + $0x648] sm:$0xff]
    %v10378 = vld [vmem:[%s5 + $0x650] sm:$0xff]
    %v10379 = vld [vmem:[%s5 + $0x658] sm:$0xff]
    %v10380 = vld [vmem:[%s5 + $0x660] sm:$0xff]
    %v10381 = vld [vmem:[%s5 + $0x668] sm:$0xff]
    %v10382 = vld [vmem:[%s5 + $0x670] sm:$0xff]
    %v10383 = vld [vmem:[%s5 + $0x678] sm:$0xff]
    %v10384 = vld [vmem:[%s5 + $0x680] sm:$0xff]
    %v10385 = vld [vmem:[%s5 + $0x688] sm:$0xff]
    %v10386 = vld [vmem:[%s5 + $0x690] sm:$0xff]
    %v10387 = vld [vmem:[%s5 + $0x698] sm:$0xff]
    %v10388 = vld [vmem:[%s5 + $0x6a0] sm:$0xff]
    %v10389 = vld [vmem:[%s5 + $0x6a8] sm:$0xff]
    %v10390 = vld [vmem:[%s5 + $0x6b0] sm:$0xff]
    %v10391 = vld [vmem:[%s5 + $0x6b8] sm:$0xff]
    %v10392 = vld [vmem:[%s5 + $0x6c0] sm:$0xff]
    %v10393 = vld [vmem:[%s5 + $0x6c8] sm:$0xff]
    %v10394 = vld [vmem:[%s5 + $0x6d0] sm:$0xff]
    %v10395 = vld [vmem:[%s5 + $0x6d8] sm:$0xff]
    %v10396 = vld [vmem:[%s5 + $0x6e0] sm:$0xff]
    %v10397 = vld [vmem:[%s5 + $0x6e8] sm:$0xff]
    %v10398 = vld [vmem:[%s5 + $0x6f0] sm:$0xff]
    %v10399 = vld [vmem:[%s5 + $0x6f8] sm:$0xff]
    %v10400 = vld [vmem:[%s5 + $0x700] sm:$0xff]
    %v10401 = vld [vmem:[%s5 + $0x708] sm:$0xff]
    %v10402 = vld [vmem:[%s5 + $0x710] sm:$0xff]
    %v10403 = vld [vmem:[%s5 + $0x718] sm:$0xff]
    %v10404 = vld [vmem:[%s5 + $0x720] sm:$0xff]
    %v10405 = vld [vmem:[%s5 + $0x728] sm:$0xff]
    %v10406 = vld [vmem:[%s5 + $0x730] sm:$0xff]
    %v10407 = vld [vmem:[%s5 + $0x738] sm:$0xff]
    %v10408 = vld [vmem:[%s5 + $0x740] sm:$0xff]
    %v10409 = vld [vmem:[%s5 + $0x748] sm:$0xff]
    %v10410 = vld [vmem:[%s5 + $0x750] sm:$0xff]
    %v10411 = vld [vmem:[%s5 + $0x758] sm:$0xff]
    %v10412 = vld [vmem:[%s5 + $0x760] sm:$0xff]
    %v10413 = vld [vmem:[%s5 + $0x768] sm:$0xff]
    %v10414 = vld [vmem:[%s5 + $0x770] sm:$0xff]
    %v10415 = vld [vmem:[%s5 + $0x778] sm:$0xff]
    %v10416 = vld [vmem:[%s5 + $0x780] sm:$0xff]
    %v10417 = vld [vmem:[%s5 + $0x788] sm:$0xff]
    %v10418 = vld [vmem:[%s5 + $0x790] sm:$0xff]
    %v10419 = vld [vmem:[%s5 + $0x798] sm:$0xff]
    %v10420 = vld [vmem:[%s5 + $0x7a0] sm:$0xff]
    %v10421 = vld [vmem:[%s5 + $0x7a8] sm:$0xff]
    %v10422 = vld [vmem:[%s5 + $0x7b0] sm:$0xff]
    %v10423 = vld [vmem:[%s5 + $0x7b8] sm:$0xff]
    %v10424 = vld [vmem:[%s5 + $0x7c0] sm:$0xff]
    %v10425 = vld [vmem:[%s5 + $0x7c8] sm:$0xff]
    %v10426 = vld [vmem:[%s5 + $0x7d0] sm:$0xff]
    %v10427 = vld [vmem:[%s5 + $0x7d8] sm:$0xff]
    %v10428 = vld [vmem:[%s5 + $0x7e0] sm:$0xff]
    %v10429 = vld [vmem:[%s5 + $0x7e8] sm:$0xff]
    %v10430 = vld [vmem:[%s5 + $0x7f0] sm:$0xff]
    %v10431 = vld [vmem:[%s5 + $0x7f8] sm:$0xff]
    %v10432 = vld [vmem:[%s5 + $0x800] sm:$0xff]
    %v10433 = vld [vmem:[%s5 + $0x808] sm:$0xff]
    %v10434 = vld [vmem:[%s5 + $0x810] sm:$0xff]
    %v10435 = vld [vmem:[%s5 + $0x818] sm:$0xff]
    %v10436 = vld [vmem:[%s5 + $0x820] sm:$0xff]
    %v10437 = vld [vmem:[%s5 + $0x828] sm:$0xff]
    %v10438 = vld [vmem:[%s5 + $0x830] sm:$0xff]
    %v10439 = vld [vmem:[%s5 + $0x838] sm:$0xff]
    %v10440 = vld [vmem:[%s5 + $0x840] sm:$0xff]
    %v10441 = vld [vmem:[%s5 + $0x848] sm:$0xff]
    %v10442 = vld [vmem:[%s5 + $0x850] sm:$0xff]
    %v10443 = vld [vmem:[%s5 + $0x858] sm:$0xff]
    %v10444 = vld [vmem:[%s5 + $0x860] sm:$0xff]
    %v10445 = vld [vmem:[%s5 + $0x868] sm:$0xff]
    %v10446 = vld [vmem:[%s5 + $0x870] sm:$0xff]
    %v10447 = vld [vmem:[%s5 + $0x878] sm:$0xff]
    %v10448 = vld [vmem:[%s5 + $0x880] sm:$0xff]
    %v10449 = vld [vmem:[%s5 + $0x888] sm:$0xff]
    %v10450 = vld [vmem:[%s5 + $0x890] sm:$0xff]
    %v10451 = vld [vmem:[%s5 + $0x898] sm:$0xff]
    %v10452 = vld [vmem:[%s5 + $0x8a0] sm:$0xff]
    %v10453 = vld [vmem:[%s5 + $0x8a8] sm:$0xff]
    %v10454 = vld [vmem:[%s5 + $0x8b0] sm:$0xff]
    %v10455 = vld [vmem:[%s5 + $0x8b8] sm:$0xff]
    %v10456 = vld [vmem:[%s5 + $0x8c0] sm:$0xff]
    %v10457 = vld [vmem:[%s5 + $0x8c8] sm:$0xff]
    %v10458 = vld [vmem:[%s5 + $0x8d0] sm:$0xff]
    %v10459 = vld [vmem:[%s5 + $0x8d8] sm:$0xff]
    %v10460 = vld [vmem:[%s5 + $0x8e0] sm:$0xff]
    %v10461 = vld [vmem:[%s5 + $0x8e8] sm:$0xff]
    %v10462 = vld [vmem:[%s5 + $0x8f0] sm:$0xff]
    %v10463 = vld [vmem:[%s5 + $0x8f8] sm:$0xff]
    %v10464 = vld [vmem:[%s5 + $0x900] sm:$0xff]
    %v10465 = vld [vmem:[%s5 + $0x908] sm:$0xff]
    %v10466 = vld [vmem:[%s5 + $0x910] sm:$0xff]
    %v10467 = vld [vmem:[%s5 + $0x918] sm:$0xff]
    %v10468 = vld [vmem:[%s5 + $0x920] sm:$0xff]
    %v10469 = vld [vmem:[%s5 + $0x928] sm:$0xff]
    %v10470 = vld [vmem:[%s5 + $0x930] sm:$0xff]
    %v10471 = vld [vmem:[%s5 + $0x938] sm:$0xff]
    %v10472 = vld [vmem:[%s5 + $0x940] sm:$0xff]
    %v10473 = vld [vmem:[%s5 + $0x948] sm:$0xff]
    %v10474 = vld [vmem:[%s5 + $0x950] sm:$0xff]
    %v10475 = vld [vmem:[%s5 + $0x958] sm:$0xff]
    %v10476 = vld [vmem:[%s5 + $0x960] sm:$0xff]
    %v10477 = vld [vmem:[%s5 + $0x968] sm:$0xff]
    %v10478 = vld [vmem:[%s5 + $0x970] sm:$0xff]
    %v10479 = vld [vmem:[%s5 + $0x978] sm:$0xff]
    %v10480 = vld [vmem:[%s5 + $0x980] sm:$0xff]
    %v10481 = vld [vmem:[%s5 + $0x988] sm:$0xff]
    %v10482 = vld [vmem:[%s5 + $0x990] sm:$0xff]
    %v10483 = vld [vmem:[%s5 + $0x998] sm:$0xff]
    %v10484 = vld [vmem:[%s5 + $0x9a0] sm:$0xff]
    %v10485 = vld [vmem:[%s5 + $0x9a8] sm:$0xff]
    %v10486 = vld [vmem:[%s5 + $0x9b0] sm:$0xff]
    %v10487 = vld [vmem:[%s5 + $0x9b8] sm:$0xff]
    %v10488 = vld [vmem:[%s5 + $0x9c0] sm:$0xff]
    %v10489 = vld [vmem:[%s5 + $0x9c8] sm:$0xff]
    %v10490 = vld [vmem:[%s5 + $0x9d0] sm:$0xff]
    %v10491 = vld [vmem:[%s5 + $0x9d8] sm:$0xff]
    %v10492 = vld [vmem:[%s5 + $0x9e0] sm:$0xff]
    %v10493 = vld [vmem:[%s5 + $0x9e8] sm:$0xff]
    %v10494 = vld [vmem:[%s5 + $0x9f0] sm:$0xff]
    %v10495 = vld [vmem:[%s5 + $0x9f8] sm:$0xff]
    %v10496 = vld [vmem:[%s5 + $0xa00] sm:$0xff]
    %v10497 = vld [vmem:[%s5 + $0xa08] sm:$0xff]
    %v10498 = vld [vmem:[%s5 + $0xa10] sm:$0xff]
    %v10499 = vld [vmem:[%s5 + $0xa18] sm:$0xff]
    %v10500 = vld [vmem:[%s5 + $0xa20] sm:$0xff]
    %v10501 = vld [vmem:[%s5 + $0xa28] sm:$0xff]
    %v10502 = vld [vmem:[%s5 + $0xa30] sm:$0xff]
    %v10503 = vld [vmem:[%s5 + $0xa38] sm:$0xff]
    %v10504 = vld [vmem:[%s5 + $0xa40] sm:$0xff]
    %v10505 = vld [vmem:[%s5 + $0xa48] sm:$0xff]
    %v10506 = vld [vmem:[%s5 + $0xa50] sm:$0xff]
    %v10507 = vld [vmem:[%s5 + $0xa58] sm:$0xff]
    %v10508 = vld [vmem:[%s5 + $0xa60] sm:$0xff]
    %v10509 = vld [vmem:[%s5 + $0xa68] sm:$0xff]
    %v10510 = vld [vmem:[%s5 + $0xa70] sm:$0xff]
    %v10511 = vld [vmem:[%s5 + $0xa78] sm:$0xff]
    %v10512 = vld [vmem:[%s5 + $0xa80] sm:$0xff]
    %v10513 = vld [vmem:[%s5 + $0xa88] sm:$0xff]
    %v10514 = vld [vmem:[%s5 + $0xa90] sm:$0xff]
    %v10515 = vld [vmem:[%s5 + $0xa98] sm:$0xff]
    %v10516 = vld [vmem:[%s5 + $0xaa0] sm:$0xff]
    %v10517 = vld [vmem:[%s5 + $0xaa8] sm:$0xff]
    %v10518 = vld [vmem:[%s5 + $0xab0] sm:$0xff]
    %v10519 = vld [vmem:[%s5 + $0xab8] sm:$0xff]
    %v10520 = vld [vmem:[%s5 + $0xac0] sm:$0xff]
    %v10521 = vld [vmem:[%s5 + $0xac8] sm:$0xff]
    %v10522 = vld [vmem:[%s5 + $0xad0] sm:$0xff]
    %v10523 = vld [vmem:[%s5 + $0xad8] sm:$0xff]
    %v10524 = vld [vmem:[%s5 + $0xae0] sm:$0xff]
    %v10525 = vld [vmem:[%s5 + $0xae8] sm:$0xff]
    %v10526 = vld [vmem:[%s5 + $0xaf0] sm:$0xff]
    %v10527 = vld [vmem:[%s5 + $0xaf8] sm:$0xff]
    %v10528 = vld [vmem:[%s5 + $0xb00] sm:$0xff]
    %v10529 = vld [vmem:[%s5 + $0xb08] sm:$0xff]
    %v10530 = vld [vmem:[%s5 + $0xb10] sm:$0xff]
    %v10531 = vld [vmem:[%s5 + $0xb18] sm:$0xff]
    %v10532 = vld [vmem:[%s5 + $0xb20] sm:$0xff]
    %v10533 = vld [vmem:[%s5 + $0xb28] sm:$0xff]
    %v10534 = vld [vmem:[%s5 + $0xb30] sm:$0xff]
    %v10535 = vld [vmem:[%s5 + $0xb38] sm:$0xff]
    %v10536 = vld [vmem:[%s5 + $0xb40] sm:$0xff]
    %v10537 = vld [vmem:[%s5 + $0xb48] sm:$0xff]
    %v10538 = vld [vmem:[%s5 + $0xb50] sm:$0xff]
    %v10539 = vld [vmem:[%s5 + $0xb58] sm:$0xff]
    %v10540 = vld [vmem:[%s5 + $0xb60] sm:$0xff]
    %v10541 = vld [vmem:[%s5 + $0xb68] sm:$0xff]
    %v10542 = vld [vmem:[%s5 + $0xb70] sm:$0xff]
    %v10543 = vld [vmem:[%s5 + $0xb78] sm:$0xff]
    %v10544 = vld [vmem:[%s5 + $0xb80] sm:$0xff]
    %v10545 = vld [vmem:[%s5 + $0xb88] sm:$0xff]
    %v10546 = vld [vmem:[%s5 + $0xb90] sm:$0xff]
    %v10547 = vld [vmem:[%s5 + $0xb98] sm:$0xff]
    %v10548 = vld [vmem:[%s5 + $0xba0] sm:$0xff]
    %v10549 = vld [vmem:[%s5 + $0xba8] sm:$0xff]
    %v10550 = vld [vmem:[%s5 + $0xbb0] sm:$0xff]
    %v10551 = vld [vmem:[%s5 + $0xbb8] sm:$0xff]
    %v10552 = vld [vmem:[%s5 + $0xbc0] sm:$0xff]
    %v10553 = vld [vmem:[%s5 + $0xbc8] sm:$0xff]
    %v10554 = vld [vmem:[%s5 + $0xbd0] sm:$0xff]
    %v10555 = vld [vmem:[%s5 + $0xbd8] sm:$0xff]
    %v10556 = vld [vmem:[%s5 + $0xbe0] sm:$0xff]
    %v10557 = vld [vmem:[%s5 + $0xbe8] sm:$0xff]
    %v10558 = vld [vmem:[%s5 + $0xbf0] sm:$0xff]
    %v10559 = vld [vmem:[%s5 + $0xbf8] sm:$0xff]
    %v10560 = vld [vmem:[%s5 + $0xc00] sm:$0xff]
    %v10561 = vld [vmem:[%s5 + $0xc08] sm:$0xff]
    %v10562 = vld [vmem:[%s5 + $0xc10] sm:$0xff]
    %v10563 = vld [vmem:[%s5 + $0xc18] sm:$0xff]
    %v10564 = vld [vmem:[%s5 + $0xc20] sm:$0xff]
    %v10565 = vld [vmem:[%s5 + $0xc28] sm:$0xff]
    %v10566 = vld [vmem:[%s5 + $0xc30] sm:$0xff]
    %v10567 = vld [vmem:[%s5 + $0xc38] sm:$0xff]
    %v10568 = vld [vmem:[%s5 + $0xc40] sm:$0xff]
    %v10569 = vld [vmem:[%s5 + $0xc48] sm:$0xff]
    %v10570 = vld [vmem:[%s5 + $0xc50] sm:$0xff]
    %v10571 = vld [vmem:[%s5 + $0xc58] sm:$0xff]
    %v10572 = vld [vmem:[%s5 + $0xc60] sm:$0xff]
    %v10573 = vld [vmem:[%s5 + $0xc68] sm:$0xff]
    %v10574 = vld [vmem:[%s5 + $0xc70] sm:$0xff]
    %v10575 = vld [vmem:[%s5 + $0xc78] sm:$0xff]
    %v10576 = vld [vmem:[%s5 + $0xc80] sm:$0xff]
    %v10577 = vld [vmem:[%s5 + $0xc88] sm:$0xff]
    %v10578 = vld [vmem:[%s5 + $0xc90] sm:$0xff]
    %v10579 = vld [vmem:[%s5 + $0xc98] sm:$0xff]
    %v10580 = vld [vmem:[%s5 + $0xca0] sm:$0xff]
    %v10581 = vld [vmem:[%s5 + $0xca8] sm:$0xff]
    %v10582 = vld [vmem:[%s5 + $0xcb0] sm:$0xff]
    %v10583 = vld [vmem:[%s5 + $0xcb8] sm:$0xff]
    %v10584 = vld [vmem:[%s5 + $0xcc0] sm:$0xff]
    %v10585 = vld [vmem:[%s5 + $0xcc8] sm:$0xff]
    %v10586 = vld [vmem:[%s5 + $0xcd0] sm:$0xff]
    %v10587 = vld [vmem:[%s5 + $0xcd8] sm:$0xff]
    %v10588 = vld [vmem:[%s5 + $0xce0] sm:$0xff]
    %v10589 = vld [vmem:[%s5 + $0xce8] sm:$0xff]
    %v10590 = vld [vmem:[%s5 + $0xcf0] sm:$0xff]
    %v10591 = vld [vmem:[%s5 + $0xcf8] sm:$0xff]
    %v10592 = vld [vmem:[%s5 + $0xd00] sm:$0xff]
    %v10593 = vld [vmem:[%s5 + $0xd08] sm:$0xff]
    %v10594 = vld [vmem:[%s5 + $0xd10] sm:$0xff]
    %v10595 = vld [vmem:[%s5 + $0xd18] sm:$0xff]
    %v10596 = vld [vmem:[%s5 + $0xd20] sm:$0xff]
    %v10597 = vld [vmem:[%s5 + $0xd28] sm:$0xff]
    %v10598 = vld [vmem:[%s5 + $0xd30] sm:$0xff]
    %v10599 = vld [vmem:[%s5 + $0xd38] sm:$0xff]
    %v10600 = vld [vmem:[%s5 + $0xd40] sm:$0xff]
    %v10601 = vld [vmem:[%s5 + $0xd48] sm:$0xff]
    %v10602 = vld [vmem:[%s5 + $0xd50] sm:$0xff]
    %v10603 = vld [vmem:[%s5 + $0xd58] sm:$0xff]
    %v10604 = vld [vmem:[%s5 + $0xd60] sm:$0xff]
    %v10605 = vld [vmem:[%s5 + $0xd68] sm:$0xff]
    %v10606 = vld [vmem:[%s5 + $0xd70] sm:$0xff]
    %v10607 = vld [vmem:[%s5 + $0xd78] sm:$0xff]
    %v10608 = vld [vmem:[%s5 + $0xd80] sm:$0xff]
    %v10609 = vld [vmem:[%s5 + $0xd88] sm:$0xff]
    %v10610 = vld [vmem:[%s5 + $0xd90] sm:$0xff]
    %v10611 = vld [vmem:[%s5 + $0xd98] sm:$0xff]
    %v10612 = vld [vmem:[%s5 + $0xda0] sm:$0xff]
    %v10613 = vld [vmem:[%s5 + $0xda8] sm:$0xff]
    %v10614 = vld [vmem:[%s5 + $0xdb0] sm:$0xff]
    %v10615 = vld [vmem:[%s5 + $0xdb8] sm:$0xff]
    %v10616 = vld [vmem:[%s5 + $0xdc0] sm:$0xff]
    %v10617 = vld [vmem:[%s5 + $0xdc8] sm:$0xff]
    %v10618 = vld [vmem:[%s5 + $0xdd0] sm:$0xff]
    %v10619 = vld [vmem:[%s5 + $0xdd8] sm:$0xff]
    %v10620 = vld [vmem:[%s5 + $0xde0] sm:$0xff]
    %v10621 = vld [vmem:[%s5 + $0xde8] sm:$0xff]
    %v10622 = vld [vmem:[%s5 + $0xdf0] sm:$0xff]
    %v10623 = vld [vmem:[%s5 + $0xdf8] sm:$0xff]
    %v10624 = vld [vmem:[%s5 + $0xe00] sm:$0xff]
    %v10625 = vld [vmem:[%s5 + $0xe08] sm:$0xff]
    %v10626 = vld [vmem:[%s5 + $0xe10] sm:$0xff]
    %v10627 = vld [vmem:[%s5 + $0xe18] sm:$0xff]
    %v10628 = vld [vmem:[%s5 + $0xe20] sm:$0xff]
    %v10629 = vld [vmem:[%s5 + $0xe28] sm:$0xff]
    %v10630 = vld [vmem:[%s5 + $0xe30] sm:$0xff]
    %v10631 = vld [vmem:[%s5 + $0xe38] sm:$0xff]
    %v10632 = vld [vmem:[%s5 + $0xe40] sm:$0xff]
    %v10633 = vld [vmem:[%s5 + $0xe48] sm:$0xff]
    %v10634 = vld [vmem:[%s5 + $0xe50] sm:$0xff]
    %v10635 = vld [vmem:[%s5 + $0xe58] sm:$0xff]
    %v10636 = vld [vmem:[%s5 + $0xe60] sm:$0xff]
    %v10637 = vld [vmem:[%s5 + $0xe68] sm:$0xff]
    %v10638 = vld [vmem:[%s5 + $0xe70] sm:$0xff]
    %v10639 = vld [vmem:[%s5 + $0xe78] sm:$0xff]
    %v10640 = vld [vmem:[%s5 + $0xe80] sm:$0xff]
    %v10641 = vld [vmem:[%s5 + $0xe88] sm:$0xff]
    %v10642 = vld [vmem:[%s5 + $0xe90] sm:$0xff]
    %v10643 = vld [vmem:[%s5 + $0xe98] sm:$0xff]
    %v10644 = vld [vmem:[%s5 + $0xea0] sm:$0xff]
    %v10645 = vld [vmem:[%s5 + $0xea8] sm:$0xff]
    %v10646 = vld [vmem:[%s5 + $0xeb0] sm:$0xff]
    %v10647 = vld [vmem:[%s5 + $0xeb8] sm:$0xff]
    %v10648 = vld [vmem:[%s5 + $0xec0] sm:$0xff]
    %v10649 = vld [vmem:[%s5 + $0xec8] sm:$0xff]
    %v10650 = vld [vmem:[%s5 + $0xed0] sm:$0xff]
    %v10651 = vld [vmem:[%s5 + $0xed8] sm:$0xff]
    %v10652 = vld [vmem:[%s5 + $0xee0] sm:$0xff]
    %v10653 = vld [vmem:[%s5 + $0xee8] sm:$0xff]
    %v10654 = vld [vmem:[%s5 + $0xef0] sm:$0xff]
    %v10655 = vld [vmem:[%s5 + $0xef8] sm:$0xff]
    %v10656 = vld [vmem:[%s5 + $0xf00] sm:$0xff]
    %v10657 = vld [vmem:[%s5 + $0xf08] sm:$0xff]
    %v10658 = vld [vmem:[%s5 + $0xf10] sm:$0xff]
    %v10659 = vld [vmem:[%s5 + $0xf18] sm:$0xff]
    %v10660 = vld [vmem:[%s5 + $0xf20] sm:$0xff]
    %v10661 = vld [vmem:[%s5 + $0xf28] sm:$0xff]
    %v10662 = vld [vmem:[%s5 + $0xf30] sm:$0xff]
    %v10663 = vld [vmem:[%s5 + $0xf38] sm:$0xff]
    %v10664 = vld [vmem:[%s5 + $0xf40] sm:$0xff]
    %v10665 = vld [vmem:[%s5 + $0xf48] sm:$0xff]
    %v10666 = vld [vmem:[%s5 + $0xf50] sm:$0xff]
    %v10667 = vld [vmem:[%s5 + $0xf58] sm:$0xff]
    %v10668 = vld [vmem:[%s5 + $0xf60] sm:$0xff]
    %v10669 = vld [vmem:[%s5 + $0xf68] sm:$0xff]
    %v10670 = vld [vmem:[%s5 + $0xf70] sm:$0xff]
    %v10671 = vld [vmem:[%s5 + $0xf78] sm:$0xff]
    %v10672 = vld [vmem:[%s5 + $0xf80] sm:$0xff]
    %v10673 = vld [vmem:[%s5 + $0xf88] sm:$0xff]
    %v10674 = vld [vmem:[%s5 + $0xf90] sm:$0xff]
    %v10675 = vld [vmem:[%s5 + $0xf98] sm:$0xff]
    %v10676 = vld [vmem:[%s5 + $0xfa0] sm:$0xff]
    %v10677 = vld [vmem:[%s5 + $0xfa8] sm:$0xff]
    %v10678 = vld [vmem:[%s5 + $0xfb0] sm:$0xff]
    %v10679 = vld [vmem:[%s5 + $0xfb8] sm:$0xff]
    %v10680 = vld [vmem:[%s5 + $0xfc0] sm:$0xff]
    %v10681 = vld [vmem:[%s5 + $0xfc8] sm:$0xff]
    %v10682 = vld [vmem:[%s5 + $0xfd0] sm:$0xff]
    %v10683 = vld [vmem:[%s5 + $0xfd8] sm:$0xff]
    %v10684 = vld [vmem:[%s5 + $0xfe0] sm:$0xff]
    %v10685 = vld [vmem:[%s5 + $0xfe8] sm:$0xff]
    %v10686 = vld [vmem:[%s5 + $0xff0] sm:$0xff]
    %v10687 = vld [vmem:[%s5 + $0xff8] sm:$0xff]
    %v10688 = vld [vmem:[%s6] sm:$0xf]
    %v10690 = vlaneseq
    %v10691 = vshrl.u32 %v10690, 7
    %v10692 = vsub.s32 0, %v10691
    %v10693 = vrot.slane %v10688, %v10692
    %v10694 = vlaneseq
    %v10695 = vshrl.u32 %v10694, 7
    %v10696 = vsub.s32 1, %v10695
    %v10697 = vrot.slane %v10688, %v10696
    %v10698 = vlaneseq
    %v10699 = vshrl.u32 %v10698, 7
    %v10700 = vsub.s32 2, %v10699
    %v10701 = vrot.slane %v10688, %v10700
    %v10702 = vlaneseq
    %v10703 = vshrl.u32 %v10702, 7
    %v10704 = vsub.s32 3, %v10703
    %v10705 = vrot.slane %v10688, %v10704
    %v10712 = vcombine.high %v10174, %v10174
    %v10714 = vunpack.c.l.s4 1983009808
    %v10715 = vunpack.c.0.s8 %v10714
    %v10716 = vlaneseq
    %v10717 = vshrl.u32 %v10716, 7
    %v10718 = vsub.s32 %v10715, %v10717
    %v10719 = vrot.slane %v10174, %v10718
    %v10721 = vunpack.c.l.s4 1983009808
    %v10722 = vunpack.c.0.s8 %v10721
    %v10723 = vlaneseq
    %v10724 = vshrl.u32 %v10723, 7
    %v10725 = vsub.s32 %v10722, %v10724
    %v10726 = vrot.slane %v10712, %v10725
    %v10727 = vcombine.high %v10719, %v10719
    %v10728 = vcombine.high %v10726, %v10726
    %v10729 = vcombine.high %v10175, %v10175
    %v10731 = vunpack.c.l.s4 1983009808
    %v10732 = vunpack.c.0.s8 %v10731
    %v10733 = vlaneseq
    %v10734 = vshrl.u32 %v10733, 7
    %v10735 = vsub.s32 %v10732, %v10734
    %v10736 = vrot.slane %v10175, %v10735
    %v10738 = vunpack.c.l.s4 1983009808
    %v10739 = vunpack.c.0.s8 %v10738
    %v10740 = vlaneseq
    %v10741 = vshrl.u32 %v10740, 7
    %v10742 = vsub.s32 %v10739, %v10741
    %v10743 = vrot.slane %v10729, %v10742
    %v10744 = vcombine.high %v10736, %v10736
    %v10745 = vcombine.high %v10743, %v10743
    %10754 = vmatprep.subr.mxu0 %v10177
    %10755 = vmatpush1.msra.mxu0 %v10176
    %10756 = vmatprep.subr.mxu0 %v10181
    %10757 = vmatpush1.msra.mxu0 %v10180
    %10758 = vmatprep.subr.mxu0 %v10185
    %10759 = vmatpush1.msra.mxu0 %v10184
    %10760 = vmatprep.subr.mxu0 %v10189
    %10761 = vmatpush1.msra.mxu0 %v10188
    %10762 = vmatprep.subr.mxu0 %v10193
    %10763 = vmatpush1.msra.mxu0 %v10192
    %10764 = vmatprep.subr.mxu0 %v10197
    %10765 = vmatpush1.msra.mxu0 %v10196
    %10766 = vmatprep.subr.mxu0 %v10201
    %10767 = vmatpush1.msra.mxu0 %v10200
    %10768 = vmatprep.subr.mxu0 %v10205
    %10769 = vmatpush1.msra.mxu0 %v10204
    %10770 = vmatprep.subr.mxu0 %v10209
    %10771 = vmatpush1.msra.mxu0 %v10208
    %10772 = vmatprep.subr.mxu0 %v10213
    %10773 = vmatpush1.msra.mxu0 %v10212
    %10774 = vmatprep.subr.mxu0 %v10217
    %10775 = vmatpush1.msra.mxu0 %v10216
    %10776 = vmatprep.subr.mxu0 %v10221
    %10777 = vmatpush1.msra.mxu0 %v10220
    %10778 = vmatprep.subr.mxu0 %v10225
    %10779 = vmatpush1.msra.mxu0 %v10224
    %10780 = vmatprep.subr.mxu0 %v10229
    %10781 = vmatpush1.msra.mxu0 %v10228
    %10782 = vmatprep.subr.mxu0 %v10233
    %10783 = vmatpush1.msra.mxu0 %v10232
    %10784 = vmatprep.subr.mxu0 %v10237
    %10785 = vmatpush1.msra.mxu0 %v10236
    %10786 = vmatprep.subr.mxu0 %v10241
    %10787 = vmatpush1.msra.mxu0 %v10240
    %10788 = vmatprep.subr.mxu0 %v10245
    %10789 = vmatpush1.msra.mxu0 %v10244
    %10790 = vmatprep.subr.mxu0 %v10249
    %10791 = vmatpush1.msra.mxu0 %v10248
    %10792 = vmatprep.subr.mxu0 %v10253
    %10793 = vmatpush1.msra.mxu0 %v10252
    %10794 = vmatprep.subr.mxu0 %v10257
    %10795 = vmatpush1.msra.mxu0 %v10256
    %10796 = vmatprep.subr.mxu0 %v10261
    %10797 = vmatpush1.msra.mxu0 %v10260
    %10798 = vmatprep.subr.mxu0 %v10265
    %10799 = vmatpush1.msra.mxu0 %v10264
    %10800 = vmatprep.subr.mxu0 %v10269
    %10801 = vmatpush1.msra.mxu0 %v10268
    %10802 = vmatprep.subr.mxu0 %v10273
    %10803 = vmatpush1.msra.mxu0 %v10272
    %10804 = vmatprep.subr.mxu0 %v10277
    %10805 = vmatpush1.msra.mxu0 %v10276
    %10806 = vmatprep.subr.mxu0 %v10281
    %10807 = vmatpush1.msra.mxu0 %v10280
    %10808 = vmatprep.subr.mxu0 %v10285
    %10809 = vmatpush1.msra.mxu0 %v10284
    %10810 = vmatprep.subr.mxu0 %v10289
    %10811 = vmatpush1.msra.mxu0 %v10288
    %10812 = vmatprep.subr.mxu0 %v10293
    %10813 = vmatpush1.msra.mxu0 %v10292
    %10814 = vmatprep.subr.mxu0 %v10297
    %10815 = vmatpush1.msra.mxu0 %v10296
    %10816 = vmatprep.subr.mxu0 %v10301
    %10817 = vmatpush1.msra.mxu0 %v10300
    %10818 = vmatprep.mubr.f32.mxu0 %v10727
    %10819 = vmatmul.mubr.f32.gmra.mrb[0].mxu0 %v10719
    %v10820 = vpop.f32.mrb[0].mxu0
    %v10821 = vadd.f32 %v10693, %v10820
    %v10822 = vpop.f32.mrb[0].mxu0
    %v10823 = vadd.f32 %v10697, %v10822
    %10824 = vdwg.mxu0
    %10825 = vmatprep.subr.mxu0 %v10305
    %10826 = vmatpush1.msra.mxu0 %v10304
    %10827 = vmatprep.subr.mxu0 %v10309
    %10828 = vmatpush1.msra.mxu0 %v10308
    %10829 = vmatprep.subr.mxu0 %v10313
    %10830 = vmatpush1.msra.mxu0 %v10312
    %10831 = vmatprep.subr.mxu0 %v10317
    %10832 = vmatpush1.msra.mxu0 %v10316
    %10833 = vmatprep.subr.mxu0 %v10321
    %10834 = vmatpush1.msra.mxu0 %v10320
    %10835 = vmatprep.subr.mxu0 %v10325
    %10836 = vmatpush1.msra.mxu0 %v10324
    %10837 = vmatprep.subr.mxu0 %v10329
    %10838 = vmatpush1.msra.mxu0 %v10328
    %10839 = vmatprep.subr.mxu0 %v10333
    %10840 = vmatpush1.msra.mxu0 %v10332
    %10841 = vmatprep.subr.mxu0 %v10337
    %10842 = vmatpush1.msra.mxu0 %v10336
    %10843 = vmatprep.subr.mxu0 %v10341
    %10844 = vmatpush1.msra.mxu0 %v10340
    %10845 = vmatprep.subr.mxu0 %v10345
    %10846 = vmatpush1.msra.mxu0 %v10344
    %10847 = vmatprep.subr.mxu0 %v10349
    %10848 = vmatpush1.msra.mxu0 %v10348
    %10849 = vmatprep.subr.mxu0 %v10353
    %10850 = vmatpush1.msra.mxu0 %v10352
    %10851 = vmatprep.subr.mxu0 %v10357
    %10852 = vmatpush1.msra.mxu0 %v10356
    %10853 = vmatprep.subr.mxu0 %v10361
    %10854 = vmatpush1.msra.mxu0 %v10360
    %10855 = vmatprep.subr.mxu0 %v10365
    %10856 = vmatpush1.msra.mxu0 %v10364
    %10857 = vmatprep.subr.mxu0 %v10369
    %10858 = vmatpush1.msra.mxu0 %v10368
    %10859 = vmatprep.subr.mxu0 %v10373
    %10860 = vmatpush1.msra.mxu0 %v10372
    %10861 = vmatprep.subr.mxu0 %v10377
    %10862 = vmatpush1.msra.mxu0 %v10376
    %10863 = vmatprep.subr.mxu0 %v10381
    %10864 = vmatpush1.msra.mxu0 %v10380
    %10865 = vmatprep.subr.mxu0 %v10385
    %10866 = vmatpush1.msra.mxu0 %v10384
    %10867 = vmatprep.subr.mxu0 %v10389
    %10868 = vmatpush1.msra.mxu0 %v10388
    %10869 = vmatprep.subr.mxu0 %v10393
    %10870 = vmatpush1.msra.mxu0 %v10392
    %10871 = vmatprep.subr.mxu0 %v10397
    %10872 = vmatpush1.msra.mxu0 %v10396
    %10873 = vmatprep.subr.mxu0 %v10401
    %10874 = vmatpush1.msra.mxu0 %v10400
    %10875 = vmatprep.subr.mxu0 %v10405
    %10876 = vmatpush1.msra.mxu0 %v10404
    %10877 = vmatprep.subr.mxu0 %v10409
    %10878 = vmatpush1.msra.mxu0 %v10408
    %10879 = vmatprep.subr.mxu0 %v10413
    %10880 = vmatpush1.msra.mxu0 %v10412
    %10881 = vmatprep.subr.mxu0 %v10417
    %10882 = vmatpush1.msra.mxu0 %v10416
    %10883 = vmatprep.subr.mxu0 %v10421
    %10884 = vmatpush1.msra.mxu0 %v10420
    %10885 = vmatprep.subr.mxu0 %v10425
    %10886 = vmatpush1.msra.mxu0 %v10424
    %10887 = vmatprep.subr.mxu0 %v10429
    %10888 = vmatpush1.msra.mxu0 %v10428
    %10889 = vmatprep.mubr.f32.mxu0 %v10728
    %10890 = vmatmul.mubr.f32.gmra.mrb[0].mxu0 %v10726
    %v10891 = vpop.f32.mrb[0].mxu0
    %v10892 = vadd.f32 %v10821, %v10891
    %v10893 = vpop.f32.mrb[0].mxu0
    %v10894 = vadd.f32 %v10823, %v10893
    %10895 = vdwg.mxu0
    %10896 = vmatprep.subr.mxu0 %v10433
    %10897 = vmatpush1.msra.mxu0 %v10432
    %10898 = vmatprep.subr.mxu0 %v10437
    %10899 = vmatpush1.msra.mxu0 %v10436
    %10900 = vmatprep.subr.mxu0 %v10441
    %10901 = vmatpush1.msra.mxu0 %v10440
    %10902 = vmatprep.subr.mxu0 %v10445
    %10903 = vmatpush1.msra.mxu0 %v10444
    %10904 = vmatprep.subr.mxu0 %v10449
    %10905 = vmatpush1.msra.mxu0 %v10448
    %10906 = vmatprep.subr.mxu0 %v10453
    %10907 = vmatpush1.msra.mxu0 %v10452
    %10908 = vmatprep.subr.mxu0 %v10457
    %10909 = vmatpush1.msra.mxu0 %v10456
    %10910 = vmatprep.subr.mxu0 %v10461
    %10911 = vmatpush1.msra.mxu0 %v10460
    %10912 = vmatprep.subr.mxu0 %v10465
    %10913 = vmatpush1.msra.mxu0 %v10464
    %10914 = vmatprep.subr.mxu0 %v10469
    %10915 = vmatpush1.msra.mxu0 %v10468
    %10916 = vmatprep.subr.mxu0 %v10473
    %10917 = vmatpush1.msra.mxu0 %v10472
    %10918 = vmatprep.subr.mxu0 %v10477
    %10919 = vmatpush1.msra.mxu0 %v10476
    %10920 = vmatprep.subr.mxu0 %v10481
    %10921 = vmatpush1.msra.mxu0 %v10480
    %10922 = vmatprep.subr.mxu0 %v10485
    %10923 = vmatpush1.msra.mxu0 %v10484
    %10924 = vmatprep.subr.mxu0 %v10489
    %10925 = vmatpush1.msra.mxu0 %v10488
    %10926 = vmatprep.subr.mxu0 %v10493
    %10927 = vmatpush1.msra.mxu0 %v10492
    %10928 = vmatprep.subr.mxu0 %v10497
    %10929 = vmatpush1.msra.mxu0 %v10496
    %10930 = vmatprep.subr.mxu0 %v10501
    %10931 = vmatpush1.msra.mxu0 %v10500
    %10932 = vmatprep.subr.mxu0 %v10505
    %10933 = vmatpush1.msra.mxu0 %v10504
    %10934 = vmatprep.subr.mxu0 %v10509
    %10935 = vmatpush1.msra.mxu0 %v10508
    %10936 = vmatprep.subr.mxu0 %v10513
    %10937 = vmatpush1.msra.mxu0 %v10512
    %10938 = vmatprep.subr.mxu0 %v10517
    %10939 = vmatpush1.msra.mxu0 %v10516
    %10940 = vmatprep.subr.mxu0 %v10521
    %10941 = vmatpush1.msra.mxu0 %v10520
    %10942 = vmatprep.subr.mxu0 %v10525
    %10943 = vmatpush1.msra.mxu0 %v10524
    %10944 = vmatprep.subr.mxu0 %v10529
    %10945 = vmatpush1.msra.mxu0 %v10528
    %10946 = vmatprep.subr.mxu0 %v10533
    %10947 = vmatpush1.msra.mxu0 %v10532
    %10948 = vmatprep.subr.mxu0 %v10537
    %10949 = vmatpush1.msra.mxu0 %v10536
    %10950 = vmatprep.subr.mxu0 %v10541
    %10951 = vmatpush1.msra.mxu0 %v10540
    %10952 = vmatprep.subr.mxu0 %v10545
    %10953 = vmatpush1.msra.mxu0 %v10544
    %10954 = vmatprep.subr.mxu0 %v10549
    %10955 = vmatpush1.msra.mxu0 %v10548
    %10956 = vmatprep.subr.mxu0 %v10553
    %10957 = vmatpush1.msra.mxu0 %v10552
    %10958 = vmatprep.subr.mxu0 %v10557
    %10959 = vmatpush1.msra.mxu0 %v10556
    %10960 = vmatprep.mubr.f32.mxu0 %v10744
    %10961 = vmatmul.mubr.f32.gmra.mrb[0].mxu0 %v10736
    %v10962 = vpop.f32.mrb[0].mxu0
    %v10963 = vadd.f32 %v10892, %v10962
    %v10964 = vpop.f32.mrb[0].mxu0
    %v10965 = vadd.f32 %v10894, %v10964
    %10966 = vdwg.mxu0
    %10967 = vmatprep.subr.mxu0 %v10561
    %10968 = vmatpush1.msra.mxu0 %v10560
    %10969 = vmatprep.subr.mxu0 %v10565
    %10970 = vmatpush1.msra.mxu0 %v10564
    %10971 = vmatprep.subr.mxu0 %v10569
    %10972 = vmatpush1.msra.mxu0 %v10568
    %10973 = vmatprep.subr.mxu0 %v10573
    %10974 = vmatpush1.msra.mxu0 %v10572
    %10975 = vmatprep.subr.mxu0 %v10577
    %10976 = vmatpush1.msra.mxu0 %v10576
    %10977 = vmatprep.subr.mxu0 %v10581
    %10978 = vmatpush1.msra.mxu0 %v10580
    %10979 = vmatprep.subr.mxu0 %v10585
    %10980 = vmatpush1.msra.mxu0 %v10584
    %10981 = vmatprep.subr.mxu0 %v10589
    %10982 = vmatpush1.msra.mxu0 %v10588
    %10983 = vmatprep.subr.mxu0 %v10593
    %10984 = vmatpush1.msra.mxu0 %v10592
    %10985 = vmatprep.subr.mxu0 %v10597
    %10986 = vmatpush1.msra.mxu0 %v10596
    %10987 = vmatprep.subr.mxu0 %v10601
    %10988 = vmatpush1.msra.mxu0 %v10600
    %10989 = vmatprep.subr.mxu0 %v10605
    %10990 = vmatpush1.msra.mxu0 %v10604
    %10991 = vmatprep.subr.mxu0 %v10609
    %10992 = vmatpush1.msra.mxu0 %v10608
    %10993 = vmatprep.subr.mxu0 %v10613
    %10994 = vmatpush1.msra.mxu0 %v10612
    %10995 = vmatprep.subr.mxu0 %v10617
    %10996 = vmatpush1.msra.mxu0 %v10616
    %10997 = vmatprep.subr.mxu0 %v10621
    %10998 = vmatpush1.msra.mxu0 %v10620
    %10999 = vmatprep.subr.mxu0 %v10625
    %11000 = vmatpush1.msra.mxu0 %v10624
    %11001 = vmatprep.subr.mxu0 %v10629
    %11002 = vmatpush1.msra.mxu0 %v10628
    %11003 = vmatprep.subr.mxu0 %v10633
    %11004 = vmatpush1.msra.mxu0 %v10632
    %11005 = vmatprep.subr.mxu0 %v10637
    %11006 = vmatpush1.msra.mxu0 %v10636
    %11007 = vmatprep.subr.mxu0 %v10641
    %11008 = vmatpush1.msra.mxu0 %v10640
    %11009 = vmatprep.subr.mxu0 %v10645
    %11010 = vmatpush1.msra.mxu0 %v10644
    %11011 = vmatprep.subr.mxu0 %v10649
    %11012 = vmatpush1.msra.mxu0 %v10648
    %11013 = vmatprep.subr.mxu0 %v10653
    %11014 = vmatpush1.msra.mxu0 %v10652
    %11015 = vmatprep.subr.mxu0 %v10657
    %11016 = vmatpush1.msra.mxu0 %v10656
    %11017 = vmatprep.subr.mxu0 %v10661
    %11018 = vmatpush1.msra.mxu0 %v10660
    %11019 = vmatprep.subr.mxu0 %v10665
    %11020 = vmatpush1.msra.mxu0 %v10664
    %11021 = vmatprep.subr.mxu0 %v10669
    %11022 = vmatpush1.msra.mxu0 %v10668
    %11023 = vmatprep.subr.mxu0 %v10673
    %11024 = vmatpush1.msra.mxu0 %v10672
    %11025 = vmatprep.subr.mxu0 %v10677
    %11026 = vmatpush1.msra.mxu0 %v10676
    %11027 = vmatprep.subr.mxu0 %v10681
    %11028 = vmatpush1.msra.mxu0 %v10680
    %11029 = vmatprep.subr.mxu0 %v10685
    %11030 = vmatpush1.msra.mxu0 %v10684
    %11031 = vmatprep.mubr.f32.mxu0 %v10745
    %11032 = vmatmul.mubr.f32.gmra.mrb[0].mxu0 %v10743
    %v11033 = vpop.f32.mrb[0].mxu0
    %v11034 = vadd.f32 %v10963, %v11033
    %v11035 = vpop.f32.mrb[0].mxu0
    %v11036 = vadd.f32 %v10965, %v11035
    %11037 = vdwg.mxu0
    %11038 = vmatprep.subr.mxu0 %v10179
    %11039 = vmatpush1.msra.mxu0 %v10178
    %11040 = vmatprep.subr.mxu0 %v10183
    %11041 = vmatpush1.msra.mxu0 %v10182
    %11042 = vmatprep.subr.mxu0 %v10187
    %11043 = vmatpush1.msra.mxu0 %v10186
    %11044 = vmatprep.subr.mxu0 %v10191
    %11045 = vmatpush1.msra.mxu0 %v10190
    %11046 = vmatprep.subr.mxu0 %v10195
    %11047 = vmatpush1.msra.mxu0 %v10194
    %11048 = vmatprep.subr.mxu0 %v10199
    %11049 = vmatpush1.msra.mxu0 %v10198
    %11050 = vmatprep.subr.mxu0 %v10203
    %11051 = vmatpush1.msra.mxu0 %v10202
    %11052 = vmatprep.subr.mxu0 %v10207
    %11053 = vmatpush1.msra.mxu0 %v10206
    %11054 = vmatprep.subr.mxu0 %v10211
    %11055 = vmatpush1.msra.mxu0 %v10210
    %11056 = vmatprep.subr.mxu0 %v10215
    %11057 = vmatpush1.msra.mxu0 %v10214
    %11058 = vmatprep.subr.mxu0 %v10219
    %11059 = vmatpush1.msra.mxu0 %v10218
    %11060 = vmatprep.subr.mxu0 %v10223
    %11061 = vmatpush1.msra.mxu0 %v10222
    %11062 = vmatprep.subr.mxu0 %v10227
    %11063 = vmatpush1.msra.mxu0 %v10226
    %11064 = vmatprep.subr.mxu0 %v10231
    %11065 = vmatpush1.msra.mxu0 %v10230
    %11066 = vmatprep.subr.mxu0 %v10235
    %11067 = vmatpush1.msra.mxu0 %v10234
    %11068 = vmatprep.subr.mxu0 %v10239
    %11069 = vmatpush1.msra.mxu0 %v10238
    %11070 = vmatprep.subr.mxu0 %v10243
    %11071 = vmatpush1.msra.mxu0 %v10242
    %11072 = vmatprep.subr.mxu0 %v10247
    %11073 = vmatpush1.msra.mxu0 %v10246
    %11074 = vmatprep.subr.mxu0 %v10251
    %11075 = vmatpush1.msra.mxu0 %v10250
    %11076 = vmatprep.subr.mxu0 %v10255
    %11077 = vmatpush1.msra.mxu0 %v10254
    %11078 = vmatprep.subr.mxu0 %v10259
    %11079 = vmatpush1.msra.mxu0 %v10258
    %11080 = vmatprep.subr.mxu0 %v10263
    %11081 = vmatpush1.msra.mxu0 %v10262
    %11082 = vmatprep.subr.mxu0 %v10267
    %11083 = vmatpush1.msra.mxu0 %v10266
    %11084 = vmatprep.subr.mxu0 %v10271
    %11085 = vmatpush1.msra.mxu0 %v10270
    %11086 = vmatprep.subr.mxu0 %v10275
    %11087 = vmatpush1.msra.mxu0 %v10274
    %11088 = vmatprep.subr.mxu0 %v10279
    %11089 = vmatpush1.msra.mxu0 %v10278
    %11090 = vmatprep.subr.mxu0 %v10283
    %11091 = vmatpush1.msra.mxu0 %v10282
    %11092 = vmatprep.subr.mxu0 %v10287
    %11093 = vmatpush1.msra.mxu0 %v10286
    %11094 = vmatprep.subr.mxu0 %v10291
    %11095 = vmatpush1.msra.mxu0 %v10290
    %11096 = vmatprep.subr.mxu0 %v10295
    %11097 = vmatpush1.msra.mxu0 %v10294
    %11098 = vmatprep.subr.mxu0 %v10299
    %11099 = vmatpush1.msra.mxu0 %v10298
    %11100 = vmatprep.subr.mxu0 %v10303
    %11101 = vmatpush1.msra.mxu0 %v10302
    %11102 = vmatprep.mubr.f32.mxu0 %v10727
    %11103 = vmatmul.mubr.f32.gmra.mrb[0].mxu0 %v10719
    %v11104 = vpop.f32.mrb[0].mxu0
    %v11105 = vadd.f32 %v10701, %v11104
    %v11106 = vpop.f32.mrb[0].mxu0
    %v11107 = vadd.f32 %v10705, %v11106
    %11108 = vdwg.mxu0
    %11109 = vmatprep.subr.mxu0 %v10307
    %11110 = vmatpush1.msra.mxu0 %v10306
    %11111 = vmatprep.subr.mxu0 %v10311
    %11112 = vmatpush1.msra.mxu0 %v10310
    %11113 = vmatprep.subr.mxu0 %v10315
    %11114 = vmatpush1.msra.mxu0 %v10314
    %11115 = vmatprep.subr.mxu0 %v10319
    %11116 = vmatpush1.msra.mxu0 %v10318
    %11117 = vmatprep.subr.mxu0 %v10323
    %11118 = vmatpush1.msra.mxu0 %v10322
    %11119 = vmatprep.subr.mxu0 %v10327
    %11120 = vmatpush1.msra.mxu0 %v10326
    %11121 = vmatprep.subr.mxu0 %v10331
    %11122 = vmatpush1.msra.mxu0 %v10330
    %11123 = vmatprep.subr.mxu0 %v10335
    %11124 = vmatpush1.msra.mxu0 %v10334
    %11125 = vmatprep.subr.mxu0 %v10339
    %11126 = vmatpush1.msra.mxu0 %v10338
    %11127 = vmatprep.subr.mxu0 %v10343
    %11128 = vmatpush1.msra.mxu0 %v10342
    %11129 = vmatprep.subr.mxu0 %v10347
    %11130 = vmatpush1.msra.mxu0 %v10346
    %11131 = vmatprep.subr.mxu0 %v10351
    %11132 = vmatpush1.msra.mxu0 %v10350
    %11133 = vmatprep.subr.mxu0 %v10355
    %11134 = vmatpush1.msra.mxu0 %v10354
    %11135 = vmatprep.subr.mxu0 %v10359
    %11136 = vmatpush1.msra.mxu0 %v10358
    %11137 = vmatprep.subr.mxu0 %v10363
    %11138 = vmatpush1.msra.mxu0 %v10362
    %11139 = vmatprep.subr.mxu0 %v10367
    %11140 = vmatpush1.msra.mxu0 %v10366
    %11141 = vmatprep.subr.mxu0 %v10371
    %11142 = vmatpush1.msra.mxu0 %v10370
    %11143 = vmatprep.subr.mxu0 %v10375
    %11144 = vmatpush1.msra.mxu0 %v10374
    %11145 = vmatprep.subr.mxu0 %v10379
    %11146 = vmatpush1.msra.mxu0 %v10378
    %11147 = vmatprep.subr.mxu0 %v10383
    %11148 = vmatpush1.msra.mxu0 %v10382
    %11149 = vmatprep.subr.mxu0 %v10387
    %11150 = vmatpush1.msra.mxu0 %v10386
    %11151 = vmatprep.subr.mxu0 %v10391
    %11152 = vmatpush1.msra.mxu0 %v10390
    %11153 = vmatprep.subr.mxu0 %v10395
    %11154 = vmatpush1.msra.mxu0 %v10394
    %11155 = vmatprep.subr.mxu0 %v10399
    %11156 = vmatpush1.msra.mxu0 %v10398
    %11157 = vmatprep.subr.mxu0 %v10403
    %11158 = vmatpush1.msra.mxu0 %v10402
    %11159 = vmatprep.subr.mxu0 %v10407
    %11160 = vmatpush1.msra.mxu0 %v10406
    %11161 = vmatprep.subr.mxu0 %v10411
    %11162 = vmatpush1.msra.mxu0 %v10410
    %11163 = vmatprep.subr.mxu0 %v10415
    %11164 = vmatpush1.msra.mxu0 %v10414
    %11165 = vmatprep.subr.mxu0 %v10419
    %11166 = vmatpush1.msra.mxu0 %v10418
    %11167 = vmatprep.subr.mxu0 %v10423
    %11168 = vmatpush1.msra.mxu0 %v10422
    %11169 = vmatprep.subr.mxu0 %v10427
    %11170 = vmatpush1.msra.mxu0 %v10426
    %11171 = vmatprep.subr.mxu0 %v10431
    %11172 = vmatpush1.msra.mxu0 %v10430
    %11173 = vmatprep.mubr.f32.mxu0 %v10728
    %11174 = vmatmul.mubr.f32.gmra.mrb[0].mxu0 %v10726
    %v11175 = vpop.f32.mrb[0].mxu0
    %v11176 = vadd.f32 %v11105, %v11175
    %v11177 = vpop.f32.mrb[0].mxu0
    %v11178 = vadd.f32 %v11107, %v11177
    %11179 = vdwg.mxu0
    %11180 = vmatprep.subr.mxu0 %v10435
    %11181 = vmatpush1.msra.mxu0 %v10434
    %11182 = vmatprep.subr.mxu0 %v10439
    %11183 = vmatpush1.msra.mxu0 %v10438
    %11184 = vmatprep.subr.mxu0 %v10443
    %11185 = vmatpush1.msra.mxu0 %v10442
    %11186 = vmatprep.subr.mxu0 %v10447
    %11187 = vmatpush1.msra.mxu0 %v10446
    %11188 = vmatprep.subr.mxu0 %v10451
    %11189 = vmatpush1.msra.mxu0 %v10450
    %11190 = vmatprep.subr.mxu0 %v10455
    %11191 = vmatpush1.msra.mxu0 %v10454
    %11192 = vmatprep.subr.mxu0 %v10459
    %11193 = vmatpush1.msra.mxu0 %v10458
    %11194 = vmatprep.subr.mxu0 %v10463
    %11195 = vmatpush1.msra.mxu0 %v10462
    %11196 = vmatprep.subr.mxu0 %v10467
    %11197 = vmatpush1.msra.mxu0 %v10466
    %11198 = vmatprep.subr.mxu0 %v10471
    %11199 = vmatpush1.msra.mxu0 %v10470
    %11200 = vmatprep.subr.mxu0 %v10475
    %11201 = vmatpush1.msra.mxu0 %v10474
    %11202 = vmatprep.subr.mxu0 %v10479
    %11203 = vmatpush1.msra.mxu0 %v10478
    %11204 = vmatprep.subr.mxu0 %v10483
    %11205 = vmatpush1.msra.mxu0 %v10482
    %11206 = vmatprep.subr.mxu0 %v10487
    %11207 = vmatpush1.msra.mxu0 %v10486
    %11208 = vmatprep.subr.mxu0 %v10491
    %11209 = vmatpush1.msra.mxu0 %v10490
    %11210 = vmatprep.subr.mxu0 %v10495
    %11211 = vmatpush1.msra.mxu0 %v10494
    %11212 = vmatprep.subr.mxu0 %v10499
    %11213 = vmatpush1.msra.mxu0 %v10498
    %11214 = vmatprep.subr.mxu0 %v10503
    %11215 = vmatpush1.msra.mxu0 %v10502
    %11216 = vmatprep.subr.mxu0 %v10507
    %11217 = vmatpush1.msra.mxu0 %v10506
    %11218 = vmatprep.subr.mxu0 %v10511
    %11219 = vmatpush1.msra.mxu0 %v10510
    %11220 = vmatprep.subr.mxu0 %v10515
    %11221 = vmatpush1.msra.mxu0 %v10514
    %11222 = vmatprep.subr.mxu0 %v10519
    %11223 = vmatpush1.msra.mxu0 %v10518
    %11224 = vmatprep.subr.mxu0 %v10523
    %11225 = vmatpush1.msra.mxu0 %v10522
    %11226 = vmatprep.subr.mxu0 %v10527
    %11227 = vmatpush1.msra.mxu0 %v10526
    %11228 = vmatprep.subr.mxu0 %v10531
    %11229 = vmatpush1.msra.mxu0 %v10530
    %11230 = vmatprep.subr.mxu0 %v10535
    %11231 = vmatpush1.msra.mxu0 %v10534
    %11232 = vmatprep.subr.mxu0 %v10539
    %11233 = vmatpush1.msra.mxu0 %v10538
    %11234 = vmatprep.subr.mxu0 %v10543
    %11235 = vmatpush1.msra.mxu0 %v10542
    %11236 = vmatprep.subr.mxu0 %v10547
    %11237 = vmatpush1.msra.mxu0 %v10546
    %11238 = vmatprep.subr.mxu0 %v10551
    %11239 = vmatpush1.msra.mxu0 %v10550
    %11240 = vmatprep.subr.mxu0 %v10555
    %11241 = vmatpush1.msra.mxu0 %v10554
    %11242 = vmatprep.subr.mxu0 %v10559
    %11243 = vmatpush1.msra.mxu0 %v10558
    %11244 = vmatprep.mubr.f32.mxu0 %v10744
    %11245 = vmatmul.mubr.f32.gmra.mrb[0].mxu0 %v10736
    %v11246 = vpop.f32.mrb[0].mxu0
    %v11247 = vadd.f32 %v11176, %v11246
    %v11248 = vpop.f32.mrb[0].mxu0
    %v11249 = vadd.f32 %v11178, %v11248
    %11250 = vdwg.mxu0
    %11251 = vmatprep.subr.mxu0 %v10563
    %11252 = vmatpush1.msra.mxu0 %v10562
    %11253 = vmatprep.subr.mxu0 %v10567
    %11254 = vmatpush1.msra.mxu0 %v10566
    %11255 = vmatprep.subr.mxu0 %v10571
    %11256 = vmatpush1.msra.mxu0 %v10570
    %11257 = vmatprep.subr.mxu0 %v10575
    %11258 = vmatpush1.msra.mxu0 %v10574
    %11259 = vmatprep.subr.mxu0 %v10579
    %11260 = vmatpush1.msra.mxu0 %v10578
    %11261 = vmatprep.subr.mxu0 %v10583
    %11262 = vmatpush1.msra.mxu0 %v10582
    %11263 = vmatprep.subr.mxu0 %v10587
    %11264 = vmatpush1.msra.mxu0 %v10586
    %11265 = vmatprep.subr.mxu0 %v10591
    %11266 = vmatpush1.msra.mxu0 %v10590
    %11267 = vmatprep.subr.mxu0 %v10595
    %11268 = vmatpush1.msra.mxu0 %v10594
    %11269 = vmatprep.subr.mxu0 %v10599
    %11270 = vmatpush1.msra.mxu0 %v10598
    %11271 = vmatprep.subr.mxu0 %v10603
    %11272 = vmatpush1.msra.mxu0 %v10602
    %11273 = vmatprep.subr.mxu0 %v10607
    %11274 = vmatpush1.msra.mxu0 %v10606
    %11275 = vmatprep.subr.mxu0 %v10611
    %11276 = vmatpush1.msra.mxu0 %v10610
    %11277 = vmatprep.subr.mxu0 %v10615
    %11278 = vmatpush1.msra.mxu0 %v10614
    %11279 = vmatprep.subr.mxu0 %v10619
    %11280 = vmatpush1.msra.mxu0 %v10618
    %11281 = vmatprep.subr.mxu0 %v10623
    %11282 = vmatpush1.msra.mxu0 %v10622
    %11283 = vmatprep.subr.mxu0 %v10627
    %11284 = vmatpush1.msra.mxu0 %v10626
    %11285 = vmatprep.subr.mxu0 %v10631
    %11286 = vmatpush1.msra.mxu0 %v10630
    %11287 = vmatprep.subr.mxu0 %v10635
    %11288 = vmatpush1.msra.mxu0 %v10634
    %11289 = vmatprep.subr.mxu0 %v10639
    %11290 = vmatpush1.msra.mxu0 %v10638
    %11291 = vmatprep.subr.mxu0 %v10643
    %11292 = vmatpush1.msra.mxu0 %v10642
    %11293 = vmatprep.subr.mxu0 %v10647
    %11294 = vmatpush1.msra.mxu0 %v10646
    %11295 = vmatprep.subr.mxu0 %v10651
    %11296 = vmatpush1.msra.mxu0 %v10650
    %11297 = vmatprep.subr.mxu0 %v10655
    %11298 = vmatpush1.msra.mxu0 %v10654
    %11299 = vmatprep.subr.mxu0 %v10659
    %11300 = vmatpush1.msra.mxu0 %v10658
    %11301 = vmatprep.subr.mxu0 %v10663
    %11302 = vmatpush1.msra.mxu0 %v10662
    %11303 = vmatprep.subr.mxu0 %v10667
    %11304 = vmatpush1.msra.mxu0 %v10666
    %11305 = vmatprep.subr.mxu0 %v10671
    %11306 = vmatpush1.msra.mxu0 %v10670
    %11307 = vmatprep.subr.mxu0 %v10675
    %11308 = vmatpush1.msra.mxu0 %v10674
    %11309 = vmatprep.subr.mxu0 %v10679
    %11310 = vmatpush1.msra.mxu0 %v10678
    %11311 = vmatprep.subr.mxu0 %v10683
    %11312 = vmatpush1.msra.mxu0 %v10682
    %11313 = vmatprep.subr.mxu0 %v10687
    %11314 = vmatpush1.msra.mxu0 %v10686
    %11315 = vmatprep.mubr.f32.mxu0 %v10745
    %11316 = vmatmul.mubr.f32.gmra.mrb[0].mxu0 %v10743
    %v11317 = vpop.f32.mrb[0].mxu0
    %v11318 = vadd.f32 %v11247, %v11317
    %v11319 = vpop.f32.mrb[0].mxu0
    %v11320 = vadd.f32 %v11249, %v11319
    %11321 = vdwg.mxu0
    %v11322 = vmax.f32 %v11034, 0.0
    %v11323 = vmax.f32 %v11036, 0.0
    %v11324 = vmax.f32 %v11318, 0.0
    %v11325 = vmax.f32 %v11320, 0.0
    %v11326 = vld [vmem:[%s7] sm:$0xff]
    %v11327 = vld [vmem:[%s7 + $0x8] sm:$0xff]
    %v11328 = vld [vmem:[%s7 + $0x10] sm:$0xff]
    %v11329 = vld [vmem:[%s7 + $0x18] sm:$0xff]
    %v11330 = vld [vmem:[%s7 + $0x20] sm:$0xff]
    %v11331 = vld [vmem:[%s7 + $0x28] sm:$0xff]
    %v11332 = vld [vmem:[%s7 + $0x30] sm:$0xff]
    %v11333 = vld [vmem:[%s7 + $0x38] sm:$0xff]
    %v11334 = vld [vmem:[%s7 + $0x40] sm:$0xff]
    %v11335 = vld [vmem:[%s7 + $0x48] sm:$0xff]
    %v11336 = vld [vmem:[%s7 + $0x50] sm:$0xff]
    %v11337 = vld [vmem:[%s7 + $0x58] sm:$0xff]
    %v11338 = vld [vmem:[%s7 + $0x60] sm:$0xff]
    %v11339 = vld [vmem:[%s7 + $0x68] sm:$0xff]
    %v11340 = vld [vmem:[%s7 + $0x70] sm:$0xff]
    %v11341 = vld [vmem:[%s7 + $0x78] sm:$0xff]
    %v11342 = vld [vmem:[%s7 + $0x80] sm:$0xff]
    %v11343 = vld [vmem:[%s7 + $0x88] sm:$0xff]
    %v11344 = vld [vmem:[%s7 + $0x90] sm:$0xff]
    %v11345 = vld [vmem:[%s7 + $0x98] sm:$0xff]
    %v11346 = vld [vmem:[%s7 + $0xa0] sm:$0xff]
    %v11347 = vld [vmem:[%s7 + $0xa8] sm:$0xff]
    %v11348 = vld [vmem:[%s7 + $0xb0] sm:$0xff]
    %v11349 = vld [vmem:[%s7 + $0xb8] sm:$0xff]
    %v11350 = vld [vmem:[%s7 + $0xc0] sm:$0xff]
    %v11351 = vld [vmem:[%s7 + $0xc8] sm:$0xff]
    %v11352 = vld [vmem:[%s7 + $0xd0] sm:$0xff]
    %v11353 = vld [vmem:[%s7 + $0xd8] sm:$0xff]
    %v11354 = vld [vmem:[%s7 + $0xe0] sm:$0xff]
    %v11355 = vld [vmem:[%s7 + $0xe8] sm:$0xff]
    %v11356 = vld [vmem:[%s7 + $0xf0] sm:$0xff]
    %v11357 = vld [vmem:[%s7 + $0xf8] sm:$0xff]
    %v11358 = vld [vmem:[%s7 + $0x100] sm:$0xff]
    %v11359 = vld [vmem:[%s7 + $0x108] sm:$0xff]
    %v11360 = vld [vmem:[%s7 + $0x110] sm:$0xff]
    %v11361 = vld [vmem:[%s7 + $0x118] sm:$0xff]
    %v11362 = vld [vmem:[%s7 + $0x120] sm:$0xff]
    %v11363 = vld [vmem:[%s7 + $0x128] sm:$0xff]
    %v11364 = vld [vmem:[%s7 + $0x130] sm:$0xff]
    %v11365 = vld [vmem:[%s7 + $0x138] sm:$0xff]
    %v11366 = vld [vmem:[%s7 + $0x140] sm:$0xff]
    %v11367 = vld [vmem:[%s7 + $0x148] sm:$0xff]
    %v11368 = vld [vmem:[%s7 + $0x150] sm:$0xff]
    %v11369 = vld [vmem:[%s7 + $0x158] sm:$0xff]
    %v11370 = vld [vmem:[%s7 + $0x160] sm:$0xff]
    %v11371 = vld [vmem:[%s7 + $0x168] sm:$0xff]
    %v11372 = vld [vmem:[%s7 + $0x170] sm:$0xff]
    %v11373 = vld [vmem:[%s7 + $0x178] sm:$0xff]
    %v11374 = vld [vmem:[%s7 + $0x180] sm:$0xff]
    %v11375 = vld [vmem:[%s7 + $0x188] sm:$0xff]
    %v11376 = vld [vmem:[%s7 + $0x190] sm:$0xff]
    %v11377 = vld [vmem:[%s7 + $0x198] sm:$0xff]
    %v11378 = vld [vmem:[%s7 + $0x1a0] sm:$0xff]
    %v11379 = vld [vmem:[%s7 + $0x1a8] sm:$0xff]
    %v11380 = vld [vmem:[%s7 + $0x1b0] sm:$0xff]
    %v11381 = vld [vmem:[%s7 + $0x1b8] sm:$0xff]
    %v11382 = vld [vmem:[%s7 + $0x1c0] sm:$0xff]
    %v11383 = vld [vmem:[%s7 + $0x1c8] sm:$0xff]
    %v11384 = vld [vmem:[%s7 + $0x1d0] sm:$0xff]
    %v11385 = vld [vmem:[%s7 + $0x1d8] sm:$0xff]
    %v11386 = vld [vmem:[%s7 + $0x1e0] sm:$0xff]
    %v11387 = vld [vmem:[%s7 + $0x1e8] sm:$0xff]
    %v11388 = vld [vmem:[%s7 + $0x1f0] sm:$0xff]
    %v11389 = vld [vmem:[%s7 + $0x1f8] sm:$0xff]
    %v11390 = vld [vmem:[%s8] sm:$0x1]
    %v11392 = vlaneseq
    %v11393 = vshrl.u32 %v11392, 7
    %v11394 = vsub.s32 0, %v11393
    %v11395 = vrot.slane %v11390, %v11394
    %11397 = vmatprep.subr.mxu0 0.0
    %11398 = vmatpush1.msra.mxu0 %v11326
    %11399 = vmatprep.subr.mxu0 0.0
    %11400 = vmatpush1.msra.mxu0 %v11327
    %11401 = vmatprep.subr.mxu0 0.0
    %11402 = vmatpush1.msra.mxu0 %v11328
    %11403 = vmatprep.subr.mxu0 0.0
    %11404 = vmatpush1.msra.mxu0 %v11329
    %11405 = vmatprep.subr.mxu0 0.0
    %11406 = vmatpush1.msra.mxu0 %v11330
    %11407 = vmatprep.subr.mxu0 0.0
    %11408 = vmatpush1.msra.mxu0 %v11331
    %11409 = vmatprep.subr.mxu0 0.0
    %11410 = vmatpush1.msra.mxu0 %v11332
    %11411 = vmatprep.subr.mxu0 0.0
    %11412 = vmatpush1.msra.mxu0 %v11333
    %11413 = vmatprep.subr.mxu0 0.0
    %11414 = vmatpush1.msra.mxu0 %v11334
    %11415 = vmatprep.subr.mxu0 0.0
    %11416 = vmatpush1.msra.mxu0 %v11335
    %11417 = vmatprep.subr.mxu0 0.0
    %11418 = vmatpush1.msra.mxu0 %v11336
    %11419 = vmatprep.subr.mxu0 0.0
    %11420 = vmatpush1.msra.mxu0 %v11337
    %11421 = vmatprep.subr.mxu0 0.0
    %11422 = vmatpush1.msra.mxu0 %v11338
    %11423 = vmatprep.subr.mxu0 0.0
    %11424 = vmatpush1.msra.mxu0 %v11339
    %11425 = vmatprep.subr.mxu0 0.0
    %11426 = vmatpush1.msra.mxu0 %v11340
    %11427 = vmatprep.subr.mxu0 0.0
    %11428 = vmatpush1.msra.mxu0 %v11341
    %11429 = vmatprep.subr.mxu0 0.0
    %11430 = vmatpush1.msra.mxu0 %v11342
    %11431 = vmatprep.subr.mxu0 0.0
    %11432 = vmatpush1.msra.mxu0 %v11343
    %11433 = vmatprep.subr.mxu0 0.0
    %11434 = vmatpush1.msra.mxu0 %v11344
    %11435 = vmatprep.subr.mxu0 0.0
    %11436 = vmatpush1.msra.mxu0 %v11345
    %11437 = vmatprep.subr.mxu0 0.0
    %11438 = vmatpush1.msra.mxu0 %v11346
    %11439 = vmatprep.subr.mxu0 0.0
    %11440 = vmatpush1.msra.mxu0 %v11347
    %11441 = vmatprep.subr.mxu0 0.0
    %11442 = vmatpush1.msra.mxu0 %v11348
    %11443 = vmatprep.subr.mxu0 0.0
    %11444 = vmatpush1.msra.mxu0 %v11349
    %11445 = vmatprep.subr.mxu0 0.0
    %11446 = vmatpush1.msra.mxu0 %v11350
    %11447 = vmatprep.subr.mxu0 0.0
    %11448 = vmatpush1.msra.mxu0 %v11351
    %11449 = vmatprep.subr.mxu0 0.0
    %11450 = vmatpush1.msra.mxu0 %v11352
    %11451 = vmatprep.subr.mxu0 0.0
    %11452 = vmatpush1.msra.mxu0 %v11353
    %11453 = vmatprep.subr.mxu0 0.0
    %11454 = vmatpush1.msra.mxu0 %v11354
    %11455 = vmatprep.subr.mxu0 0.0
    %11456 = vmatpush1.msra.mxu0 %v11355
    %11457 = vmatprep.subr.mxu0 0.0
    %11458 = vmatpush1.msra.mxu0 %v11356
    %11459 = vmatprep.subr.mxu0 0.0
    %11460 = vmatpush1.msra.mxu0 %v11357
    %11461 = vmatprep.mubr.f32.mxu0 %v11323
    %11462 = vmatmul.mubr.f32.gmra.mrb[0].mxu0 %v11322
    %v11463 = vpop.f32.mrb[0].mxu0
    %v11464 = vadd.f32 %v11395, %v11463
    %v11465 = vpop.f32.mrb[0].mxu0
    %11466 = vdwg.mxu0
    %11467 = vmatprep.subr.mxu0 0.0
    %11468 = vmatpush1.msra.mxu0 %v11358
    %11469 = vmatprep.subr.mxu0 0.0
    %11470 = vmatpush1.msra.mxu0 %v11359
    %11471 = vmatprep.subr.mxu0 0.0
    %11472 = vmatpush1.msra.mxu0 %v11360
    %11473 = vmatprep.subr.mxu0 0.0
    %11474 = vmatpush1.msra.mxu0 %v11361
    %11475 = vmatprep.subr.mxu0 0.0
    %11476 = vmatpush1.msra.mxu0 %v11362
    %11477 = vmatprep.subr.mxu0 0.0
    %11478 = vmatpush1.msra.mxu0 %v11363
    %11479 = vmatprep.subr.mxu0 0.0
    %11480 = vmatpush1.msra.mxu0 %v11364
    %11481 = vmatprep.subr.mxu0 0.0
    %11482 = vmatpush1.msra.mxu0 %v11365
    %11483 = vmatprep.subr.mxu0 0.0
    %11484 = vmatpush1.msra.mxu0 %v11366
    %11485 = vmatprep.subr.mxu0 0.0
    %11486 = vmatpush1.msra.mxu0 %v11367
    %11487 = vmatprep.subr.mxu0 0.0
    %11488 = vmatpush1.msra.mxu0 %v11368
    %11489 = vmatprep.subr.mxu0 0.0
    %11490 = vmatpush1.msra.mxu0 %v11369
    %11491 = vmatprep.subr.mxu0 0.0
    %11492 = vmatpush1.msra.mxu0 %v11370
    %11493 = vmatprep.subr.mxu0 0.0
    %11494 = vmatpush1.msra.mxu0 %v11371
    %11495 = vmatprep.subr.mxu0 0.0
    %11496 = vmatpush1.msra.mxu0 %v11372
    %11497 = vmatprep.subr.mxu0 0.0
    %11498 = vmatpush1.msra.mxu0 %v11373
    %11499 = vmatprep.subr.mxu0 0.0
    %11500 = vmatpush1.msra.mxu0 %v11374
    %11501 = vmatprep.subr.mxu0 0.0
    %11502 = vmatpush1.msra.mxu0 %v11375
    %11503 = vmatprep.subr.mxu0 0.0
    %11504 = vmatpush1.msra.mxu0 %v11376
    %11505 = vmatprep.subr.mxu0 0.0
    %11506 = vmatpush1.msra.mxu0 %v11377
    %11507 = vmatprep.subr.mxu0 0.0
    %11508 = vmatpush1.msra.mxu0 %v11378
    %11509 = vmatprep.subr.mxu0 0.0
    %11510 = vmatpush1.msra.mxu0 %v11379
    %11511 = vmatprep.subr.mxu0 0.0
    %11512 = vmatpush1.msra.mxu0 %v11380
    %11513 = vmatprep.subr.mxu0 0.0
    %11514 = vmatpush1.msra.mxu0 %v11381
    %11515 = vmatprep.subr.mxu0 0.0
    %11516 = vmatpush1.msra.mxu0 %v11382
    %11517 = vmatprep.subr.mxu0 0.0
    %11518 = vmatpush1.msra.mxu0 %v11383
    %11519 = vmatprep.subr.mxu0 0.0
    %11520 = vmatpush1.msra.mxu0 %v11384
    %11521 = vmatprep.subr.mxu0 0.0
    %11522 = vmatpush1.msra.mxu0 %v11385
    %11523 = vmatprep.subr.mxu0 0.0
    %11524 = vmatpush1.msra.mxu0 %v11386
    %11525 = vmatprep.subr.mxu0 0.0
    %11526 = vmatpush1.msra.mxu0 %v11387
    %11527 = vmatprep.subr.mxu0 0.0
    %11528 = vmatpush1.msra.mxu0 %v11388
    %11529 = vmatprep.subr.mxu0 0.0
    %11530 = vmatpush1.msra.mxu0 %v11389
    %11531 = vmatprep.mubr.f32.mxu0 %v11325
    %11532 = vmatmul.mubr.f32.gmra.mrb[0].mxu0 %v11324
    %v11533 = vpop.f32.mrb[0].mxu0
    %v11534 = vadd.f32 %v11464, %v11533
    %v11535 = vpop.f32.mrb[0].mxu0
    %11536 = vdwg.mxu0
    %v11537 = vlaneseq
    %v11538 = vand.u32 %v11537, 127
    %vm11539 = vcmp.lt.s32.totalorder %v11538, 10
    %v11540 = vsel %vm11539, %v11534, -1e+30
    %vm11541 = vcmask 1041408
    %v11542 = vsel %vm11541, %v11540, -inf
    %11543 = vmax.xlane.f32.xlu0 %v11542
    %v11544 = vpop.xlane.xlu0 %11543
    %v11545 = vsub.f32 %v11534, %v11544
    %v11546 = vmul.f32 %v11545, 1.442695
    %v11547 = vpow.pop %v11546
    %v11548 = vsel %vm11539, %v11547, 0.0
    %v11549 = vsel %vm11541, %v11548, 0.0
    %11550 = vadd.xlane.f32.xlu0 %v11549
    %v11551 = vpop.xlane.xlu0 %11550
    %v11552 = vlog2.pop %v11551
    %v11553 = vmul.f32 %v11552, 0.6931472
    %v11554 = vsub.f32 %v11545, %v11553
    %v11555 = vsel %vm11539, %v11554, 0.0
    %11556 = vst [vmem:[#allocation5] sm:$0x3] %v11555
    // Predicated region
    $region38: #{net_forward.1} parent=1 // pred_check
      _
    $region39: #{net_forward.1} parent=1 // pred_check_branch
      %11558 = sbr.rel (0) target = $region41
    $region40: #{net_forward.1} parent=1 // pred_region
      %s11560 = ssub.s32 32, 32
      %11561 = vsyncadd [#allocation6], %s11560
      %s11563 = sshll.u32 [#allocation5], 4
      %s11564 = int_to_ptr.vmem [resolvable:$true] %s11563
      %11566 = dma.vmem_to_hbm [thread:$0]  %s11564, 32, %s9, [#allocation6]
    $region41: #{net_forward.1} parent=1 // pred_fallthru
      _
    // Predicated region
    $region42: #{net_forward.1} parent=1 // pred_check
      _
    $region43: #{net_forward.1} parent=1 // pred_check_branch
      %11568 = sbr.rel (0) target = $region45
    $region44: #{net_forward.1} parent=1 // pred_region
      %11569 = dma.done [#allocation6], 32
    $region45: #{net_forward.1} parent=1 // pred_fallthru
      _
    %11570 = vsyncpa [#allocation6], 1

</llo_original>
